<compile_context>
chip_gen: v6e
topology: v6e:2x2x1
jax: 0.10.0
libtpu: 0.0.40
codegen_flags: <defaults>
</compile_context>

<pallas_src>
import functools

import jax
import jax.numpy as jnp
import numpy as np
from jax import lax
from jax.experimental import pallas as pl
from jax.experimental.pallas import tpu as pltpu

_PREC_HI = lax.Precision.HIGHEST       # hoisted input projection / FC head
_FULL_UNROLL_MAX_T = 32                # wavefront-unrolled path for short T


@functools.lru_cache(maxsize=None)
def _recurrent_precision():
    """Use bf16_3x (Precision.HIGH) for the serial recurrent matmul when the
    Mosaic build supports it (≈half the MXU passes of HIGHEST); otherwise fall
    back to HIGHEST so the kernel always compiles and stays within 1e-4."""
    def _probe(a_ref, b_ref, o_ref):
        o_ref[...] = jnp.dot(a_ref[...], b_ref[...],
                             precision=lax.Precision.HIGH,
                             preferred_element_type=jnp.float32)
    try:
        vmem = pltpu.MemorySpace.VMEM
        out = pl.pallas_call(
            _probe,
            out_shape=jax.ShapeDtypeStruct((8, 128), jnp.float32),
            in_specs=[pl.BlockSpec(memory_space=vmem)] * 2,
            out_specs=pl.BlockSpec(memory_space=vmem),
        )(jnp.ones((8, 128), jnp.float32), jnp.ones((128, 128), jnp.float32))
        jax.block_until_ready(out)
        return lax.Precision.HIGH
    except Exception:                   # unsupported on this Mosaic build
        return lax.Precision.HIGHEST


# ----------------------------------------------------------------------------
# Wavefront-fused kernel (short sequences, fully unrolled, vreg-resident).
# ----------------------------------------------------------------------------
def _wavefront_kernel(num_layers, hidden_dim, seq_len, batch, input_dim,
                      out_dim, prec_rec,
                      x_ref, w_in_ref, b_in_ref, w_rec_ref, b_rec_ref,
                      w_fc_ref, b_fc_ref, out_ref):
    H, T, B, L = hidden_dim, seq_len, batch, num_layers
    G = 4 * H

    # Hoisted layer-0 input projection over ALL timesteps (bias folded in):
    # one lane-dense (B*T, D) x (D, 4H) matmul instead of T tiny ones.
    x2d = x_ref[...].astype(jnp.float32).reshape(B * T, input_dim)
    gin0 = (jnp.dot(x2d, w_in_ref[...], precision=_PREC_HI,
                    preferred_element_type=jnp.float32)
            + b_in_ref[...]).reshape(B, T, G)

    w_rec = w_rec_ref[...]              # (L*H, L*4H) fused recurrent weights
    b_rec = b_rec_ref[...]              # (1, L*4H)   biases for layers >= 1

    h = [jnp.zeros((B, H), jnp.float32) for _ in range(L)]
    c = [jnp.zeros((B, H), jnp.float32) for _ in range(L)]
    top_h = []                          # top-layer hidden states, time order

    # Wavefront step s advances layer l to time t = s - l (if 0 <= t < T).
    # One fused MXU matmul per step feeds every active layer's gates; the
    # serial chain is T + L - 1 steps instead of T * L.
    for s in range(T + L - 1):          # fully unrolled: static slices only
        if s == 0:
            rec = b_rec                 # all hidden states are still zero
        else:
            lhs = h[0] if L == 1 else jnp.concatenate(h, axis=1)   # (B, L*H)
            rec = jnp.dot(lhs, w_rec, precision=prec_rec,
                          preferred_element_type=jnp.float32) + b_rec
        for l in range(L):
            t = s - l
            if t < 0 or t >= T:         # layer inactive at this wavefront step
                continue
            gates = rec[:, l * G:(l + 1) * G]
            if l == 0:
                gates = gates + gin0[:, t, :]       # includes layer-0 bias
            # Two full-width transcendentals instead of four narrow ones:
            # PyTorch gate order is i | f | g | o.
            sig = jax.nn.sigmoid(gates)
            tnh = jnp.tanh(gates)
            c_new = sig[:, H:2 * H] * c[l] + sig[:, 0:H] * tnh[:, 2 * H:3 * H]
            h_new = sig[:, 3 * H:4 * H] * jnp.tanh(c_new)
            c[l] = c_new
            h[l] = h_new
            if l == L - 1:
                top_h.append(h_new)

    # FC head over the whole top-layer sequence: one matmul, one dense store,
    # written directly in batch-first (B, T, out) layout.
    h_top = jnp.stack(top_h, axis=1).reshape(B * T, H)
    y = jnp.dot(h_top, w_fc_ref[...], precision=_PREC_HI,
                preferred_element_type=jnp.float32) + b_fc_ref[...]
    out_ref[...] = y.reshape(B, T, out_dim).astype(out_ref.dtype)


# ----------------------------------------------------------------------------
# Long-sequence fallback: per-layer hoisted projection + fori_loop recurrence
# with VMEM scratch (gate inputs / h-sequence too large to live in vregs).
# ----------------------------------------------------------------------------
def _layerwise_kernel(num_layers, hidden_dim, seq_len, batch, input_dim,
                      out_dim, prec_rec, *refs):
    x_ref = refs[0]
    layer_refs = refs[1:1 + 3 * num_layers]
    w_fc_ref = refs[1 + 3 * num_layers]
    b_fc_ref = refs[2 + 3 * num_layers]
    out_ref = refs[3 + 3 * num_layers]
    gin_scr = refs[4 + 3 * num_layers]     # (T*B, 4H) hoisted gate inputs
    hseq_scr = refs[5 + 3 * num_layers]    # (T*B, H)  current layer h sequence

    H, T, B = hidden_dim, seq_len, batch

    # Time-major flatten inside the kernel (row t*B + b) — no wrapper XLA op.
    prev_seq = jnp.transpose(x_ref[...].astype(jnp.float32),
                             (1, 0, 2)).reshape(T * B, input_dim)

    for l in range(num_layers):
        w_x = layer_refs[3 * l][...]        # (D_prev, 4H)
        w_h = layer_refs[3 * l + 1][...]    # (H, 4H)
        b = layer_refs[3 * l + 2][...]      # (1, 4H)

        gin_scr[...] = jnp.dot(prev_seq, w_x, precision=_PREC_HI,
                               preferred_element_type=jnp.float32) + b

        def step(t, carry):
            h_prev, c_prev = carry
            rows = pl.ds(t * B, B)
            gates = gin_scr[rows, :] + jnp.dot(
                h_prev, w_h, precision=prec_rec,
                preferred_element_type=jnp.float32)
            sig = jax.nn.sigmoid(gates)
            tnh = jnp.tanh(gates)
            c_new = sig[:, H:2 * H] * c_prev + sig[:, 0:H] * tnh[:, 2 * H:3 * H]
            h_new = sig[:, 3 * H:4 * H] * jnp.tanh(c_new)
            hseq_scr[rows, :] = h_new
            return h_new, c_new

        carry = (jnp.zeros((B, H), jnp.float32),
                 jnp.zeros((B, H), jnp.float32))
        carry = lax.fori_loop(0, T, step, carry)
        prev_seq = hseq_scr[...]

    y = jnp.dot(prev_seq, w_fc_ref[...], precision=_PREC_HI,
                preferred_element_type=jnp.float32) + b_fc_ref[...]
    out_ref[...] = jnp.transpose(y.reshape(T, B, out_dim),
                                 (1, 0, 2)).astype(out_ref.dtype)


# ----------------------------------------------------------------------------
# Load-time parameter repack (transposes + fused wavefront matrix) — done ONCE.
# ----------------------------------------------------------------------------
def prepare_params(params, *, hidden_dim, num_layers):
    H, L = hidden_dim, num_layers
    G = 4 * H
    prepared = {
        "w_in": jnp.transpose(params["w_ih_0"]),     # (D, 4H)
        "b_in": params["b_0"],                       # (1, 4H) = b_ih0 + b_hh0
        "w_fc": jnp.transpose(params["w_fc"]),       # (H, out_dim)
        "b_fc": params["b_fc"],                      # (1, out_dim)
    }
    # Fused recurrent/inter-layer matrix: rows for h_r carry W_hh_r^T into the
    # layer-r gate columns and W_ih_{r+1}^T into the layer-(r+1) gate columns.
    rows = []
    for r in range(L):
        blocks = []
        for cl in range(L):
            if cl == r:
                blocks.append(jnp.transpose(params[f"w_hh_{r}"]))
            elif cl == r + 1:
                blocks.append(jnp.transpose(params[f"w_ih_{r + 1}"]))
            else:
                blocks.append(jnp.zeros((H, G), jnp.float32))
        rows.append(jnp.concatenate(blocks, axis=1))
    prepared["w_rec"] = jnp.concatenate(rows, axis=0)            # (L*H, L*4H)
    prepared["b_rec"] = jnp.concatenate(
        [jnp.zeros((1, G), jnp.float32)]
        + [params[f"b_{l}"] for l in range(1, L)], axis=1)       # (1, L*4H)
    # Per-layer transposed weights for the long-sequence fallback path.
    for l in range(L):
        prepared[f"w_ih_{l}"] = jnp.transpose(params[f"w_ih_{l}"])
        prepared[f"w_hh_{l}"] = jnp.transpose(params[f"w_hh_{l}"])
        prepared[f"b_{l}"] = params[f"b_{l}"]
    return prepared


# ----------------------------------------------------------------------------
# Forward wrapper: a single pallas_call, no surrounding XLA ops.
# ----------------------------------------------------------------------------
def personal_vad_et_forward(x, prepared, *, hidden_dim, num_layers, out_dim):
    """x: (B, T, input_dim) float32, batch_first.  Returns (B, T, out_dim)."""
    B, T, D = x.shape
    H, L, G = hidden_dim, num_layers, 4 * hidden_dim
    vmem = pltpu.MemorySpace.VMEM
    prec_rec = _recurrent_precision()

    cost = pl.CostEstimate(
        flops=int(2 * (B * T * D * G
                       + (T + L - 1) * B * (L * H) * (L * G)
                       + B * T * H * out_dim)),
        transcendentals=int(T * L * B * (2 * G + H)),
        bytes_accessed=int(4 * (B * T * D + D * G + G + (L * H) * (L * G)
                                + L * G + H * out_dim + out_dim
                                + B * T * out_dim)))
    out_shape = jax.ShapeDtypeStruct((B, T, out_dim), jnp.float32)

    if T <= _FULL_UNROLL_MAX_T:
        kernel = functools.partial(_wavefront_kernel, L, H, T, B, D, out_dim,
                                   prec_rec)
        args = (x, prepared["w_in"], prepared["b_in"], prepared["w_rec"],
                prepared["b_rec"], prepared["w_fc"], prepared["b_fc"])
        return pl.pallas_call(
            kernel,
            out_shape=out_shape,
            in_specs=[pl.BlockSpec(memory_space=vmem)] * len(args),
            out_specs=pl.BlockSpec(memory_space=vmem),
            cost_estimate=cost,
        )(*args)

    # Long-sequence fallback (scratch + fori_loop).
    kernel = functools.partial(_layerwise_kernel, L, H, T, B, D, out_dim,
                               prec_rec)
    args = [x]
    for l in range(L):
        args += [prepared[f"w_ih_{l}"], prepared[f"w_hh_{l}"], prepared[f"b_{l}"]]
    args += [prepared["w_fc"], prepared["b_fc"]]
    return pl.pallas_call(
        kernel,
        out_shape=out_shape,
        in_specs=[pl.BlockSpec(memory_space=vmem)] * len(args),
        out_specs=pl.BlockSpec(memory_space=vmem),
        scratch_shapes=[pltpu.VMEM((T * B, G), jnp.float32),
                        pltpu.VMEM((T * B, H), jnp.float32)],
        cost_estimate=cost,
    )(*args)


# ----------------------------------------------------------------------------
# Deterministic init (PyTorch default U(-1/sqrt(H), 1/sqrt(H))) and reference.
# ----------------------------------------------------------------------------
def init_params(key, input_dim, hidden_dim, num_layers, out_dim):
    params = {}
    k = 1.0 / float(np.sqrt(hidden_dim))
    keys = jax.random.split(key, 4 * num_layers + 2)
    idx = 0
    for l in range(num_layers):
        d_in = input_dim if l == 0 else hidden_dim
        params[f"w_ih_{l}"] = jax.random.uniform(
            keys[idx], (4 * hidden_dim, d_in), jnp.float32, -k, k); idx += 1
        params[f"w_hh_{l}"] = jax.random.uniform(
            keys[idx], (4 * hidden_dim, hidden_dim), jnp.float32, -k, k); idx += 1
        b_ih = jax.random.uniform(
            keys[idx], (4 * hidden_dim,), jnp.float32, -k, k); idx += 1
        b_hh = jax.random.uniform(
            keys[idx], (4 * hidden_dim,), jnp.float32, -k, k); idx += 1
        params[f"b_{l}"] = (b_ih + b_hh)[None, :]     # combined bias (1, 4H)
    params["w_fc"] = jax.random.uniform(
        keys[idx], (out_dim, hidden_dim), jnp.float32, -k, k); idx += 1
    params["b_fc"] = jax.random.uniform(
        keys[idx], (out_dim,), jnp.float32, -k, k)[None, :]
    return params


def reference_forward(x, params, *, hidden_dim, num_layers):
    """Pure-JAX reference of the same LSTM+FC math (for the sanity check)."""
    B, T, _ = x.shape
    H = hidden_dim
    h = [jnp.zeros((B, H), jnp.float32) for _ in range(num_layers)]
    c = [jnp.zeros((B, H), jnp.float32) for _ in range(num_layers)]
    outs = []
    for t in range(T):
        inp = x[:, t, :]
        for l in range(num_layers):
            gates = (jnp.dot(inp, params[f"w_ih_{l}"].T, precision=_PREC_HI)
                     + jnp.dot(h[l], params[f"w_hh_{l}"].T, precision=_PREC_HI)
                     + params[f"b_{l}"])
            i = jax.nn.sigmoid(gates[:, :H])
            f = jax.nn.sigmoid(gates[:, H:2 * H])
            g = jnp.tanh(gates[:, 2 * H:3 * H])
            o = jax.nn.sigmoid(gates[:, 3 * H:])
            c[l] = f * c[l] + i * g
            h[l] = o * jnp.tanh(c[l])
            inp = h[l]
        outs.append(jnp.dot(inp, params["w_fc"].T, precision=_PREC_HI)
                    + params["b_fc"])
    return jnp.stack(outs, axis=1)


if __name__ == "__main__":
    B, T = 2, 8
    INPUT_DIM, HIDDEN_DIM, NUM_LAYERS, OUT_DIM = 40, 32, 2, 3

    key = jax.random.PRNGKey(0)
    k_param, k_x = jax.random.split(key)
    raw_params = init_params(k_param, INPUT_DIM, HIDDEN_DIM, NUM_LAYERS, OUT_DIM)
    x = jax.random.normal(k_x, (B, T, INPUT_DIM), jnp.float32)

    # One-time (model-load) weight repack: transposes + fused wavefront matrix.
    params = prepare_params(raw_params, hidden_dim=HIDDEN_DIM,
                            num_layers=NUM_LAYERS)

    out = personal_vad_et_forward(x, params, hidden_dim=HIDDEN_DIM,
                                  num_layers=NUM_LAYERS, out_dim=OUT_DIM)
    out = jax.block_until_ready(out)

    ref = reference_forward(x, raw_params, hidden_dim=HIDDEN_DIM,
                            num_layers=NUM_LAYERS)
    assert out.shape == (B, T, OUT_DIM)
    np.testing.assert_allclose(np.asarray(out), np.asarray(ref),
                               rtol=1e-4, atol=1e-4)
    print("KERNEL_OK")
</pallas_src>

<mosaic_0001>
module attributes {stable_mosaic.version = 11 : i64} {
  func.func @_wavefront_kernel(%arg0: memref<2x8x40xf32, #tpu.memory_space<vmem>>, %arg1: memref<40x128xf32, #tpu.memory_space<vmem>>, %arg2: memref<1x128xf32, #tpu.memory_space<vmem>>, %arg3: memref<64x256xf32, #tpu.memory_space<vmem>>, %arg4: memref<1x256xf32, #tpu.memory_space<vmem>>, %arg5: memref<32x3xf32, #tpu.memory_space<vmem>>, %arg6: memref<1x3xf32, #tpu.memory_space<vmem>>, %arg7: memref<2x8x3xf32, #tpu.memory_space<vmem>>) attributes {dimension_semantics = [], scalar_prefetch = 0 : i64, scratch_operands = 0 : i64, tpu.core_type = #tpu.core_type<tc>} {
    %c0 = arith.constant 0 : index
    %c0_0 = arith.constant 0 : index
    %c0_1 = arith.constant 0 : index
    %0 = vector.load %arg0[%c0, %c0_0, %c0_1] : memref<2x8x40xf32, #tpu.memory_space<vmem>>, vector<2x8x40xf32>
    %1 = vector.shape_cast %0 : vector<2x8x40xf32> to vector<16x40xf32>
    %c0_2 = arith.constant 0 : index
    %c0_3 = arith.constant 0 : index
    %2 = vector.load %arg1[%c0_2, %c0_3] : memref<40x128xf32, #tpu.memory_space<vmem>>, vector<40x128xf32>
    %cst = arith.constant dense<0.000000e+00> : vector<16x128xf32>
    %3 = tpu.matmul %1, %2, %cst {dimension_numbers = #tpu.dot_dimension_numbers<[1], [0], [0], [1], [0, 0, 1, 1], [], []>, precision = #tpu.contract_precision<fp32>} : vector<16x40xf32>, vector<40x128xf32>, vector<16x128xf32> -> vector<16x128xf32>
    %c0_4 = arith.constant 0 : index
    %c0_5 = arith.constant 0 : index
    %4 = vector.load %arg2[%c0_4, %c0_5] : memref<1x128xf32, #tpu.memory_space<vmem>>, vector<1x128xf32>
    %5 = vector.broadcast %4 : vector<1x128xf32> to vector<16x128xf32>
    %6 = arith.addf %3, %5 : vector<16x128xf32>
    %7 = vector.shape_cast %6 : vector<16x128xf32> to vector<2x8x128xf32>
    %c0_6 = arith.constant 0 : index
    %c0_7 = arith.constant 0 : index
    %8 = vector.load %arg3[%c0_6, %c0_7] : memref<64x256xf32, #tpu.memory_space<vmem>>, vector<64x256xf32>
    %c0_8 = arith.constant 0 : index
    %c0_9 = arith.constant 0 : index
    %9 = vector.load %arg4[%c0_8, %c0_9] : memref<1x256xf32, #tpu.memory_space<vmem>>, vector<1x256xf32>
    %cst_10 = arith.constant 0.000000e+00 : f32
    %10 = vector.broadcast %cst_10 : f32 to vector<2x32xf32>
    %cst_11 = arith.constant 0.000000e+00 : f32
    %11 = vector.broadcast %cst_11 : f32 to vector<2x32xf32>
    %cst_12 = arith.constant 0.000000e+00 : f32
    %12 = vector.broadcast %cst_12 : f32 to vector<2x32xf32>
    %13 = vector.extract_strided_slice %9 {offsets = [0, 0], sizes = [1, 128], strides = [1, 1]} : vector<1x256xf32> to vector<1x128xf32>
    %14 = vector.extract_strided_slice %7 {offsets = [0, 0, 0], sizes = [2, 1, 128], strides = [1, 1, 1]} : vector<2x8x128xf32> to vector<2x1x128xf32>
    %15 = vector.shape_cast %14 : vector<2x1x128xf32> to vector<2x128xf32>
    %16 = vector.broadcast %13 : vector<1x128xf32> to vector<2x128xf32>
    %17 = arith.addf %16, %15 : vector<2x128xf32>
    %18 = arith.negf %17 : vector<2x128xf32>
    %19 = math.exp %18 : vector<2x128xf32>
    %cst_13 = arith.constant 1.000000e+00 : f32
    %20 = vector.broadcast %cst_13 : f32 to vector<2x128xf32>
    %21 = arith.addf %20, %19 : vector<2x128xf32>
    %22 = arith.divf %20, %21 : vector<2x128xf32>
    %23 = math.tanh %17 : vector<2x128xf32>
    %24 = vector.extract_strided_slice %22 {offsets = [0, 32], sizes = [2, 32], strides = [1, 1]} : vector<2x128xf32> to vector<2x32xf32>
    %25 = arith.mulf %24, %11 : vector<2x32xf32>
    %26 = vector.extract_strided_slice %22 {offsets = [0, 0], sizes = [2, 32], strides = [1, 1]} : vector<2x128xf32> to vector<2x32xf32>
    %27 = vector.extract_strided_slice %23 {offsets = [0, 64], sizes = [2, 32], strides = [1, 1]} : vector<2x128xf32> to vector<2x32xf32>
    %28 = arith.mulf %26, %27 : vector<2x32xf32>
    %29 = arith.addf %25, %28 : vector<2x32xf32>
    %30 = vector.extract_strided_slice %22 {offsets = [0, 96], sizes = [2, 32], strides = [1, 1]} : vector<2x128xf32> to vector<2x32xf32>
    %31 = math.tanh %29 : vector<2x32xf32>
    %32 = arith.mulf %30, %31 : vector<2x32xf32>
    %33 = tpu.concatenate %32, %10 in 1 : vector<2x32xf32>, vector<2x32xf32> -> vector<2x64xf32>
    %cst_14 = arith.constant dense<0.000000e+00> : vector<2x256xf32>
    %34 = tpu.matmul %33, %8, %cst_14 {dimension_numbers = #tpu.dot_dimension_numbers<[1], [0], [0], [1], [0, 0, 1, 1], [], []>, precision = #tpu.contract_precision<fp32>} : vector<2x64xf32>, vector<64x256xf32>, vector<2x256xf32> -> vector<2x256xf32>
    %35 = vector.broadcast %9 : vector<1x256xf32> to vector<2x256xf32>
    %36 = arith.addf %34, %35 : vector<2x256xf32>
    %37 = vector.extract_strided_slice %36 {offsets = [0, 0], sizes = [2, 128], strides = [1, 1]} : vector<2x256xf32> to vector<2x128xf32>
    %38 = vector.extract_strided_slice %7 {offsets = [0, 1, 0], sizes = [2, 1, 128], strides = [1, 1, 1]} : vector<2x8x128xf32> to vector<2x1x128xf32>
    %39 = vector.shape_cast %38 : vector<2x1x128xf32> to vector<2x128xf32>
    %40 = arith.addf %37, %39 : vector<2x128xf32>
    %41 = arith.negf %40 : vector<2x128xf32>
    %42 = math.exp %41 : vector<2x128xf32>
    %cst_15 = arith.constant 1.000000e+00 : f32
    %43 = vector.broadcast %cst_15 : f32 to vector<2x128xf32>
    %44 = arith.addf %43, %42 : vector<2x128xf32>
    %45 = arith.divf %43, %44 : vector<2x128xf32>
    %46 = math.tanh %40 : vector<2x128xf32>
    %47 = vector.extract_strided_slice %45 {offsets = [0, 32], sizes = [2, 32], strides = [1, 1]} : vector<2x128xf32> to vector<2x32xf32>
    %48 = arith.mulf %47, %29 : vector<2x32xf32>
    %49 = vector.extract_strided_slice %45 {offsets = [0, 0], sizes = [2, 32], strides = [1, 1]} : vector<2x128xf32> to vector<2x32xf32>
    %50 = vector.extract_strided_slice %46 {offsets = [0, 64], sizes = [2, 32], strides = [1, 1]} : vector<2x128xf32> to vector<2x32xf32>
    %51 = arith.mulf %49, %50 : vector<2x32xf32>
    %52 = arith.addf %48, %51 : vector<2x32xf32>
    %53 = vector.extract_strided_slice %45 {offsets = [0, 96], sizes = [2, 32], strides = [1, 1]} : vector<2x128xf32> to vector<2x32xf32>
    %54 = math.tanh %52 : vector<2x32xf32>
    %55 = arith.mulf %53, %54 : vector<2x32xf32>
    %56 = vector.extract_strided_slice %36 {offsets = [0, 128], sizes = [2, 128], strides = [1, 1]} : vector<2x256xf32> to vector<2x128xf32>
    %57 = arith.negf %56 : vector<2x128xf32>
    %58 = math.exp %57 : vector<2x128xf32>
    %cst_16 = arith.constant 1.000000e+00 : f32
    %59 = vector.broadcast %cst_16 : f32 to vector<2x128xf32>
    %60 = arith.addf %59, %58 : vector<2x128xf32>
    %61 = arith.divf %59, %60 : vector<2x128xf32>
    %62 = math.tanh %56 : vector<2x128xf32>
    %63 = vector.extract_strided_slice %61 {offsets = [0, 32], sizes = [2, 32], strides = [1, 1]} : vector<2x128xf32> to vector<2x32xf32>
    %64 = arith.mulf %63, %12 : vector<2x32xf32>
    %65 = vector.extract_strided_slice %61 {offsets = [0, 0], sizes = [2, 32], strides = [1, 1]} : vector<2x128xf32> to vector<2x32xf32>
    %66 = vector.extract_strided_slice %62 {offsets = [0, 64], sizes = [2, 32], strides = [1, 1]} : vector<2x128xf32> to vector<2x32xf32>
    %67 = arith.mulf %65, %66 : vector<2x32xf32>
    %68 = arith.addf %64, %67 : vector<2x32xf32>
    %69 = vector.extract_strided_slice %61 {offsets = [0, 96], sizes = [2, 32], strides = [1, 1]} : vector<2x128xf32> to vector<2x32xf32>
    %70 = math.tanh %68 : vector<2x32xf32>
    %71 = arith.mulf %69, %70 : vector<2x32xf32>
    %72 = tpu.concatenate %55, %71 in 1 : vector<2x32xf32>, vector<2x32xf32> -> vector<2x64xf32>
    %cst_17 = arith.constant dense<0.000000e+00> : vector<2x256xf32>
    %73 = tpu.matmul %72, %8, %cst_17 {dimension_numbers = #tpu.dot_dimension_numbers<[1], [0], [0], [1], [0, 0, 1, 1], [], []>, precision = #tpu.contract_precision<fp32>} : vector<2x64xf32>, vector<64x256xf32>, vector<2x256xf32> -> vector<2x256xf32>
    %74 = vector.broadcast %9 : vector<1x256xf32> to vector<2x256xf32>
    %75 = arith.addf %73, %74 : vector<2x256xf32>
    %76 = vector.extract_strided_slice %75 {offsets = [0, 0], sizes = [2, 128], strides = [1, 1]} : vector<2x256xf32> to vector<2x128xf32>
    %77 = vector.extract_strided_slice %7 {offsets = [0, 2, 0], sizes = [2, 1, 128], strides = [1, 1, 1]} : vector<2x8x128xf32> to vector<2x1x128xf32>
    %78 = vector.shape_cast %77 : vector<2x1x128xf32> to vector<2x128xf32>
    %79 = arith.addf %76, %78 : vector<2x128xf32>
    %80 = arith.negf %79 : vector<2x128xf32>
    %81 = math.exp %80 : vector<2x128xf32>
    %cst_18 = arith.constant 1.000000e+00 : f32
    %82 = vector.broadcast %cst_18 : f32 to vector<2x128xf32>
    %83 = arith.addf %82, %81 : vector<2x128xf32>
    %84 = arith.divf %82, %83 : vector<2x128xf32>
    %85 = math.tanh %79 : vector<2x128xf32>
    %86 = vector.extract_strided_slice %84 {offsets = [0, 32], sizes = [2, 32], strides = [1, 1]} : vector<2x128xf32> to vector<2x32xf32>
    %87 = arith.mulf %86, %52 : vector<2x32xf32>
    %88 = vector.extract_strided_slice %84 {offsets = [0, 0], sizes = [2, 32], strides = [1, 1]} : vector<2x128xf32> to vector<2x32xf32>
    %89 = vector.extract_strided_slice %85 {offsets = [0, 64], sizes = [2, 32], strides = [1, 1]} : vector<2x128xf32> to vector<2x32xf32>
    %90 = arith.mulf %88, %89 : vector<2x32xf32>
    %91 = arith.addf %87, %90 : vector<2x32xf32>
    %92 = vector.extract_strided_slice %84 {offsets = [0, 96], sizes = [2, 32], strides = [1, 1]} : vector<2x128xf32> to vector<2x32xf32>
    %93 = math.tanh %91 : vector<2x32xf32>
    %94 = arith.mulf %92, %93 : vector<2x32xf32>
    %95 = vector.extract_strided_slice %75 {offsets = [0, 128], sizes = [2, 128], strides = [1, 1]} : vector<2x256xf32> to vector<2x128xf32>
    %96 = arith.negf %95 : vector<2x128xf32>
    %97 = math.exp %96 : vector<2x128xf32>
    %cst_19 = arith.constant 1.000000e+00 : f32
    %98 = vector.broadcast %cst_19 : f32 to vector<2x128xf32>
    %99 = arith.addf %98, %97 : vector<2x128xf32>
    %100 = arith.divf %98, %99 : vector<2x128xf32>
    %101 = math.tanh %95 : vector<2x128xf32>
    %102 = vector.extract_strided_slice %100 {offsets = [0, 32], sizes = [2, 32], strides = [1, 1]} : vector<2x128xf32> to vector<2x32xf32>
    %103 = arith.mulf %102, %68 : vector<2x32xf32>
    %104 = vector.extract_strided_slice %100 {offsets = [0, 0], sizes = [2, 32], strides = [1, 1]} : vector<2x128xf32> to vector<2x32xf32>
    %105 = vector.extract_strided_slice %101 {offsets = [0, 64], sizes = [2, 32], strides = [1, 1]} : vector<2x128xf32> to vector<2x32xf32>
    %106 = arith.mulf %104, %105 : vector<2x32xf32>
    %107 = arith.addf %103, %106 : vector<2x32xf32>
    %108 = vector.extract_strided_slice %100 {offsets = [0, 96], sizes = [2, 32], strides = [1, 1]} : vector<2x128xf32> to vector<2x32xf32>
    %109 = math.tanh %107 : vector<2x32xf32>
    %110 = arith.mulf %108, %109 : vector<2x32xf32>
    %111 = tpu.concatenate %94, %110 in 1 : vector<2x32xf32>, vector<2x32xf32> -> vector<2x64xf32>
    %cst_20 = arith.constant dense<0.000000e+00> : vector<2x256xf32>
    %112 = tpu.matmul %111, %8, %cst_20 {dimension_numbers = #tpu.dot_dimension_numbers<[1], [0], [0], [1], [0, 0, 1, 1], [], []>, precision = #tpu.contract_precision<fp32>} : vector<2x64xf32>, vector<64x256xf32>, vector<2x256xf32> -> vector<2x256xf32>
    %113 = vector.broadcast %9 : vector<1x256xf32> to vector<2x256xf32>
    %114 = arith.addf %112, %113 : vector<2x256xf32>
    %115 = vector.extract_strided_slice %114 {offsets = [0, 0], sizes = [2, 128], strides = [1, 1]} : vector<2x256xf32> to vector<2x128xf32>
    %116 = vector.extract_strided_slice %7 {offsets = [0, 3, 0], sizes = [2, 1, 128], strides = [1, 1, 1]} : vector<2x8x128xf32> to vector<2x1x128xf32>
    %117 = vector.shape_cast %116 : vector<2x1x128xf32> to vector<2x128xf32>
    %118 = arith.addf %115, %117 : vector<2x128xf32>
    %119 = arith.negf %118 : vector<2x128xf32>
    %120 = math.exp %119 : vector<2x128xf32>
    %cst_21 = arith.constant 1.000000e+00 : f32
    %121 = vector.broadcast %cst_21 : f32 to vector<2x128xf32>
    %122 = arith.addf %121, %120 : vector<2x128xf32>
    %123 = arith.divf %121, %122 : vector<2x128xf32>
    %124 = math.tanh %118 : vector<2x128xf32>
    %125 = vector.extract_strided_slice %123 {offsets = [0, 32], sizes = [2, 32], strides = [1, 1]} : vector<2x128xf32> to vector<2x32xf32>
    %126 = arith.mulf %125, %91 : vector<2x32xf32>
    %127 = vector.extract_strided_slice %123 {offsets = [0, 0], sizes = [2, 32], strides = [1, 1]} : vector<2x128xf32> to vector<2x32xf32>
    %128 = vector.extract_strided_slice %124 {offsets = [0, 64], sizes = [2, 32], strides = [1, 1]} : vector<2x128xf32> to vector<2x32xf32>
    %129 = arith.mulf %127, %128 : vector<2x32xf32>
    %130 = arith.addf %126, %129 : vector<2x32xf32>
    %131 = vector.extract_strided_slice %123 {offsets = [0, 96], sizes = [2, 32], strides = [1, 1]} : vector<2x128xf32> to vector<2x32xf32>
    %132 = math.tanh %130 : vector<2x32xf32>
    %133 = arith.mulf %131, %132 : vector<2x32xf32>
    %134 = vector.extract_strided_slice %114 {offsets = [0, 128], sizes = [2, 128], strides = [1, 1]} : vector<2x256xf32> to vector<2x128xf32>
    %135 = arith.negf %134 : vector<2x128xf32>
    %136 = math.exp %135 : vector<2x128xf32>
    %cst_22 = arith.constant 1.000000e+00 : f32
    %137 = vector.broadcast %cst_22 : f32 to vector<2x128xf32>
    %138 = arith.addf %137, %136 : vector<2x128xf32>
    %139 = arith.divf %137, %138 : vector<2x128xf32>
    %140 = math.tanh %134 : vector<2x128xf32>
    %141 = vector.extract_strided_slice %139 {offsets = [0, 32], sizes = [2, 32], strides = [1, 1]} : vector<2x128xf32> to vector<2x32xf32>
    %142 = arith.mulf %141, %107 : vector<2x32xf32>
    %143 = vector.extract_strided_slice %139 {offsets = [0, 0], sizes = [2, 32], strides = [1, 1]} : vector<2x128xf32> to vector<2x32xf32>
    %144 = vector.extract_strided_slice %140 {offsets = [0, 64], sizes = [2, 32], strides = [1, 1]} : vector<2x128xf32> to vector<2x32xf32>
    %145 = arith.mulf %143, %144 : vector<2x32xf32>
    %146 = arith.addf %142, %145 : vector<2x32xf32>
    %147 = vector.extract_strided_slice %139 {offsets = [0, 96], sizes = [2, 32], strides = [1, 1]} : vector<2x128xf32> to vector<2x32xf32>
    %148 = math.tanh %146 : vector<2x32xf32>
    %149 = arith.mulf %147, %148 : vector<2x32xf32>
    %150 = tpu.concatenate %133, %149 in 1 : vector<2x32xf32>, vector<2x32xf32> -> vector<2x64xf32>
    %cst_23 = arith.constant dense<0.000000e+00> : vector<2x256xf32>
    %151 = tpu.matmul %150, %8, %cst_23 {dimension_numbers = #tpu.dot_dimension_numbers<[1], [0], [0], [1], [0, 0, 1, 1], [], []>, precision = #tpu.contract_precision<fp32>} : vector<2x64xf32>, vector<64x256xf32>, vector<2x256xf32> -> vector<2x256xf32>
    %152 = vector.broadcast %9 : vector<1x256xf32> to vector<2x256xf32>
    %153 = arith.addf %151, %152 : vector<2x256xf32>
    %154 = vector.extract_strided_slice %153 {offsets = [0, 0], sizes = [2, 128], strides = [1, 1]} : vector<2x256xf32> to vector<2x128xf32>
    %155 = vector.extract_strided_slice %7 {offsets = [0, 4, 0], sizes = [2, 1, 128], strides = [1, 1, 1]} : vector<2x8x128xf32> to vector<2x1x128xf32>
    %156 = vector.shape_cast %155 : vector<2x1x128xf32> to vector<2x128xf32>
    %157 = arith.addf %154, %156 : vector<2x128xf32>
    %158 = arith.negf %157 : vector<2x128xf32>
    %159 = math.exp %158 : vector<2x128xf32>
    %cst_24 = arith.constant 1.000000e+00 : f32
    %160 = vector.broadcast %cst_24 : f32 to vector<2x128xf32>
    %161 = arith.addf %160, %159 : vector<2x128xf32>
    %162 = arith.divf %160, %161 : vector<2x128xf32>
    %163 = math.tanh %157 : vector<2x128xf32>
    %164 = vector.extract_strided_slice %162 {offsets = [0, 32], sizes = [2, 32], strides = [1, 1]} : vector<2x128xf32> to vector<2x32xf32>
    %165 = arith.mulf %164, %130 : vector<2x32xf32>
    %166 = vector.extract_strided_slice %162 {offsets = [0, 0], sizes = [2, 32], strides = [1, 1]} : vector<2x128xf32> to vector<2x32xf32>
    %167 = vector.extract_strided_slice %163 {offsets = [0, 64], sizes = [2, 32], strides = [1, 1]} : vector<2x128xf32> to vector<2x32xf32>
    %168 = arith.mulf %166, %167 : vector<2x32xf32>
    %169 = arith.addf %165, %168 : vector<2x32xf32>
    %170 = vector.extract_strided_slice %162 {offsets = [0, 96], sizes = [2, 32], strides = [1, 1]} : vector<2x128xf32> to vector<2x32xf32>
    %171 = math.tanh %169 : vector<2x32xf32>
    %172 = arith.mulf %170, %171 : vector<2x32xf32>
    %173 = vector.extract_strided_slice %153 {offsets = [0, 128], sizes = [2, 128], strides = [1, 1]} : vector<2x256xf32> to vector<2x128xf32>
    %174 = arith.negf %173 : vector<2x128xf32>
    %175 = math.exp %174 : vector<2x128xf32>
    %cst_25 = arith.constant 1.000000e+00 : f32
    %176 = vector.broadcast %cst_25 : f32 to vector<2x128xf32>
    %177 = arith.addf %176, %175 : vector<2x128xf32>
    %178 = arith.divf %176, %177 : vector<2x128xf32>
    %179 = math.tanh %173 : vector<2x128xf32>
    %180 = vector.extract_strided_slice %178 {offsets = [0, 32], sizes = [2, 32], strides = [1, 1]} : vector<2x128xf32> to vector<2x32xf32>
    %181 = arith.mulf %180, %146 : vector<2x32xf32>
    %182 = vector.extract_strided_slice %178 {offsets = [0, 0], sizes = [2, 32], strides = [1, 1]} : vector<2x128xf32> to vector<2x32xf32>
    %183 = vector.extract_strided_slice %179 {offsets = [0, 64], sizes = [2, 32], strides = [1, 1]} : vector<2x128xf32> to vector<2x32xf32>
    %184 = arith.mulf %182, %183 : vector<2x32xf32>
    %185 = arith.addf %181, %184 : vector<2x32xf32>
    %186 = vector.extract_strided_slice %178 {offsets = [0, 96], sizes = [2, 32], strides = [1, 1]} : vector<2x128xf32> to vector<2x32xf32>
    %187 = math.tanh %185 : vector<2x32xf32>
    %188 = arith.mulf %186, %187 : vector<2x32xf32>
    %189 = tpu.concatenate %172, %188 in 1 : vector<2x32xf32>, vector<2x32xf32> -> vector<2x64xf32>
    %cst_26 = arith.constant dense<0.000000e+00> : vector<2x256xf32>
    %190 = tpu.matmul %189, %8, %cst_26 {dimension_numbers = #tpu.dot_dimension_numbers<[1], [0], [0], [1], [0, 0, 1, 1], [], []>, precision = #tpu.contract_precision<fp32>} : vector<2x64xf32>, vector<64x256xf32>, vector<2x256xf32> -> vector<2x256xf32>
    %191 = vector.broadcast %9 : vector<1x256xf32> to vector<2x256xf32>
    %192 = arith.addf %190, %191 : vector<2x256xf32>
    %193 = vector.extract_strided_slice %192 {offsets = [0, 0], sizes = [2, 128], strides = [1, 1]} : vector<2x256xf32> to vector<2x128xf32>
    %194 = vector.extract_strided_slice %7 {offsets = [0, 5, 0], sizes = [2, 1, 128], strides = [1, 1, 1]} : vector<2x8x128xf32> to vector<2x1x128xf32>
    %195 = vector.shape_cast %194 : vector<2x1x128xf32> to vector<2x128xf32>
    %196 = arith.addf %193, %195 : vector<2x128xf32>
    %197 = arith.negf %196 : vector<2x128xf32>
    %198 = math.exp %197 : vector<2x128xf32>
    %cst_27 = arith.constant 1.000000e+00 : f32
    %199 = vector.broadcast %cst_27 : f32 to vector<2x128xf32>
    %200 = arith.addf %199, %198 : vector<2x128xf32>
    %201 = arith.divf %199, %200 : vector<2x128xf32>
    %202 = math.tanh %196 : vector<2x128xf32>
    %203 = vector.extract_strided_slice %201 {offsets = [0, 32], sizes = [2, 32], strides = [1, 1]} : vector<2x128xf32> to vector<2x32xf32>
    %204 = arith.mulf %203, %169 : vector<2x32xf32>
    %205 = vector.extract_strided_slice %201 {offsets = [0, 0], sizes = [2, 32], strides = [1, 1]} : vector<2x128xf32> to vector<2x32xf32>
    %206 = vector.extract_strided_slice %202 {offsets = [0, 64], sizes = [2, 32], strides = [1, 1]} : vector<2x128xf32> to vector<2x32xf32>
    %207 = arith.mulf %205, %206 : vector<2x32xf32>
    %208 = arith.addf %204, %207 : vector<2x32xf32>
    %209 = vector.extract_strided_slice %201 {offsets = [0, 96], sizes = [2, 32], strides = [1, 1]} : vector<2x128xf32> to vector<2x32xf32>
    %210 = math.tanh %208 : vector<2x32xf32>
    %211 = arith.mulf %209, %210 : vector<2x32xf32>
    %212 = vector.extract_strided_slice %192 {offsets = [0, 128], sizes = [2, 128], strides = [1, 1]} : vector<2x256xf32> to vector<2x128xf32>
    %213 = arith.negf %212 : vector<2x128xf32>
    %214 = math.exp %213 : vector<2x128xf32>
    %cst_28 = arith.constant 1.000000e+00 : f32
    %215 = vector.broadcast %cst_28 : f32 to vector<2x128xf32>
    %216 = arith.addf %215, %214 : vector<2x128xf32>
    %217 = arith.divf %215, %216 : vector<2x128xf32>
    %218 = math.tanh %212 : vector<2x128xf32>
    %219 = vector.extract_strided_slice %217 {offsets = [0, 32], sizes = [2, 32], strides = [1, 1]} : vector<2x128xf32> to vector<2x32xf32>
    %220 = arith.mulf %219, %185 : vector<2x32xf32>
    %221 = vector.extract_strided_slice %217 {offsets = [0, 0], sizes = [2, 32], strides = [1, 1]} : vector<2x128xf32> to vector<2x32xf32>
    %222 = vector.extract_strided_slice %218 {offsets = [0, 64], sizes = [2, 32], strides = [1, 1]} : vector<2x128xf32> to vector<2x32xf32>
    %223 = arith.mulf %221, %222 : vector<2x32xf32>
    %224 = arith.addf %220, %223 : vector<2x32xf32>
    %225 = vector.extract_strided_slice %217 {offsets = [0, 96], sizes = [2, 32], strides = [1, 1]} : vector<2x128xf32> to vector<2x32xf32>
    %226 = math.tanh %224 : vector<2x32xf32>
    %227 = arith.mulf %225, %226 : vector<2x32xf32>
    %228 = tpu.concatenate %211, %227 in 1 : vector<2x32xf32>, vector<2x32xf32> -> vector<2x64xf32>
    %cst_29 = arith.constant dense<0.000000e+00> : vector<2x256xf32>
    %229 = tpu.matmul %228, %8, %cst_29 {dimension_numbers = #tpu.dot_dimension_numbers<[1], [0], [0], [1], [0, 0, 1, 1], [], []>, precision = #tpu.contract_precision<fp32>} : vector<2x64xf32>, vector<64x256xf32>, vector<2x256xf32> -> vector<2x256xf32>
    %230 = vector.broadcast %9 : vector<1x256xf32> to vector<2x256xf32>
    %231 = arith.addf %229, %230 : vector<2x256xf32>
    %232 = vector.extract_strided_slice %231 {offsets = [0, 0], sizes = [2, 128], strides = [1, 1]} : vector<2x256xf32> to vector<2x128xf32>
    %233 = vector.extract_strided_slice %7 {offsets = [0, 6, 0], sizes = [2, 1, 128], strides = [1, 1, 1]} : vector<2x8x128xf32> to vector<2x1x128xf32>
    %234 = vector.shape_cast %233 : vector<2x1x128xf32> to vector<2x128xf32>
    %235 = arith.addf %232, %234 : vector<2x128xf32>
    %236 = arith.negf %235 : vector<2x128xf32>
    %237 = math.exp %236 : vector<2x128xf32>
    %cst_30 = arith.constant 1.000000e+00 : f32
    %238 = vector.broadcast %cst_30 : f32 to vector<2x128xf32>
    %239 = arith.addf %238, %237 : vector<2x128xf32>
    %240 = arith.divf %238, %239 : vector<2x128xf32>
    %241 = math.tanh %235 : vector<2x128xf32>
    %242 = vector.extract_strided_slice %240 {offsets = [0, 32], sizes = [2, 32], strides = [1, 1]} : vector<2x128xf32> to vector<2x32xf32>
    %243 = arith.mulf %242, %208 : vector<2x32xf32>
    %244 = vector.extract_strided_slice %240 {offsets = [0, 0], sizes = [2, 32], strides = [1, 1]} : vector<2x128xf32> to vector<2x32xf32>
    %245 = vector.extract_strided_slice %241 {offsets = [0, 64], sizes = [2, 32], strides = [1, 1]} : vector<2x128xf32> to vector<2x32xf32>
    %246 = arith.mulf %244, %245 : vector<2x32xf32>
    %247 = arith.addf %243, %246 : vector<2x32xf32>
    %248 = vector.extract_strided_slice %240 {offsets = [0, 96], sizes = [2, 32], strides = [1, 1]} : vector<2x128xf32> to vector<2x32xf32>
    %249 = math.tanh %247 : vector<2x32xf32>
    %250 = arith.mulf %248, %249 : vector<2x32xf32>
    %251 = vector.extract_strided_slice %231 {offsets = [0, 128], sizes = [2, 128], strides = [1, 1]} : vector<2x256xf32> to vector<2x128xf32>
    %252 = arith.negf %251 : vector<2x128xf32>
    %253 = math.exp %252 : vector<2x128xf32>
    %cst_31 = arith.constant 1.000000e+00 : f32
    %254 = vector.broadcast %cst_31 : f32 to vector<2x128xf32>
    %255 = arith.addf %254, %253 : vector<2x128xf32>
    %256 = arith.divf %254, %255 : vector<2x128xf32>
    %257 = math.tanh %251 : vector<2x128xf32>
    %258 = vector.extract_strided_slice %256 {offsets = [0, 32], sizes = [2, 32], strides = [1, 1]} : vector<2x128xf32> to vector<2x32xf32>
    %259 = arith.mulf %258, %224 : vector<2x32xf32>
    %260 = vector.extract_strided_slice %256 {offsets = [0, 0], sizes = [2, 32], strides = [1, 1]} : vector<2x128xf32> to vector<2x32xf32>
    %261 = vector.extract_strided_slice %257 {offsets = [0, 64], sizes = [2, 32], strides = [1, 1]} : vector<2x128xf32> to vector<2x32xf32>
    %262 = arith.mulf %260, %261 : vector<2x32xf32>
    %263 = arith.addf %259, %262 : vector<2x32xf32>
    %264 = vector.extract_strided_slice %256 {offsets = [0, 96], sizes = [2, 32], strides = [1, 1]} : vector<2x128xf32> to vector<2x32xf32>
    %265 = math.tanh %263 : vector<2x32xf32>
    %266 = arith.mulf %264, %265 : vector<2x32xf32>
    %267 = tpu.concatenate %250, %266 in 1 : vector<2x32xf32>, vector<2x32xf32> -> vector<2x64xf32>
    %cst_32 = arith.constant dense<0.000000e+00> : vector<2x256xf32>
    %268 = tpu.matmul %267, %8, %cst_32 {dimension_numbers = #tpu.dot_dimension_numbers<[1], [0], [0], [1], [0, 0, 1, 1], [], []>, precision = #tpu.contract_precision<fp32>} : vector<2x64xf32>, vector<64x256xf32>, vector<2x256xf32> -> vector<2x256xf32>
    %269 = vector.broadcast %9 : vector<1x256xf32> to vector<2x256xf32>
    %270 = arith.addf %268, %269 : vector<2x256xf32>
    %271 = vector.extract_strided_slice %270 {offsets = [0, 0], sizes = [2, 128], strides = [1, 1]} : vector<2x256xf32> to vector<2x128xf32>
    %272 = vector.extract_strided_slice %7 {offsets = [0, 7, 0], sizes = [2, 1, 128], strides = [1, 1, 1]} : vector<2x8x128xf32> to vector<2x1x128xf32>
    %273 = vector.shape_cast %272 : vector<2x1x128xf32> to vector<2x128xf32>
    %274 = arith.addf %271, %273 : vector<2x128xf32>
    %275 = arith.negf %274 : vector<2x128xf32>
    %276 = math.exp %275 : vector<2x128xf32>
    %cst_33 = arith.constant 1.000000e+00 : f32
    %277 = vector.broadcast %cst_33 : f32 to vector<2x128xf32>
    %278 = arith.addf %277, %276 : vector<2x128xf32>
    %279 = arith.divf %277, %278 : vector<2x128xf32>
    %280 = math.tanh %274 : vector<2x128xf32>
    %281 = vector.extract_strided_slice %279 {offsets = [0, 32], sizes = [2, 32], strides = [1, 1]} : vector<2x128xf32> to vector<2x32xf32>
    %282 = arith.mulf %281, %247 : vector<2x32xf32>
    %283 = vector.extract_strided_slice %279 {offsets = [0, 0], sizes = [2, 32], strides = [1, 1]} : vector<2x128xf32> to vector<2x32xf32>
    %284 = vector.extract_strided_slice %280 {offsets = [0, 64], sizes = [2, 32], strides = [1, 1]} : vector<2x128xf32> to vector<2x32xf32>
    %285 = arith.mulf %283, %284 : vector<2x32xf32>
    %286 = arith.addf %282, %285 : vector<2x32xf32>
    %287 = vector.extract_strided_slice %279 {offsets = [0, 96], sizes = [2, 32], strides = [1, 1]} : vector<2x128xf32> to vector<2x32xf32>
    %288 = math.tanh %286 : vector<2x32xf32>
    %289 = arith.mulf %287, %288 : vector<2x32xf32>
    %290 = vector.extract_strided_slice %270 {offsets = [0, 128], sizes = [2, 128], strides = [1, 1]} : vector<2x256xf32> to vector<2x128xf32>
    %291 = arith.negf %290 : vector<2x128xf32>
    %292 = math.exp %291 : vector<2x128xf32>
    %cst_34 = arith.constant 1.000000e+00 : f32
    %293 = vector.broadcast %cst_34 : f32 to vector<2x128xf32>
    %294 = arith.addf %293, %292 : vector<2x128xf32>
    %295 = arith.divf %293, %294 : vector<2x128xf32>
    %296 = math.tanh %290 : vector<2x128xf32>
    %297 = vector.extract_strided_slice %295 {offsets = [0, 32], sizes = [2, 32], strides = [1, 1]} : vector<2x128xf32> to vector<2x32xf32>
    %298 = arith.mulf %297, %263 : vector<2x32xf32>
    %299 = vector.extract_strided_slice %295 {offsets = [0, 0], sizes = [2, 32], strides = [1, 1]} : vector<2x128xf32> to vector<2x32xf32>
    %300 = vector.extract_strided_slice %296 {offsets = [0, 64], sizes = [2, 32], strides = [1, 1]} : vector<2x128xf32> to vector<2x32xf32>
    %301 = arith.mulf %299, %300 : vector<2x32xf32>
    %302 = arith.addf %298, %301 : vector<2x32xf32>
    %303 = vector.extract_strided_slice %295 {offsets = [0, 96], sizes = [2, 32], strides = [1, 1]} : vector<2x128xf32> to vector<2x32xf32>
    %304 = math.tanh %302 : vector<2x32xf32>
    %305 = arith.mulf %303, %304 : vector<2x32xf32>
    %306 = tpu.concatenate %289, %305 in 1 : vector<2x32xf32>, vector<2x32xf32> -> vector<2x64xf32>
    %cst_35 = arith.constant dense<0.000000e+00> : vector<2x256xf32>
    %307 = tpu.matmul %306, %8, %cst_35 {dimension_numbers = #tpu.dot_dimension_numbers<[1], [0], [0], [1], [0, 0, 1, 1], [], []>, precision = #tpu.contract_precision<fp32>} : vector<2x64xf32>, vector<64x256xf32>, vector<2x256xf32> -> vector<2x256xf32>
    %308 = vector.broadcast %9 : vector<1x256xf32> to vector<2x256xf32>
    %309 = arith.addf %307, %308 : vector<2x256xf32>
    %310 = vector.extract_strided_slice %309 {offsets = [0, 128], sizes = [2, 128], strides = [1, 1]} : vector<2x256xf32> to vector<2x128xf32>
    %311 = arith.negf %310 : vector<2x128xf32>
    %312 = math.exp %311 : vector<2x128xf32>
    %cst_36 = arith.constant 1.000000e+00 : f32
    %313 = vector.broadcast %cst_36 : f32 to vector<2x128xf32>
    %314 = arith.addf %313, %312 : vector<2x128xf32>
    %315 = arith.divf %313, %314 : vector<2x128xf32>
    %316 = math.tanh %310 : vector<2x128xf32>
    %317 = vector.extract_strided_slice %315 {offsets = [0, 32], sizes = [2, 32], strides = [1, 1]} : vector<2x128xf32> to vector<2x32xf32>
    %318 = arith.mulf %317, %302 : vector<2x32xf32>
    %319 = vector.extract_strided_slice %315 {offsets = [0, 0], sizes = [2, 32], strides = [1, 1]} : vector<2x128xf32> to vector<2x32xf32>
    %320 = vector.extract_strided_slice %316 {offsets = [0, 64], sizes = [2, 32], strides = [1, 1]} : vector<2x128xf32> to vector<2x32xf32>
    %321 = arith.mulf %319, %320 : vector<2x32xf32>
    %322 = arith.addf %318, %321 : vector<2x32xf32>
    %323 = vector.extract_strided_slice %315 {offsets = [0, 96], sizes = [2, 32], strides = [1, 1]} : vector<2x128xf32> to vector<2x32xf32>
    %324 = math.tanh %322 : vector<2x32xf32>
    %325 = arith.mulf %323, %324 : vector<2x32xf32>
    %326 = vector.shape_cast %71 : vector<2x32xf32> to vector<2x1x32xf32>
    %327 = vector.shape_cast %110 : vector<2x32xf32> to vector<2x1x32xf32>
    %328 = vector.shape_cast %149 : vector<2x32xf32> to vector<2x1x32xf32>
    %329 = vector.shape_cast %188 : vector<2x32xf32> to vector<2x1x32xf32>
    %330 = vector.shape_cast %227 : vector<2x32xf32> to vector<2x1x32xf32>
    %331 = vector.shape_cast %266 : vector<2x32xf32> to vector<2x1x32xf32>
    %332 = vector.shape_cast %305 : vector<2x32xf32> to vector<2x1x32xf32>
    %333 = vector.shape_cast %325 : vector<2x32xf32> to vector<2x1x32xf32>
    %334 = tpu.concatenate %326, %327, %328, %329, %330, %331, %332, %333 in 1 : vector<2x1x32xf32>, vector<2x1x32xf32>, vector<2x1x32xf32>, vector<2x1x32xf32>, vector<2x1x32xf32>, vector<2x1x32xf32>, vector<2x1x32xf32>, vector<2x1x32xf32> -> vector<2x8x32xf32>
    %335 = vector.shape_cast %334 : vector<2x8x32xf32> to vector<16x32xf32>
    %c0_37 = arith.constant 0 : index
    %c0_38 = arith.constant 0 : index
    %336 = vector.load %arg5[%c0_37, %c0_38] : memref<32x3xf32, #tpu.memory_space<vmem>>, vector<32x3xf32>
    %cst_39 = arith.constant dense<0.000000e+00> : vector<16x3xf32>
    %337 = tpu.matmul %335, %336, %cst_39 {dimension_numbers = #tpu.dot_dimension_numbers<[1], [0], [0], [1], [0, 0, 1, 1], [], []>, precision = #tpu.contract_precision<fp32>} : vector<16x32xf32>, vector<32x3xf32>, vector<16x3xf32> -> vector<16x3xf32>
    %c0_40 = arith.constant 0 : index
    %c0_41 = arith.constant 0 : index
    %338 = vector.load %arg6[%c0_40, %c0_41] : memref<1x3xf32, #tpu.memory_space<vmem>>, vector<1x3xf32>
    %339 = vector.broadcast %338 : vector<1x3xf32> to vector<16x3xf32>
    %340 = arith.addf %337, %339 : vector<16x3xf32>
    %341 = vector.shape_cast %340 : vector<16x3xf32> to vector<2x8x3xf32>
    %c0_42 = arith.constant 0 : index
    %c0_43 = arith.constant 0 : index
    %c0_44 = arith.constant 0 : index
    %342 = vector.load %arg7[%c0_42, %c0_43, %c0_44] : memref<2x8x3xf32, #tpu.memory_space<vmem>>, vector<2x8x3xf32>
    tpu.vector_store %arg7[%c0_42, %c0_43, %c0_44], %341 {strides = array<i32>} : memref<2x8x3xf32, #tpu.memory_space<vmem>>, vector<2x8x3xf32>,
    return
  }
}

</mosaic_0001>

<llo_original>
// kernel: tpu_custom_call.1
$region0: #{tpu_custom_call.1}
  #allocation0 [shape = 'u32[]', space=smem, size = 0x4, offset = 0x4, fixed_abs, tag = 'smem constant byte address 0x4 - core index']
  #allocation1 [shape = 'u32[144,128]{1,0:T(1,128)}', space=vmem, size = 0x12000, scoped, tag = 'internal scratch']
  %s0 = inlined_call_operand.vmem [shape: f32[2,8,40], index: 0, kind: input, shape index: {}]
  %s1 = inlined_call_operand.hbm [shape: f32[40,128], index: 1, kind: input, shape index: {}]
  %s2 = inlined_call_operand.vmem [shape: f32[1,128], index: 2, kind: input, shape index: {}]
  %s3 = inlined_call_operand.hbm [shape: f32[64,256], index: 3, kind: input, shape index: {}]
  %s4 = inlined_call_operand.vmem [shape: f32[1,256], index: 4, kind: input, shape index: {}]
  %s5 = inlined_call_operand.vmem [shape: f32[32,3], index: 5, kind: input, shape index: {}]
  %s6 = inlined_call_operand.vmem [shape: f32[1,3], index: 6, kind: input, shape index: {}]
  %s7 = inlined_call_operand.vmem [shape: f32[2,8,3], index: 7, kind: output, shape index: {}]
  %s8 = sld [smem:[#allocation0]]
  $region46: #{tpu_custom_call.1} parent=0
    _
  %s10 = ssub.s32 1, %s8
  %s11 = scalar_select 0, %s10, %s8
  $region1: #{tpu_custom_call.1} parent=0
    #allocation2 [shape = 'u8[20480]{0}', space=vmem, size = 0x5000, scoped, tag = 'input window, operand 1, single buffered']
    #allocation3 [shape = 's32[1]{0}', space=sflag, size = 0x4, scoped, tag = 'scoped memory for tpu_custom_call.1']
    #allocation4 [shape = 'u8[65536]{0}', space=vmem, size = 0x10000, scoped, tag = 'input window, operand 3, single buffered']
    #allocation5 [shape = 's32[1]{0}', space=sflag, size = 0x4, scoped, tag = 'scoped memory for tpu_custom_call.1']
    %12 = vsyncpa [#allocation3], 0
    %13 = vsyncpa [#allocation5], 0
    // Predicated region
    $region2: #{tpu_custom_call.1} parent=1 // pred_check
      _
    $region3: #{tpu_custom_call.1} parent=1 // pred_check_branch
      %15 = sbr.rel (0) target = $region5
    $region4: #{tpu_custom_call.1} parent=1 // pred_region
      _
    $region5: #{tpu_custom_call.1} parent=1 // pred_fallthru
      _
    // Predicated region
    $region6: #{tpu_custom_call.1} parent=1 // pred_check
      _
    $region7: #{tpu_custom_call.1} parent=1 // pred_check_branch
      %17 = sbr.rel (0) target = $region9
    $region8: #{tpu_custom_call.1} parent=1 // pred_region
      %s19 = ssub.s32 640, 640
      %20 = vsyncadd [#allocation3], %s19
      %s21 = sshll.u32 [#allocation2], 4
      %s22 = int_to_ptr.vmem [resolvable:$true] %s21
      %27 = dma.hbm_to_vmem [thread:$0]  %s1, 640, %s22, [#allocation3], 128, 128, 8
    $region9: #{tpu_custom_call.1} parent=1 // pred_fallthru
      _
    // Predicated region
    $region10: #{tpu_custom_call.1} parent=1 // pred_check
      _
    $region11: #{tpu_custom_call.1} parent=1 // pred_check_branch
      %29 = sbr.rel (0) target = $region13
    $region12: #{tpu_custom_call.1} parent=1 // pred_region
      _
    $region13: #{tpu_custom_call.1} parent=1 // pred_fallthru
      _
    // Predicated region
    $region14: #{tpu_custom_call.1} parent=1 // pred_check
      _
    $region15: #{tpu_custom_call.1} parent=1 // pred_check_branch
      %31 = sbr.rel (0) target = $region17
    $region16: #{tpu_custom_call.1} parent=1 // pred_region
      %s33 = ssub.s32 2048, 2048
      %34 = vsyncadd [#allocation5], %s33
      %s35 = sshll.u32 [#allocation4], 4
      %s36 = int_to_ptr.vmem [resolvable:$true] %s35
      %41 = dma.hbm_to_vmem [thread:$0]  %s3, 2048, %s36, [#allocation5], 256, 256, 16
    $region17: #{tpu_custom_call.1} parent=1 // pred_fallthru
      _
    // Predicated region
    $region18: #{tpu_custom_call.1} parent=1 // pred_check
      _
    $region19: #{tpu_custom_call.1} parent=1 // pred_check_branch
      %43 = sbr.rel (0) target = $region21
    $region20: #{tpu_custom_call.1} parent=1 // pred_region
      _
    $region21: #{tpu_custom_call.1} parent=1 // pred_fallthru
      _
    // Predicated region
    $region22: #{tpu_custom_call.1} parent=1 // pred_check
      _
    $region23: #{tpu_custom_call.1} parent=1 // pred_check_branch
      %45 = sbr.rel (0) target = $region25
    $region24: #{tpu_custom_call.1} parent=1 // pred_region
      _
    $region25: #{tpu_custom_call.1} parent=1 // pred_fallthru
      _
    // Predicated region
    $region26: #{tpu_custom_call.1} parent=1 // pred_check
      _
    $region27: #{tpu_custom_call.1} parent=1 // pred_check_branch
      %47 = sbr.rel (0) target = $region29
    $region28: #{tpu_custom_call.1} parent=1 // pred_region
      _
    $region29: #{tpu_custom_call.1} parent=1 // pred_fallthru
      _
    // Predicated region
    $region30: #{tpu_custom_call.1} parent=1 // pred_check
      _
    $region31: #{tpu_custom_call.1} parent=1 // pred_check_branch
      %49 = sbr.rel (0) target = $region33
    $region32: #{tpu_custom_call.1} parent=1 // pred_region
      %50 = dma.done [#allocation3], 640
    $region33: #{tpu_custom_call.1} parent=1 // pred_fallthru
      _
    // Predicated region
    $region34: #{tpu_custom_call.1} parent=1 // pred_check
      _
    $region35: #{tpu_custom_call.1} parent=1 // pred_check_branch
      %52 = sbr.rel (0) target = $region37
    $region36: #{tpu_custom_call.1} parent=1 // pred_region
      %53 = dma.done [#allocation5], 2048
    $region37: #{tpu_custom_call.1} parent=1 // pred_fallthru
      _
    %v54 = vld [vmem:[%s0] sm:$0xff]
    %v55 = vld [vmem:[%s0 + $0x8] sm:$0xff]
    %v56 = vld [vmem:[#allocation2] sm:$0xff]
    %v57 = vld [vmem:[#allocation2 + $0x8] sm:$0xff]
    %v58 = vld [vmem:[#allocation2 + $0x10] sm:$0xff]
    %v59 = vld [vmem:[#allocation2 + $0x18] sm:$0xff]
    %v60 = vld [vmem:[#allocation2 + $0x20] sm:$0xff]
    %v61 = vld [vmem:[%s2] sm:$0x1]
    %v63 = vlaneseq
    %v64 = vshrl.u32 %v63, 7
    %v65 = vsub.s32 0, %v64
    %v66 = vrot.slane %v61, %v65
    %vm68 = vcmask 326656
    %v70 = vsel %vm68, %v54, 0
    %v73 = vsel %vm68, %v55, 0
    %75 = vmatprep.subr.mxu0 0.0
    %76 = vmatpush1.msra.mxu0 0.0
    %77 = vmatprep.subr.mxu0 0.0
    %78 = vmatpush1.msra.mxu0 0.0
    %79 = vmatprep.subr.mxu0 0.0
    %80 = vmatpush1.msra.mxu0 0.0
    %81 = vmatprep.subr.mxu0 0.0
    %82 = vmatpush1.msra.mxu0 0.0
    %83 = vmatprep.subr.mxu0 0.0
    %84 = vmatpush1.msra.mxu0 0.0
    %85 = vmatprep.subr.mxu0 0.0
    %86 = vmatpush1.msra.mxu0 0.0
    %87 = vmatprep.subr.mxu0 0.0
    %88 = vmatpush1.msra.mxu0 0.0
    %89 = vmatprep.subr.mxu0 0.0
    %90 = vmatpush1.msra.mxu0 0.0
    %91 = vmatprep.subr.mxu0 0.0
    %92 = vmatpush1.msra.mxu0 0.0
    %93 = vmatprep.subr.mxu0 0.0
    %94 = vmatpush1.msra.mxu0 0.0
    %95 = vmatprep.subr.mxu0 0.0
    %96 = vmatpush1.msra.mxu0 0.0
    %97 = vmatprep.subr.mxu0 0.0
    %v98 = vand.u32 %v60, 4294901760
    %99 = vmatpush1.msra.mxu0 %v98
    %100 = vmatprep.subr.mxu0 0.0
    %v101 = vand.u32 %v59, 4294901760
    %102 = vmatpush1.msra.mxu0 %v101
    %103 = vmatprep.subr.mxu0 0.0
    %v104 = vand.u32 %v58, 4294901760
    %105 = vmatpush1.msra.mxu0 %v104
    %106 = vmatprep.subr.mxu0 0.0
    %v107 = vand.u32 %v57, 4294901760
    %108 = vmatpush1.msra.mxu0 %v107
    %109 = vmatprep.subr.mxu0 0.0
    %v110 = vand.u32 %v56, 4294901760
    %111 = vmatpush1.msra.mxu0 %v110
    %112 = vmatprep.subr.mxu0 0.0
    %113 = vmatpush2.msra.mxu0 0.0
    %114 = vmatprep.subr.mxu0 0.0
    %115 = vmatpush2.msra.mxu0 0.0
    %116 = vmatprep.subr.mxu0 0.0
    %117 = vmatpush2.msra.mxu0 0.0
    %118 = vmatprep.subr.mxu0 0.0
    %119 = vmatpush2.msra.mxu0 0.0
    %120 = vmatprep.subr.mxu0 0.0
    %121 = vmatpush2.msra.mxu0 0.0
    %122 = vmatprep.subr.mxu0 0.0
    %123 = vmatpush2.msra.mxu0 0.0
    %124 = vmatprep.subr.mxu0 0.0
    %125 = vmatpush2.msra.mxu0 0.0
    %126 = vmatprep.subr.mxu0 0.0
    %127 = vmatpush2.msra.mxu0 0.0
    %128 = vmatprep.subr.mxu0 0.0
    %129 = vmatpush2.msra.mxu0 0.0
    %130 = vmatprep.subr.mxu0 0.0
    %131 = vmatpush2.msra.mxu0 0.0
    %132 = vmatprep.subr.mxu0 0.0
    %133 = vmatpush2.msra.mxu0 0.0
    %134 = vmatprep.subr.mxu0 0.0
    %135 = vmatpush2.msra.mxu0 0.0
    %136 = vmatprep.subr.mxu0 0.0
    %137 = vmatpush2.msra.mxu0 0.0
    %138 = vmatprep.subr.mxu0 0.0
    %139 = vmatpush2.msra.mxu0 0.0
    %140 = vmatprep.subr.mxu0 0.0
    %141 = vmatpush2.msra.mxu0 0.0
    %142 = vmatprep.subr.mxu0 0.0
    %143 = vmatpush2.msra.mxu0 0.0
    %144 = vmatprep.mubr.f32.mxu0 0.0
    %v145 = vand.u32 %v70, 4294901760
    %v146 = vsub.f32 %v70, %v145
    %v147 = vand.u32 %v146, 4294901760
    %v148 = vsub.f32 %v146, %v147
    %v149 = vand.u32 %v148, 4294901760
    %150 = vmatmul.mubr.f32.gmra.mxu0 %v149
    %v151 = vpop.f32.mrf.mxu0
    %v152 = vadd.f32 %v66, %v151
    %v153 = vpop.f32.mrf.mxu0
    %154 = vmatprep.mubr.f32.mxu0 0.0
    %v155 = vand.u32 %v73, 4294901760
    %v156 = vsub.f32 %v73, %v155
    %v157 = vand.u32 %v156, 4294901760
    %v158 = vsub.f32 %v156, %v157
    %v159 = vand.u32 %v158, 4294901760
    %160 = vmatmul.mubr.f32.gmra.mxu0 %v159
    %v161 = vpop.f32.mrf.mxu0
    %v162 = vadd.f32 %v66, %v161
    %v163 = vpop.f32.mrf.mxu0
    %164 = vdwg.mxu0
    %165 = vmatprep.subr.mxu0 0.0
    %166 = vmatpush1.msra.mxu0 0.0
    %167 = vmatprep.subr.mxu0 0.0
    %168 = vmatpush1.msra.mxu0 0.0
    %169 = vmatprep.subr.mxu0 0.0
    %170 = vmatpush1.msra.mxu0 0.0
    %171 = vmatprep.subr.mxu0 0.0
    %172 = vmatpush1.msra.mxu0 0.0
    %173 = vmatprep.subr.mxu0 0.0
    %174 = vmatpush1.msra.mxu0 0.0
    %175 = vmatprep.subr.mxu0 0.0
    %176 = vmatpush1.msra.mxu0 0.0
    %177 = vmatprep.subr.mxu0 0.0
    %178 = vmatpush1.msra.mxu0 0.0
    %179 = vmatprep.subr.mxu0 0.0
    %180 = vmatpush1.msra.mxu0 0.0
    %181 = vmatprep.subr.mxu0 0.0
    %182 = vmatpush1.msra.mxu0 0.0
    %183 = vmatprep.subr.mxu0 0.0
    %184 = vmatpush1.msra.mxu0 0.0
    %185 = vmatprep.subr.mxu0 0.0
    %186 = vmatpush1.msra.mxu0 0.0
    %187 = vmatprep.subr.mxu0 0.0
    %v188 = vand.u32 %v60, 4294901760
    %v189 = vsub.f32 %v60, %v188
    %v190 = vand.u32 %v189, 4294901760
    %v191 = vsub.f32 %v189, %v190
    %v192 = vand.u32 %v191, 4294901760
    %193 = vmatpush1.msra.mxu0 %v192
    %194 = vmatprep.subr.mxu0 0.0
    %v195 = vand.u32 %v59, 4294901760
    %v196 = vsub.f32 %v59, %v195
    %v197 = vand.u32 %v196, 4294901760
    %v198 = vsub.f32 %v196, %v197
    %v199 = vand.u32 %v198, 4294901760
    %200 = vmatpush1.msra.mxu0 %v199
    %201 = vmatprep.subr.mxu0 0.0
    %v202 = vand.u32 %v58, 4294901760
    %v203 = vsub.f32 %v58, %v202
    %v204 = vand.u32 %v203, 4294901760
    %v205 = vsub.f32 %v203, %v204
    %v206 = vand.u32 %v205, 4294901760
    %207 = vmatpush1.msra.mxu0 %v206
    %208 = vmatprep.subr.mxu0 0.0
    %v209 = vand.u32 %v57, 4294901760
    %v210 = vsub.f32 %v57, %v209
    %v211 = vand.u32 %v210, 4294901760
    %v212 = vsub.f32 %v210, %v211
    %v213 = vand.u32 %v212, 4294901760
    %214 = vmatpush1.msra.mxu0 %v213
    %215 = vmatprep.subr.mxu0 0.0
    %v216 = vand.u32 %v56, 4294901760
    %v217 = vsub.f32 %v56, %v216
    %v218 = vand.u32 %v217, 4294901760
    %v219 = vsub.f32 %v217, %v218
    %v220 = vand.u32 %v219, 4294901760
    %221 = vmatpush1.msra.mxu0 %v220
    %222 = vmatprep.subr.mxu0 0.0
    %223 = vmatpush2.msra.mxu0 0.0
    %224 = vmatprep.subr.mxu0 0.0
    %225 = vmatpush2.msra.mxu0 0.0
    %226 = vmatprep.subr.mxu0 0.0
    %227 = vmatpush2.msra.mxu0 0.0
    %228 = vmatprep.subr.mxu0 0.0
    %229 = vmatpush2.msra.mxu0 0.0
    %230 = vmatprep.subr.mxu0 0.0
    %231 = vmatpush2.msra.mxu0 0.0
    %232 = vmatprep.subr.mxu0 0.0
    %233 = vmatpush2.msra.mxu0 0.0
    %234 = vmatprep.subr.mxu0 0.0
    %235 = vmatpush2.msra.mxu0 0.0
    %236 = vmatprep.subr.mxu0 0.0
    %237 = vmatpush2.msra.mxu0 0.0
    %238 = vmatprep.subr.mxu0 0.0
    %239 = vmatpush2.msra.mxu0 0.0
    %240 = vmatprep.subr.mxu0 0.0
    %241 = vmatpush2.msra.mxu0 0.0
    %242 = vmatprep.subr.mxu0 0.0
    %243 = vmatpush2.msra.mxu0 0.0
    %244 = vmatprep.subr.mxu0 0.0
    %245 = vmatpush2.msra.mxu0 0.0
    %246 = vmatprep.subr.mxu0 0.0
    %247 = vmatpush2.msra.mxu0 0.0
    %248 = vmatprep.subr.mxu0 0.0
    %249 = vmatpush2.msra.mxu0 0.0
    %250 = vmatprep.subr.mxu0 0.0
    %251 = vmatpush2.msra.mxu0 0.0
    %252 = vmatprep.subr.mxu0 0.0
    %253 = vmatpush2.msra.mxu0 0.0
    %254 = vmatprep.mubr.f32.mxu0 0.0
    %v255 = vand.u32 %v70, 4294901760
    %256 = vmatmul.mubr.f32.gmra.mxu0 %v255
    %v257 = vpop.f32.mrf.mxu0
    %v258 = vadd.f32 %v152, %v257
    %v259 = vpop.f32.mrf.mxu0
    %260 = vmatprep.mubr.f32.mxu0 0.0
    %v261 = vand.u32 %v73, 4294901760
    %262 = vmatmul.mubr.f32.gmra.mxu0 %v261
    %v263 = vpop.f32.mrf.mxu0
    %v264 = vadd.f32 %v162, %v263
    %v265 = vpop.f32.mrf.mxu0
    %266 = vdwg.mxu0
    %267 = vmatprep.subr.mxu0 0.0
    %268 = vmatpush1.msra.mxu0 0.0
    %269 = vmatprep.subr.mxu0 0.0
    %270 = vmatpush1.msra.mxu0 0.0
    %271 = vmatprep.subr.mxu0 0.0
    %272 = vmatpush1.msra.mxu0 0.0
    %273 = vmatprep.subr.mxu0 0.0
    %274 = vmatpush1.msra.mxu0 0.0
    %275 = vmatprep.subr.mxu0 0.0
    %276 = vmatpush1.msra.mxu0 0.0
    %277 = vmatprep.subr.mxu0 0.0
    %278 = vmatpush1.msra.mxu0 0.0
    %279 = vmatprep.subr.mxu0 0.0
    %280 = vmatpush1.msra.mxu0 0.0
    %281 = vmatprep.subr.mxu0 0.0
    %282 = vmatpush1.msra.mxu0 0.0
    %283 = vmatprep.subr.mxu0 0.0
    %284 = vmatpush1.msra.mxu0 0.0
    %285 = vmatprep.subr.mxu0 0.0
    %286 = vmatpush1.msra.mxu0 0.0
    %287 = vmatprep.subr.mxu0 0.0
    %288 = vmatpush1.msra.mxu0 0.0
    %289 = vmatprep.subr.mxu0 0.0
    %v290 = vand.u32 %v60, 4294901760
    %v291 = vsub.f32 %v60, %v290
    %292 = vmatpush1.msra.mxu0 %v291
    %293 = vmatprep.subr.mxu0 0.0
    %v294 = vand.u32 %v59, 4294901760
    %v295 = vsub.f32 %v59, %v294
    %296 = vmatpush1.msra.mxu0 %v295
    %297 = vmatprep.subr.mxu0 0.0
    %v298 = vand.u32 %v58, 4294901760
    %v299 = vsub.f32 %v58, %v298
    %300 = vmatpush1.msra.mxu0 %v299
    %301 = vmatprep.subr.mxu0 0.0
    %v302 = vand.u32 %v57, 4294901760
    %v303 = vsub.f32 %v57, %v302
    %304 = vmatpush1.msra.mxu0 %v303
    %305 = vmatprep.subr.mxu0 0.0
    %v306 = vand.u32 %v56, 4294901760
    %v307 = vsub.f32 %v56, %v306
    %308 = vmatpush1.msra.mxu0 %v307
    %309 = vmatprep.subr.mxu0 0.0
    %310 = vmatpush2.msra.mxu0 0.0
    %311 = vmatprep.subr.mxu0 0.0
    %312 = vmatpush2.msra.mxu0 0.0
    %313 = vmatprep.subr.mxu0 0.0
    %314 = vmatpush2.msra.mxu0 0.0
    %315 = vmatprep.subr.mxu0 0.0
    %316 = vmatpush2.msra.mxu0 0.0
    %317 = vmatprep.subr.mxu0 0.0
    %318 = vmatpush2.msra.mxu0 0.0
    %319 = vmatprep.subr.mxu0 0.0
    %320 = vmatpush2.msra.mxu0 0.0
    %321 = vmatprep.subr.mxu0 0.0
    %322 = vmatpush2.msra.mxu0 0.0
    %323 = vmatprep.subr.mxu0 0.0
    %324 = vmatpush2.msra.mxu0 0.0
    %325 = vmatprep.subr.mxu0 0.0
    %326 = vmatpush2.msra.mxu0 0.0
    %327 = vmatprep.subr.mxu0 0.0
    %328 = vmatpush2.msra.mxu0 0.0
    %329 = vmatprep.subr.mxu0 0.0
    %330 = vmatpush2.msra.mxu0 0.0
    %331 = vmatprep.subr.mxu0 0.0
    %332 = vmatpush2.msra.mxu0 0.0
    %333 = vmatprep.subr.mxu0 0.0
    %334 = vmatpush2.msra.mxu0 0.0
    %335 = vmatprep.subr.mxu0 0.0
    %336 = vmatpush2.msra.mxu0 0.0
    %337 = vmatprep.subr.mxu0 0.0
    %338 = vmatpush2.msra.mxu0 0.0
    %339 = vmatprep.subr.mxu0 0.0
    %340 = vmatpush2.msra.mxu0 0.0
    %341 = vmatprep.mubr.f32.mxu0 0.0
    %v342 = vand.u32 %v70, 4294901760
    %v343 = vsub.f32 %v70, %v342
    %344 = vmatmul.mubr.f32.gmra.mxu0 %v343
    %v345 = vpop.f32.mrf.mxu0
    %v346 = vadd.f32 %v258, %v345
    %v347 = vpop.f32.mrf.mxu0
    %348 = vmatprep.mubr.f32.mxu0 0.0
    %v349 = vand.u32 %v73, 4294901760
    %v350 = vsub.f32 %v73, %v349
    %351 = vmatmul.mubr.f32.gmra.mxu0 %v350
    %v352 = vpop.f32.mrf.mxu0
    %v353 = vadd.f32 %v264, %v352
    %v354 = vpop.f32.mrf.mxu0
    %355 = vdwg.mxu0
    %356 = vmatprep.subr.mxu0 0.0
    %357 = vmatpush1.msra.mxu0 0.0
    %358 = vmatprep.subr.mxu0 0.0
    %359 = vmatpush1.msra.mxu0 0.0
    %360 = vmatprep.subr.mxu0 0.0
    %361 = vmatpush1.msra.mxu0 0.0
    %362 = vmatprep.subr.mxu0 0.0
    %363 = vmatpush1.msra.mxu0 0.0
    %364 = vmatprep.subr.mxu0 0.0
    %365 = vmatpush1.msra.mxu0 0.0
    %366 = vmatprep.subr.mxu0 0.0
    %367 = vmatpush1.msra.mxu0 0.0
    %368 = vmatprep.subr.mxu0 0.0
    %369 = vmatpush1.msra.mxu0 0.0
    %370 = vmatprep.subr.mxu0 0.0
    %371 = vmatpush1.msra.mxu0 0.0
    %372 = vmatprep.subr.mxu0 0.0
    %373 = vmatpush1.msra.mxu0 0.0
    %374 = vmatprep.subr.mxu0 0.0
    %375 = vmatpush1.msra.mxu0 0.0
    %376 = vmatprep.subr.mxu0 0.0
    %377 = vmatpush1.msra.mxu0 0.0
    %378 = vmatprep.subr.mxu0 0.0
    %v379 = vand.u32 %v60, 4294901760
    %380 = vmatpush1.msra.mxu0 %v379
    %381 = vmatprep.subr.mxu0 0.0
    %v382 = vand.u32 %v59, 4294901760
    %383 = vmatpush1.msra.mxu0 %v382
    %384 = vmatprep.subr.mxu0 0.0
    %v385 = vand.u32 %v58, 4294901760
    %386 = vmatpush1.msra.mxu0 %v385
    %387 = vmatprep.subr.mxu0 0.0
    %v388 = vand.u32 %v57, 4294901760
    %389 = vmatpush1.msra.mxu0 %v388
    %390 = vmatprep.subr.mxu0 0.0
    %v391 = vand.u32 %v56, 4294901760
    %392 = vmatpush1.msra.mxu0 %v391
    %393 = vmatprep.subr.mxu0 0.0
    %394 = vmatpush2.msra.mxu0 0.0
    %395 = vmatprep.subr.mxu0 0.0
    %396 = vmatpush2.msra.mxu0 0.0
    %397 = vmatprep.subr.mxu0 0.0
    %398 = vmatpush2.msra.mxu0 0.0
    %399 = vmatprep.subr.mxu0 0.0
    %400 = vmatpush2.msra.mxu0 0.0
    %401 = vmatprep.subr.mxu0 0.0
    %402 = vmatpush2.msra.mxu0 0.0
    %403 = vmatprep.subr.mxu0 0.0
    %404 = vmatpush2.msra.mxu0 0.0
    %405 = vmatprep.subr.mxu0 0.0
    %406 = vmatpush2.msra.mxu0 0.0
    %407 = vmatprep.subr.mxu0 0.0
    %408 = vmatpush2.msra.mxu0 0.0
    %409 = vmatprep.subr.mxu0 0.0
    %410 = vmatpush2.msra.mxu0 0.0
    %411 = vmatprep.subr.mxu0 0.0
    %412 = vmatpush2.msra.mxu0 0.0
    %413 = vmatprep.subr.mxu0 0.0
    %414 = vmatpush2.msra.mxu0 0.0
    %415 = vmatprep.subr.mxu0 0.0
    %416 = vmatpush2.msra.mxu0 0.0
    %417 = vmatprep.subr.mxu0 0.0
    %418 = vmatpush2.msra.mxu0 0.0
    %419 = vmatprep.subr.mxu0 0.0
    %420 = vmatpush2.msra.mxu0 0.0
    %421 = vmatprep.subr.mxu0 0.0
    %422 = vmatpush2.msra.mxu0 0.0
    %423 = vmatprep.subr.mxu0 0.0
    %424 = vmatpush2.msra.mxu0 0.0
    %425 = vmatprep.mubr.f32.mxu0 0.0
    %v426 = vand.u32 %v70, 4294901760
    %v427 = vsub.f32 %v70, %v426
    %v428 = vand.u32 %v427, 4294901760
    %429 = vmatmul.mubr.f32.gmra.mxu0 %v428
    %v430 = vpop.f32.mrf.mxu0
    %v431 = vadd.f32 %v346, %v430
    %v432 = vpop.f32.mrf.mxu0
    %433 = vmatprep.mubr.f32.mxu0 0.0
    %v434 = vand.u32 %v73, 4294901760
    %v435 = vsub.f32 %v73, %v434
    %v436 = vand.u32 %v435, 4294901760
    %437 = vmatmul.mubr.f32.gmra.mxu0 %v436
    %v438 = vpop.f32.mrf.mxu0
    %v439 = vadd.f32 %v353, %v438
    %v440 = vpop.f32.mrf.mxu0
    %441 = vdwg.mxu0
    %442 = vmatprep.subr.mxu0 0.0
    %443 = vmatpush1.msra.mxu0 0.0
    %444 = vmatprep.subr.mxu0 0.0
    %445 = vmatpush1.msra.mxu0 0.0
    %446 = vmatprep.subr.mxu0 0.0
    %447 = vmatpush1.msra.mxu0 0.0
    %448 = vmatprep.subr.mxu0 0.0
    %449 = vmatpush1.msra.mxu0 0.0
    %450 = vmatprep.subr.mxu0 0.0
    %451 = vmatpush1.msra.mxu0 0.0
    %452 = vmatprep.subr.mxu0 0.0
    %453 = vmatpush1.msra.mxu0 0.0
    %454 = vmatprep.subr.mxu0 0.0
    %455 = vmatpush1.msra.mxu0 0.0
    %456 = vmatprep.subr.mxu0 0.0
    %457 = vmatpush1.msra.mxu0 0.0
    %458 = vmatprep.subr.mxu0 0.0
    %459 = vmatpush1.msra.mxu0 0.0
    %460 = vmatprep.subr.mxu0 0.0
    %461 = vmatpush1.msra.mxu0 0.0
    %462 = vmatprep.subr.mxu0 0.0
    %463 = vmatpush1.msra.mxu0 0.0
    %464 = vmatprep.subr.mxu0 0.0
    %v465 = vand.u32 %v60, 4294901760
    %v466 = vsub.f32 %v60, %v465
    %v467 = vand.u32 %v466, 4294901760
    %468 = vmatpush1.msra.mxu0 %v467
    %469 = vmatprep.subr.mxu0 0.0
    %v470 = vand.u32 %v59, 4294901760
    %v471 = vsub.f32 %v59, %v470
    %v472 = vand.u32 %v471, 4294901760
    %473 = vmatpush1.msra.mxu0 %v472
    %474 = vmatprep.subr.mxu0 0.0
    %v475 = vand.u32 %v58, 4294901760
    %v476 = vsub.f32 %v58, %v475
    %v477 = vand.u32 %v476, 4294901760
    %478 = vmatpush1.msra.mxu0 %v477
    %479 = vmatprep.subr.mxu0 0.0
    %v480 = vand.u32 %v57, 4294901760
    %v481 = vsub.f32 %v57, %v480
    %v482 = vand.u32 %v481, 4294901760
    %483 = vmatpush1.msra.mxu0 %v482
    %484 = vmatprep.subr.mxu0 0.0
    %v485 = vand.u32 %v56, 4294901760
    %v486 = vsub.f32 %v56, %v485
    %v487 = vand.u32 %v486, 4294901760
    %488 = vmatpush1.msra.mxu0 %v487
    %489 = vmatprep.subr.mxu0 0.0
    %490 = vmatpush2.msra.mxu0 0.0
    %491 = vmatprep.subr.mxu0 0.0
    %492 = vmatpush2.msra.mxu0 0.0
    %493 = vmatprep.subr.mxu0 0.0
    %494 = vmatpush2.msra.mxu0 0.0
    %495 = vmatprep.subr.mxu0 0.0
    %496 = vmatpush2.msra.mxu0 0.0
    %497 = vmatprep.subr.mxu0 0.0
    %498 = vmatpush2.msra.mxu0 0.0
    %499 = vmatprep.subr.mxu0 0.0
    %500 = vmatpush2.msra.mxu0 0.0
    %501 = vmatprep.subr.mxu0 0.0
    %502 = vmatpush2.msra.mxu0 0.0
    %503 = vmatprep.subr.mxu0 0.0
    %504 = vmatpush2.msra.mxu0 0.0
    %505 = vmatprep.subr.mxu0 0.0
    %506 = vmatpush2.msra.mxu0 0.0
    %507 = vmatprep.subr.mxu0 0.0
    %508 = vmatpush2.msra.mxu0 0.0
    %509 = vmatprep.subr.mxu0 0.0
    %510 = vmatpush2.msra.mxu0 0.0
    %511 = vmatprep.subr.mxu0 0.0
    %512 = vmatpush2.msra.mxu0 0.0
    %513 = vmatprep.subr.mxu0 0.0
    %514 = vmatpush2.msra.mxu0 0.0
    %515 = vmatprep.subr.mxu0 0.0
    %516 = vmatpush2.msra.mxu0 0.0
    %517 = vmatprep.subr.mxu0 0.0
    %518 = vmatpush2.msra.mxu0 0.0
    %519 = vmatprep.subr.mxu0 0.0
    %520 = vmatpush2.msra.mxu0 0.0
    %521 = vmatprep.mubr.f32.mxu0 0.0
    %v522 = vand.u32 %v70, 4294901760
    %523 = vmatmul.mubr.f32.gmra.mxu0 %v522
    %v524 = vpop.f32.mrf.mxu0
    %v525 = vadd.f32 %v431, %v524
    %v526 = vpop.f32.mrf.mxu0
    %527 = vmatprep.mubr.f32.mxu0 0.0
    %v528 = vand.u32 %v73, 4294901760
    %529 = vmatmul.mubr.f32.gmra.mxu0 %v528
    %v530 = vpop.f32.mrf.mxu0
    %v531 = vadd.f32 %v439, %v530
    %v532 = vpop.f32.mrf.mxu0
    %533 = vdwg.mxu0
    %534 = vmatprep.subr.mxu0 0.0
    %535 = vmatpush1.msra.mxu0 0.0
    %536 = vmatprep.subr.mxu0 0.0
    %537 = vmatpush1.msra.mxu0 0.0
    %538 = vmatprep.subr.mxu0 0.0
    %539 = vmatpush1.msra.mxu0 0.0
    %540 = vmatprep.subr.mxu0 0.0
    %541 = vmatpush1.msra.mxu0 0.0
    %542 = vmatprep.subr.mxu0 0.0
    %543 = vmatpush1.msra.mxu0 0.0
    %544 = vmatprep.subr.mxu0 0.0
    %545 = vmatpush1.msra.mxu0 0.0
    %546 = vmatprep.subr.mxu0 0.0
    %547 = vmatpush1.msra.mxu0 0.0
    %548 = vmatprep.subr.mxu0 0.0
    %549 = vmatpush1.msra.mxu0 0.0
    %550 = vmatprep.subr.mxu0 0.0
    %551 = vmatpush1.msra.mxu0 0.0
    %552 = vmatprep.subr.mxu0 0.0
    %553 = vmatpush1.msra.mxu0 0.0
    %554 = vmatprep.subr.mxu0 0.0
    %555 = vmatpush1.msra.mxu0 0.0
    %556 = vmatprep.subr.mxu0 0.0
    %v557 = vand.u32 %v60, 4294901760
    %558 = vmatpush1.msra.mxu0 %v557
    %559 = vmatprep.subr.mxu0 0.0
    %v560 = vand.u32 %v59, 4294901760
    %561 = vmatpush1.msra.mxu0 %v560
    %562 = vmatprep.subr.mxu0 0.0
    %v563 = vand.u32 %v58, 4294901760
    %564 = vmatpush1.msra.mxu0 %v563
    %565 = vmatprep.subr.mxu0 0.0
    %v566 = vand.u32 %v57, 4294901760
    %567 = vmatpush1.msra.mxu0 %v566
    %568 = vmatprep.subr.mxu0 0.0
    %v569 = vand.u32 %v56, 4294901760
    %570 = vmatpush1.msra.mxu0 %v569
    %571 = vmatprep.subr.mxu0 0.0
    %572 = vmatpush2.msra.mxu0 0.0
    %573 = vmatprep.subr.mxu0 0.0
    %574 = vmatpush2.msra.mxu0 0.0
    %575 = vmatprep.subr.mxu0 0.0
    %576 = vmatpush2.msra.mxu0 0.0
    %577 = vmatprep.subr.mxu0 0.0
    %578 = vmatpush2.msra.mxu0 0.0
    %579 = vmatprep.subr.mxu0 0.0
    %580 = vmatpush2.msra.mxu0 0.0
    %581 = vmatprep.subr.mxu0 0.0
    %582 = vmatpush2.msra.mxu0 0.0
    %583 = vmatprep.subr.mxu0 0.0
    %584 = vmatpush2.msra.mxu0 0.0
    %585 = vmatprep.subr.mxu0 0.0
    %586 = vmatpush2.msra.mxu0 0.0
    %587 = vmatprep.subr.mxu0 0.0
    %588 = vmatpush2.msra.mxu0 0.0
    %589 = vmatprep.subr.mxu0 0.0
    %590 = vmatpush2.msra.mxu0 0.0
    %591 = vmatprep.subr.mxu0 0.0
    %592 = vmatpush2.msra.mxu0 0.0
    %593 = vmatprep.subr.mxu0 0.0
    %594 = vmatpush2.msra.mxu0 0.0
    %595 = vmatprep.subr.mxu0 0.0
    %596 = vmatpush2.msra.mxu0 0.0
    %597 = vmatprep.subr.mxu0 0.0
    %598 = vmatpush2.msra.mxu0 0.0
    %599 = vmatprep.subr.mxu0 0.0
    %600 = vmatpush2.msra.mxu0 0.0
    %601 = vmatprep.subr.mxu0 0.0
    %602 = vmatpush2.msra.mxu0 0.0
    %603 = vmatprep.mubr.f32.mxu0 0.0
    %v604 = vand.u32 %v70, 4294901760
    %605 = vmatmul.mubr.f32.gmra.mxu0 %v604
    %v606 = vpop.f32.mrf.mxu0
    %v607 = vadd.f32 %v525, %v606
    %v608 = vpop.f32.mrf.mxu0
    %609 = vmatprep.mubr.f32.mxu0 0.0
    %v610 = vand.u32 %v73, 4294901760
    %611 = vmatmul.mubr.f32.gmra.mxu0 %v610
    %v612 = vpop.f32.mrf.mxu0
    %v613 = vadd.f32 %v531, %v612
    %v614 = vpop.f32.mrf.mxu0
    %615 = vdwg.mxu0
    %v616 = vld [vmem:[#allocation4] sm:$0xff]
    %v617 = vld [vmem:[#allocation4 + $0x8] sm:$0xff]
    %v618 = vld [vmem:[#allocation4 + $0x10] sm:$0xff]
    %v619 = vld [vmem:[#allocation4 + $0x18] sm:$0xff]
    %v620 = vld [vmem:[#allocation4 + $0x20] sm:$0xff]
    %v621 = vld [vmem:[#allocation4 + $0x28] sm:$0xff]
    %v622 = vld [vmem:[#allocation4 + $0x30] sm:$0xff]
    %v623 = vld [vmem:[#allocation4 + $0x38] sm:$0xff]
    %v624 = vld [vmem:[#allocation4 + $0x40] sm:$0xff]
    %v625 = vld [vmem:[#allocation4 + $0x48] sm:$0xff]
    %v626 = vld [vmem:[#allocation4 + $0x50] sm:$0xff]
    %v627 = vld [vmem:[#allocation4 + $0x58] sm:$0xff]
    %v628 = vld [vmem:[#allocation4 + $0x60] sm:$0xff]
    %v629 = vld [vmem:[#allocation4 + $0x68] sm:$0xff]
    %v630 = vld [vmem:[#allocation4 + $0x70] sm:$0xff]
    %v631 = vld [vmem:[#allocation4 + $0x78] sm:$0xff]
    %v632 = vld [vmem:[%s4] sm:$0x3]
    %v634 = vlaneseq
    %v635 = vshrl.u32 %v634, 7
    %v636 = vsub.s32 0, %v635
    %v637 = vrot.slane %v632, %v636
    %v641 = vrot.slane %v613, 7
    %vm642 = vcmask 1041409
    %v643 = vsel %vm642, %v641, %v607
    %v645 = vadd.f32 %v637, %v643
    %v646 = vxor.u32 %v645, 2147483648
    %v647 = vmul.f32 %v646, 1.442695
    %v648 = vpow.pop %v647
    %v649 = vadd.f32 %v648, 1.0
    %v650 = vrcp.pop %v649
    %v651 = vmul.f32 1.0, %v650
    %v652 = vtanh.pop %v645
    %v653 = vmul.f32 %v651, 0.0
    %655 = vrot.lane.b32.xlu0 %v652, 64
    %v656 = vpop.permute.xlu0 %655
    %v658 = vmul.f32 %v651, %v656
    %660 = vrot.lane.b32.xlu0 %v658, 32
    %v661 = vpop.permute.xlu0 %660
    %v663 = vadd.f32 %v653, %v661
    %v664 = vtanh.pop %v663
    %666 = vrot.lane.b32.xlu0 %v664, 64
    %v667 = vpop.permute.xlu0 %666
    %v669 = vmul.f32 %v651, %v667
    %671 = vrot.lane.b32.xlu0 %v669, 32
    %v672 = vpop.permute.xlu0 %671
    %vm674 = vcmask 261120
    %v675 = vsel %vm674, %v672, 0.0
    %v676 = vlaneseq
    %v677 = vshrl.u32 %v676, 7
    %v678 = vsub.s32 1, %v677
    %v679 = vrot.slane %v632, %v678
    %vm681 = vcmask 523264
    %v683 = vsel %vm681, %v675, 0
    %685 = vmatprep.subr.mxu0 0.0
    %686 = vmatpush1.msra.mxu0 0.0
    %687 = vmatprep.subr.mxu0 0.0
    %688 = vmatpush1.msra.mxu0 0.0
    %689 = vmatprep.subr.mxu0 0.0
    %690 = vmatpush1.msra.mxu0 0.0
    %691 = vmatprep.subr.mxu0 0.0
    %692 = vmatpush1.msra.mxu0 0.0
    %693 = vmatprep.subr.mxu0 0.0
    %694 = vmatpush1.msra.mxu0 0.0
    %695 = vmatprep.subr.mxu0 0.0
    %696 = vmatpush1.msra.mxu0 0.0
    %697 = vmatprep.subr.mxu0 0.0
    %698 = vmatpush1.msra.mxu0 0.0
    %699 = vmatprep.subr.mxu0 0.0
    %700 = vmatpush1.msra.mxu0 0.0
    %v701 = vand.u32 %v631, 4294901760
    %702 = vmatprep.subr.mxu0 %v701
    %v703 = vand.u32 %v630, 4294901760
    %704 = vmatpush1.msra.mxu0 %v703
    %v705 = vand.u32 %v629, 4294901760
    %706 = vmatprep.subr.mxu0 %v705
    %v707 = vand.u32 %v628, 4294901760
    %708 = vmatpush1.msra.mxu0 %v707
    %v709 = vand.u32 %v627, 4294901760
    %710 = vmatprep.subr.mxu0 %v709
    %v711 = vand.u32 %v626, 4294901760
    %712 = vmatpush1.msra.mxu0 %v711
    %v713 = vand.u32 %v625, 4294901760
    %714 = vmatprep.subr.mxu0 %v713
    %v715 = vand.u32 %v624, 4294901760
    %716 = vmatpush1.msra.mxu0 %v715
    %v717 = vand.u32 %v623, 4294901760
    %718 = vmatprep.subr.mxu0 %v717
    %v719 = vand.u32 %v622, 4294901760
    %720 = vmatpush1.msra.mxu0 %v719
    %v721 = vand.u32 %v621, 4294901760
    %722 = vmatprep.subr.mxu0 %v721
    %v723 = vand.u32 %v620, 4294901760
    %724 = vmatpush1.msra.mxu0 %v723
    %v725 = vand.u32 %v619, 4294901760
    %726 = vmatprep.subr.mxu0 %v725
    %v727 = vand.u32 %v618, 4294901760
    %728 = vmatpush1.msra.mxu0 %v727
    %v729 = vand.u32 %v617, 4294901760
    %730 = vmatprep.subr.mxu0 %v729
    %v731 = vand.u32 %v616, 4294901760
    %732 = vmatpush1.msra.mxu0 %v731
    %733 = vmatprep.subr.mxu0 0.0
    %734 = vmatpush2.msra.mxu0 0.0
    %735 = vmatprep.subr.mxu0 0.0
    %736 = vmatpush2.msra.mxu0 0.0
    %737 = vmatprep.subr.mxu0 0.0
    %738 = vmatpush2.msra.mxu0 0.0
    %739 = vmatprep.subr.mxu0 0.0
    %740 = vmatpush2.msra.mxu0 0.0
    %741 = vmatprep.subr.mxu0 0.0
    %742 = vmatpush2.msra.mxu0 0.0
    %743 = vmatprep.subr.mxu0 0.0
    %744 = vmatpush2.msra.mxu0 0.0
    %745 = vmatprep.subr.mxu0 0.0
    %746 = vmatpush2.msra.mxu0 0.0
    %747 = vmatprep.subr.mxu0 0.0
    %748 = vmatpush2.msra.mxu0 0.0
    %749 = vmatprep.subr.mxu0 0.0
    %750 = vmatpush2.msra.mxu0 0.0
    %751 = vmatprep.subr.mxu0 0.0
    %752 = vmatpush2.msra.mxu0 0.0
    %753 = vmatprep.subr.mxu0 0.0
    %754 = vmatpush2.msra.mxu0 0.0
    %755 = vmatprep.subr.mxu0 0.0
    %756 = vmatpush2.msra.mxu0 0.0
    %757 = vmatprep.subr.mxu0 0.0
    %758 = vmatpush2.msra.mxu0 0.0
    %759 = vmatprep.subr.mxu0 0.0
    %760 = vmatpush2.msra.mxu0 0.0
    %761 = vmatprep.subr.mxu0 0.0
    %762 = vmatpush2.msra.mxu0 0.0
    %763 = vmatprep.subr.mxu0 0.0
    %764 = vmatpush2.msra.mxu0 0.0
    %765 = vmatprep.mubr.f32.mxu0 0.0
    %v766 = vand.u32 %v683, 4294901760
    %v767 = vsub.f32 %v683, %v766
    %v768 = vand.u32 %v767, 4294901760
    %v769 = vsub.f32 %v767, %v768
    %v770 = vand.u32 %v769, 4294901760
    %771 = vmatmul.mubr.f32.gmra.mxu0 %v770
    %v772 = vpop.f32.mrf.mxu0
    %v773 = vadd.f32 %v637, %v772
    %v774 = vpop.f32.mrf.mxu0
    %v775 = vadd.f32 %v679, %v774
    %776 = vdwg.mxu0
    %777 = vmatprep.subr.mxu0 0.0
    %778 = vmatpush1.msra.mxu0 0.0
    %779 = vmatprep.subr.mxu0 0.0
    %780 = vmatpush1.msra.mxu0 0.0
    %781 = vmatprep.subr.mxu0 0.0
    %782 = vmatpush1.msra.mxu0 0.0
    %783 = vmatprep.subr.mxu0 0.0
    %784 = vmatpush1.msra.mxu0 0.0
    %785 = vmatprep.subr.mxu0 0.0
    %786 = vmatpush1.msra.mxu0 0.0
    %787 = vmatprep.subr.mxu0 0.0
    %788 = vmatpush1.msra.mxu0 0.0
    %789 = vmatprep.subr.mxu0 0.0
    %790 = vmatpush1.msra.mxu0 0.0
    %791 = vmatprep.subr.mxu0 0.0
    %792 = vmatpush1.msra.mxu0 0.0
    %v793 = vand.u32 %v631, 4294901760
    %v794 = vsub.f32 %v631, %v793
    %v795 = vand.u32 %v794, 4294901760
    %v796 = vsub.f32 %v794, %v795
    %v797 = vand.u32 %v796, 4294901760
    %798 = vmatprep.subr.mxu0 %v797
    %v799 = vand.u32 %v630, 4294901760
    %v800 = vsub.f32 %v630, %v799
    %v801 = vand.u32 %v800, 4294901760
    %v802 = vsub.f32 %v800, %v801
    %v803 = vand.u32 %v802, 4294901760
    %804 = vmatpush1.msra.mxu0 %v803
    %v805 = vand.u32 %v629, 4294901760
    %v806 = vsub.f32 %v629, %v805
    %v807 = vand.u32 %v806, 4294901760
    %v808 = vsub.f32 %v806, %v807
    %v809 = vand.u32 %v808, 4294901760
    %810 = vmatprep.subr.mxu0 %v809
    %v811 = vand.u32 %v628, 4294901760
    %v812 = vsub.f32 %v628, %v811
    %v813 = vand.u32 %v812, 4294901760
    %v814 = vsub.f32 %v812, %v813
    %v815 = vand.u32 %v814, 4294901760
    %816 = vmatpush1.msra.mxu0 %v815
    %v817 = vand.u32 %v627, 4294901760
    %v818 = vsub.f32 %v627, %v817
    %v819 = vand.u32 %v818, 4294901760
    %v820 = vsub.f32 %v818, %v819
    %v821 = vand.u32 %v820, 4294901760
    %822 = vmatprep.subr.mxu0 %v821
    %v823 = vand.u32 %v626, 4294901760
    %v824 = vsub.f32 %v626, %v823
    %v825 = vand.u32 %v824, 4294901760
    %v826 = vsub.f32 %v824, %v825
    %v827 = vand.u32 %v826, 4294901760
    %828 = vmatpush1.msra.mxu0 %v827
    %v829 = vand.u32 %v625, 4294901760
    %v830 = vsub.f32 %v625, %v829
    %v831 = vand.u32 %v830, 4294901760
    %v832 = vsub.f32 %v830, %v831
    %v833 = vand.u32 %v832, 4294901760
    %834 = vmatprep.subr.mxu0 %v833
    %v835 = vand.u32 %v624, 4294901760
    %v836 = vsub.f32 %v624, %v835
    %v837 = vand.u32 %v836, 4294901760
    %v838 = vsub.f32 %v836, %v837
    %v839 = vand.u32 %v838, 4294901760
    %840 = vmatpush1.msra.mxu0 %v839
    %v841 = vand.u32 %v623, 4294901760
    %v842 = vsub.f32 %v623, %v841
    %v843 = vand.u32 %v842, 4294901760
    %v844 = vsub.f32 %v842, %v843
    %v845 = vand.u32 %v844, 4294901760
    %846 = vmatprep.subr.mxu0 %v845
    %v847 = vand.u32 %v622, 4294901760
    %v848 = vsub.f32 %v622, %v847
    %v849 = vand.u32 %v848, 4294901760
    %v850 = vsub.f32 %v848, %v849
    %v851 = vand.u32 %v850, 4294901760
    %852 = vmatpush1.msra.mxu0 %v851
    %v853 = vand.u32 %v621, 4294901760
    %v854 = vsub.f32 %v621, %v853
    %v855 = vand.u32 %v854, 4294901760
    %v856 = vsub.f32 %v854, %v855
    %v857 = vand.u32 %v856, 4294901760
    %858 = vmatprep.subr.mxu0 %v857
    %v859 = vand.u32 %v620, 4294901760
    %v860 = vsub.f32 %v620, %v859
    %v861 = vand.u32 %v860, 4294901760
    %v862 = vsub.f32 %v860, %v861
    %v863 = vand.u32 %v862, 4294901760
    %864 = vmatpush1.msra.mxu0 %v863
    %v865 = vand.u32 %v619, 4294901760
    %v866 = vsub.f32 %v619, %v865
    %v867 = vand.u32 %v866, 4294901760
    %v868 = vsub.f32 %v866, %v867
    %v869 = vand.u32 %v868, 4294901760
    %870 = vmatprep.subr.mxu0 %v869
    %v871 = vand.u32 %v618, 4294901760
    %v872 = vsub.f32 %v618, %v871
    %v873 = vand.u32 %v872, 4294901760
    %v874 = vsub.f32 %v872, %v873
    %v875 = vand.u32 %v874, 4294901760
    %876 = vmatpush1.msra.mxu0 %v875
    %v877 = vand.u32 %v617, 4294901760
    %v878 = vsub.f32 %v617, %v877
    %v879 = vand.u32 %v878, 4294901760
    %v880 = vsub.f32 %v878, %v879
    %v881 = vand.u32 %v880, 4294901760
    %882 = vmatprep.subr.mxu0 %v881
    %v883 = vand.u32 %v616, 4294901760
    %v884 = vsub.f32 %v616, %v883
    %v885 = vand.u32 %v884, 4294901760
    %v886 = vsub.f32 %v884, %v885
    %v887 = vand.u32 %v886, 4294901760
    %888 = vmatpush1.msra.mxu0 %v887
    %889 = vmatprep.subr.mxu0 0.0
    %890 = vmatpush2.msra.mxu0 0.0
    %891 = vmatprep.subr.mxu0 0.0
    %892 = vmatpush2.msra.mxu0 0.0
    %893 = vmatprep.subr.mxu0 0.0
    %894 = vmatpush2.msra.mxu0 0.0
    %895 = vmatprep.subr.mxu0 0.0
    %896 = vmatpush2.msra.mxu0 0.0
    %897 = vmatprep.subr.mxu0 0.0
    %898 = vmatpush2.msra.mxu0 0.0
    %899 = vmatprep.subr.mxu0 0.0
    %900 = vmatpush2.msra.mxu0 0.0
    %901 = vmatprep.subr.mxu0 0.0
    %902 = vmatpush2.msra.mxu0 0.0
    %903 = vmatprep.subr.mxu0 0.0
    %904 = vmatpush2.msra.mxu0 0.0
    %905 = vmatprep.subr.mxu0 0.0
    %906 = vmatpush2.msra.mxu0 0.0
    %907 = vmatprep.subr.mxu0 0.0
    %908 = vmatpush2.msra.mxu0 0.0
    %909 = vmatprep.subr.mxu0 0.0
    %910 = vmatpush2.msra.mxu0 0.0
    %911 = vmatprep.subr.mxu0 0.0
    %912 = vmatpush2.msra.mxu0 0.0
    %913 = vmatprep.subr.mxu0 0.0
    %914 = vmatpush2.msra.mxu0 0.0
    %915 = vmatprep.subr.mxu0 0.0
    %916 = vmatpush2.msra.mxu0 0.0
    %917 = vmatprep.subr.mxu0 0.0
    %918 = vmatpush2.msra.mxu0 0.0
    %919 = vmatprep.subr.mxu0 0.0
    %920 = vmatpush2.msra.mxu0 0.0
    %921 = vmatprep.mubr.f32.mxu0 0.0
    %v922 = vand.u32 %v683, 4294901760
    %923 = vmatmul.mubr.f32.gmra.mxu0 %v922
    %v924 = vpop.f32.mrf.mxu0
    %v925 = vadd.f32 %v773, %v924
    %v926 = vpop.f32.mrf.mxu0
    %v927 = vadd.f32 %v775, %v926
    %928 = vdwg.mxu0
    %929 = vmatprep.subr.mxu0 0.0
    %930 = vmatpush1.msra.mxu0 0.0
    %931 = vmatprep.subr.mxu0 0.0
    %932 = vmatpush1.msra.mxu0 0.0
    %933 = vmatprep.subr.mxu0 0.0
    %934 = vmatpush1.msra.mxu0 0.0
    %935 = vmatprep.subr.mxu0 0.0
    %936 = vmatpush1.msra.mxu0 0.0
    %937 = vmatprep.subr.mxu0 0.0
    %938 = vmatpush1.msra.mxu0 0.0
    %939 = vmatprep.subr.mxu0 0.0
    %940 = vmatpush1.msra.mxu0 0.0
    %941 = vmatprep.subr.mxu0 0.0
    %942 = vmatpush1.msra.mxu0 0.0
    %943 = vmatprep.subr.mxu0 0.0
    %944 = vmatpush1.msra.mxu0 0.0
    %v945 = vand.u32 %v631, 4294901760
    %v946 = vsub.f32 %v631, %v945
    %947 = vmatprep.subr.mxu0 %v946
    %v948 = vand.u32 %v630, 4294901760
    %v949 = vsub.f32 %v630, %v948
    %950 = vmatpush1.msra.mxu0 %v949
    %v951 = vand.u32 %v629, 4294901760
    %v952 = vsub.f32 %v629, %v951
    %953 = vmatprep.subr.mxu0 %v952
    %v954 = vand.u32 %v628, 4294901760
    %v955 = vsub.f32 %v628, %v954
    %956 = vmatpush1.msra.mxu0 %v955
    %v957 = vand.u32 %v627, 4294901760
    %v958 = vsub.f32 %v627, %v957
    %959 = vmatprep.subr.mxu0 %v958
    %v960 = vand.u32 %v626, 4294901760
    %v961 = vsub.f32 %v626, %v960
    %962 = vmatpush1.msra.mxu0 %v961
    %v963 = vand.u32 %v625, 4294901760
    %v964 = vsub.f32 %v625, %v963
    %965 = vmatprep.subr.mxu0 %v964
    %v966 = vand.u32 %v624, 4294901760
    %v967 = vsub.f32 %v624, %v966
    %968 = vmatpush1.msra.mxu0 %v967
    %v969 = vand.u32 %v623, 4294901760
    %v970 = vsub.f32 %v623, %v969
    %971 = vmatprep.subr.mxu0 %v970
    %v972 = vand.u32 %v622, 4294901760
    %v973 = vsub.f32 %v622, %v972
    %974 = vmatpush1.msra.mxu0 %v973
    %v975 = vand.u32 %v621, 4294901760
    %v976 = vsub.f32 %v621, %v975
    %977 = vmatprep.subr.mxu0 %v976
    %v978 = vand.u32 %v620, 4294901760
    %v979 = vsub.f32 %v620, %v978
    %980 = vmatpush1.msra.mxu0 %v979
    %v981 = vand.u32 %v619, 4294901760
    %v982 = vsub.f32 %v619, %v981
    %983 = vmatprep.subr.mxu0 %v982
    %v984 = vand.u32 %v618, 4294901760
    %v985 = vsub.f32 %v618, %v984
    %986 = vmatpush1.msra.mxu0 %v985
    %v987 = vand.u32 %v617, 4294901760
    %v988 = vsub.f32 %v617, %v987
    %989 = vmatprep.subr.mxu0 %v988
    %v990 = vand.u32 %v616, 4294901760
    %v991 = vsub.f32 %v616, %v990
    %992 = vmatpush1.msra.mxu0 %v991
    %993 = vmatprep.subr.mxu0 0.0
    %994 = vmatpush2.msra.mxu0 0.0
    %995 = vmatprep.subr.mxu0 0.0
    %996 = vmatpush2.msra.mxu0 0.0
    %997 = vmatprep.subr.mxu0 0.0
    %998 = vmatpush2.msra.mxu0 0.0
    %999 = vmatprep.subr.mxu0 0.0
    %1000 = vmatpush2.msra.mxu0 0.0
    %1001 = vmatprep.subr.mxu0 0.0
    %1002 = vmatpush2.msra.mxu0 0.0
    %1003 = vmatprep.subr.mxu0 0.0
    %1004 = vmatpush2.msra.mxu0 0.0
    %1005 = vmatprep.subr.mxu0 0.0
    %1006 = vmatpush2.msra.mxu0 0.0
    %1007 = vmatprep.subr.mxu0 0.0
    %1008 = vmatpush2.msra.mxu0 0.0
    %1009 = vmatprep.subr.mxu0 0.0
    %1010 = vmatpush2.msra.mxu0 0.0
    %1011 = vmatprep.subr.mxu0 0.0
    %1012 = vmatpush2.msra.mxu0 0.0
    %1013 = vmatprep.subr.mxu0 0.0
    %1014 = vmatpush2.msra.mxu0 0.0
    %1015 = vmatprep.subr.mxu0 0.0
    %1016 = vmatpush2.msra.mxu0 0.0
    %1017 = vmatprep.subr.mxu0 0.0
    %1018 = vmatpush2.msra.mxu0 0.0
    %1019 = vmatprep.subr.mxu0 0.0
    %1020 = vmatpush2.msra.mxu0 0.0
    %1021 = vmatprep.subr.mxu0 0.0
    %1022 = vmatpush2.msra.mxu0 0.0
    %1023 = vmatprep.subr.mxu0 0.0
    %1024 = vmatpush2.msra.mxu0 0.0
    %1025 = vmatprep.mubr.f32.mxu0 0.0
    %v1026 = vand.u32 %v683, 4294901760
    %v1027 = vsub.f32 %v683, %v1026
    %1028 = vmatmul.mubr.f32.gmra.mxu0 %v1027
    %v1029 = vpop.f32.mrf.mxu0
    %v1030 = vadd.f32 %v925, %v1029
    %v1031 = vpop.f32.mrf.mxu0
    %v1032 = vadd.f32 %v927, %v1031
    %1033 = vdwg.mxu0
    %1034 = vmatprep.subr.mxu0 0.0
    %1035 = vmatpush1.msra.mxu0 0.0
    %1036 = vmatprep.subr.mxu0 0.0
    %1037 = vmatpush1.msra.mxu0 0.0
    %1038 = vmatprep.subr.mxu0 0.0
    %1039 = vmatpush1.msra.mxu0 0.0
    %1040 = vmatprep.subr.mxu0 0.0
    %1041 = vmatpush1.msra.mxu0 0.0
    %1042 = vmatprep.subr.mxu0 0.0
    %1043 = vmatpush1.msra.mxu0 0.0
    %1044 = vmatprep.subr.mxu0 0.0
    %1045 = vmatpush1.msra.mxu0 0.0
    %1046 = vmatprep.subr.mxu0 0.0
    %1047 = vmatpush1.msra.mxu0 0.0
    %1048 = vmatprep.subr.mxu0 0.0
    %1049 = vmatpush1.msra.mxu0 0.0
    %v1050 = vand.u32 %v631, 4294901760
    %1051 = vmatprep.subr.mxu0 %v1050
    %v1052 = vand.u32 %v630, 4294901760
    %1053 = vmatpush1.msra.mxu0 %v1052
    %v1054 = vand.u32 %v629, 4294901760
    %1055 = vmatprep.subr.mxu0 %v1054
    %v1056 = vand.u32 %v628, 4294901760
    %1057 = vmatpush1.msra.mxu0 %v1056
    %v1058 = vand.u32 %v627, 4294901760
    %1059 = vmatprep.subr.mxu0 %v1058
    %v1060 = vand.u32 %v626, 4294901760
    %1061 = vmatpush1.msra.mxu0 %v1060
    %v1062 = vand.u32 %v625, 4294901760
    %1063 = vmatprep.subr.mxu0 %v1062
    %v1064 = vand.u32 %v624, 4294901760
    %1065 = vmatpush1.msra.mxu0 %v1064
    %v1066 = vand.u32 %v623, 4294901760
    %1067 = vmatprep.subr.mxu0 %v1066
    %v1068 = vand.u32 %v622, 4294901760
    %1069 = vmatpush1.msra.mxu0 %v1068
    %v1070 = vand.u32 %v621, 4294901760
    %1071 = vmatprep.subr.mxu0 %v1070
    %v1072 = vand.u32 %v620, 4294901760
    %1073 = vmatpush1.msra.mxu0 %v1072
    %v1074 = vand.u32 %v619, 4294901760
    %1075 = vmatprep.subr.mxu0 %v1074
    %v1076 = vand.u32 %v618, 4294901760
    %1077 = vmatpush1.msra.mxu0 %v1076
    %v1078 = vand.u32 %v617, 4294901760
    %1079 = vmatprep.subr.mxu0 %v1078
    %v1080 = vand.u32 %v616, 4294901760
    %1081 = vmatpush1.msra.mxu0 %v1080
    %1082 = vmatprep.subr.mxu0 0.0
    %1083 = vmatpush2.msra.mxu0 0.0
    %1084 = vmatprep.subr.mxu0 0.0
    %1085 = vmatpush2.msra.mxu0 0.0
    %1086 = vmatprep.subr.mxu0 0.0
    %1087 = vmatpush2.msra.mxu0 0.0
    %1088 = vmatprep.subr.mxu0 0.0
    %1089 = vmatpush2.msra.mxu0 0.0
    %1090 = vmatprep.subr.mxu0 0.0
    %1091 = vmatpush2.msra.mxu0 0.0
    %1092 = vmatprep.subr.mxu0 0.0
    %1093 = vmatpush2.msra.mxu0 0.0
    %1094 = vmatprep.subr.mxu0 0.0
    %1095 = vmatpush2.msra.mxu0 0.0
    %1096 = vmatprep.subr.mxu0 0.0
    %1097 = vmatpush2.msra.mxu0 0.0
    %1098 = vmatprep.subr.mxu0 0.0
    %1099 = vmatpush2.msra.mxu0 0.0
    %1100 = vmatprep.subr.mxu0 0.0
    %1101 = vmatpush2.msra.mxu0 0.0
    %1102 = vmatprep.subr.mxu0 0.0
    %1103 = vmatpush2.msra.mxu0 0.0
    %1104 = vmatprep.subr.mxu0 0.0
    %1105 = vmatpush2.msra.mxu0 0.0
    %1106 = vmatprep.subr.mxu0 0.0
    %1107 = vmatpush2.msra.mxu0 0.0
    %1108 = vmatprep.subr.mxu0 0.0
    %1109 = vmatpush2.msra.mxu0 0.0
    %1110 = vmatprep.subr.mxu0 0.0
    %1111 = vmatpush2.msra.mxu0 0.0
    %1112 = vmatprep.subr.mxu0 0.0
    %1113 = vmatpush2.msra.mxu0 0.0
    %1114 = vmatprep.mubr.f32.mxu0 0.0
    %v1115 = vand.u32 %v683, 4294901760
    %v1116 = vsub.f32 %v683, %v1115
    %v1117 = vand.u32 %v1116, 4294901760
    %1118 = vmatmul.mubr.f32.gmra.mxu0 %v1117
    %v1119 = vpop.f32.mrf.mxu0
    %v1120 = vadd.f32 %v1030, %v1119
    %v1121 = vpop.f32.mrf.mxu0
    %v1122 = vadd.f32 %v1032, %v1121
    %1123 = vdwg.mxu0
    %1124 = vmatprep.subr.mxu0 0.0
    %1125 = vmatpush1.msra.mxu0 0.0
    %1126 = vmatprep.subr.mxu0 0.0
    %1127 = vmatpush1.msra.mxu0 0.0
    %1128 = vmatprep.subr.mxu0 0.0
    %1129 = vmatpush1.msra.mxu0 0.0
    %1130 = vmatprep.subr.mxu0 0.0
    %1131 = vmatpush1.msra.mxu0 0.0
    %1132 = vmatprep.subr.mxu0 0.0
    %1133 = vmatpush1.msra.mxu0 0.0
    %1134 = vmatprep.subr.mxu0 0.0
    %1135 = vmatpush1.msra.mxu0 0.0
    %1136 = vmatprep.subr.mxu0 0.0
    %1137 = vmatpush1.msra.mxu0 0.0
    %1138 = vmatprep.subr.mxu0 0.0
    %1139 = vmatpush1.msra.mxu0 0.0
    %v1140 = vand.u32 %v631, 4294901760
    %v1141 = vsub.f32 %v631, %v1140
    %v1142 = vand.u32 %v1141, 4294901760
    %1143 = vmatprep.subr.mxu0 %v1142
    %v1144 = vand.u32 %v630, 4294901760
    %v1145 = vsub.f32 %v630, %v1144
    %v1146 = vand.u32 %v1145, 4294901760
    %1147 = vmatpush1.msra.mxu0 %v1146
    %v1148 = vand.u32 %v629, 4294901760
    %v1149 = vsub.f32 %v629, %v1148
    %v1150 = vand.u32 %v1149, 4294901760
    %1151 = vmatprep.subr.mxu0 %v1150
    %v1152 = vand.u32 %v628, 4294901760
    %v1153 = vsub.f32 %v628, %v1152
    %v1154 = vand.u32 %v1153, 4294901760
    %1155 = vmatpush1.msra.mxu0 %v1154
    %v1156 = vand.u32 %v627, 4294901760
    %v1157 = vsub.f32 %v627, %v1156
    %v1158 = vand.u32 %v1157, 4294901760
    %1159 = vmatprep.subr.mxu0 %v1158
    %v1160 = vand.u32 %v626, 4294901760
    %v1161 = vsub.f32 %v626, %v1160
    %v1162 = vand.u32 %v1161, 4294901760
    %1163 = vmatpush1.msra.mxu0 %v1162
    %v1164 = vand.u32 %v625, 4294901760
    %v1165 = vsub.f32 %v625, %v1164
    %v1166 = vand.u32 %v1165, 4294901760
    %1167 = vmatprep.subr.mxu0 %v1166
    %v1168 = vand.u32 %v624, 4294901760
    %v1169 = vsub.f32 %v624, %v1168
    %v1170 = vand.u32 %v1169, 4294901760
    %1171 = vmatpush1.msra.mxu0 %v1170
    %v1172 = vand.u32 %v623, 4294901760
    %v1173 = vsub.f32 %v623, %v1172
    %v1174 = vand.u32 %v1173, 4294901760
    %1175 = vmatprep.subr.mxu0 %v1174
    %v1176 = vand.u32 %v622, 4294901760
    %v1177 = vsub.f32 %v622, %v1176
    %v1178 = vand.u32 %v1177, 4294901760
    %1179 = vmatpush1.msra.mxu0 %v1178
    %v1180 = vand.u32 %v621, 4294901760
    %v1181 = vsub.f32 %v621, %v1180
    %v1182 = vand.u32 %v1181, 4294901760
    %1183 = vmatprep.subr.mxu0 %v1182
    %v1184 = vand.u32 %v620, 4294901760
    %v1185 = vsub.f32 %v620, %v1184
    %v1186 = vand.u32 %v1185, 4294901760
    %1187 = vmatpush1.msra.mxu0 %v1186
    %v1188 = vand.u32 %v619, 4294901760
    %v1189 = vsub.f32 %v619, %v1188
    %v1190 = vand.u32 %v1189, 4294901760
    %1191 = vmatprep.subr.mxu0 %v1190
    %v1192 = vand.u32 %v618, 4294901760
    %v1193 = vsub.f32 %v618, %v1192
    %v1194 = vand.u32 %v1193, 4294901760
    %1195 = vmatpush1.msra.mxu0 %v1194
    %v1196 = vand.u32 %v617, 4294901760
    %v1197 = vsub.f32 %v617, %v1196
    %v1198 = vand.u32 %v1197, 4294901760
    %1199 = vmatprep.subr.mxu0 %v1198
    %v1200 = vand.u32 %v616, 4294901760
    %v1201 = vsub.f32 %v616, %v1200
    %v1202 = vand.u32 %v1201, 4294901760
    %1203 = vmatpush1.msra.mxu0 %v1202
    %1204 = vmatprep.subr.mxu0 0.0
    %1205 = vmatpush2.msra.mxu0 0.0
    %1206 = vmatprep.subr.mxu0 0.0
    %1207 = vmatpush2.msra.mxu0 0.0
    %1208 = vmatprep.subr.mxu0 0.0
    %1209 = vmatpush2.msra.mxu0 0.0
    %1210 = vmatprep.subr.mxu0 0.0
    %1211 = vmatpush2.msra.mxu0 0.0
    %1212 = vmatprep.subr.mxu0 0.0
    %1213 = vmatpush2.msra.mxu0 0.0
    %1214 = vmatprep.subr.mxu0 0.0
    %1215 = vmatpush2.msra.mxu0 0.0
    %1216 = vmatprep.subr.mxu0 0.0
    %1217 = vmatpush2.msra.mxu0 0.0
    %1218 = vmatprep.subr.mxu0 0.0
    %1219 = vmatpush2.msra.mxu0 0.0
    %1220 = vmatprep.subr.mxu0 0.0
    %1221 = vmatpush2.msra.mxu0 0.0
    %1222 = vmatprep.subr.mxu0 0.0
    %1223 = vmatpush2.msra.mxu0 0.0
    %1224 = vmatprep.subr.mxu0 0.0
    %1225 = vmatpush2.msra.mxu0 0.0
    %1226 = vmatprep.subr.mxu0 0.0
    %1227 = vmatpush2.msra.mxu0 0.0
    %1228 = vmatprep.subr.mxu0 0.0
    %1229 = vmatpush2.msra.mxu0 0.0
    %1230 = vmatprep.subr.mxu0 0.0
    %1231 = vmatpush2.msra.mxu0 0.0
    %1232 = vmatprep.subr.mxu0 0.0
    %1233 = vmatpush2.msra.mxu0 0.0
    %1234 = vmatprep.subr.mxu0 0.0
    %1235 = vmatpush2.msra.mxu0 0.0
    %1236 = vmatprep.mubr.f32.mxu0 0.0
    %v1237 = vand.u32 %v683, 4294901760
    %1238 = vmatmul.mubr.f32.gmra.mxu0 %v1237
    %v1239 = vpop.f32.mrf.mxu0
    %v1240 = vadd.f32 %v1120, %v1239
    %v1241 = vpop.f32.mrf.mxu0
    %v1242 = vadd.f32 %v1122, %v1241
    %1243 = vdwg.mxu0
    %1244 = vmatprep.subr.mxu0 0.0
    %1245 = vmatpush1.msra.mxu0 0.0
    %1246 = vmatprep.subr.mxu0 0.0
    %1247 = vmatpush1.msra.mxu0 0.0
    %1248 = vmatprep.subr.mxu0 0.0
    %1249 = vmatpush1.msra.mxu0 0.0
    %1250 = vmatprep.subr.mxu0 0.0
    %1251 = vmatpush1.msra.mxu0 0.0
    %1252 = vmatprep.subr.mxu0 0.0
    %1253 = vmatpush1.msra.mxu0 0.0
    %1254 = vmatprep.subr.mxu0 0.0
    %1255 = vmatpush1.msra.mxu0 0.0
    %1256 = vmatprep.subr.mxu0 0.0
    %1257 = vmatpush1.msra.mxu0 0.0
    %1258 = vmatprep.subr.mxu0 0.0
    %1259 = vmatpush1.msra.mxu0 0.0
    %v1260 = vand.u32 %v631, 4294901760
    %1261 = vmatprep.subr.mxu0 %v1260
    %v1262 = vand.u32 %v630, 4294901760
    %1263 = vmatpush1.msra.mxu0 %v1262
    %v1264 = vand.u32 %v629, 4294901760
    %1265 = vmatprep.subr.mxu0 %v1264
    %v1266 = vand.u32 %v628, 4294901760
    %1267 = vmatpush1.msra.mxu0 %v1266
    %v1268 = vand.u32 %v627, 4294901760
    %1269 = vmatprep.subr.mxu0 %v1268
    %v1270 = vand.u32 %v626, 4294901760
    %1271 = vmatpush1.msra.mxu0 %v1270
    %v1272 = vand.u32 %v625, 4294901760
    %1273 = vmatprep.subr.mxu0 %v1272
    %v1274 = vand.u32 %v624, 4294901760
    %1275 = vmatpush1.msra.mxu0 %v1274
    %v1276 = vand.u32 %v623, 4294901760
    %1277 = vmatprep.subr.mxu0 %v1276
    %v1278 = vand.u32 %v622, 4294901760
    %1279 = vmatpush1.msra.mxu0 %v1278
    %v1280 = vand.u32 %v621, 4294901760
    %1281 = vmatprep.subr.mxu0 %v1280
    %v1282 = vand.u32 %v620, 4294901760
    %1283 = vmatpush1.msra.mxu0 %v1282
    %v1284 = vand.u32 %v619, 4294901760
    %1285 = vmatprep.subr.mxu0 %v1284
    %v1286 = vand.u32 %v618, 4294901760
    %1287 = vmatpush1.msra.mxu0 %v1286
    %v1288 = vand.u32 %v617, 4294901760
    %1289 = vmatprep.subr.mxu0 %v1288
    %v1290 = vand.u32 %v616, 4294901760
    %1291 = vmatpush1.msra.mxu0 %v1290
    %1292 = vmatprep.subr.mxu0 0.0
    %1293 = vmatpush2.msra.mxu0 0.0
    %1294 = vmatprep.subr.mxu0 0.0
    %1295 = vmatpush2.msra.mxu0 0.0
    %1296 = vmatprep.subr.mxu0 0.0
    %1297 = vmatpush2.msra.mxu0 0.0
    %1298 = vmatprep.subr.mxu0 0.0
    %1299 = vmatpush2.msra.mxu0 0.0
    %1300 = vmatprep.subr.mxu0 0.0
    %1301 = vmatpush2.msra.mxu0 0.0
    %1302 = vmatprep.subr.mxu0 0.0
    %1303 = vmatpush2.msra.mxu0 0.0
    %1304 = vmatprep.subr.mxu0 0.0
    %1305 = vmatpush2.msra.mxu0 0.0
    %1306 = vmatprep.subr.mxu0 0.0
    %1307 = vmatpush2.msra.mxu0 0.0
    %1308 = vmatprep.subr.mxu0 0.0
    %1309 = vmatpush2.msra.mxu0 0.0
    %1310 = vmatprep.subr.mxu0 0.0
    %1311 = vmatpush2.msra.mxu0 0.0
    %1312 = vmatprep.subr.mxu0 0.0
    %1313 = vmatpush2.msra.mxu0 0.0
    %1314 = vmatprep.subr.mxu0 0.0
    %1315 = vmatpush2.msra.mxu0 0.0
    %1316 = vmatprep.subr.mxu0 0.0
    %1317 = vmatpush2.msra.mxu0 0.0
    %1318 = vmatprep.subr.mxu0 0.0
    %1319 = vmatpush2.msra.mxu0 0.0
    %1320 = vmatprep.subr.mxu0 0.0
    %1321 = vmatpush2.msra.mxu0 0.0
    %1322 = vmatprep.subr.mxu0 0.0
    %1323 = vmatpush2.msra.mxu0 0.0
    %1324 = vmatprep.mubr.f32.mxu0 0.0
    %v1325 = vand.u32 %v683, 4294901760
    %1326 = vmatmul.mubr.f32.gmra.mxu0 %v1325
    %v1327 = vpop.f32.mrf.mxu0
    %v1328 = vadd.f32 %v1240, %v1327
    %v1329 = vpop.f32.mrf.mxu0
    %v1330 = vadd.f32 %v1242, %v1329
    %1331 = vdwg.mxu0
    %v1332 = vrot.slane %v607, 1
    %v1333 = vsel %vm642, %v613, %v1332
    %v1335 = vadd.f32 %v1328, %v1333
    %v1336 = vxor.u32 %v1335, 2147483648
    %v1337 = vmul.f32 %v1336, 1.442695
    %v1338 = vpow.pop %v1337
    %v1339 = vadd.f32 %v1338, 1.0
    %v1340 = vrcp.pop %v1339
    %v1341 = vmul.f32 1.0, %v1340
    %v1342 = vtanh.pop %v1335
    %v1343 = vmul.f32 %v1341, %v663
    %1345 = vrot.lane.b32.xlu0 %v1342, 64
    %v1346 = vpop.permute.xlu0 %1345
    %v1348 = vmul.f32 %v1341, %v1346
    %1350 = vrot.lane.b32.xlu0 %v1348, 32
    %v1351 = vpop.permute.xlu0 %1350
    %v1353 = vadd.f32 %v1343, %v1351
    %v1354 = vtanh.pop %v1353
    %1356 = vrot.lane.b32.xlu0 %v1354, 64
    %v1357 = vpop.permute.xlu0 %1356
    %v1359 = vmul.f32 %v1341, %v1357
    %v1360 = vxor.u32 %v1330, 2147483648
    %v1361 = vmul.f32 %v1360, 1.442695
    %v1362 = vpow.pop %v1361
    %v1363 = vadd.f32 %v1362, 1.0
    %v1364 = vrcp.pop %v1363
    %v1365 = vmul.f32 1.0, %v1364
    %v1366 = vtanh.pop %v1330
    %v1367 = vmul.f32 %v1365, 0.0
    %1369 = vrot.lane.b32.xlu0 %v1366, 64
    %v1370 = vpop.permute.xlu0 %1369
    %v1372 = vmul.f32 %v1365, %v1370
    %1374 = vrot.lane.b32.xlu0 %v1372, 32
    %v1375 = vpop.permute.xlu0 %1374
    %v1377 = vadd.f32 %v1367, %v1375
    %v1378 = vtanh.pop %v1377
    %1380 = vrot.lane.b32.xlu0 %v1378, 64
    %v1381 = vpop.permute.xlu0 %1380
    %v1383 = vmul.f32 %v1365, %v1381
    %1385 = vrot.lane.b32.xlu0 %v1359, 32
    %v1386 = vpop.permute.xlu0 %1385
    %1389 = vrot.lane.b32.xlu0 %v1383, 64
    %v1390 = vpop.permute.xlu0 %1389
    %v1392 = vsel %vm674, %v1386, %v1390
    %v1394 = vsel %vm681, %v1392, 0
    %1396 = vmatprep.subr.mxu0 0.0
    %1397 = vmatpush1.msra.mxu0 0.0
    %1398 = vmatprep.subr.mxu0 0.0
    %1399 = vmatpush1.msra.mxu0 0.0
    %1400 = vmatprep.subr.mxu0 0.0
    %1401 = vmatpush1.msra.mxu0 0.0
    %1402 = vmatprep.subr.mxu0 0.0
    %1403 = vmatpush1.msra.mxu0 0.0
    %1404 = vmatprep.subr.mxu0 0.0
    %1405 = vmatpush1.msra.mxu0 0.0
    %1406 = vmatprep.subr.mxu0 0.0
    %1407 = vmatpush1.msra.mxu0 0.0
    %1408 = vmatprep.subr.mxu0 0.0
    %1409 = vmatpush1.msra.mxu0 0.0
    %1410 = vmatprep.subr.mxu0 0.0
    %1411 = vmatpush1.msra.mxu0 0.0
    %v1412 = vand.u32 %v631, 4294901760
    %1413 = vmatprep.subr.mxu0 %v1412
    %v1414 = vand.u32 %v630, 4294901760
    %1415 = vmatpush1.msra.mxu0 %v1414
    %v1416 = vand.u32 %v629, 4294901760
    %1417 = vmatprep.subr.mxu0 %v1416
    %v1418 = vand.u32 %v628, 4294901760
    %1419 = vmatpush1.msra.mxu0 %v1418
    %v1420 = vand.u32 %v627, 4294901760
    %1421 = vmatprep.subr.mxu0 %v1420
    %v1422 = vand.u32 %v626, 4294901760
    %1423 = vmatpush1.msra.mxu0 %v1422
    %v1424 = vand.u32 %v625, 4294901760
    %1425 = vmatprep.subr.mxu0 %v1424
    %v1426 = vand.u32 %v624, 4294901760
    %1427 = vmatpush1.msra.mxu0 %v1426
    %v1428 = vand.u32 %v623, 4294901760
    %1429 = vmatprep.subr.mxu0 %v1428
    %v1430 = vand.u32 %v622, 4294901760
    %1431 = vmatpush1.msra.mxu0 %v1430
    %v1432 = vand.u32 %v621, 4294901760
    %1433 = vmatprep.subr.mxu0 %v1432
    %v1434 = vand.u32 %v620, 4294901760
    %1435 = vmatpush1.msra.mxu0 %v1434
    %v1436 = vand.u32 %v619, 4294901760
    %1437 = vmatprep.subr.mxu0 %v1436
    %v1438 = vand.u32 %v618, 4294901760
    %1439 = vmatpush1.msra.mxu0 %v1438
    %v1440 = vand.u32 %v617, 4294901760
    %1441 = vmatprep.subr.mxu0 %v1440
    %v1442 = vand.u32 %v616, 4294901760
    %1443 = vmatpush1.msra.mxu0 %v1442
    %1444 = vmatprep.subr.mxu0 0.0
    %1445 = vmatpush2.msra.mxu0 0.0
    %1446 = vmatprep.subr.mxu0 0.0
    %1447 = vmatpush2.msra.mxu0 0.0
    %1448 = vmatprep.subr.mxu0 0.0
    %1449 = vmatpush2.msra.mxu0 0.0
    %1450 = vmatprep.subr.mxu0 0.0
    %1451 = vmatpush2.msra.mxu0 0.0
    %1452 = vmatprep.subr.mxu0 0.0
    %1453 = vmatpush2.msra.mxu0 0.0
    %1454 = vmatprep.subr.mxu0 0.0
    %1455 = vmatpush2.msra.mxu0 0.0
    %1456 = vmatprep.subr.mxu0 0.0
    %1457 = vmatpush2.msra.mxu0 0.0
    %1458 = vmatprep.subr.mxu0 0.0
    %1459 = vmatpush2.msra.mxu0 0.0
    %1460 = vmatprep.subr.mxu0 0.0
    %1461 = vmatpush2.msra.mxu0 0.0
    %1462 = vmatprep.subr.mxu0 0.0
    %1463 = vmatpush2.msra.mxu0 0.0
    %1464 = vmatprep.subr.mxu0 0.0
    %1465 = vmatpush2.msra.mxu0 0.0
    %1466 = vmatprep.subr.mxu0 0.0
    %1467 = vmatpush2.msra.mxu0 0.0
    %1468 = vmatprep.subr.mxu0 0.0
    %1469 = vmatpush2.msra.mxu0 0.0
    %1470 = vmatprep.subr.mxu0 0.0
    %1471 = vmatpush2.msra.mxu0 0.0
    %1472 = vmatprep.subr.mxu0 0.0
    %1473 = vmatpush2.msra.mxu0 0.0
    %1474 = vmatprep.subr.mxu0 0.0
    %1475 = vmatpush2.msra.mxu0 0.0
    %1476 = vmatprep.mubr.f32.mxu0 0.0
    %v1477 = vand.u32 %v1394, 4294901760
    %v1478 = vsub.f32 %v1394, %v1477
    %v1479 = vand.u32 %v1478, 4294901760
    %v1480 = vsub.f32 %v1478, %v1479
    %v1481 = vand.u32 %v1480, 4294901760
    %1482 = vmatmul.mubr.f32.gmra.mxu0 %v1481
    %v1483 = vpop.f32.mrf.mxu0
    %v1484 = vadd.f32 %v637, %v1483
    %v1485 = vpop.f32.mrf.mxu0
    %v1486 = vadd.f32 %v679, %v1485
    %1487 = vdwg.mxu0
    %1488 = vmatprep.subr.mxu0 0.0
    %1489 = vmatpush1.msra.mxu0 0.0
    %1490 = vmatprep.subr.mxu0 0.0
    %1491 = vmatpush1.msra.mxu0 0.0
    %1492 = vmatprep.subr.mxu0 0.0
    %1493 = vmatpush1.msra.mxu0 0.0
    %1494 = vmatprep.subr.mxu0 0.0
    %1495 = vmatpush1.msra.mxu0 0.0
    %1496 = vmatprep.subr.mxu0 0.0
    %1497 = vmatpush1.msra.mxu0 0.0
    %1498 = vmatprep.subr.mxu0 0.0
    %1499 = vmatpush1.msra.mxu0 0.0
    %1500 = vmatprep.subr.mxu0 0.0
    %1501 = vmatpush1.msra.mxu0 0.0
    %1502 = vmatprep.subr.mxu0 0.0
    %1503 = vmatpush1.msra.mxu0 0.0
    %v1504 = vand.u32 %v631, 4294901760
    %v1505 = vsub.f32 %v631, %v1504
    %v1506 = vand.u32 %v1505, 4294901760
    %v1507 = vsub.f32 %v1505, %v1506
    %v1508 = vand.u32 %v1507, 4294901760
    %1509 = vmatprep.subr.mxu0 %v1508
    %v1510 = vand.u32 %v630, 4294901760
    %v1511 = vsub.f32 %v630, %v1510
    %v1512 = vand.u32 %v1511, 4294901760
    %v1513 = vsub.f32 %v1511, %v1512
    %v1514 = vand.u32 %v1513, 4294901760
    %1515 = vmatpush1.msra.mxu0 %v1514
    %v1516 = vand.u32 %v629, 4294901760
    %v1517 = vsub.f32 %v629, %v1516
    %v1518 = vand.u32 %v1517, 4294901760
    %v1519 = vsub.f32 %v1517, %v1518
    %v1520 = vand.u32 %v1519, 4294901760
    %1521 = vmatprep.subr.mxu0 %v1520
    %v1522 = vand.u32 %v628, 4294901760
    %v1523 = vsub.f32 %v628, %v1522
    %v1524 = vand.u32 %v1523, 4294901760
    %v1525 = vsub.f32 %v1523, %v1524
    %v1526 = vand.u32 %v1525, 4294901760
    %1527 = vmatpush1.msra.mxu0 %v1526
    %v1528 = vand.u32 %v627, 4294901760
    %v1529 = vsub.f32 %v627, %v1528
    %v1530 = vand.u32 %v1529, 4294901760
    %v1531 = vsub.f32 %v1529, %v1530
    %v1532 = vand.u32 %v1531, 4294901760
    %1533 = vmatprep.subr.mxu0 %v1532
    %v1534 = vand.u32 %v626, 4294901760
    %v1535 = vsub.f32 %v626, %v1534
    %v1536 = vand.u32 %v1535, 4294901760
    %v1537 = vsub.f32 %v1535, %v1536
    %v1538 = vand.u32 %v1537, 4294901760
    %1539 = vmatpush1.msra.mxu0 %v1538
    %v1540 = vand.u32 %v625, 4294901760
    %v1541 = vsub.f32 %v625, %v1540
    %v1542 = vand.u32 %v1541, 4294901760
    %v1543 = vsub.f32 %v1541, %v1542
    %v1544 = vand.u32 %v1543, 4294901760
    %1545 = vmatprep.subr.mxu0 %v1544
    %v1546 = vand.u32 %v624, 4294901760
    %v1547 = vsub.f32 %v624, %v1546
    %v1548 = vand.u32 %v1547, 4294901760
    %v1549 = vsub.f32 %v1547, %v1548
    %v1550 = vand.u32 %v1549, 4294901760
    %1551 = vmatpush1.msra.mxu0 %v1550
    %v1552 = vand.u32 %v623, 4294901760
    %v1553 = vsub.f32 %v623, %v1552
    %v1554 = vand.u32 %v1553, 4294901760
    %v1555 = vsub.f32 %v1553, %v1554
    %v1556 = vand.u32 %v1555, 4294901760
    %1557 = vmatprep.subr.mxu0 %v1556
    %v1558 = vand.u32 %v622, 4294901760
    %v1559 = vsub.f32 %v622, %v1558
    %v1560 = vand.u32 %v1559, 4294901760
    %v1561 = vsub.f32 %v1559, %v1560
    %v1562 = vand.u32 %v1561, 4294901760
    %1563 = vmatpush1.msra.mxu0 %v1562
    %v1564 = vand.u32 %v621, 4294901760
    %v1565 = vsub.f32 %v621, %v1564
    %v1566 = vand.u32 %v1565, 4294901760
    %v1567 = vsub.f32 %v1565, %v1566
    %v1568 = vand.u32 %v1567, 4294901760
    %1569 = vmatprep.subr.mxu0 %v1568
    %v1570 = vand.u32 %v620, 4294901760
    %v1571 = vsub.f32 %v620, %v1570
    %v1572 = vand.u32 %v1571, 4294901760
    %v1573 = vsub.f32 %v1571, %v1572
    %v1574 = vand.u32 %v1573, 4294901760
    %1575 = vmatpush1.msra.mxu0 %v1574
    %v1576 = vand.u32 %v619, 4294901760
    %v1577 = vsub.f32 %v619, %v1576
    %v1578 = vand.u32 %v1577, 4294901760
    %v1579 = vsub.f32 %v1577, %v1578
    %v1580 = vand.u32 %v1579, 4294901760
    %1581 = vmatprep.subr.mxu0 %v1580
    %v1582 = vand.u32 %v618, 4294901760
    %v1583 = vsub.f32 %v618, %v1582
    %v1584 = vand.u32 %v1583, 4294901760
    %v1585 = vsub.f32 %v1583, %v1584
    %v1586 = vand.u32 %v1585, 4294901760
    %1587 = vmatpush1.msra.mxu0 %v1586
    %v1588 = vand.u32 %v617, 4294901760
    %v1589 = vsub.f32 %v617, %v1588
    %v1590 = vand.u32 %v1589, 4294901760
    %v1591 = vsub.f32 %v1589, %v1590
    %v1592 = vand.u32 %v1591, 4294901760
    %1593 = vmatprep.subr.mxu0 %v1592
    %v1594 = vand.u32 %v616, 4294901760
    %v1595 = vsub.f32 %v616, %v1594
    %v1596 = vand.u32 %v1595, 4294901760
    %v1597 = vsub.f32 %v1595, %v1596
    %v1598 = vand.u32 %v1597, 4294901760
    %1599 = vmatpush1.msra.mxu0 %v1598
    %1600 = vmatprep.subr.mxu0 0.0
    %1601 = vmatpush2.msra.mxu0 0.0
    %1602 = vmatprep.subr.mxu0 0.0
    %1603 = vmatpush2.msra.mxu0 0.0
    %1604 = vmatprep.subr.mxu0 0.0
    %1605 = vmatpush2.msra.mxu0 0.0
    %1606 = vmatprep.subr.mxu0 0.0
    %1607 = vmatpush2.msra.mxu0 0.0
    %1608 = vmatprep.subr.mxu0 0.0
    %1609 = vmatpush2.msra.mxu0 0.0
    %1610 = vmatprep.subr.mxu0 0.0
    %1611 = vmatpush2.msra.mxu0 0.0
    %1612 = vmatprep.subr.mxu0 0.0
    %1613 = vmatpush2.msra.mxu0 0.0
    %1614 = vmatprep.subr.mxu0 0.0
    %1615 = vmatpush2.msra.mxu0 0.0
    %1616 = vmatprep.subr.mxu0 0.0
    %1617 = vmatpush2.msra.mxu0 0.0
    %1618 = vmatprep.subr.mxu0 0.0
    %1619 = vmatpush2.msra.mxu0 0.0
    %1620 = vmatprep.subr.mxu0 0.0
    %1621 = vmatpush2.msra.mxu0 0.0
    %1622 = vmatprep.subr.mxu0 0.0
    %1623 = vmatpush2.msra.mxu0 0.0
    %1624 = vmatprep.subr.mxu0 0.0
    %1625 = vmatpush2.msra.mxu0 0.0
    %1626 = vmatprep.subr.mxu0 0.0
    %1627 = vmatpush2.msra.mxu0 0.0
    %1628 = vmatprep.subr.mxu0 0.0
    %1629 = vmatpush2.msra.mxu0 0.0
    %1630 = vmatprep.subr.mxu0 0.0
    %1631 = vmatpush2.msra.mxu0 0.0
    %1632 = vmatprep.mubr.f32.mxu0 0.0
    %v1633 = vand.u32 %v1394, 4294901760
    %1634 = vmatmul.mubr.f32.gmra.mxu0 %v1633
    %v1635 = vpop.f32.mrf.mxu0
    %v1636 = vadd.f32 %v1484, %v1635
    %v1637 = vpop.f32.mrf.mxu0
    %v1638 = vadd.f32 %v1486, %v1637
    %1639 = vdwg.mxu0
    %1640 = vmatprep.subr.mxu0 0.0
    %1641 = vmatpush1.msra.mxu0 0.0
    %1642 = vmatprep.subr.mxu0 0.0
    %1643 = vmatpush1.msra.mxu0 0.0
    %1644 = vmatprep.subr.mxu0 0.0
    %1645 = vmatpush1.msra.mxu0 0.0
    %1646 = vmatprep.subr.mxu0 0.0
    %1647 = vmatpush1.msra.mxu0 0.0
    %1648 = vmatprep.subr.mxu0 0.0
    %1649 = vmatpush1.msra.mxu0 0.0
    %1650 = vmatprep.subr.mxu0 0.0
    %1651 = vmatpush1.msra.mxu0 0.0
    %1652 = vmatprep.subr.mxu0 0.0
    %1653 = vmatpush1.msra.mxu0 0.0
    %1654 = vmatprep.subr.mxu0 0.0
    %1655 = vmatpush1.msra.mxu0 0.0
    %v1656 = vand.u32 %v631, 4294901760
    %v1657 = vsub.f32 %v631, %v1656
    %1658 = vmatprep.subr.mxu0 %v1657
    %v1659 = vand.u32 %v630, 4294901760
    %v1660 = vsub.f32 %v630, %v1659
    %1661 = vmatpush1.msra.mxu0 %v1660
    %v1662 = vand.u32 %v629, 4294901760
    %v1663 = vsub.f32 %v629, %v1662
    %1664 = vmatprep.subr.mxu0 %v1663
    %v1665 = vand.u32 %v628, 4294901760
    %v1666 = vsub.f32 %v628, %v1665
    %1667 = vmatpush1.msra.mxu0 %v1666
    %v1668 = vand.u32 %v627, 4294901760
    %v1669 = vsub.f32 %v627, %v1668
    %1670 = vmatprep.subr.mxu0 %v1669
    %v1671 = vand.u32 %v626, 4294901760
    %v1672 = vsub.f32 %v626, %v1671
    %1673 = vmatpush1.msra.mxu0 %v1672
    %v1674 = vand.u32 %v625, 4294901760
    %v1675 = vsub.f32 %v625, %v1674
    %1676 = vmatprep.subr.mxu0 %v1675
    %v1677 = vand.u32 %v624, 4294901760
    %v1678 = vsub.f32 %v624, %v1677
    %1679 = vmatpush1.msra.mxu0 %v1678
    %v1680 = vand.u32 %v623, 4294901760
    %v1681 = vsub.f32 %v623, %v1680
    %1682 = vmatprep.subr.mxu0 %v1681
    %v1683 = vand.u32 %v622, 4294901760
    %v1684 = vsub.f32 %v622, %v1683
    %1685 = vmatpush1.msra.mxu0 %v1684
    %v1686 = vand.u32 %v621, 4294901760
    %v1687 = vsub.f32 %v621, %v1686
    %1688 = vmatprep.subr.mxu0 %v1687
    %v1689 = vand.u32 %v620, 4294901760
    %v1690 = vsub.f32 %v620, %v1689
    %1691 = vmatpush1.msra.mxu0 %v1690
    %v1692 = vand.u32 %v619, 4294901760
    %v1693 = vsub.f32 %v619, %v1692
    %1694 = vmatprep.subr.mxu0 %v1693
    %v1695 = vand.u32 %v618, 4294901760
    %v1696 = vsub.f32 %v618, %v1695
    %1697 = vmatpush1.msra.mxu0 %v1696
    %v1698 = vand.u32 %v617, 4294901760
    %v1699 = vsub.f32 %v617, %v1698
    %1700 = vmatprep.subr.mxu0 %v1699
    %v1701 = vand.u32 %v616, 4294901760
    %v1702 = vsub.f32 %v616, %v1701
    %1703 = vmatpush1.msra.mxu0 %v1702
    %1704 = vmatprep.subr.mxu0 0.0
    %1705 = vmatpush2.msra.mxu0 0.0
    %1706 = vmatprep.subr.mxu0 0.0
    %1707 = vmatpush2.msra.mxu0 0.0
    %1708 = vmatprep.subr.mxu0 0.0
    %1709 = vmatpush2.msra.mxu0 0.0
    %1710 = vmatprep.subr.mxu0 0.0
    %1711 = vmatpush2.msra.mxu0 0.0
    %1712 = vmatprep.subr.mxu0 0.0
    %1713 = vmatpush2.msra.mxu0 0.0
    %1714 = vmatprep.subr.mxu0 0.0
    %1715 = vmatpush2.msra.mxu0 0.0
    %1716 = vmatprep.subr.mxu0 0.0
    %1717 = vmatpush2.msra.mxu0 0.0
    %1718 = vmatprep.subr.mxu0 0.0
    %1719 = vmatpush2.msra.mxu0 0.0
    %1720 = vmatprep.subr.mxu0 0.0
    %1721 = vmatpush2.msra.mxu0 0.0
    %1722 = vmatprep.subr.mxu0 0.0
    %1723 = vmatpush2.msra.mxu0 0.0
    %1724 = vmatprep.subr.mxu0 0.0
    %1725 = vmatpush2.msra.mxu0 0.0
    %1726 = vmatprep.subr.mxu0 0.0
    %1727 = vmatpush2.msra.mxu0 0.0
    %1728 = vmatprep.subr.mxu0 0.0
    %1729 = vmatpush2.msra.mxu0 0.0
    %1730 = vmatprep.subr.mxu0 0.0
    %1731 = vmatpush2.msra.mxu0 0.0
    %1732 = vmatprep.subr.mxu0 0.0
    %1733 = vmatpush2.msra.mxu0 0.0
    %1734 = vmatprep.subr.mxu0 0.0
    %1735 = vmatpush2.msra.mxu0 0.0
    %1736 = vmatprep.mubr.f32.mxu0 0.0
    %v1737 = vand.u32 %v1394, 4294901760
    %v1738 = vsub.f32 %v1394, %v1737
    %1739 = vmatmul.mubr.f32.gmra.mxu0 %v1738
    %v1740 = vpop.f32.mrf.mxu0
    %v1741 = vadd.f32 %v1636, %v1740
    %v1742 = vpop.f32.mrf.mxu0
    %v1743 = vadd.f32 %v1638, %v1742
    %1744 = vdwg.mxu0
    %1745 = vmatprep.subr.mxu0 0.0
    %1746 = vmatpush1.msra.mxu0 0.0
    %1747 = vmatprep.subr.mxu0 0.0
    %1748 = vmatpush1.msra.mxu0 0.0
    %1749 = vmatprep.subr.mxu0 0.0
    %1750 = vmatpush1.msra.mxu0 0.0
    %1751 = vmatprep.subr.mxu0 0.0
    %1752 = vmatpush1.msra.mxu0 0.0
    %1753 = vmatprep.subr.mxu0 0.0
    %1754 = vmatpush1.msra.mxu0 0.0
    %1755 = vmatprep.subr.mxu0 0.0
    %1756 = vmatpush1.msra.mxu0 0.0
    %1757 = vmatprep.subr.mxu0 0.0
    %1758 = vmatpush1.msra.mxu0 0.0
    %1759 = vmatprep.subr.mxu0 0.0
    %1760 = vmatpush1.msra.mxu0 0.0
    %v1761 = vand.u32 %v631, 4294901760
    %1762 = vmatprep.subr.mxu0 %v1761
    %v1763 = vand.u32 %v630, 4294901760
    %1764 = vmatpush1.msra.mxu0 %v1763
    %v1765 = vand.u32 %v629, 4294901760
    %1766 = vmatprep.subr.mxu0 %v1765
    %v1767 = vand.u32 %v628, 4294901760
    %1768 = vmatpush1.msra.mxu0 %v1767
    %v1769 = vand.u32 %v627, 4294901760
    %1770 = vmatprep.subr.mxu0 %v1769
    %v1771 = vand.u32 %v626, 4294901760
    %1772 = vmatpush1.msra.mxu0 %v1771
    %v1773 = vand.u32 %v625, 4294901760
    %1774 = vmatprep.subr.mxu0 %v1773
    %v1775 = vand.u32 %v624, 4294901760
    %1776 = vmatpush1.msra.mxu0 %v1775
    %v1777 = vand.u32 %v623, 4294901760
    %1778 = vmatprep.subr.mxu0 %v1777
    %v1779 = vand.u32 %v622, 4294901760
    %1780 = vmatpush1.msra.mxu0 %v1779
    %v1781 = vand.u32 %v621, 4294901760
    %1782 = vmatprep.subr.mxu0 %v1781
    %v1783 = vand.u32 %v620, 4294901760
    %1784 = vmatpush1.msra.mxu0 %v1783
    %v1785 = vand.u32 %v619, 4294901760
    %1786 = vmatprep.subr.mxu0 %v1785
    %v1787 = vand.u32 %v618, 4294901760
    %1788 = vmatpush1.msra.mxu0 %v1787
    %v1789 = vand.u32 %v617, 4294901760
    %1790 = vmatprep.subr.mxu0 %v1789
    %v1791 = vand.u32 %v616, 4294901760
    %1792 = vmatpush1.msra.mxu0 %v1791
    %1793 = vmatprep.subr.mxu0 0.0
    %1794 = vmatpush2.msra.mxu0 0.0
    %1795 = vmatprep.subr.mxu0 0.0
    %1796 = vmatpush2.msra.mxu0 0.0
    %1797 = vmatprep.subr.mxu0 0.0
    %1798 = vmatpush2.msra.mxu0 0.0
    %1799 = vmatprep.subr.mxu0 0.0
    %1800 = vmatpush2.msra.mxu0 0.0
    %1801 = vmatprep.subr.mxu0 0.0
    %1802 = vmatpush2.msra.mxu0 0.0
    %1803 = vmatprep.subr.mxu0 0.0
    %1804 = vmatpush2.msra.mxu0 0.0
    %1805 = vmatprep.subr.mxu0 0.0
    %1806 = vmatpush2.msra.mxu0 0.0
    %1807 = vmatprep.subr.mxu0 0.0
    %1808 = vmatpush2.msra.mxu0 0.0
    %1809 = vmatprep.subr.mxu0 0.0
    %1810 = vmatpush2.msra.mxu0 0.0
    %1811 = vmatprep.subr.mxu0 0.0
    %1812 = vmatpush2.msra.mxu0 0.0
    %1813 = vmatprep.subr.mxu0 0.0
    %1814 = vmatpush2.msra.mxu0 0.0
    %1815 = vmatprep.subr.mxu0 0.0
    %1816 = vmatpush2.msra.mxu0 0.0
    %1817 = vmatprep.subr.mxu0 0.0
    %1818 = vmatpush2.msra.mxu0 0.0
    %1819 = vmatprep.subr.mxu0 0.0
    %1820 = vmatpush2.msra.mxu0 0.0
    %1821 = vmatprep.subr.mxu0 0.0
    %1822 = vmatpush2.msra.mxu0 0.0
    %1823 = vmatprep.subr.mxu0 0.0
    %1824 = vmatpush2.msra.mxu0 0.0
    %1825 = vmatprep.mubr.f32.mxu0 0.0
    %v1826 = vand.u32 %v1394, 4294901760
    %v1827 = vsub.f32 %v1394, %v1826
    %v1828 = vand.u32 %v1827, 4294901760
    %1829 = vmatmul.mubr.f32.gmra.mxu0 %v1828
    %v1830 = vpop.f32.mrf.mxu0
    %v1831 = vadd.f32 %v1741, %v1830
    %v1832 = vpop.f32.mrf.mxu0
    %v1833 = vadd.f32 %v1743, %v1832
    %1834 = vdwg.mxu0
    %1835 = vmatprep.subr.mxu0 0.0
    %1836 = vmatpush1.msra.mxu0 0.0
    %1837 = vmatprep.subr.mxu0 0.0
    %1838 = vmatpush1.msra.mxu0 0.0
    %1839 = vmatprep.subr.mxu0 0.0
    %1840 = vmatpush1.msra.mxu0 0.0
    %1841 = vmatprep.subr.mxu0 0.0
    %1842 = vmatpush1.msra.mxu0 0.0
    %1843 = vmatprep.subr.mxu0 0.0
    %1844 = vmatpush1.msra.mxu0 0.0
    %1845 = vmatprep.subr.mxu0 0.0
    %1846 = vmatpush1.msra.mxu0 0.0
    %1847 = vmatprep.subr.mxu0 0.0
    %1848 = vmatpush1.msra.mxu0 0.0
    %1849 = vmatprep.subr.mxu0 0.0
    %1850 = vmatpush1.msra.mxu0 0.0
    %v1851 = vand.u32 %v631, 4294901760
    %v1852 = vsub.f32 %v631, %v1851
    %v1853 = vand.u32 %v1852, 4294901760
    %1854 = vmatprep.subr.mxu0 %v1853
    %v1855 = vand.u32 %v630, 4294901760
    %v1856 = vsub.f32 %v630, %v1855
    %v1857 = vand.u32 %v1856, 4294901760
    %1858 = vmatpush1.msra.mxu0 %v1857
    %v1859 = vand.u32 %v629, 4294901760
    %v1860 = vsub.f32 %v629, %v1859
    %v1861 = vand.u32 %v1860, 4294901760
    %1862 = vmatprep.subr.mxu0 %v1861
    %v1863 = vand.u32 %v628, 4294901760
    %v1864 = vsub.f32 %v628, %v1863
    %v1865 = vand.u32 %v1864, 4294901760
    %1866 = vmatpush1.msra.mxu0 %v1865
    %v1867 = vand.u32 %v627, 4294901760
    %v1868 = vsub.f32 %v627, %v1867
    %v1869 = vand.u32 %v1868, 4294901760
    %1870 = vmatprep.subr.mxu0 %v1869
    %v1871 = vand.u32 %v626, 4294901760
    %v1872 = vsub.f32 %v626, %v1871
    %v1873 = vand.u32 %v1872, 4294901760
    %1874 = vmatpush1.msra.mxu0 %v1873
    %v1875 = vand.u32 %v625, 4294901760
    %v1876 = vsub.f32 %v625, %v1875
    %v1877 = vand.u32 %v1876, 4294901760
    %1878 = vmatprep.subr.mxu0 %v1877
    %v1879 = vand.u32 %v624, 4294901760
    %v1880 = vsub.f32 %v624, %v1879
    %v1881 = vand.u32 %v1880, 4294901760
    %1882 = vmatpush1.msra.mxu0 %v1881
    %v1883 = vand.u32 %v623, 4294901760
    %v1884 = vsub.f32 %v623, %v1883
    %v1885 = vand.u32 %v1884, 4294901760
    %1886 = vmatprep.subr.mxu0 %v1885
    %v1887 = vand.u32 %v622, 4294901760
    %v1888 = vsub.f32 %v622, %v1887
    %v1889 = vand.u32 %v1888, 4294901760
    %1890 = vmatpush1.msra.mxu0 %v1889
    %v1891 = vand.u32 %v621, 4294901760
    %v1892 = vsub.f32 %v621, %v1891
    %v1893 = vand.u32 %v1892, 4294901760
    %1894 = vmatprep.subr.mxu0 %v1893
    %v1895 = vand.u32 %v620, 4294901760
    %v1896 = vsub.f32 %v620, %v1895
    %v1897 = vand.u32 %v1896, 4294901760
    %1898 = vmatpush1.msra.mxu0 %v1897
    %v1899 = vand.u32 %v619, 4294901760
    %v1900 = vsub.f32 %v619, %v1899
    %v1901 = vand.u32 %v1900, 4294901760
    %1902 = vmatprep.subr.mxu0 %v1901
    %v1903 = vand.u32 %v618, 4294901760
    %v1904 = vsub.f32 %v618, %v1903
    %v1905 = vand.u32 %v1904, 4294901760
    %1906 = vmatpush1.msra.mxu0 %v1905
    %v1907 = vand.u32 %v617, 4294901760
    %v1908 = vsub.f32 %v617, %v1907
    %v1909 = vand.u32 %v1908, 4294901760
    %1910 = vmatprep.subr.mxu0 %v1909
    %v1911 = vand.u32 %v616, 4294901760
    %v1912 = vsub.f32 %v616, %v1911
    %v1913 = vand.u32 %v1912, 4294901760
    %1914 = vmatpush1.msra.mxu0 %v1913
    %1915 = vmatprep.subr.mxu0 0.0
    %1916 = vmatpush2.msra.mxu0 0.0
    %1917 = vmatprep.subr.mxu0 0.0
    %1918 = vmatpush2.msra.mxu0 0.0
    %1919 = vmatprep.subr.mxu0 0.0
    %1920 = vmatpush2.msra.mxu0 0.0
    %1921 = vmatprep.subr.mxu0 0.0
    %1922 = vmatpush2.msra.mxu0 0.0
    %1923 = vmatprep.subr.mxu0 0.0
    %1924 = vmatpush2.msra.mxu0 0.0
    %1925 = vmatprep.subr.mxu0 0.0
    %1926 = vmatpush2.msra.mxu0 0.0
    %1927 = vmatprep.subr.mxu0 0.0
    %1928 = vmatpush2.msra.mxu0 0.0
    %1929 = vmatprep.subr.mxu0 0.0
    %1930 = vmatpush2.msra.mxu0 0.0
    %1931 = vmatprep.subr.mxu0 0.0
    %1932 = vmatpush2.msra.mxu0 0.0
    %1933 = vmatprep.subr.mxu0 0.0
    %1934 = vmatpush2.msra.mxu0 0.0
    %1935 = vmatprep.subr.mxu0 0.0
    %1936 = vmatpush2.msra.mxu0 0.0
    %1937 = vmatprep.subr.mxu0 0.0
    %1938 = vmatpush2.msra.mxu0 0.0
    %1939 = vmatprep.subr.mxu0 0.0
    %1940 = vmatpush2.msra.mxu0 0.0
    %1941 = vmatprep.subr.mxu0 0.0
    %1942 = vmatpush2.msra.mxu0 0.0
    %1943 = vmatprep.subr.mxu0 0.0
    %1944 = vmatpush2.msra.mxu0 0.0
    %1945 = vmatprep.subr.mxu0 0.0
    %1946 = vmatpush2.msra.mxu0 0.0
    %1947 = vmatprep.mubr.f32.mxu0 0.0
    %v1948 = vand.u32 %v1394, 4294901760
    %1949 = vmatmul.mubr.f32.gmra.mxu0 %v1948
    %v1950 = vpop.f32.mrf.mxu0
    %v1951 = vadd.f32 %v1831, %v1950
    %v1952 = vpop.f32.mrf.mxu0
    %v1953 = vadd.f32 %v1833, %v1952
    %1954 = vdwg.mxu0
    %1955 = vmatprep.subr.mxu0 0.0
    %1956 = vmatpush1.msra.mxu0 0.0
    %1957 = vmatprep.subr.mxu0 0.0
    %1958 = vmatpush1.msra.mxu0 0.0
    %1959 = vmatprep.subr.mxu0 0.0
    %1960 = vmatpush1.msra.mxu0 0.0
    %1961 = vmatprep.subr.mxu0 0.0
    %1962 = vmatpush1.msra.mxu0 0.0
    %1963 = vmatprep.subr.mxu0 0.0
    %1964 = vmatpush1.msra.mxu0 0.0
    %1965 = vmatprep.subr.mxu0 0.0
    %1966 = vmatpush1.msra.mxu0 0.0
    %1967 = vmatprep.subr.mxu0 0.0
    %1968 = vmatpush1.msra.mxu0 0.0
    %1969 = vmatprep.subr.mxu0 0.0
    %1970 = vmatpush1.msra.mxu0 0.0
    %v1971 = vand.u32 %v631, 4294901760
    %1972 = vmatprep.subr.mxu0 %v1971
    %v1973 = vand.u32 %v630, 4294901760
    %1974 = vmatpush1.msra.mxu0 %v1973
    %v1975 = vand.u32 %v629, 4294901760
    %1976 = vmatprep.subr.mxu0 %v1975
    %v1977 = vand.u32 %v628, 4294901760
    %1978 = vmatpush1.msra.mxu0 %v1977
    %v1979 = vand.u32 %v627, 4294901760
    %1980 = vmatprep.subr.mxu0 %v1979
    %v1981 = vand.u32 %v626, 4294901760
    %1982 = vmatpush1.msra.mxu0 %v1981
    %v1983 = vand.u32 %v625, 4294901760
    %1984 = vmatprep.subr.mxu0 %v1983
    %v1985 = vand.u32 %v624, 4294901760
    %1986 = vmatpush1.msra.mxu0 %v1985
    %v1987 = vand.u32 %v623, 4294901760
    %1988 = vmatprep.subr.mxu0 %v1987
    %v1989 = vand.u32 %v622, 4294901760
    %1990 = vmatpush1.msra.mxu0 %v1989
    %v1991 = vand.u32 %v621, 4294901760
    %1992 = vmatprep.subr.mxu0 %v1991
    %v1993 = vand.u32 %v620, 4294901760
    %1994 = vmatpush1.msra.mxu0 %v1993
    %v1995 = vand.u32 %v619, 4294901760
    %1996 = vmatprep.subr.mxu0 %v1995
    %v1997 = vand.u32 %v618, 4294901760
    %1998 = vmatpush1.msra.mxu0 %v1997
    %v1999 = vand.u32 %v617, 4294901760
    %2000 = vmatprep.subr.mxu0 %v1999
    %v2001 = vand.u32 %v616, 4294901760
    %2002 = vmatpush1.msra.mxu0 %v2001
    %2003 = vmatprep.subr.mxu0 0.0
    %2004 = vmatpush2.msra.mxu0 0.0
    %2005 = vmatprep.subr.mxu0 0.0
    %2006 = vmatpush2.msra.mxu0 0.0
    %2007 = vmatprep.subr.mxu0 0.0
    %2008 = vmatpush2.msra.mxu0 0.0
    %2009 = vmatprep.subr.mxu0 0.0
    %2010 = vmatpush2.msra.mxu0 0.0
    %2011 = vmatprep.subr.mxu0 0.0
    %2012 = vmatpush2.msra.mxu0 0.0
    %2013 = vmatprep.subr.mxu0 0.0
    %2014 = vmatpush2.msra.mxu0 0.0
    %2015 = vmatprep.subr.mxu0 0.0
    %2016 = vmatpush2.msra.mxu0 0.0
    %2017 = vmatprep.subr.mxu0 0.0
    %2018 = vmatpush2.msra.mxu0 0.0
    %2019 = vmatprep.subr.mxu0 0.0
    %2020 = vmatpush2.msra.mxu0 0.0
    %2021 = vmatprep.subr.mxu0 0.0
    %2022 = vmatpush2.msra.mxu0 0.0
    %2023 = vmatprep.subr.mxu0 0.0
    %2024 = vmatpush2.msra.mxu0 0.0
    %2025 = vmatprep.subr.mxu0 0.0
    %2026 = vmatpush2.msra.mxu0 0.0
    %2027 = vmatprep.subr.mxu0 0.0
    %2028 = vmatpush2.msra.mxu0 0.0
    %2029 = vmatprep.subr.mxu0 0.0
    %2030 = vmatpush2.msra.mxu0 0.0
    %2031 = vmatprep.subr.mxu0 0.0
    %2032 = vmatpush2.msra.mxu0 0.0
    %2033 = vmatprep.subr.mxu0 0.0
    %2034 = vmatpush2.msra.mxu0 0.0
    %2035 = vmatprep.mubr.f32.mxu0 0.0
    %v2036 = vand.u32 %v1394, 4294901760
    %2037 = vmatmul.mubr.f32.gmra.mxu0 %v2036
    %v2038 = vpop.f32.mrf.mxu0
    %v2039 = vadd.f32 %v1951, %v2038
    %v2040 = vpop.f32.mrf.mxu0
    %v2041 = vadd.f32 %v1953, %v2040
    %2042 = vdwg.mxu0
    %v2043 = vrot.slane %v607, 2
    %v2044 = vrot.slane %v613, 1
    %v2045 = vsel %vm642, %v2044, %v2043
    %v2047 = vadd.f32 %v2039, %v2045
    %v2048 = vxor.u32 %v2047, 2147483648
    %v2049 = vmul.f32 %v2048, 1.442695
    %v2050 = vpow.pop %v2049
    %v2051 = vadd.f32 %v2050, 1.0
    %v2052 = vrcp.pop %v2051
    %v2053 = vmul.f32 1.0, %v2052
    %v2054 = vtanh.pop %v2047
    %v2055 = vmul.f32 %v2053, %v1353
    %2057 = vrot.lane.b32.xlu0 %v2054, 64
    %v2058 = vpop.permute.xlu0 %2057
    %v2060 = vmul.f32 %v2053, %v2058
    %2062 = vrot.lane.b32.xlu0 %v2060, 32
    %v2063 = vpop.permute.xlu0 %2062
    %v2065 = vadd.f32 %v2055, %v2063
    %v2066 = vtanh.pop %v2065
    %2068 = vrot.lane.b32.xlu0 %v2066, 64
    %v2069 = vpop.permute.xlu0 %2068
    %v2071 = vmul.f32 %v2053, %v2069
    %v2072 = vxor.u32 %v2041, 2147483648
    %v2073 = vmul.f32 %v2072, 1.442695
    %v2074 = vpow.pop %v2073
    %v2075 = vadd.f32 %v2074, 1.0
    %v2076 = vrcp.pop %v2075
    %v2077 = vmul.f32 1.0, %v2076
    %v2078 = vtanh.pop %v2041
    %v2079 = vmul.f32 %v2077, %v1377
    %2081 = vrot.lane.b32.xlu0 %v2078, 64
    %v2082 = vpop.permute.xlu0 %2081
    %v2084 = vmul.f32 %v2077, %v2082
    %2086 = vrot.lane.b32.xlu0 %v2084, 32
    %v2087 = vpop.permute.xlu0 %2086
    %v2089 = vadd.f32 %v2079, %v2087
    %v2090 = vtanh.pop %v2089
    %2092 = vrot.lane.b32.xlu0 %v2090, 64
    %v2093 = vpop.permute.xlu0 %2092
    %v2095 = vmul.f32 %v2077, %v2093
    %2097 = vrot.lane.b32.xlu0 %v2071, 32
    %v2098 = vpop.permute.xlu0 %2097
    %2101 = vrot.lane.b32.xlu0 %v2095, 64
    %v2102 = vpop.permute.xlu0 %2101
    %v2104 = vsel %vm674, %v2098, %v2102
    %v2106 = vsel %vm681, %v2104, 0
    %2108 = vmatprep.subr.mxu0 0.0
    %2109 = vmatpush1.msra.mxu0 0.0
    %2110 = vmatprep.subr.mxu0 0.0
    %2111 = vmatpush1.msra.mxu0 0.0
    %2112 = vmatprep.subr.mxu0 0.0
    %2113 = vmatpush1.msra.mxu0 0.0
    %2114 = vmatprep.subr.mxu0 0.0
    %2115 = vmatpush1.msra.mxu0 0.0
    %2116 = vmatprep.subr.mxu0 0.0
    %2117 = vmatpush1.msra.mxu0 0.0
    %2118 = vmatprep.subr.mxu0 0.0
    %2119 = vmatpush1.msra.mxu0 0.0
    %2120 = vmatprep.subr.mxu0 0.0
    %2121 = vmatpush1.msra.mxu0 0.0
    %2122 = vmatprep.subr.mxu0 0.0
    %2123 = vmatpush1.msra.mxu0 0.0
    %v2124 = vand.u32 %v631, 4294901760
    %2125 = vmatprep.subr.mxu0 %v2124
    %v2126 = vand.u32 %v630, 4294901760
    %2127 = vmatpush1.msra.mxu0 %v2126
    %v2128 = vand.u32 %v629, 4294901760
    %2129 = vmatprep.subr.mxu0 %v2128
    %v2130 = vand.u32 %v628, 4294901760
    %2131 = vmatpush1.msra.mxu0 %v2130
    %v2132 = vand.u32 %v627, 4294901760
    %2133 = vmatprep.subr.mxu0 %v2132
    %v2134 = vand.u32 %v626, 4294901760
    %2135 = vmatpush1.msra.mxu0 %v2134
    %v2136 = vand.u32 %v625, 4294901760
    %2137 = vmatprep.subr.mxu0 %v2136
    %v2138 = vand.u32 %v624, 4294901760
    %2139 = vmatpush1.msra.mxu0 %v2138
    %v2140 = vand.u32 %v623, 4294901760
    %2141 = vmatprep.subr.mxu0 %v2140
    %v2142 = vand.u32 %v622, 4294901760
    %2143 = vmatpush1.msra.mxu0 %v2142
    %v2144 = vand.u32 %v621, 4294901760
    %2145 = vmatprep.subr.mxu0 %v2144
    %v2146 = vand.u32 %v620, 4294901760
    %2147 = vmatpush1.msra.mxu0 %v2146
    %v2148 = vand.u32 %v619, 4294901760
    %2149 = vmatprep.subr.mxu0 %v2148
    %v2150 = vand.u32 %v618, 4294901760
    %2151 = vmatpush1.msra.mxu0 %v2150
    %v2152 = vand.u32 %v617, 4294901760
    %2153 = vmatprep.subr.mxu0 %v2152
    %v2154 = vand.u32 %v616, 4294901760
    %2155 = vmatpush1.msra.mxu0 %v2154
    %2156 = vmatprep.subr.mxu0 0.0
    %2157 = vmatpush2.msra.mxu0 0.0
    %2158 = vmatprep.subr.mxu0 0.0
    %2159 = vmatpush2.msra.mxu0 0.0
    %2160 = vmatprep.subr.mxu0 0.0
    %2161 = vmatpush2.msra.mxu0 0.0
    %2162 = vmatprep.subr.mxu0 0.0
    %2163 = vmatpush2.msra.mxu0 0.0
    %2164 = vmatprep.subr.mxu0 0.0
    %2165 = vmatpush2.msra.mxu0 0.0
    %2166 = vmatprep.subr.mxu0 0.0
    %2167 = vmatpush2.msra.mxu0 0.0
    %2168 = vmatprep.subr.mxu0 0.0
    %2169 = vmatpush2.msra.mxu0 0.0
    %2170 = vmatprep.subr.mxu0 0.0
    %2171 = vmatpush2.msra.mxu0 0.0
    %2172 = vmatprep.subr.mxu0 0.0
    %2173 = vmatpush2.msra.mxu0 0.0
    %2174 = vmatprep.subr.mxu0 0.0
    %2175 = vmatpush2.msra.mxu0 0.0
    %2176 = vmatprep.subr.mxu0 0.0
    %2177 = vmatpush2.msra.mxu0 0.0
    %2178 = vmatprep.subr.mxu0 0.0
    %2179 = vmatpush2.msra.mxu0 0.0
    %2180 = vmatprep.subr.mxu0 0.0
    %2181 = vmatpush2.msra.mxu0 0.0
    %2182 = vmatprep.subr.mxu0 0.0
    %2183 = vmatpush2.msra.mxu0 0.0
    %2184 = vmatprep.subr.mxu0 0.0
    %2185 = vmatpush2.msra.mxu0 0.0
    %2186 = vmatprep.subr.mxu0 0.0
    %2187 = vmatpush2.msra.mxu0 0.0
    %2188 = vmatprep.mubr.f32.mxu0 0.0
    %v2189 = vand.u32 %v2106, 4294901760
    %v2190 = vsub.f32 %v2106, %v2189
    %v2191 = vand.u32 %v2190, 4294901760
    %v2192 = vsub.f32 %v2190, %v2191
    %v2193 = vand.u32 %v2192, 4294901760
    %2194 = vmatmul.mubr.f32.gmra.mxu0 %v2193
    %v2195 = vpop.f32.mrf.mxu0
    %v2196 = vadd.f32 %v637, %v2195
    %v2197 = vpop.f32.mrf.mxu0
    %v2198 = vadd.f32 %v679, %v2197
    %2199 = vdwg.mxu0
    %2200 = vmatprep.subr.mxu0 0.0
    %2201 = vmatpush1.msra.mxu0 0.0
    %2202 = vmatprep.subr.mxu0 0.0
    %2203 = vmatpush1.msra.mxu0 0.0
    %2204 = vmatprep.subr.mxu0 0.0
    %2205 = vmatpush1.msra.mxu0 0.0
    %2206 = vmatprep.subr.mxu0 0.0
    %2207 = vmatpush1.msra.mxu0 0.0
    %2208 = vmatprep.subr.mxu0 0.0
    %2209 = vmatpush1.msra.mxu0 0.0
    %2210 = vmatprep.subr.mxu0 0.0
    %2211 = vmatpush1.msra.mxu0 0.0
    %2212 = vmatprep.subr.mxu0 0.0
    %2213 = vmatpush1.msra.mxu0 0.0
    %2214 = vmatprep.subr.mxu0 0.0
    %2215 = vmatpush1.msra.mxu0 0.0
    %v2216 = vand.u32 %v631, 4294901760
    %v2217 = vsub.f32 %v631, %v2216
    %v2218 = vand.u32 %v2217, 4294901760
    %v2219 = vsub.f32 %v2217, %v2218
    %v2220 = vand.u32 %v2219, 4294901760
    %2221 = vmatprep.subr.mxu0 %v2220
    %v2222 = vand.u32 %v630, 4294901760
    %v2223 = vsub.f32 %v630, %v2222
    %v2224 = vand.u32 %v2223, 4294901760
    %v2225 = vsub.f32 %v2223, %v2224
    %v2226 = vand.u32 %v2225, 4294901760
    %2227 = vmatpush1.msra.mxu0 %v2226
    %v2228 = vand.u32 %v629, 4294901760
    %v2229 = vsub.f32 %v629, %v2228
    %v2230 = vand.u32 %v2229, 4294901760
    %v2231 = vsub.f32 %v2229, %v2230
    %v2232 = vand.u32 %v2231, 4294901760
    %2233 = vmatprep.subr.mxu0 %v2232
    %v2234 = vand.u32 %v628, 4294901760
    %v2235 = vsub.f32 %v628, %v2234
    %v2236 = vand.u32 %v2235, 4294901760
    %v2237 = vsub.f32 %v2235, %v2236
    %v2238 = vand.u32 %v2237, 4294901760
    %2239 = vmatpush1.msra.mxu0 %v2238
    %v2240 = vand.u32 %v627, 4294901760
    %v2241 = vsub.f32 %v627, %v2240
    %v2242 = vand.u32 %v2241, 4294901760
    %v2243 = vsub.f32 %v2241, %v2242
    %v2244 = vand.u32 %v2243, 4294901760
    %2245 = vmatprep.subr.mxu0 %v2244
    %v2246 = vand.u32 %v626, 4294901760
    %v2247 = vsub.f32 %v626, %v2246
    %v2248 = vand.u32 %v2247, 4294901760
    %v2249 = vsub.f32 %v2247, %v2248
    %v2250 = vand.u32 %v2249, 4294901760
    %2251 = vmatpush1.msra.mxu0 %v2250
    %v2252 = vand.u32 %v625, 4294901760
    %v2253 = vsub.f32 %v625, %v2252
    %v2254 = vand.u32 %v2253, 4294901760
    %v2255 = vsub.f32 %v2253, %v2254
    %v2256 = vand.u32 %v2255, 4294901760
    %2257 = vmatprep.subr.mxu0 %v2256
    %v2258 = vand.u32 %v624, 4294901760
    %v2259 = vsub.f32 %v624, %v2258
    %v2260 = vand.u32 %v2259, 4294901760
    %v2261 = vsub.f32 %v2259, %v2260
    %v2262 = vand.u32 %v2261, 4294901760
    %2263 = vmatpush1.msra.mxu0 %v2262
    %v2264 = vand.u32 %v623, 4294901760
    %v2265 = vsub.f32 %v623, %v2264
    %v2266 = vand.u32 %v2265, 4294901760
    %v2267 = vsub.f32 %v2265, %v2266
    %v2268 = vand.u32 %v2267, 4294901760
    %2269 = vmatprep.subr.mxu0 %v2268
    %v2270 = vand.u32 %v622, 4294901760
    %v2271 = vsub.f32 %v622, %v2270
    %v2272 = vand.u32 %v2271, 4294901760
    %v2273 = vsub.f32 %v2271, %v2272
    %v2274 = vand.u32 %v2273, 4294901760
    %2275 = vmatpush1.msra.mxu0 %v2274
    %v2276 = vand.u32 %v621, 4294901760
    %v2277 = vsub.f32 %v621, %v2276
    %v2278 = vand.u32 %v2277, 4294901760
    %v2279 = vsub.f32 %v2277, %v2278
    %v2280 = vand.u32 %v2279, 4294901760
    %2281 = vmatprep.subr.mxu0 %v2280
    %v2282 = vand.u32 %v620, 4294901760
    %v2283 = vsub.f32 %v620, %v2282
    %v2284 = vand.u32 %v2283, 4294901760
    %v2285 = vsub.f32 %v2283, %v2284
    %v2286 = vand.u32 %v2285, 4294901760
    %2287 = vmatpush1.msra.mxu0 %v2286
    %v2288 = vand.u32 %v619, 4294901760
    %v2289 = vsub.f32 %v619, %v2288
    %v2290 = vand.u32 %v2289, 4294901760
    %v2291 = vsub.f32 %v2289, %v2290
    %v2292 = vand.u32 %v2291, 4294901760
    %2293 = vmatprep.subr.mxu0 %v2292
    %v2294 = vand.u32 %v618, 4294901760
    %v2295 = vsub.f32 %v618, %v2294
    %v2296 = vand.u32 %v2295, 4294901760
    %v2297 = vsub.f32 %v2295, %v2296
    %v2298 = vand.u32 %v2297, 4294901760
    %2299 = vmatpush1.msra.mxu0 %v2298
    %v2300 = vand.u32 %v617, 4294901760
    %v2301 = vsub.f32 %v617, %v2300
    %v2302 = vand.u32 %v2301, 4294901760
    %v2303 = vsub.f32 %v2301, %v2302
    %v2304 = vand.u32 %v2303, 4294901760
    %2305 = vmatprep.subr.mxu0 %v2304
    %v2306 = vand.u32 %v616, 4294901760
    %v2307 = vsub.f32 %v616, %v2306
    %v2308 = vand.u32 %v2307, 4294901760
    %v2309 = vsub.f32 %v2307, %v2308
    %v2310 = vand.u32 %v2309, 4294901760
    %2311 = vmatpush1.msra.mxu0 %v2310
    %2312 = vmatprep.subr.mxu0 0.0
    %2313 = vmatpush2.msra.mxu0 0.0
    %2314 = vmatprep.subr.mxu0 0.0
    %2315 = vmatpush2.msra.mxu0 0.0
    %2316 = vmatprep.subr.mxu0 0.0
    %2317 = vmatpush2.msra.mxu0 0.0
    %2318 = vmatprep.subr.mxu0 0.0
    %2319 = vmatpush2.msra.mxu0 0.0
    %2320 = vmatprep.subr.mxu0 0.0
    %2321 = vmatpush2.msra.mxu0 0.0
    %2322 = vmatprep.subr.mxu0 0.0
    %2323 = vmatpush2.msra.mxu0 0.0
    %2324 = vmatprep.subr.mxu0 0.0
    %2325 = vmatpush2.msra.mxu0 0.0
    %2326 = vmatprep.subr.mxu0 0.0
    %2327 = vmatpush2.msra.mxu0 0.0
    %2328 = vmatprep.subr.mxu0 0.0
    %2329 = vmatpush2.msra.mxu0 0.0
    %2330 = vmatprep.subr.mxu0 0.0
    %2331 = vmatpush2.msra.mxu0 0.0
    %2332 = vmatprep.subr.mxu0 0.0
    %2333 = vmatpush2.msra.mxu0 0.0
    %2334 = vmatprep.subr.mxu0 0.0
    %2335 = vmatpush2.msra.mxu0 0.0
    %2336 = vmatprep.subr.mxu0 0.0
    %2337 = vmatpush2.msra.mxu0 0.0
    %2338 = vmatprep.subr.mxu0 0.0
    %2339 = vmatpush2.msra.mxu0 0.0
    %2340 = vmatprep.subr.mxu0 0.0
    %2341 = vmatpush2.msra.mxu0 0.0
    %2342 = vmatprep.subr.mxu0 0.0
    %2343 = vmatpush2.msra.mxu0 0.0
    %2344 = vmatprep.mubr.f32.mxu0 0.0
    %v2345 = vand.u32 %v2106, 4294901760
    %2346 = vmatmul.mubr.f32.gmra.mxu0 %v2345
    %v2347 = vpop.f32.mrf.mxu0
    %v2348 = vadd.f32 %v2196, %v2347
    %v2349 = vpop.f32.mrf.mxu0
    %v2350 = vadd.f32 %v2198, %v2349
    %2351 = vdwg.mxu0
    %2352 = vmatprep.subr.mxu0 0.0
    %2353 = vmatpush1.msra.mxu0 0.0
    %2354 = vmatprep.subr.mxu0 0.0
    %2355 = vmatpush1.msra.mxu0 0.0
    %2356 = vmatprep.subr.mxu0 0.0
    %2357 = vmatpush1.msra.mxu0 0.0
    %2358 = vmatprep.subr.mxu0 0.0
    %2359 = vmatpush1.msra.mxu0 0.0
    %2360 = vmatprep.subr.mxu0 0.0
    %2361 = vmatpush1.msra.mxu0 0.0
    %2362 = vmatprep.subr.mxu0 0.0
    %2363 = vmatpush1.msra.mxu0 0.0
    %2364 = vmatprep.subr.mxu0 0.0
    %2365 = vmatpush1.msra.mxu0 0.0
    %2366 = vmatprep.subr.mxu0 0.0
    %2367 = vmatpush1.msra.mxu0 0.0
    %v2368 = vand.u32 %v631, 4294901760
    %v2369 = vsub.f32 %v631, %v2368
    %2370 = vmatprep.subr.mxu0 %v2369
    %v2371 = vand.u32 %v630, 4294901760
    %v2372 = vsub.f32 %v630, %v2371
    %2373 = vmatpush1.msra.mxu0 %v2372
    %v2374 = vand.u32 %v629, 4294901760
    %v2375 = vsub.f32 %v629, %v2374
    %2376 = vmatprep.subr.mxu0 %v2375
    %v2377 = vand.u32 %v628, 4294901760
    %v2378 = vsub.f32 %v628, %v2377
    %2379 = vmatpush1.msra.mxu0 %v2378
    %v2380 = vand.u32 %v627, 4294901760
    %v2381 = vsub.f32 %v627, %v2380
    %2382 = vmatprep.subr.mxu0 %v2381
    %v2383 = vand.u32 %v626, 4294901760
    %v2384 = vsub.f32 %v626, %v2383
    %2385 = vmatpush1.msra.mxu0 %v2384
    %v2386 = vand.u32 %v625, 4294901760
    %v2387 = vsub.f32 %v625, %v2386
    %2388 = vmatprep.subr.mxu0 %v2387
    %v2389 = vand.u32 %v624, 4294901760
    %v2390 = vsub.f32 %v624, %v2389
    %2391 = vmatpush1.msra.mxu0 %v2390
    %v2392 = vand.u32 %v623, 4294901760
    %v2393 = vsub.f32 %v623, %v2392
    %2394 = vmatprep.subr.mxu0 %v2393
    %v2395 = vand.u32 %v622, 4294901760
    %v2396 = vsub.f32 %v622, %v2395
    %2397 = vmatpush1.msra.mxu0 %v2396
    %v2398 = vand.u32 %v621, 4294901760
    %v2399 = vsub.f32 %v621, %v2398
    %2400 = vmatprep.subr.mxu0 %v2399
    %v2401 = vand.u32 %v620, 4294901760
    %v2402 = vsub.f32 %v620, %v2401
    %2403 = vmatpush1.msra.mxu0 %v2402
    %v2404 = vand.u32 %v619, 4294901760
    %v2405 = vsub.f32 %v619, %v2404
    %2406 = vmatprep.subr.mxu0 %v2405
    %v2407 = vand.u32 %v618, 4294901760
    %v2408 = vsub.f32 %v618, %v2407
    %2409 = vmatpush1.msra.mxu0 %v2408
    %v2410 = vand.u32 %v617, 4294901760
    %v2411 = vsub.f32 %v617, %v2410
    %2412 = vmatprep.subr.mxu0 %v2411
    %v2413 = vand.u32 %v616, 4294901760
    %v2414 = vsub.f32 %v616, %v2413
    %2415 = vmatpush1.msra.mxu0 %v2414
    %2416 = vmatprep.subr.mxu0 0.0
    %2417 = vmatpush2.msra.mxu0 0.0
    %2418 = vmatprep.subr.mxu0 0.0
    %2419 = vmatpush2.msra.mxu0 0.0
    %2420 = vmatprep.subr.mxu0 0.0
    %2421 = vmatpush2.msra.mxu0 0.0
    %2422 = vmatprep.subr.mxu0 0.0
    %2423 = vmatpush2.msra.mxu0 0.0
    %2424 = vmatprep.subr.mxu0 0.0
    %2425 = vmatpush2.msra.mxu0 0.0
    %2426 = vmatprep.subr.mxu0 0.0
    %2427 = vmatpush2.msra.mxu0 0.0
    %2428 = vmatprep.subr.mxu0 0.0
    %2429 = vmatpush2.msra.mxu0 0.0
    %2430 = vmatprep.subr.mxu0 0.0
    %2431 = vmatpush2.msra.mxu0 0.0
    %2432 = vmatprep.subr.mxu0 0.0
    %2433 = vmatpush2.msra.mxu0 0.0
    %2434 = vmatprep.subr.mxu0 0.0
    %2435 = vmatpush2.msra.mxu0 0.0
    %2436 = vmatprep.subr.mxu0 0.0
    %2437 = vmatpush2.msra.mxu0 0.0
    %2438 = vmatprep.subr.mxu0 0.0
    %2439 = vmatpush2.msra.mxu0 0.0
    %2440 = vmatprep.subr.mxu0 0.0
    %2441 = vmatpush2.msra.mxu0 0.0
    %2442 = vmatprep.subr.mxu0 0.0
    %2443 = vmatpush2.msra.mxu0 0.0
    %2444 = vmatprep.subr.mxu0 0.0
    %2445 = vmatpush2.msra.mxu0 0.0
    %2446 = vmatprep.subr.mxu0 0.0
    %2447 = vmatpush2.msra.mxu0 0.0
    %2448 = vmatprep.mubr.f32.mxu0 0.0
    %v2449 = vand.u32 %v2106, 4294901760
    %v2450 = vsub.f32 %v2106, %v2449
    %2451 = vmatmul.mubr.f32.gmra.mxu0 %v2450
    %v2452 = vpop.f32.mrf.mxu0
    %v2453 = vadd.f32 %v2348, %v2452
    %v2454 = vpop.f32.mrf.mxu0
    %v2455 = vadd.f32 %v2350, %v2454
    %2456 = vdwg.mxu0
    %2457 = vmatprep.subr.mxu0 0.0
    %2458 = vmatpush1.msra.mxu0 0.0
    %2459 = vmatprep.subr.mxu0 0.0
    %2460 = vmatpush1.msra.mxu0 0.0
    %2461 = vmatprep.subr.mxu0 0.0
    %2462 = vmatpush1.msra.mxu0 0.0
    %2463 = vmatprep.subr.mxu0 0.0
    %2464 = vmatpush1.msra.mxu0 0.0
    %2465 = vmatprep.subr.mxu0 0.0
    %2466 = vmatpush1.msra.mxu0 0.0
    %2467 = vmatprep.subr.mxu0 0.0
    %2468 = vmatpush1.msra.mxu0 0.0
    %2469 = vmatprep.subr.mxu0 0.0
    %2470 = vmatpush1.msra.mxu0 0.0
    %2471 = vmatprep.subr.mxu0 0.0
    %2472 = vmatpush1.msra.mxu0 0.0
    %v2473 = vand.u32 %v631, 4294901760
    %2474 = vmatprep.subr.mxu0 %v2473
    %v2475 = vand.u32 %v630, 4294901760
    %2476 = vmatpush1.msra.mxu0 %v2475
    %v2477 = vand.u32 %v629, 4294901760
    %2478 = vmatprep.subr.mxu0 %v2477
    %v2479 = vand.u32 %v628, 4294901760
    %2480 = vmatpush1.msra.mxu0 %v2479
    %v2481 = vand.u32 %v627, 4294901760
    %2482 = vmatprep.subr.mxu0 %v2481
    %v2483 = vand.u32 %v626, 4294901760
    %2484 = vmatpush1.msra.mxu0 %v2483
    %v2485 = vand.u32 %v625, 4294901760
    %2486 = vmatprep.subr.mxu0 %v2485
    %v2487 = vand.u32 %v624, 4294901760
    %2488 = vmatpush1.msra.mxu0 %v2487
    %v2489 = vand.u32 %v623, 4294901760
    %2490 = vmatprep.subr.mxu0 %v2489
    %v2491 = vand.u32 %v622, 4294901760
    %2492 = vmatpush1.msra.mxu0 %v2491
    %v2493 = vand.u32 %v621, 4294901760
    %2494 = vmatprep.subr.mxu0 %v2493
    %v2495 = vand.u32 %v620, 4294901760
    %2496 = vmatpush1.msra.mxu0 %v2495
    %v2497 = vand.u32 %v619, 4294901760
    %2498 = vmatprep.subr.mxu0 %v2497
    %v2499 = vand.u32 %v618, 4294901760
    %2500 = vmatpush1.msra.mxu0 %v2499
    %v2501 = vand.u32 %v617, 4294901760
    %2502 = vmatprep.subr.mxu0 %v2501
    %v2503 = vand.u32 %v616, 4294901760
    %2504 = vmatpush1.msra.mxu0 %v2503
    %2505 = vmatprep.subr.mxu0 0.0
    %2506 = vmatpush2.msra.mxu0 0.0
    %2507 = vmatprep.subr.mxu0 0.0
    %2508 = vmatpush2.msra.mxu0 0.0
    %2509 = vmatprep.subr.mxu0 0.0
    %2510 = vmatpush2.msra.mxu0 0.0
    %2511 = vmatprep.subr.mxu0 0.0
    %2512 = vmatpush2.msra.mxu0 0.0
    %2513 = vmatprep.subr.mxu0 0.0
    %2514 = vmatpush2.msra.mxu0 0.0
    %2515 = vmatprep.subr.mxu0 0.0
    %2516 = vmatpush2.msra.mxu0 0.0
    %2517 = vmatprep.subr.mxu0 0.0
    %2518 = vmatpush2.msra.mxu0 0.0
    %2519 = vmatprep.subr.mxu0 0.0
    %2520 = vmatpush2.msra.mxu0 0.0
    %2521 = vmatprep.subr.mxu0 0.0
    %2522 = vmatpush2.msra.mxu0 0.0
    %2523 = vmatprep.subr.mxu0 0.0
    %2524 = vmatpush2.msra.mxu0 0.0
    %2525 = vmatprep.subr.mxu0 0.0
    %2526 = vmatpush2.msra.mxu0 0.0
    %2527 = vmatprep.subr.mxu0 0.0
    %2528 = vmatpush2.msra.mxu0 0.0
    %2529 = vmatprep.subr.mxu0 0.0
    %2530 = vmatpush2.msra.mxu0 0.0
    %2531 = vmatprep.subr.mxu0 0.0
    %2532 = vmatpush2.msra.mxu0 0.0
    %2533 = vmatprep.subr.mxu0 0.0
    %2534 = vmatpush2.msra.mxu0 0.0
    %2535 = vmatprep.subr.mxu0 0.0
    %2536 = vmatpush2.msra.mxu0 0.0
    %2537 = vmatprep.mubr.f32.mxu0 0.0
    %v2538 = vand.u32 %v2106, 4294901760
    %v2539 = vsub.f32 %v2106, %v2538
    %v2540 = vand.u32 %v2539, 4294901760
    %2541 = vmatmul.mubr.f32.gmra.mxu0 %v2540
    %v2542 = vpop.f32.mrf.mxu0
    %v2543 = vadd.f32 %v2453, %v2542
    %v2544 = vpop.f32.mrf.mxu0
    %v2545 = vadd.f32 %v2455, %v2544
    %2546 = vdwg.mxu0
    %2547 = vmatprep.subr.mxu0 0.0
    %2548 = vmatpush1.msra.mxu0 0.0
    %2549 = vmatprep.subr.mxu0 0.0
    %2550 = vmatpush1.msra.mxu0 0.0
    %2551 = vmatprep.subr.mxu0 0.0
    %2552 = vmatpush1.msra.mxu0 0.0
    %2553 = vmatprep.subr.mxu0 0.0
    %2554 = vmatpush1.msra.mxu0 0.0
    %2555 = vmatprep.subr.mxu0 0.0
    %2556 = vmatpush1.msra.mxu0 0.0
    %2557 = vmatprep.subr.mxu0 0.0
    %2558 = vmatpush1.msra.mxu0 0.0
    %2559 = vmatprep.subr.mxu0 0.0
    %2560 = vmatpush1.msra.mxu0 0.0
    %2561 = vmatprep.subr.mxu0 0.0
    %2562 = vmatpush1.msra.mxu0 0.0
    %v2563 = vand.u32 %v631, 4294901760
    %v2564 = vsub.f32 %v631, %v2563
    %v2565 = vand.u32 %v2564, 4294901760
    %2566 = vmatprep.subr.mxu0 %v2565
    %v2567 = vand.u32 %v630, 4294901760
    %v2568 = vsub.f32 %v630, %v2567
    %v2569 = vand.u32 %v2568, 4294901760
    %2570 = vmatpush1.msra.mxu0 %v2569
    %v2571 = vand.u32 %v629, 4294901760
    %v2572 = vsub.f32 %v629, %v2571
    %v2573 = vand.u32 %v2572, 4294901760
    %2574 = vmatprep.subr.mxu0 %v2573
    %v2575 = vand.u32 %v628, 4294901760
    %v2576 = vsub.f32 %v628, %v2575
    %v2577 = vand.u32 %v2576, 4294901760
    %2578 = vmatpush1.msra.mxu0 %v2577
    %v2579 = vand.u32 %v627, 4294901760
    %v2580 = vsub.f32 %v627, %v2579
    %v2581 = vand.u32 %v2580, 4294901760
    %2582 = vmatprep.subr.mxu0 %v2581
    %v2583 = vand.u32 %v626, 4294901760
    %v2584 = vsub.f32 %v626, %v2583
    %v2585 = vand.u32 %v2584, 4294901760
    %2586 = vmatpush1.msra.mxu0 %v2585
    %v2587 = vand.u32 %v625, 4294901760
    %v2588 = vsub.f32 %v625, %v2587
    %v2589 = vand.u32 %v2588, 4294901760
    %2590 = vmatprep.subr.mxu0 %v2589
    %v2591 = vand.u32 %v624, 4294901760
    %v2592 = vsub.f32 %v624, %v2591
    %v2593 = vand.u32 %v2592, 4294901760
    %2594 = vmatpush1.msra.mxu0 %v2593
    %v2595 = vand.u32 %v623, 4294901760
    %v2596 = vsub.f32 %v623, %v2595
    %v2597 = vand.u32 %v2596, 4294901760
    %2598 = vmatprep.subr.mxu0 %v2597
    %v2599 = vand.u32 %v622, 4294901760
    %v2600 = vsub.f32 %v622, %v2599
    %v2601 = vand.u32 %v2600, 4294901760
    %2602 = vmatpush1.msra.mxu0 %v2601
    %v2603 = vand.u32 %v621, 4294901760
    %v2604 = vsub.f32 %v621, %v2603
    %v2605 = vand.u32 %v2604, 4294901760
    %2606 = vmatprep.subr.mxu0 %v2605
    %v2607 = vand.u32 %v620, 4294901760
    %v2608 = vsub.f32 %v620, %v2607
    %v2609 = vand.u32 %v2608, 4294901760
    %2610 = vmatpush1.msra.mxu0 %v2609
    %v2611 = vand.u32 %v619, 4294901760
    %v2612 = vsub.f32 %v619, %v2611
    %v2613 = vand.u32 %v2612, 4294901760
    %2614 = vmatprep.subr.mxu0 %v2613
    %v2615 = vand.u32 %v618, 4294901760
    %v2616 = vsub.f32 %v618, %v2615
    %v2617 = vand.u32 %v2616, 4294901760
    %2618 = vmatpush1.msra.mxu0 %v2617
    %v2619 = vand.u32 %v617, 4294901760
    %v2620 = vsub.f32 %v617, %v2619
    %v2621 = vand.u32 %v2620, 4294901760
    %2622 = vmatprep.subr.mxu0 %v2621
    %v2623 = vand.u32 %v616, 4294901760
    %v2624 = vsub.f32 %v616, %v2623
    %v2625 = vand.u32 %v2624, 4294901760
    %2626 = vmatpush1.msra.mxu0 %v2625
    %2627 = vmatprep.subr.mxu0 0.0
    %2628 = vmatpush2.msra.mxu0 0.0
    %2629 = vmatprep.subr.mxu0 0.0
    %2630 = vmatpush2.msra.mxu0 0.0
    %2631 = vmatprep.subr.mxu0 0.0
    %2632 = vmatpush2.msra.mxu0 0.0
    %2633 = vmatprep.subr.mxu0 0.0
    %2634 = vmatpush2.msra.mxu0 0.0
    %2635 = vmatprep.subr.mxu0 0.0
    %2636 = vmatpush2.msra.mxu0 0.0
    %2637 = vmatprep.subr.mxu0 0.0
    %2638 = vmatpush2.msra.mxu0 0.0
    %2639 = vmatprep.subr.mxu0 0.0
    %2640 = vmatpush2.msra.mxu0 0.0
    %2641 = vmatprep.subr.mxu0 0.0
    %2642 = vmatpush2.msra.mxu0 0.0
    %2643 = vmatprep.subr.mxu0 0.0
    %2644 = vmatpush2.msra.mxu0 0.0
    %2645 = vmatprep.subr.mxu0 0.0
    %2646 = vmatpush2.msra.mxu0 0.0
    %2647 = vmatprep.subr.mxu0 0.0
    %2648 = vmatpush2.msra.mxu0 0.0
    %2649 = vmatprep.subr.mxu0 0.0
    %2650 = vmatpush2.msra.mxu0 0.0
    %2651 = vmatprep.subr.mxu0 0.0
    %2652 = vmatpush2.msra.mxu0 0.0
    %2653 = vmatprep.subr.mxu0 0.0
    %2654 = vmatpush2.msra.mxu0 0.0
    %2655 = vmatprep.subr.mxu0 0.0
    %2656 = vmatpush2.msra.mxu0 0.0
    %2657 = vmatprep.subr.mxu0 0.0
    %2658 = vmatpush2.msra.mxu0 0.0
    %2659 = vmatprep.mubr.f32.mxu0 0.0
    %v2660 = vand.u32 %v2106, 4294901760
    %2661 = vmatmul.mubr.f32.gmra.mxu0 %v2660
    %v2662 = vpop.f32.mrf.mxu0
    %v2663 = vadd.f32 %v2543, %v2662
    %v2664 = vpop.f32.mrf.mxu0
    %v2665 = vadd.f32 %v2545, %v2664
    %2666 = vdwg.mxu0
    %2667 = vmatprep.subr.mxu0 0.0
    %2668 = vmatpush1.msra.mxu0 0.0
    %2669 = vmatprep.subr.mxu0 0.0
    %2670 = vmatpush1.msra.mxu0 0.0
    %2671 = vmatprep.subr.mxu0 0.0
    %2672 = vmatpush1.msra.mxu0 0.0
    %2673 = vmatprep.subr.mxu0 0.0
    %2674 = vmatpush1.msra.mxu0 0.0
    %2675 = vmatprep.subr.mxu0 0.0
    %2676 = vmatpush1.msra.mxu0 0.0
    %2677 = vmatprep.subr.mxu0 0.0
    %2678 = vmatpush1.msra.mxu0 0.0
    %2679 = vmatprep.subr.mxu0 0.0
    %2680 = vmatpush1.msra.mxu0 0.0
    %2681 = vmatprep.subr.mxu0 0.0
    %2682 = vmatpush1.msra.mxu0 0.0
    %v2683 = vand.u32 %v631, 4294901760
    %2684 = vmatprep.subr.mxu0 %v2683
    %v2685 = vand.u32 %v630, 4294901760
    %2686 = vmatpush1.msra.mxu0 %v2685
    %v2687 = vand.u32 %v629, 4294901760
    %2688 = vmatprep.subr.mxu0 %v2687
    %v2689 = vand.u32 %v628, 4294901760
    %2690 = vmatpush1.msra.mxu0 %v2689
    %v2691 = vand.u32 %v627, 4294901760
    %2692 = vmatprep.subr.mxu0 %v2691
    %v2693 = vand.u32 %v626, 4294901760
    %2694 = vmatpush1.msra.mxu0 %v2693
    %v2695 = vand.u32 %v625, 4294901760
    %2696 = vmatprep.subr.mxu0 %v2695
    %v2697 = vand.u32 %v624, 4294901760
    %2698 = vmatpush1.msra.mxu0 %v2697
    %v2699 = vand.u32 %v623, 4294901760
    %2700 = vmatprep.subr.mxu0 %v2699
    %v2701 = vand.u32 %v622, 4294901760
    %2702 = vmatpush1.msra.mxu0 %v2701
    %v2703 = vand.u32 %v621, 4294901760
    %2704 = vmatprep.subr.mxu0 %v2703
    %v2705 = vand.u32 %v620, 4294901760
    %2706 = vmatpush1.msra.mxu0 %v2705
    %v2707 = vand.u32 %v619, 4294901760
    %2708 = vmatprep.subr.mxu0 %v2707
    %v2709 = vand.u32 %v618, 4294901760
    %2710 = vmatpush1.msra.mxu0 %v2709
    %v2711 = vand.u32 %v617, 4294901760
    %2712 = vmatprep.subr.mxu0 %v2711
    %v2713 = vand.u32 %v616, 4294901760
    %2714 = vmatpush1.msra.mxu0 %v2713
    %2715 = vmatprep.subr.mxu0 0.0
    %2716 = vmatpush2.msra.mxu0 0.0
    %2717 = vmatprep.subr.mxu0 0.0
    %2718 = vmatpush2.msra.mxu0 0.0
    %2719 = vmatprep.subr.mxu0 0.0
    %2720 = vmatpush2.msra.mxu0 0.0
    %2721 = vmatprep.subr.mxu0 0.0
    %2722 = vmatpush2.msra.mxu0 0.0
    %2723 = vmatprep.subr.mxu0 0.0
    %2724 = vmatpush2.msra.mxu0 0.0
    %2725 = vmatprep.subr.mxu0 0.0
    %2726 = vmatpush2.msra.mxu0 0.0
    %2727 = vmatprep.subr.mxu0 0.0
    %2728 = vmatpush2.msra.mxu0 0.0
    %2729 = vmatprep.subr.mxu0 0.0
    %2730 = vmatpush2.msra.mxu0 0.0
    %2731 = vmatprep.subr.mxu0 0.0
    %2732 = vmatpush2.msra.mxu0 0.0
    %2733 = vmatprep.subr.mxu0 0.0
    %2734 = vmatpush2.msra.mxu0 0.0
    %2735 = vmatprep.subr.mxu0 0.0
    %2736 = vmatpush2.msra.mxu0 0.0
    %2737 = vmatprep.subr.mxu0 0.0
    %2738 = vmatpush2.msra.mxu0 0.0
    %2739 = vmatprep.subr.mxu0 0.0
    %2740 = vmatpush2.msra.mxu0 0.0
    %2741 = vmatprep.subr.mxu0 0.0
    %2742 = vmatpush2.msra.mxu0 0.0
    %2743 = vmatprep.subr.mxu0 0.0
    %2744 = vmatpush2.msra.mxu0 0.0
    %2745 = vmatprep.subr.mxu0 0.0
    %2746 = vmatpush2.msra.mxu0 0.0
    %2747 = vmatprep.mubr.f32.mxu0 0.0
    %v2748 = vand.u32 %v2106, 4294901760
    %2749 = vmatmul.mubr.f32.gmra.mxu0 %v2748
    %v2750 = vpop.f32.mrf.mxu0
    %v2751 = vadd.f32 %v2663, %v2750
    %v2752 = vpop.f32.mrf.mxu0
    %v2753 = vadd.f32 %v2665, %v2752
    %2754 = vdwg.mxu0
    %v2755 = vrot.slane %v607, 3
    %v2756 = vrot.slane %v613, 2
    %v2757 = vsel %vm642, %v2756, %v2755
    %v2759 = vadd.f32 %v2751, %v2757
    %v2760 = vxor.u32 %v2759, 2147483648
    %v2761 = vmul.f32 %v2760, 1.442695
    %v2762 = vpow.pop %v2761
    %v2763 = vadd.f32 %v2762, 1.0
    %v2764 = vrcp.pop %v2763
    %v2765 = vmul.f32 1.0, %v2764
    %v2766 = vtanh.pop %v2759
    %v2767 = vmul.f32 %v2765, %v2065
    %2769 = vrot.lane.b32.xlu0 %v2766, 64
    %v2770 = vpop.permute.xlu0 %2769
    %v2772 = vmul.f32 %v2765, %v2770
    %2774 = vrot.lane.b32.xlu0 %v2772, 32
    %v2775 = vpop.permute.xlu0 %2774
    %v2777 = vadd.f32 %v2767, %v2775
    %v2778 = vtanh.pop %v2777
    %2780 = vrot.lane.b32.xlu0 %v2778, 64
    %v2781 = vpop.permute.xlu0 %2780
    %v2783 = vmul.f32 %v2765, %v2781
    %v2784 = vxor.u32 %v2753, 2147483648
    %v2785 = vmul.f32 %v2784, 1.442695
    %v2786 = vpow.pop %v2785
    %v2787 = vadd.f32 %v2786, 1.0
    %v2788 = vrcp.pop %v2787
    %v2789 = vmul.f32 1.0, %v2788
    %v2790 = vtanh.pop %v2753
    %v2791 = vmul.f32 %v2789, %v2089
    %2793 = vrot.lane.b32.xlu0 %v2790, 64
    %v2794 = vpop.permute.xlu0 %2793
    %v2796 = vmul.f32 %v2789, %v2794
    %2798 = vrot.lane.b32.xlu0 %v2796, 32
    %v2799 = vpop.permute.xlu0 %2798
    %v2801 = vadd.f32 %v2791, %v2799
    %v2802 = vtanh.pop %v2801
    %2804 = vrot.lane.b32.xlu0 %v2802, 64
    %v2805 = vpop.permute.xlu0 %2804
    %v2807 = vmul.f32 %v2789, %v2805
    %2809 = vrot.lane.b32.xlu0 %v2783, 32
    %v2810 = vpop.permute.xlu0 %2809
    %2813 = vrot.lane.b32.xlu0 %v2807, 64
    %v2814 = vpop.permute.xlu0 %2813
    %v2816 = vsel %vm674, %v2810, %v2814
    %v2818 = vsel %vm681, %v2816, 0
    %2820 = vmatprep.subr.mxu0 0.0
    %2821 = vmatpush1.msra.mxu0 0.0
    %2822 = vmatprep.subr.mxu0 0.0
    %2823 = vmatpush1.msra.mxu0 0.0
    %2824 = vmatprep.subr.mxu0 0.0
    %2825 = vmatpush1.msra.mxu0 0.0
    %2826 = vmatprep.subr.mxu0 0.0
    %2827 = vmatpush1.msra.mxu0 0.0
    %2828 = vmatprep.subr.mxu0 0.0
    %2829 = vmatpush1.msra.mxu0 0.0
    %2830 = vmatprep.subr.mxu0 0.0
    %2831 = vmatpush1.msra.mxu0 0.0
    %2832 = vmatprep.subr.mxu0 0.0
    %2833 = vmatpush1.msra.mxu0 0.0
    %2834 = vmatprep.subr.mxu0 0.0
    %2835 = vmatpush1.msra.mxu0 0.0
    %v2836 = vand.u32 %v631, 4294901760
    %2837 = vmatprep.subr.mxu0 %v2836
    %v2838 = vand.u32 %v630, 4294901760
    %2839 = vmatpush1.msra.mxu0 %v2838
    %v2840 = vand.u32 %v629, 4294901760
    %2841 = vmatprep.subr.mxu0 %v2840
    %v2842 = vand.u32 %v628, 4294901760
    %2843 = vmatpush1.msra.mxu0 %v2842
    %v2844 = vand.u32 %v627, 4294901760
    %2845 = vmatprep.subr.mxu0 %v2844
    %v2846 = vand.u32 %v626, 4294901760
    %2847 = vmatpush1.msra.mxu0 %v2846
    %v2848 = vand.u32 %v625, 4294901760
    %2849 = vmatprep.subr.mxu0 %v2848
    %v2850 = vand.u32 %v624, 4294901760
    %2851 = vmatpush1.msra.mxu0 %v2850
    %v2852 = vand.u32 %v623, 4294901760
    %2853 = vmatprep.subr.mxu0 %v2852
    %v2854 = vand.u32 %v622, 4294901760
    %2855 = vmatpush1.msra.mxu0 %v2854
    %v2856 = vand.u32 %v621, 4294901760
    %2857 = vmatprep.subr.mxu0 %v2856
    %v2858 = vand.u32 %v620, 4294901760
    %2859 = vmatpush1.msra.mxu0 %v2858
    %v2860 = vand.u32 %v619, 4294901760
    %2861 = vmatprep.subr.mxu0 %v2860
    %v2862 = vand.u32 %v618, 4294901760
    %2863 = vmatpush1.msra.mxu0 %v2862
    %v2864 = vand.u32 %v617, 4294901760
    %2865 = vmatprep.subr.mxu0 %v2864
    %v2866 = vand.u32 %v616, 4294901760
    %2867 = vmatpush1.msra.mxu0 %v2866
    %2868 = vmatprep.subr.mxu0 0.0
    %2869 = vmatpush2.msra.mxu0 0.0
    %2870 = vmatprep.subr.mxu0 0.0
    %2871 = vmatpush2.msra.mxu0 0.0
    %2872 = vmatprep.subr.mxu0 0.0
    %2873 = vmatpush2.msra.mxu0 0.0
    %2874 = vmatprep.subr.mxu0 0.0
    %2875 = vmatpush2.msra.mxu0 0.0
    %2876 = vmatprep.subr.mxu0 0.0
    %2877 = vmatpush2.msra.mxu0 0.0
    %2878 = vmatprep.subr.mxu0 0.0
    %2879 = vmatpush2.msra.mxu0 0.0
    %2880 = vmatprep.subr.mxu0 0.0
    %2881 = vmatpush2.msra.mxu0 0.0
    %2882 = vmatprep.subr.mxu0 0.0
    %2883 = vmatpush2.msra.mxu0 0.0
    %2884 = vmatprep.subr.mxu0 0.0
    %2885 = vmatpush2.msra.mxu0 0.0
    %2886 = vmatprep.subr.mxu0 0.0
    %2887 = vmatpush2.msra.mxu0 0.0
    %2888 = vmatprep.subr.mxu0 0.0
    %2889 = vmatpush2.msra.mxu0 0.0
    %2890 = vmatprep.subr.mxu0 0.0
    %2891 = vmatpush2.msra.mxu0 0.0
    %2892 = vmatprep.subr.mxu0 0.0
    %2893 = vmatpush2.msra.mxu0 0.0
    %2894 = vmatprep.subr.mxu0 0.0
    %2895 = vmatpush2.msra.mxu0 0.0
    %2896 = vmatprep.subr.mxu0 0.0
    %2897 = vmatpush2.msra.mxu0 0.0
    %2898 = vmatprep.subr.mxu0 0.0
    %2899 = vmatpush2.msra.mxu0 0.0
    %2900 = vmatprep.mubr.f32.mxu0 0.0
    %v2901 = vand.u32 %v2818, 4294901760
    %v2902 = vsub.f32 %v2818, %v2901
    %v2903 = vand.u32 %v2902, 4294901760
    %v2904 = vsub.f32 %v2902, %v2903
    %v2905 = vand.u32 %v2904, 4294901760
    %2906 = vmatmul.mubr.f32.gmra.mxu0 %v2905
    %v2907 = vpop.f32.mrf.mxu0
    %v2908 = vadd.f32 %v637, %v2907
    %v2909 = vpop.f32.mrf.mxu0
    %v2910 = vadd.f32 %v679, %v2909
    %2911 = vdwg.mxu0
    %2912 = vmatprep.subr.mxu0 0.0
    %2913 = vmatpush1.msra.mxu0 0.0
    %2914 = vmatprep.subr.mxu0 0.0
    %2915 = vmatpush1.msra.mxu0 0.0
    %2916 = vmatprep.subr.mxu0 0.0
    %2917 = vmatpush1.msra.mxu0 0.0
    %2918 = vmatprep.subr.mxu0 0.0
    %2919 = vmatpush1.msra.mxu0 0.0
    %2920 = vmatprep.subr.mxu0 0.0
    %2921 = vmatpush1.msra.mxu0 0.0
    %2922 = vmatprep.subr.mxu0 0.0
    %2923 = vmatpush1.msra.mxu0 0.0
    %2924 = vmatprep.subr.mxu0 0.0
    %2925 = vmatpush1.msra.mxu0 0.0
    %2926 = vmatprep.subr.mxu0 0.0
    %2927 = vmatpush1.msra.mxu0 0.0
    %v2928 = vand.u32 %v631, 4294901760
    %v2929 = vsub.f32 %v631, %v2928
    %v2930 = vand.u32 %v2929, 4294901760
    %v2931 = vsub.f32 %v2929, %v2930
    %v2932 = vand.u32 %v2931, 4294901760
    %2933 = vmatprep.subr.mxu0 %v2932
    %v2934 = vand.u32 %v630, 4294901760
    %v2935 = vsub.f32 %v630, %v2934
    %v2936 = vand.u32 %v2935, 4294901760
    %v2937 = vsub.f32 %v2935, %v2936
    %v2938 = vand.u32 %v2937, 4294901760
    %2939 = vmatpush1.msra.mxu0 %v2938
    %v2940 = vand.u32 %v629, 4294901760
    %v2941 = vsub.f32 %v629, %v2940
    %v2942 = vand.u32 %v2941, 4294901760
    %v2943 = vsub.f32 %v2941, %v2942
    %v2944 = vand.u32 %v2943, 4294901760
    %2945 = vmatprep.subr.mxu0 %v2944
    %v2946 = vand.u32 %v628, 4294901760
    %v2947 = vsub.f32 %v628, %v2946
    %v2948 = vand.u32 %v2947, 4294901760
    %v2949 = vsub.f32 %v2947, %v2948
    %v2950 = vand.u32 %v2949, 4294901760
    %2951 = vmatpush1.msra.mxu0 %v2950
    %v2952 = vand.u32 %v627, 4294901760
    %v2953 = vsub.f32 %v627, %v2952
    %v2954 = vand.u32 %v2953, 4294901760
    %v2955 = vsub.f32 %v2953, %v2954
    %v2956 = vand.u32 %v2955, 4294901760
    %2957 = vmatprep.subr.mxu0 %v2956
    %v2958 = vand.u32 %v626, 4294901760
    %v2959 = vsub.f32 %v626, %v2958
    %v2960 = vand.u32 %v2959, 4294901760
    %v2961 = vsub.f32 %v2959, %v2960
    %v2962 = vand.u32 %v2961, 4294901760
    %2963 = vmatpush1.msra.mxu0 %v2962
    %v2964 = vand.u32 %v625, 4294901760
    %v2965 = vsub.f32 %v625, %v2964
    %v2966 = vand.u32 %v2965, 4294901760
    %v2967 = vsub.f32 %v2965, %v2966
    %v2968 = vand.u32 %v2967, 4294901760
    %2969 = vmatprep.subr.mxu0 %v2968
    %v2970 = vand.u32 %v624, 4294901760
    %v2971 = vsub.f32 %v624, %v2970
    %v2972 = vand.u32 %v2971, 4294901760
    %v2973 = vsub.f32 %v2971, %v2972
    %v2974 = vand.u32 %v2973, 4294901760
    %2975 = vmatpush1.msra.mxu0 %v2974
    %v2976 = vand.u32 %v623, 4294901760
    %v2977 = vsub.f32 %v623, %v2976
    %v2978 = vand.u32 %v2977, 4294901760
    %v2979 = vsub.f32 %v2977, %v2978
    %v2980 = vand.u32 %v2979, 4294901760
    %2981 = vmatprep.subr.mxu0 %v2980
    %v2982 = vand.u32 %v622, 4294901760
    %v2983 = vsub.f32 %v622, %v2982
    %v2984 = vand.u32 %v2983, 4294901760
    %v2985 = vsub.f32 %v2983, %v2984
    %v2986 = vand.u32 %v2985, 4294901760
    %2987 = vmatpush1.msra.mxu0 %v2986
    %v2988 = vand.u32 %v621, 4294901760
    %v2989 = vsub.f32 %v621, %v2988
    %v2990 = vand.u32 %v2989, 4294901760
    %v2991 = vsub.f32 %v2989, %v2990
    %v2992 = vand.u32 %v2991, 4294901760
    %2993 = vmatprep.subr.mxu0 %v2992
    %v2994 = vand.u32 %v620, 4294901760
    %v2995 = vsub.f32 %v620, %v2994
    %v2996 = vand.u32 %v2995, 4294901760
    %v2997 = vsub.f32 %v2995, %v2996
    %v2998 = vand.u32 %v2997, 4294901760
    %2999 = vmatpush1.msra.mxu0 %v2998
    %v3000 = vand.u32 %v619, 4294901760
    %v3001 = vsub.f32 %v619, %v3000
    %v3002 = vand.u32 %v3001, 4294901760
    %v3003 = vsub.f32 %v3001, %v3002
    %v3004 = vand.u32 %v3003, 4294901760
    %3005 = vmatprep.subr.mxu0 %v3004
    %v3006 = vand.u32 %v618, 4294901760
    %v3007 = vsub.f32 %v618, %v3006
    %v3008 = vand.u32 %v3007, 4294901760
    %v3009 = vsub.f32 %v3007, %v3008
    %v3010 = vand.u32 %v3009, 4294901760
    %3011 = vmatpush1.msra.mxu0 %v3010
    %v3012 = vand.u32 %v617, 4294901760
    %v3013 = vsub.f32 %v617, %v3012
    %v3014 = vand.u32 %v3013, 4294901760
    %v3015 = vsub.f32 %v3013, %v3014
    %v3016 = vand.u32 %v3015, 4294901760
    %3017 = vmatprep.subr.mxu0 %v3016
    %v3018 = vand.u32 %v616, 4294901760
    %v3019 = vsub.f32 %v616, %v3018
    %v3020 = vand.u32 %v3019, 4294901760
    %v3021 = vsub.f32 %v3019, %v3020
    %v3022 = vand.u32 %v3021, 4294901760
    %3023 = vmatpush1.msra.mxu0 %v3022
    %3024 = vmatprep.subr.mxu0 0.0
    %3025 = vmatpush2.msra.mxu0 0.0
    %3026 = vmatprep.subr.mxu0 0.0
    %3027 = vmatpush2.msra.mxu0 0.0
    %3028 = vmatprep.subr.mxu0 0.0
    %3029 = vmatpush2.msra.mxu0 0.0
    %3030 = vmatprep.subr.mxu0 0.0
    %3031 = vmatpush2.msra.mxu0 0.0
    %3032 = vmatprep.subr.mxu0 0.0
    %3033 = vmatpush2.msra.mxu0 0.0
    %3034 = vmatprep.subr.mxu0 0.0
    %3035 = vmatpush2.msra.mxu0 0.0
    %3036 = vmatprep.subr.mxu0 0.0
    %3037 = vmatpush2.msra.mxu0 0.0
    %3038 = vmatprep.subr.mxu0 0.0
    %3039 = vmatpush2.msra.mxu0 0.0
    %3040 = vmatprep.subr.mxu0 0.0
    %3041 = vmatpush2.msra.mxu0 0.0
    %3042 = vmatprep.subr.mxu0 0.0
    %3043 = vmatpush2.msra.mxu0 0.0
    %3044 = vmatprep.subr.mxu0 0.0
    %3045 = vmatpush2.msra.mxu0 0.0
    %3046 = vmatprep.subr.mxu0 0.0
    %3047 = vmatpush2.msra.mxu0 0.0
    %3048 = vmatprep.subr.mxu0 0.0
    %3049 = vmatpush2.msra.mxu0 0.0
    %3050 = vmatprep.subr.mxu0 0.0
    %3051 = vmatpush2.msra.mxu0 0.0
    %3052 = vmatprep.subr.mxu0 0.0
    %3053 = vmatpush2.msra.mxu0 0.0
    %3054 = vmatprep.subr.mxu0 0.0
    %3055 = vmatpush2.msra.mxu0 0.0
    %3056 = vmatprep.mubr.f32.mxu0 0.0
    %v3057 = vand.u32 %v2818, 4294901760
    %3058 = vmatmul.mubr.f32.gmra.mxu0 %v3057
    %v3059 = vpop.f32.mrf.mxu0
    %v3060 = vadd.f32 %v2908, %v3059
    %v3061 = vpop.f32.mrf.mxu0
    %v3062 = vadd.f32 %v2910, %v3061
    %3063 = vdwg.mxu0
    %3064 = vmatprep.subr.mxu0 0.0
    %3065 = vmatpush1.msra.mxu0 0.0
    %3066 = vmatprep.subr.mxu0 0.0
    %3067 = vmatpush1.msra.mxu0 0.0
    %3068 = vmatprep.subr.mxu0 0.0
    %3069 = vmatpush1.msra.mxu0 0.0
    %3070 = vmatprep.subr.mxu0 0.0
    %3071 = vmatpush1.msra.mxu0 0.0
    %3072 = vmatprep.subr.mxu0 0.0
    %3073 = vmatpush1.msra.mxu0 0.0
    %3074 = vmatprep.subr.mxu0 0.0
    %3075 = vmatpush1.msra.mxu0 0.0
    %3076 = vmatprep.subr.mxu0 0.0
    %3077 = vmatpush1.msra.mxu0 0.0
    %3078 = vmatprep.subr.mxu0 0.0
    %3079 = vmatpush1.msra.mxu0 0.0
    %v3080 = vand.u32 %v631, 4294901760
    %v3081 = vsub.f32 %v631, %v3080
    %3082 = vmatprep.subr.mxu0 %v3081
    %v3083 = vand.u32 %v630, 4294901760
    %v3084 = vsub.f32 %v630, %v3083
    %3085 = vmatpush1.msra.mxu0 %v3084
    %v3086 = vand.u32 %v629, 4294901760
    %v3087 = vsub.f32 %v629, %v3086
    %3088 = vmatprep.subr.mxu0 %v3087
    %v3089 = vand.u32 %v628, 4294901760
    %v3090 = vsub.f32 %v628, %v3089
    %3091 = vmatpush1.msra.mxu0 %v3090
    %v3092 = vand.u32 %v627, 4294901760
    %v3093 = vsub.f32 %v627, %v3092
    %3094 = vmatprep.subr.mxu0 %v3093
    %v3095 = vand.u32 %v626, 4294901760
    %v3096 = vsub.f32 %v626, %v3095
    %3097 = vmatpush1.msra.mxu0 %v3096
    %v3098 = vand.u32 %v625, 4294901760
    %v3099 = vsub.f32 %v625, %v3098
    %3100 = vmatprep.subr.mxu0 %v3099
    %v3101 = vand.u32 %v624, 4294901760
    %v3102 = vsub.f32 %v624, %v3101
    %3103 = vmatpush1.msra.mxu0 %v3102
    %v3104 = vand.u32 %v623, 4294901760
    %v3105 = vsub.f32 %v623, %v3104
    %3106 = vmatprep.subr.mxu0 %v3105
    %v3107 = vand.u32 %v622, 4294901760
    %v3108 = vsub.f32 %v622, %v3107
    %3109 = vmatpush1.msra.mxu0 %v3108
    %v3110 = vand.u32 %v621, 4294901760
    %v3111 = vsub.f32 %v621, %v3110
    %3112 = vmatprep.subr.mxu0 %v3111
    %v3113 = vand.u32 %v620, 4294901760
    %v3114 = vsub.f32 %v620, %v3113
    %3115 = vmatpush1.msra.mxu0 %v3114
    %v3116 = vand.u32 %v619, 4294901760
    %v3117 = vsub.f32 %v619, %v3116
    %3118 = vmatprep.subr.mxu0 %v3117
    %v3119 = vand.u32 %v618, 4294901760
    %v3120 = vsub.f32 %v618, %v3119
    %3121 = vmatpush1.msra.mxu0 %v3120
    %v3122 = vand.u32 %v617, 4294901760
    %v3123 = vsub.f32 %v617, %v3122
    %3124 = vmatprep.subr.mxu0 %v3123
    %v3125 = vand.u32 %v616, 4294901760
    %v3126 = vsub.f32 %v616, %v3125
    %3127 = vmatpush1.msra.mxu0 %v3126
    %3128 = vmatprep.subr.mxu0 0.0
    %3129 = vmatpush2.msra.mxu0 0.0
    %3130 = vmatprep.subr.mxu0 0.0
    %3131 = vmatpush2.msra.mxu0 0.0
    %3132 = vmatprep.subr.mxu0 0.0
    %3133 = vmatpush2.msra.mxu0 0.0
    %3134 = vmatprep.subr.mxu0 0.0
    %3135 = vmatpush2.msra.mxu0 0.0
    %3136 = vmatprep.subr.mxu0 0.0
    %3137 = vmatpush2.msra.mxu0 0.0
    %3138 = vmatprep.subr.mxu0 0.0
    %3139 = vmatpush2.msra.mxu0 0.0
    %3140 = vmatprep.subr.mxu0 0.0
    %3141 = vmatpush2.msra.mxu0 0.0
    %3142 = vmatprep.subr.mxu0 0.0
    %3143 = vmatpush2.msra.mxu0 0.0
    %3144 = vmatprep.subr.mxu0 0.0
    %3145 = vmatpush2.msra.mxu0 0.0
    %3146 = vmatprep.subr.mxu0 0.0
    %3147 = vmatpush2.msra.mxu0 0.0
    %3148 = vmatprep.subr.mxu0 0.0
    %3149 = vmatpush2.msra.mxu0 0.0
    %3150 = vmatprep.subr.mxu0 0.0
    %3151 = vmatpush2.msra.mxu0 0.0
    %3152 = vmatprep.subr.mxu0 0.0
    %3153 = vmatpush2.msra.mxu0 0.0
    %3154 = vmatprep.subr.mxu0 0.0
    %3155 = vmatpush2.msra.mxu0 0.0
    %3156 = vmatprep.subr.mxu0 0.0
    %3157 = vmatpush2.msra.mxu0 0.0
    %3158 = vmatprep.subr.mxu0 0.0
    %3159 = vmatpush2.msra.mxu0 0.0
    %3160 = vmatprep.mubr.f32.mxu0 0.0
    %v3161 = vand.u32 %v2818, 4294901760
    %v3162 = vsub.f32 %v2818, %v3161
    %3163 = vmatmul.mubr.f32.gmra.mxu0 %v3162
    %v3164 = vpop.f32.mrf.mxu0
    %v3165 = vadd.f32 %v3060, %v3164
    %v3166 = vpop.f32.mrf.mxu0
    %v3167 = vadd.f32 %v3062, %v3166
    %3168 = vdwg.mxu0
    %3169 = vmatprep.subr.mxu0 0.0
    %3170 = vmatpush1.msra.mxu0 0.0
    %3171 = vmatprep.subr.mxu0 0.0
    %3172 = vmatpush1.msra.mxu0 0.0
    %3173 = vmatprep.subr.mxu0 0.0
    %3174 = vmatpush1.msra.mxu0 0.0
    %3175 = vmatprep.subr.mxu0 0.0
    %3176 = vmatpush1.msra.mxu0 0.0
    %3177 = vmatprep.subr.mxu0 0.0
    %3178 = vmatpush1.msra.mxu0 0.0
    %3179 = vmatprep.subr.mxu0 0.0
    %3180 = vmatpush1.msra.mxu0 0.0
    %3181 = vmatprep.subr.mxu0 0.0
    %3182 = vmatpush1.msra.mxu0 0.0
    %3183 = vmatprep.subr.mxu0 0.0
    %3184 = vmatpush1.msra.mxu0 0.0
    %v3185 = vand.u32 %v631, 4294901760
    %3186 = vmatprep.subr.mxu0 %v3185
    %v3187 = vand.u32 %v630, 4294901760
    %3188 = vmatpush1.msra.mxu0 %v3187
    %v3189 = vand.u32 %v629, 4294901760
    %3190 = vmatprep.subr.mxu0 %v3189
    %v3191 = vand.u32 %v628, 4294901760
    %3192 = vmatpush1.msra.mxu0 %v3191
    %v3193 = vand.u32 %v627, 4294901760
    %3194 = vmatprep.subr.mxu0 %v3193
    %v3195 = vand.u32 %v626, 4294901760
    %3196 = vmatpush1.msra.mxu0 %v3195
    %v3197 = vand.u32 %v625, 4294901760
    %3198 = vmatprep.subr.mxu0 %v3197
    %v3199 = vand.u32 %v624, 4294901760
    %3200 = vmatpush1.msra.mxu0 %v3199
    %v3201 = vand.u32 %v623, 4294901760
    %3202 = vmatprep.subr.mxu0 %v3201
    %v3203 = vand.u32 %v622, 4294901760
    %3204 = vmatpush1.msra.mxu0 %v3203
    %v3205 = vand.u32 %v621, 4294901760
    %3206 = vmatprep.subr.mxu0 %v3205
    %v3207 = vand.u32 %v620, 4294901760
    %3208 = vmatpush1.msra.mxu0 %v3207
    %v3209 = vand.u32 %v619, 4294901760
    %3210 = vmatprep.subr.mxu0 %v3209
    %v3211 = vand.u32 %v618, 4294901760
    %3212 = vmatpush1.msra.mxu0 %v3211
    %v3213 = vand.u32 %v617, 4294901760
    %3214 = vmatprep.subr.mxu0 %v3213
    %v3215 = vand.u32 %v616, 4294901760
    %3216 = vmatpush1.msra.mxu0 %v3215
    %3217 = vmatprep.subr.mxu0 0.0
    %3218 = vmatpush2.msra.mxu0 0.0
    %3219 = vmatprep.subr.mxu0 0.0
    %3220 = vmatpush2.msra.mxu0 0.0
    %3221 = vmatprep.subr.mxu0 0.0
    %3222 = vmatpush2.msra.mxu0 0.0
    %3223 = vmatprep.subr.mxu0 0.0
    %3224 = vmatpush2.msra.mxu0 0.0
    %3225 = vmatprep.subr.mxu0 0.0
    %3226 = vmatpush2.msra.mxu0 0.0
    %3227 = vmatprep.subr.mxu0 0.0
    %3228 = vmatpush2.msra.mxu0 0.0
    %3229 = vmatprep.subr.mxu0 0.0
    %3230 = vmatpush2.msra.mxu0 0.0
    %3231 = vmatprep.subr.mxu0 0.0
    %3232 = vmatpush2.msra.mxu0 0.0
    %3233 = vmatprep.subr.mxu0 0.0
    %3234 = vmatpush2.msra.mxu0 0.0
    %3235 = vmatprep.subr.mxu0 0.0
    %3236 = vmatpush2.msra.mxu0 0.0
    %3237 = vmatprep.subr.mxu0 0.0
    %3238 = vmatpush2.msra.mxu0 0.0
    %3239 = vmatprep.subr.mxu0 0.0
    %3240 = vmatpush2.msra.mxu0 0.0
    %3241 = vmatprep.subr.mxu0 0.0
    %3242 = vmatpush2.msra.mxu0 0.0
    %3243 = vmatprep.subr.mxu0 0.0
    %3244 = vmatpush2.msra.mxu0 0.0
    %3245 = vmatprep.subr.mxu0 0.0
    %3246 = vmatpush2.msra.mxu0 0.0
    %3247 = vmatprep.subr.mxu0 0.0
    %3248 = vmatpush2.msra.mxu0 0.0
    %3249 = vmatprep.mubr.f32.mxu0 0.0
    %v3250 = vand.u32 %v2818, 4294901760
    %v3251 = vsub.f32 %v2818, %v3250
    %v3252 = vand.u32 %v3251, 4294901760
    %3253 = vmatmul.mubr.f32.gmra.mxu0 %v3252
    %v3254 = vpop.f32.mrf.mxu0
    %v3255 = vadd.f32 %v3165, %v3254
    %v3256 = vpop.f32.mrf.mxu0
    %v3257 = vadd.f32 %v3167, %v3256
    %3258 = vdwg.mxu0
    %3259 = vmatprep.subr.mxu0 0.0
    %3260 = vmatpush1.msra.mxu0 0.0
    %3261 = vmatprep.subr.mxu0 0.0
    %3262 = vmatpush1.msra.mxu0 0.0
    %3263 = vmatprep.subr.mxu0 0.0
    %3264 = vmatpush1.msra.mxu0 0.0
    %3265 = vmatprep.subr.mxu0 0.0
    %3266 = vmatpush1.msra.mxu0 0.0
    %3267 = vmatprep.subr.mxu0 0.0
    %3268 = vmatpush1.msra.mxu0 0.0
    %3269 = vmatprep.subr.mxu0 0.0
    %3270 = vmatpush1.msra.mxu0 0.0
    %3271 = vmatprep.subr.mxu0 0.0
    %3272 = vmatpush1.msra.mxu0 0.0
    %3273 = vmatprep.subr.mxu0 0.0
    %3274 = vmatpush1.msra.mxu0 0.0
    %v3275 = vand.u32 %v631, 4294901760
    %v3276 = vsub.f32 %v631, %v3275
    %v3277 = vand.u32 %v3276, 4294901760
    %3278 = vmatprep.subr.mxu0 %v3277
    %v3279 = vand.u32 %v630, 4294901760
    %v3280 = vsub.f32 %v630, %v3279
    %v3281 = vand.u32 %v3280, 4294901760
    %3282 = vmatpush1.msra.mxu0 %v3281
    %v3283 = vand.u32 %v629, 4294901760
    %v3284 = vsub.f32 %v629, %v3283
    %v3285 = vand.u32 %v3284, 4294901760
    %3286 = vmatprep.subr.mxu0 %v3285
    %v3287 = vand.u32 %v628, 4294901760
    %v3288 = vsub.f32 %v628, %v3287
    %v3289 = vand.u32 %v3288, 4294901760
    %3290 = vmatpush1.msra.mxu0 %v3289
    %v3291 = vand.u32 %v627, 4294901760
    %v3292 = vsub.f32 %v627, %v3291
    %v3293 = vand.u32 %v3292, 4294901760
    %3294 = vmatprep.subr.mxu0 %v3293
    %v3295 = vand.u32 %v626, 4294901760
    %v3296 = vsub.f32 %v626, %v3295
    %v3297 = vand.u32 %v3296, 4294901760
    %3298 = vmatpush1.msra.mxu0 %v3297
    %v3299 = vand.u32 %v625, 4294901760
    %v3300 = vsub.f32 %v625, %v3299
    %v3301 = vand.u32 %v3300, 4294901760
    %3302 = vmatprep.subr.mxu0 %v3301
    %v3303 = vand.u32 %v624, 4294901760
    %v3304 = vsub.f32 %v624, %v3303
    %v3305 = vand.u32 %v3304, 4294901760
    %3306 = vmatpush1.msra.mxu0 %v3305
    %v3307 = vand.u32 %v623, 4294901760
    %v3308 = vsub.f32 %v623, %v3307
    %v3309 = vand.u32 %v3308, 4294901760
    %3310 = vmatprep.subr.mxu0 %v3309
    %v3311 = vand.u32 %v622, 4294901760
    %v3312 = vsub.f32 %v622, %v3311
    %v3313 = vand.u32 %v3312, 4294901760
    %3314 = vmatpush1.msra.mxu0 %v3313
    %v3315 = vand.u32 %v621, 4294901760
    %v3316 = vsub.f32 %v621, %v3315
    %v3317 = vand.u32 %v3316, 4294901760
    %3318 = vmatprep.subr.mxu0 %v3317
    %v3319 = vand.u32 %v620, 4294901760
    %v3320 = vsub.f32 %v620, %v3319
    %v3321 = vand.u32 %v3320, 4294901760
    %3322 = vmatpush1.msra.mxu0 %v3321
    %v3323 = vand.u32 %v619, 4294901760
    %v3324 = vsub.f32 %v619, %v3323
    %v3325 = vand.u32 %v3324, 4294901760
    %3326 = vmatprep.subr.mxu0 %v3325
    %v3327 = vand.u32 %v618, 4294901760
    %v3328 = vsub.f32 %v618, %v3327
    %v3329 = vand.u32 %v3328, 4294901760
    %3330 = vmatpush1.msra.mxu0 %v3329
    %v3331 = vand.u32 %v617, 4294901760
    %v3332 = vsub.f32 %v617, %v3331
    %v3333 = vand.u32 %v3332, 4294901760
    %3334 = vmatprep.subr.mxu0 %v3333
    %v3335 = vand.u32 %v616, 4294901760
    %v3336 = vsub.f32 %v616, %v3335
    %v3337 = vand.u32 %v3336, 4294901760
    %3338 = vmatpush1.msra.mxu0 %v3337
    %3339 = vmatprep.subr.mxu0 0.0
    %3340 = vmatpush2.msra.mxu0 0.0
    %3341 = vmatprep.subr.mxu0 0.0
    %3342 = vmatpush2.msra.mxu0 0.0
    %3343 = vmatprep.subr.mxu0 0.0
    %3344 = vmatpush2.msra.mxu0 0.0
    %3345 = vmatprep.subr.mxu0 0.0
    %3346 = vmatpush2.msra.mxu0 0.0
    %3347 = vmatprep.subr.mxu0 0.0
    %3348 = vmatpush2.msra.mxu0 0.0
    %3349 = vmatprep.subr.mxu0 0.0
    %3350 = vmatpush2.msra.mxu0 0.0
    %3351 = vmatprep.subr.mxu0 0.0
    %3352 = vmatpush2.msra.mxu0 0.0
    %3353 = vmatprep.subr.mxu0 0.0
    %3354 = vmatpush2.msra.mxu0 0.0
    %3355 = vmatprep.subr.mxu0 0.0
    %3356 = vmatpush2.msra.mxu0 0.0
    %3357 = vmatprep.subr.mxu0 0.0
    %3358 = vmatpush2.msra.mxu0 0.0
    %3359 = vmatprep.subr.mxu0 0.0
    %3360 = vmatpush2.msra.mxu0 0.0
    %3361 = vmatprep.subr.mxu0 0.0
    %3362 = vmatpush2.msra.mxu0 0.0
    %3363 = vmatprep.subr.mxu0 0.0
    %3364 = vmatpush2.msra.mxu0 0.0
    %3365 = vmatprep.subr.mxu0 0.0
    %3366 = vmatpush2.msra.mxu0 0.0
    %3367 = vmatprep.subr.mxu0 0.0
    %3368 = vmatpush2.msra.mxu0 0.0
    %3369 = vmatprep.subr.mxu0 0.0
    %3370 = vmatpush2.msra.mxu0 0.0
    %3371 = vmatprep.mubr.f32.mxu0 0.0
    %v3372 = vand.u32 %v2818, 4294901760
    %3373 = vmatmul.mubr.f32.gmra.mxu0 %v3372
    %v3374 = vpop.f32.mrf.mxu0
    %v3375 = vadd.f32 %v3255, %v3374
    %v3376 = vpop.f32.mrf.mxu0
    %v3377 = vadd.f32 %v3257, %v3376
    %3378 = vdwg.mxu0
    %3379 = vmatprep.subr.mxu0 0.0
    %3380 = vmatpush1.msra.mxu0 0.0
    %3381 = vmatprep.subr.mxu0 0.0
    %3382 = vmatpush1.msra.mxu0 0.0
    %3383 = vmatprep.subr.mxu0 0.0
    %3384 = vmatpush1.msra.mxu0 0.0
    %3385 = vmatprep.subr.mxu0 0.0
    %3386 = vmatpush1.msra.mxu0 0.0
    %3387 = vmatprep.subr.mxu0 0.0
    %3388 = vmatpush1.msra.mxu0 0.0
    %3389 = vmatprep.subr.mxu0 0.0
    %3390 = vmatpush1.msra.mxu0 0.0
    %3391 = vmatprep.subr.mxu0 0.0
    %3392 = vmatpush1.msra.mxu0 0.0
    %3393 = vmatprep.subr.mxu0 0.0
    %3394 = vmatpush1.msra.mxu0 0.0
    %v3395 = vand.u32 %v631, 4294901760
    %3396 = vmatprep.subr.mxu0 %v3395
    %v3397 = vand.u32 %v630, 4294901760
    %3398 = vmatpush1.msra.mxu0 %v3397
    %v3399 = vand.u32 %v629, 4294901760
    %3400 = vmatprep.subr.mxu0 %v3399
    %v3401 = vand.u32 %v628, 4294901760
    %3402 = vmatpush1.msra.mxu0 %v3401
    %v3403 = vand.u32 %v627, 4294901760
    %3404 = vmatprep.subr.mxu0 %v3403
    %v3405 = vand.u32 %v626, 4294901760
    %3406 = vmatpush1.msra.mxu0 %v3405
    %v3407 = vand.u32 %v625, 4294901760
    %3408 = vmatprep.subr.mxu0 %v3407
    %v3409 = vand.u32 %v624, 4294901760
    %3410 = vmatpush1.msra.mxu0 %v3409
    %v3411 = vand.u32 %v623, 4294901760
    %3412 = vmatprep.subr.mxu0 %v3411
    %v3413 = vand.u32 %v622, 4294901760
    %3414 = vmatpush1.msra.mxu0 %v3413
    %v3415 = vand.u32 %v621, 4294901760
    %3416 = vmatprep.subr.mxu0 %v3415
    %v3417 = vand.u32 %v620, 4294901760
    %3418 = vmatpush1.msra.mxu0 %v3417
    %v3419 = vand.u32 %v619, 4294901760
    %3420 = vmatprep.subr.mxu0 %v3419
    %v3421 = vand.u32 %v618, 4294901760
    %3422 = vmatpush1.msra.mxu0 %v3421
    %v3423 = vand.u32 %v617, 4294901760
    %3424 = vmatprep.subr.mxu0 %v3423
    %v3425 = vand.u32 %v616, 4294901760
    %3426 = vmatpush1.msra.mxu0 %v3425
    %3427 = vmatprep.subr.mxu0 0.0
    %3428 = vmatpush2.msra.mxu0 0.0
    %3429 = vmatprep.subr.mxu0 0.0
    %3430 = vmatpush2.msra.mxu0 0.0
    %3431 = vmatprep.subr.mxu0 0.0
    %3432 = vmatpush2.msra.mxu0 0.0
    %3433 = vmatprep.subr.mxu0 0.0
    %3434 = vmatpush2.msra.mxu0 0.0
    %3435 = vmatprep.subr.mxu0 0.0
    %3436 = vmatpush2.msra.mxu0 0.0
    %3437 = vmatprep.subr.mxu0 0.0
    %3438 = vmatpush2.msra.mxu0 0.0
    %3439 = vmatprep.subr.mxu0 0.0
    %3440 = vmatpush2.msra.mxu0 0.0
    %3441 = vmatprep.subr.mxu0 0.0
    %3442 = vmatpush2.msra.mxu0 0.0
    %3443 = vmatprep.subr.mxu0 0.0
    %3444 = vmatpush2.msra.mxu0 0.0
    %3445 = vmatprep.subr.mxu0 0.0
    %3446 = vmatpush2.msra.mxu0 0.0
    %3447 = vmatprep.subr.mxu0 0.0
    %3448 = vmatpush2.msra.mxu0 0.0
    %3449 = vmatprep.subr.mxu0 0.0
    %3450 = vmatpush2.msra.mxu0 0.0
    %3451 = vmatprep.subr.mxu0 0.0
    %3452 = vmatpush2.msra.mxu0 0.0
    %3453 = vmatprep.subr.mxu0 0.0
    %3454 = vmatpush2.msra.mxu0 0.0
    %3455 = vmatprep.subr.mxu0 0.0
    %3456 = vmatpush2.msra.mxu0 0.0
    %3457 = vmatprep.subr.mxu0 0.0
    %3458 = vmatpush2.msra.mxu0 0.0
    %3459 = vmatprep.mubr.f32.mxu0 0.0
    %v3460 = vand.u32 %v2818, 4294901760
    %3461 = vmatmul.mubr.f32.gmra.mxu0 %v3460
    %v3462 = vpop.f32.mrf.mxu0
    %v3463 = vadd.f32 %v3375, %v3462
    %v3464 = vpop.f32.mrf.mxu0
    %v3465 = vadd.f32 %v3377, %v3464
    %3466 = vdwg.mxu0
    %v3467 = vrot.slane %v607, 4
    %v3468 = vrot.slane %v613, 3
    %v3469 = vsel %vm642, %v3468, %v3467
    %v3471 = vadd.f32 %v3463, %v3469
    %v3472 = vxor.u32 %v3471, 2147483648
    %v3473 = vmul.f32 %v3472, 1.442695
    %v3474 = vpow.pop %v3473
    %v3475 = vadd.f32 %v3474, 1.0
    %v3476 = vrcp.pop %v3475
    %v3477 = vmul.f32 1.0, %v3476
    %v3478 = vtanh.pop %v3471
    %v3479 = vmul.f32 %v3477, %v2777
    %3481 = vrot.lane.b32.xlu0 %v3478, 64
    %v3482 = vpop.permute.xlu0 %3481
    %v3484 = vmul.f32 %v3477, %v3482
    %3486 = vrot.lane.b32.xlu0 %v3484, 32
    %v3487 = vpop.permute.xlu0 %3486
    %v3489 = vadd.f32 %v3479, %v3487
    %v3490 = vtanh.pop %v3489
    %3492 = vrot.lane.b32.xlu0 %v3490, 64
    %v3493 = vpop.permute.xlu0 %3492
    %v3495 = vmul.f32 %v3477, %v3493
    %v3496 = vxor.u32 %v3465, 2147483648
    %v3497 = vmul.f32 %v3496, 1.442695
    %v3498 = vpow.pop %v3497
    %v3499 = vadd.f32 %v3498, 1.0
    %v3500 = vrcp.pop %v3499
    %v3501 = vmul.f32 1.0, %v3500
    %v3502 = vtanh.pop %v3465
    %v3503 = vmul.f32 %v3501, %v2801
    %3505 = vrot.lane.b32.xlu0 %v3502, 64
    %v3506 = vpop.permute.xlu0 %3505
    %v3508 = vmul.f32 %v3501, %v3506
    %3510 = vrot.lane.b32.xlu0 %v3508, 32
    %v3511 = vpop.permute.xlu0 %3510
    %v3513 = vadd.f32 %v3503, %v3511
    %v3514 = vtanh.pop %v3513
    %3516 = vrot.lane.b32.xlu0 %v3514, 64
    %v3517 = vpop.permute.xlu0 %3516
    %v3519 = vmul.f32 %v3501, %v3517
    %3521 = vrot.lane.b32.xlu0 %v3495, 32
    %v3522 = vpop.permute.xlu0 %3521
    %3525 = vrot.lane.b32.xlu0 %v3519, 64
    %v3526 = vpop.permute.xlu0 %3525
    %v3528 = vsel %vm674, %v3522, %v3526
    %v3530 = vsel %vm681, %v3528, 0
    %3532 = vmatprep.subr.mxu0 0.0
    %3533 = vmatpush1.msra.mxu0 0.0
    %3534 = vmatprep.subr.mxu0 0.0
    %3535 = vmatpush1.msra.mxu0 0.0
    %3536 = vmatprep.subr.mxu0 0.0
    %3537 = vmatpush1.msra.mxu0 0.0
    %3538 = vmatprep.subr.mxu0 0.0
    %3539 = vmatpush1.msra.mxu0 0.0
    %3540 = vmatprep.subr.mxu0 0.0
    %3541 = vmatpush1.msra.mxu0 0.0
    %3542 = vmatprep.subr.mxu0 0.0
    %3543 = vmatpush1.msra.mxu0 0.0
    %3544 = vmatprep.subr.mxu0 0.0
    %3545 = vmatpush1.msra.mxu0 0.0
    %3546 = vmatprep.subr.mxu0 0.0
    %3547 = vmatpush1.msra.mxu0 0.0
    %v3548 = vand.u32 %v631, 4294901760
    %3549 = vmatprep.subr.mxu0 %v3548
    %v3550 = vand.u32 %v630, 4294901760
    %3551 = vmatpush1.msra.mxu0 %v3550
    %v3552 = vand.u32 %v629, 4294901760
    %3553 = vmatprep.subr.mxu0 %v3552
    %v3554 = vand.u32 %v628, 4294901760
    %3555 = vmatpush1.msra.mxu0 %v3554
    %v3556 = vand.u32 %v627, 4294901760
    %3557 = vmatprep.subr.mxu0 %v3556
    %v3558 = vand.u32 %v626, 4294901760
    %3559 = vmatpush1.msra.mxu0 %v3558
    %v3560 = vand.u32 %v625, 4294901760
    %3561 = vmatprep.subr.mxu0 %v3560
    %v3562 = vand.u32 %v624, 4294901760
    %3563 = vmatpush1.msra.mxu0 %v3562
    %v3564 = vand.u32 %v623, 4294901760
    %3565 = vmatprep.subr.mxu0 %v3564
    %v3566 = vand.u32 %v622, 4294901760
    %3567 = vmatpush1.msra.mxu0 %v3566
    %v3568 = vand.u32 %v621, 4294901760
    %3569 = vmatprep.subr.mxu0 %v3568
    %v3570 = vand.u32 %v620, 4294901760
    %3571 = vmatpush1.msra.mxu0 %v3570
    %v3572 = vand.u32 %v619, 4294901760
    %3573 = vmatprep.subr.mxu0 %v3572
    %v3574 = vand.u32 %v618, 4294901760
    %3575 = vmatpush1.msra.mxu0 %v3574
    %v3576 = vand.u32 %v617, 4294901760
    %3577 = vmatprep.subr.mxu0 %v3576
    %v3578 = vand.u32 %v616, 4294901760
    %3579 = vmatpush1.msra.mxu0 %v3578
    %3580 = vmatprep.subr.mxu0 0.0
    %3581 = vmatpush2.msra.mxu0 0.0
    %3582 = vmatprep.subr.mxu0 0.0
    %3583 = vmatpush2.msra.mxu0 0.0
    %3584 = vmatprep.subr.mxu0 0.0
    %3585 = vmatpush2.msra.mxu0 0.0
    %3586 = vmatprep.subr.mxu0 0.0
    %3587 = vmatpush2.msra.mxu0 0.0
    %3588 = vmatprep.subr.mxu0 0.0
    %3589 = vmatpush2.msra.mxu0 0.0
    %3590 = vmatprep.subr.mxu0 0.0
    %3591 = vmatpush2.msra.mxu0 0.0
    %3592 = vmatprep.subr.mxu0 0.0
    %3593 = vmatpush2.msra.mxu0 0.0
    %3594 = vmatprep.subr.mxu0 0.0
    %3595 = vmatpush2.msra.mxu0 0.0
    %3596 = vmatprep.subr.mxu0 0.0
    %3597 = vmatpush2.msra.mxu0 0.0
    %3598 = vmatprep.subr.mxu0 0.0
    %3599 = vmatpush2.msra.mxu0 0.0
    %3600 = vmatprep.subr.mxu0 0.0
    %3601 = vmatpush2.msra.mxu0 0.0
    %3602 = vmatprep.subr.mxu0 0.0
    %3603 = vmatpush2.msra.mxu0 0.0
    %3604 = vmatprep.subr.mxu0 0.0
    %3605 = vmatpush2.msra.mxu0 0.0
    %3606 = vmatprep.subr.mxu0 0.0
    %3607 = vmatpush2.msra.mxu0 0.0
    %3608 = vmatprep.subr.mxu0 0.0
    %3609 = vmatpush2.msra.mxu0 0.0
    %3610 = vmatprep.subr.mxu0 0.0
    %3611 = vmatpush2.msra.mxu0 0.0
    %3612 = vmatprep.mubr.f32.mxu0 0.0
    %v3613 = vand.u32 %v3530, 4294901760
    %v3614 = vsub.f32 %v3530, %v3613
    %v3615 = vand.u32 %v3614, 4294901760
    %v3616 = vsub.f32 %v3614, %v3615
    %v3617 = vand.u32 %v3616, 4294901760
    %3618 = vmatmul.mubr.f32.gmra.mxu0 %v3617
    %v3619 = vpop.f32.mrf.mxu0
    %v3620 = vadd.f32 %v637, %v3619
    %v3621 = vpop.f32.mrf.mxu0
    %v3622 = vadd.f32 %v679, %v3621
    %3623 = vdwg.mxu0
    %3624 = vmatprep.subr.mxu0 0.0
    %3625 = vmatpush1.msra.mxu0 0.0
    %3626 = vmatprep.subr.mxu0 0.0
    %3627 = vmatpush1.msra.mxu0 0.0
    %3628 = vmatprep.subr.mxu0 0.0
    %3629 = vmatpush1.msra.mxu0 0.0
    %3630 = vmatprep.subr.mxu0 0.0
    %3631 = vmatpush1.msra.mxu0 0.0
    %3632 = vmatprep.subr.mxu0 0.0
    %3633 = vmatpush1.msra.mxu0 0.0
    %3634 = vmatprep.subr.mxu0 0.0
    %3635 = vmatpush1.msra.mxu0 0.0
    %3636 = vmatprep.subr.mxu0 0.0
    %3637 = vmatpush1.msra.mxu0 0.0
    %3638 = vmatprep.subr.mxu0 0.0
    %3639 = vmatpush1.msra.mxu0 0.0
    %v3640 = vand.u32 %v631, 4294901760
    %v3641 = vsub.f32 %v631, %v3640
    %v3642 = vand.u32 %v3641, 4294901760
    %v3643 = vsub.f32 %v3641, %v3642
    %v3644 = vand.u32 %v3643, 4294901760
    %3645 = vmatprep.subr.mxu0 %v3644
    %v3646 = vand.u32 %v630, 4294901760
    %v3647 = vsub.f32 %v630, %v3646
    %v3648 = vand.u32 %v3647, 4294901760
    %v3649 = vsub.f32 %v3647, %v3648
    %v3650 = vand.u32 %v3649, 4294901760
    %3651 = vmatpush1.msra.mxu0 %v3650
    %v3652 = vand.u32 %v629, 4294901760
    %v3653 = vsub.f32 %v629, %v3652
    %v3654 = vand.u32 %v3653, 4294901760
    %v3655 = vsub.f32 %v3653, %v3654
    %v3656 = vand.u32 %v3655, 4294901760
    %3657 = vmatprep.subr.mxu0 %v3656
    %v3658 = vand.u32 %v628, 4294901760
    %v3659 = vsub.f32 %v628, %v3658
    %v3660 = vand.u32 %v3659, 4294901760
    %v3661 = vsub.f32 %v3659, %v3660
    %v3662 = vand.u32 %v3661, 4294901760
    %3663 = vmatpush1.msra.mxu0 %v3662
    %v3664 = vand.u32 %v627, 4294901760
    %v3665 = vsub.f32 %v627, %v3664
    %v3666 = vand.u32 %v3665, 4294901760
    %v3667 = vsub.f32 %v3665, %v3666
    %v3668 = vand.u32 %v3667, 4294901760
    %3669 = vmatprep.subr.mxu0 %v3668
    %v3670 = vand.u32 %v626, 4294901760
    %v3671 = vsub.f32 %v626, %v3670
    %v3672 = vand.u32 %v3671, 4294901760
    %v3673 = vsub.f32 %v3671, %v3672
    %v3674 = vand.u32 %v3673, 4294901760
    %3675 = vmatpush1.msra.mxu0 %v3674
    %v3676 = vand.u32 %v625, 4294901760
    %v3677 = vsub.f32 %v625, %v3676
    %v3678 = vand.u32 %v3677, 4294901760
    %v3679 = vsub.f32 %v3677, %v3678
    %v3680 = vand.u32 %v3679, 4294901760
    %3681 = vmatprep.subr.mxu0 %v3680
    %v3682 = vand.u32 %v624, 4294901760
    %v3683 = vsub.f32 %v624, %v3682
    %v3684 = vand.u32 %v3683, 4294901760
    %v3685 = vsub.f32 %v3683, %v3684
    %v3686 = vand.u32 %v3685, 4294901760
    %3687 = vmatpush1.msra.mxu0 %v3686
    %v3688 = vand.u32 %v623, 4294901760
    %v3689 = vsub.f32 %v623, %v3688
    %v3690 = vand.u32 %v3689, 4294901760
    %v3691 = vsub.f32 %v3689, %v3690
    %v3692 = vand.u32 %v3691, 4294901760
    %3693 = vmatprep.subr.mxu0 %v3692
    %v3694 = vand.u32 %v622, 4294901760
    %v3695 = vsub.f32 %v622, %v3694
    %v3696 = vand.u32 %v3695, 4294901760
    %v3697 = vsub.f32 %v3695, %v3696
    %v3698 = vand.u32 %v3697, 4294901760
    %3699 = vmatpush1.msra.mxu0 %v3698
    %v3700 = vand.u32 %v621, 4294901760
    %v3701 = vsub.f32 %v621, %v3700
    %v3702 = vand.u32 %v3701, 4294901760
    %v3703 = vsub.f32 %v3701, %v3702
    %v3704 = vand.u32 %v3703, 4294901760
    %3705 = vmatprep.subr.mxu0 %v3704
    %v3706 = vand.u32 %v620, 4294901760
    %v3707 = vsub.f32 %v620, %v3706
    %v3708 = vand.u32 %v3707, 4294901760
    %v3709 = vsub.f32 %v3707, %v3708
    %v3710 = vand.u32 %v3709, 4294901760
    %3711 = vmatpush1.msra.mxu0 %v3710
    %v3712 = vand.u32 %v619, 4294901760
    %v3713 = vsub.f32 %v619, %v3712
    %v3714 = vand.u32 %v3713, 4294901760
    %v3715 = vsub.f32 %v3713, %v3714
    %v3716 = vand.u32 %v3715, 4294901760
    %3717 = vmatprep.subr.mxu0 %v3716
    %v3718 = vand.u32 %v618, 4294901760
    %v3719 = vsub.f32 %v618, %v3718
    %v3720 = vand.u32 %v3719, 4294901760
    %v3721 = vsub.f32 %v3719, %v3720
    %v3722 = vand.u32 %v3721, 4294901760
    %3723 = vmatpush1.msra.mxu0 %v3722
    %v3724 = vand.u32 %v617, 4294901760
    %v3725 = vsub.f32 %v617, %v3724
    %v3726 = vand.u32 %v3725, 4294901760
    %v3727 = vsub.f32 %v3725, %v3726
    %v3728 = vand.u32 %v3727, 4294901760
    %3729 = vmatprep.subr.mxu0 %v3728
    %v3730 = vand.u32 %v616, 4294901760
    %v3731 = vsub.f32 %v616, %v3730
    %v3732 = vand.u32 %v3731, 4294901760
    %v3733 = vsub.f32 %v3731, %v3732
    %v3734 = vand.u32 %v3733, 4294901760
    %3735 = vmatpush1.msra.mxu0 %v3734
    %3736 = vmatprep.subr.mxu0 0.0
    %3737 = vmatpush2.msra.mxu0 0.0
    %3738 = vmatprep.subr.mxu0 0.0
    %3739 = vmatpush2.msra.mxu0 0.0
    %3740 = vmatprep.subr.mxu0 0.0
    %3741 = vmatpush2.msra.mxu0 0.0
    %3742 = vmatprep.subr.mxu0 0.0
    %3743 = vmatpush2.msra.mxu0 0.0
    %3744 = vmatprep.subr.mxu0 0.0
    %3745 = vmatpush2.msra.mxu0 0.0
    %3746 = vmatprep.subr.mxu0 0.0
    %3747 = vmatpush2.msra.mxu0 0.0
    %3748 = vmatprep.subr.mxu0 0.0
    %3749 = vmatpush2.msra.mxu0 0.0
    %3750 = vmatprep.subr.mxu0 0.0
    %3751 = vmatpush2.msra.mxu0 0.0
    %3752 = vmatprep.subr.mxu0 0.0
    %3753 = vmatpush2.msra.mxu0 0.0
    %3754 = vmatprep.subr.mxu0 0.0
    %3755 = vmatpush2.msra.mxu0 0.0
    %3756 = vmatprep.subr.mxu0 0.0
    %3757 = vmatpush2.msra.mxu0 0.0
    %3758 = vmatprep.subr.mxu0 0.0
    %3759 = vmatpush2.msra.mxu0 0.0
    %3760 = vmatprep.subr.mxu0 0.0
    %3761 = vmatpush2.msra.mxu0 0.0
    %3762 = vmatprep.subr.mxu0 0.0
    %3763 = vmatpush2.msra.mxu0 0.0
    %3764 = vmatprep.subr.mxu0 0.0
    %3765 = vmatpush2.msra.mxu0 0.0
    %3766 = vmatprep.subr.mxu0 0.0
    %3767 = vmatpush2.msra.mxu0 0.0
    %3768 = vmatprep.mubr.f32.mxu0 0.0
    %v3769 = vand.u32 %v3530, 4294901760
    %3770 = vmatmul.mubr.f32.gmra.mxu0 %v3769
    %v3771 = vpop.f32.mrf.mxu0
    %v3772 = vadd.f32 %v3620, %v3771
    %v3773 = vpop.f32.mrf.mxu0
    %v3774 = vadd.f32 %v3622, %v3773
    %3775 = vdwg.mxu0
    %3776 = vmatprep.subr.mxu0 0.0
    %3777 = vmatpush1.msra.mxu0 0.0
    %3778 = vmatprep.subr.mxu0 0.0
    %3779 = vmatpush1.msra.mxu0 0.0
    %3780 = vmatprep.subr.mxu0 0.0
    %3781 = vmatpush1.msra.mxu0 0.0
    %3782 = vmatprep.subr.mxu0 0.0
    %3783 = vmatpush1.msra.mxu0 0.0
    %3784 = vmatprep.subr.mxu0 0.0
    %3785 = vmatpush1.msra.mxu0 0.0
    %3786 = vmatprep.subr.mxu0 0.0
    %3787 = vmatpush1.msra.mxu0 0.0
    %3788 = vmatprep.subr.mxu0 0.0
    %3789 = vmatpush1.msra.mxu0 0.0
    %3790 = vmatprep.subr.mxu0 0.0
    %3791 = vmatpush1.msra.mxu0 0.0
    %v3792 = vand.u32 %v631, 4294901760
    %v3793 = vsub.f32 %v631, %v3792
    %3794 = vmatprep.subr.mxu0 %v3793
    %v3795 = vand.u32 %v630, 4294901760
    %v3796 = vsub.f32 %v630, %v3795
    %3797 = vmatpush1.msra.mxu0 %v3796
    %v3798 = vand.u32 %v629, 4294901760
    %v3799 = vsub.f32 %v629, %v3798
    %3800 = vmatprep.subr.mxu0 %v3799
    %v3801 = vand.u32 %v628, 4294901760
    %v3802 = vsub.f32 %v628, %v3801
    %3803 = vmatpush1.msra.mxu0 %v3802
    %v3804 = vand.u32 %v627, 4294901760
    %v3805 = vsub.f32 %v627, %v3804
    %3806 = vmatprep.subr.mxu0 %v3805
    %v3807 = vand.u32 %v626, 4294901760
    %v3808 = vsub.f32 %v626, %v3807
    %3809 = vmatpush1.msra.mxu0 %v3808
    %v3810 = vand.u32 %v625, 4294901760
    %v3811 = vsub.f32 %v625, %v3810
    %3812 = vmatprep.subr.mxu0 %v3811
    %v3813 = vand.u32 %v624, 4294901760
    %v3814 = vsub.f32 %v624, %v3813
    %3815 = vmatpush1.msra.mxu0 %v3814
    %v3816 = vand.u32 %v623, 4294901760
    %v3817 = vsub.f32 %v623, %v3816
    %3818 = vmatprep.subr.mxu0 %v3817
    %v3819 = vand.u32 %v622, 4294901760
    %v3820 = vsub.f32 %v622, %v3819
    %3821 = vmatpush1.msra.mxu0 %v3820
    %v3822 = vand.u32 %v621, 4294901760
    %v3823 = vsub.f32 %v621, %v3822
    %3824 = vmatprep.subr.mxu0 %v3823
    %v3825 = vand.u32 %v620, 4294901760
    %v3826 = vsub.f32 %v620, %v3825
    %3827 = vmatpush1.msra.mxu0 %v3826
    %v3828 = vand.u32 %v619, 4294901760
    %v3829 = vsub.f32 %v619, %v3828
    %3830 = vmatprep.subr.mxu0 %v3829
    %v3831 = vand.u32 %v618, 4294901760
    %v3832 = vsub.f32 %v618, %v3831
    %3833 = vmatpush1.msra.mxu0 %v3832
    %v3834 = vand.u32 %v617, 4294901760
    %v3835 = vsub.f32 %v617, %v3834
    %3836 = vmatprep.subr.mxu0 %v3835
    %v3837 = vand.u32 %v616, 4294901760
    %v3838 = vsub.f32 %v616, %v3837
    %3839 = vmatpush1.msra.mxu0 %v3838
    %3840 = vmatprep.subr.mxu0 0.0
    %3841 = vmatpush2.msra.mxu0 0.0
    %3842 = vmatprep.subr.mxu0 0.0
    %3843 = vmatpush2.msra.mxu0 0.0
    %3844 = vmatprep.subr.mxu0 0.0
    %3845 = vmatpush2.msra.mxu0 0.0
    %3846 = vmatprep.subr.mxu0 0.0
    %3847 = vmatpush2.msra.mxu0 0.0
    %3848 = vmatprep.subr.mxu0 0.0
    %3849 = vmatpush2.msra.mxu0 0.0
    %3850 = vmatprep.subr.mxu0 0.0
    %3851 = vmatpush2.msra.mxu0 0.0
    %3852 = vmatprep.subr.mxu0 0.0
    %3853 = vmatpush2.msra.mxu0 0.0
    %3854 = vmatprep.subr.mxu0 0.0
    %3855 = vmatpush2.msra.mxu0 0.0
    %3856 = vmatprep.subr.mxu0 0.0
    %3857 = vmatpush2.msra.mxu0 0.0
    %3858 = vmatprep.subr.mxu0 0.0
    %3859 = vmatpush2.msra.mxu0 0.0
    %3860 = vmatprep.subr.mxu0 0.0
    %3861 = vmatpush2.msra.mxu0 0.0
    %3862 = vmatprep.subr.mxu0 0.0
    %3863 = vmatpush2.msra.mxu0 0.0
    %3864 = vmatprep.subr.mxu0 0.0
    %3865 = vmatpush2.msra.mxu0 0.0
    %3866 = vmatprep.subr.mxu0 0.0
    %3867 = vmatpush2.msra.mxu0 0.0
    %3868 = vmatprep.subr.mxu0 0.0
    %3869 = vmatpush2.msra.mxu0 0.0
    %3870 = vmatprep.subr.mxu0 0.0
    %3871 = vmatpush2.msra.mxu0 0.0
    %3872 = vmatprep.mubr.f32.mxu0 0.0
    %v3873 = vand.u32 %v3530, 4294901760
    %v3874 = vsub.f32 %v3530, %v3873
    %3875 = vmatmul.mubr.f32.gmra.mxu0 %v3874
    %v3876 = vpop.f32.mrf.mxu0
    %v3877 = vadd.f32 %v3772, %v3876
    %v3878 = vpop.f32.mrf.mxu0
    %v3879 = vadd.f32 %v3774, %v3878
    %3880 = vdwg.mxu0
    %3881 = vmatprep.subr.mxu0 0.0
    %3882 = vmatpush1.msra.mxu0 0.0
    %3883 = vmatprep.subr.mxu0 0.0
    %3884 = vmatpush1.msra.mxu0 0.0
    %3885 = vmatprep.subr.mxu0 0.0
    %3886 = vmatpush1.msra.mxu0 0.0
    %3887 = vmatprep.subr.mxu0 0.0
    %3888 = vmatpush1.msra.mxu0 0.0
    %3889 = vmatprep.subr.mxu0 0.0
    %3890 = vmatpush1.msra.mxu0 0.0
    %3891 = vmatprep.subr.mxu0 0.0
    %3892 = vmatpush1.msra.mxu0 0.0
    %3893 = vmatprep.subr.mxu0 0.0
    %3894 = vmatpush1.msra.mxu0 0.0
    %3895 = vmatprep.subr.mxu0 0.0
    %3896 = vmatpush1.msra.mxu0 0.0
    %v3897 = vand.u32 %v631, 4294901760
    %3898 = vmatprep.subr.mxu0 %v3897
    %v3899 = vand.u32 %v630, 4294901760
    %3900 = vmatpush1.msra.mxu0 %v3899
    %v3901 = vand.u32 %v629, 4294901760
    %3902 = vmatprep.subr.mxu0 %v3901
    %v3903 = vand.u32 %v628, 4294901760
    %3904 = vmatpush1.msra.mxu0 %v3903
    %v3905 = vand.u32 %v627, 4294901760
    %3906 = vmatprep.subr.mxu0 %v3905
    %v3907 = vand.u32 %v626, 4294901760
    %3908 = vmatpush1.msra.mxu0 %v3907
    %v3909 = vand.u32 %v625, 4294901760
    %3910 = vmatprep.subr.mxu0 %v3909
    %v3911 = vand.u32 %v624, 4294901760
    %3912 = vmatpush1.msra.mxu0 %v3911
    %v3913 = vand.u32 %v623, 4294901760
    %3914 = vmatprep.subr.mxu0 %v3913
    %v3915 = vand.u32 %v622, 4294901760
    %3916 = vmatpush1.msra.mxu0 %v3915
    %v3917 = vand.u32 %v621, 4294901760
    %3918 = vmatprep.subr.mxu0 %v3917
    %v3919 = vand.u32 %v620, 4294901760
    %3920 = vmatpush1.msra.mxu0 %v3919
    %v3921 = vand.u32 %v619, 4294901760
    %3922 = vmatprep.subr.mxu0 %v3921
    %v3923 = vand.u32 %v618, 4294901760
    %3924 = vmatpush1.msra.mxu0 %v3923
    %v3925 = vand.u32 %v617, 4294901760
    %3926 = vmatprep.subr.mxu0 %v3925
    %v3927 = vand.u32 %v616, 4294901760
    %3928 = vmatpush1.msra.mxu0 %v3927
    %3929 = vmatprep.subr.mxu0 0.0
    %3930 = vmatpush2.msra.mxu0 0.0
    %3931 = vmatprep.subr.mxu0 0.0
    %3932 = vmatpush2.msra.mxu0 0.0
    %3933 = vmatprep.subr.mxu0 0.0
    %3934 = vmatpush2.msra.mxu0 0.0
    %3935 = vmatprep.subr.mxu0 0.0
    %3936 = vmatpush2.msra.mxu0 0.0
    %3937 = vmatprep.subr.mxu0 0.0
    %3938 = vmatpush2.msra.mxu0 0.0
    %3939 = vmatprep.subr.mxu0 0.0
    %3940 = vmatpush2.msra.mxu0 0.0
    %3941 = vmatprep.subr.mxu0 0.0
    %3942 = vmatpush2.msra.mxu0 0.0
    %3943 = vmatprep.subr.mxu0 0.0
    %3944 = vmatpush2.msra.mxu0 0.0
    %3945 = vmatprep.subr.mxu0 0.0
    %3946 = vmatpush2.msra.mxu0 0.0
    %3947 = vmatprep.subr.mxu0 0.0
    %3948 = vmatpush2.msra.mxu0 0.0
    %3949 = vmatprep.subr.mxu0 0.0
    %3950 = vmatpush2.msra.mxu0 0.0
    %3951 = vmatprep.subr.mxu0 0.0
    %3952 = vmatpush2.msra.mxu0 0.0
    %3953 = vmatprep.subr.mxu0 0.0
    %3954 = vmatpush2.msra.mxu0 0.0
    %3955 = vmatprep.subr.mxu0 0.0
    %3956 = vmatpush2.msra.mxu0 0.0
    %3957 = vmatprep.subr.mxu0 0.0
    %3958 = vmatpush2.msra.mxu0 0.0
    %3959 = vmatprep.subr.mxu0 0.0
    %3960 = vmatpush2.msra.mxu0 0.0
    %3961 = vmatprep.mubr.f32.mxu0 0.0
    %v3962 = vand.u32 %v3530, 4294901760
    %v3963 = vsub.f32 %v3530, %v3962
    %v3964 = vand.u32 %v3963, 4294901760
    %3965 = vmatmul.mubr.f32.gmra.mxu0 %v3964
    %v3966 = vpop.f32.mrf.mxu0
    %v3967 = vadd.f32 %v3877, %v3966
    %v3968 = vpop.f32.mrf.mxu0
    %v3969 = vadd.f32 %v3879, %v3968
    %3970 = vdwg.mxu0
    %3971 = vmatprep.subr.mxu0 0.0
    %3972 = vmatpush1.msra.mxu0 0.0
    %3973 = vmatprep.subr.mxu0 0.0
    %3974 = vmatpush1.msra.mxu0 0.0
    %3975 = vmatprep.subr.mxu0 0.0
    %3976 = vmatpush1.msra.mxu0 0.0
    %3977 = vmatprep.subr.mxu0 0.0
    %3978 = vmatpush1.msra.mxu0 0.0
    %3979 = vmatprep.subr.mxu0 0.0
    %3980 = vmatpush1.msra.mxu0 0.0
    %3981 = vmatprep.subr.mxu0 0.0
    %3982 = vmatpush1.msra.mxu0 0.0
    %3983 = vmatprep.subr.mxu0 0.0
    %3984 = vmatpush1.msra.mxu0 0.0
    %3985 = vmatprep.subr.mxu0 0.0
    %3986 = vmatpush1.msra.mxu0 0.0
    %v3987 = vand.u32 %v631, 4294901760
    %v3988 = vsub.f32 %v631, %v3987
    %v3989 = vand.u32 %v3988, 4294901760
    %3990 = vmatprep.subr.mxu0 %v3989
    %v3991 = vand.u32 %v630, 4294901760
    %v3992 = vsub.f32 %v630, %v3991
    %v3993 = vand.u32 %v3992, 4294901760
    %3994 = vmatpush1.msra.mxu0 %v3993
    %v3995 = vand.u32 %v629, 4294901760
    %v3996 = vsub.f32 %v629, %v3995
    %v3997 = vand.u32 %v3996, 4294901760
    %3998 = vmatprep.subr.mxu0 %v3997
    %v3999 = vand.u32 %v628, 4294901760
    %v4000 = vsub.f32 %v628, %v3999
    %v4001 = vand.u32 %v4000, 4294901760
    %4002 = vmatpush1.msra.mxu0 %v4001
    %v4003 = vand.u32 %v627, 4294901760
    %v4004 = vsub.f32 %v627, %v4003
    %v4005 = vand.u32 %v4004, 4294901760
    %4006 = vmatprep.subr.mxu0 %v4005
    %v4007 = vand.u32 %v626, 4294901760
    %v4008 = vsub.f32 %v626, %v4007
    %v4009 = vand.u32 %v4008, 4294901760
    %4010 = vmatpush1.msra.mxu0 %v4009
    %v4011 = vand.u32 %v625, 4294901760
    %v4012 = vsub.f32 %v625, %v4011
    %v4013 = vand.u32 %v4012, 4294901760
    %4014 = vmatprep.subr.mxu0 %v4013
    %v4015 = vand.u32 %v624, 4294901760
    %v4016 = vsub.f32 %v624, %v4015
    %v4017 = vand.u32 %v4016, 4294901760
    %4018 = vmatpush1.msra.mxu0 %v4017
    %v4019 = vand.u32 %v623, 4294901760
    %v4020 = vsub.f32 %v623, %v4019
    %v4021 = vand.u32 %v4020, 4294901760
    %4022 = vmatprep.subr.mxu0 %v4021
    %v4023 = vand.u32 %v622, 4294901760
    %v4024 = vsub.f32 %v622, %v4023
    %v4025 = vand.u32 %v4024, 4294901760
    %4026 = vmatpush1.msra.mxu0 %v4025
    %v4027 = vand.u32 %v621, 4294901760
    %v4028 = vsub.f32 %v621, %v4027
    %v4029 = vand.u32 %v4028, 4294901760
    %4030 = vmatprep.subr.mxu0 %v4029
    %v4031 = vand.u32 %v620, 4294901760
    %v4032 = vsub.f32 %v620, %v4031
    %v4033 = vand.u32 %v4032, 4294901760
    %4034 = vmatpush1.msra.mxu0 %v4033
    %v4035 = vand.u32 %v619, 4294901760
    %v4036 = vsub.f32 %v619, %v4035
    %v4037 = vand.u32 %v4036, 4294901760
    %4038 = vmatprep.subr.mxu0 %v4037
    %v4039 = vand.u32 %v618, 4294901760
    %v4040 = vsub.f32 %v618, %v4039
    %v4041 = vand.u32 %v4040, 4294901760
    %4042 = vmatpush1.msra.mxu0 %v4041
    %v4043 = vand.u32 %v617, 4294901760
    %v4044 = vsub.f32 %v617, %v4043
    %v4045 = vand.u32 %v4044, 4294901760
    %4046 = vmatprep.subr.mxu0 %v4045
    %v4047 = vand.u32 %v616, 4294901760
    %v4048 = vsub.f32 %v616, %v4047
    %v4049 = vand.u32 %v4048, 4294901760
    %4050 = vmatpush1.msra.mxu0 %v4049
    %4051 = vmatprep.subr.mxu0 0.0
    %4052 = vmatpush2.msra.mxu0 0.0
    %4053 = vmatprep.subr.mxu0 0.0
    %4054 = vmatpush2.msra.mxu0 0.0
    %4055 = vmatprep.subr.mxu0 0.0
    %4056 = vmatpush2.msra.mxu0 0.0
    %4057 = vmatprep.subr.mxu0 0.0
    %4058 = vmatpush2.msra.mxu0 0.0
    %4059 = vmatprep.subr.mxu0 0.0
    %4060 = vmatpush2.msra.mxu0 0.0
    %4061 = vmatprep.subr.mxu0 0.0
    %4062 = vmatpush2.msra.mxu0 0.0
    %4063 = vmatprep.subr.mxu0 0.0
    %4064 = vmatpush2.msra.mxu0 0.0
    %4065 = vmatprep.subr.mxu0 0.0
    %4066 = vmatpush2.msra.mxu0 0.0
    %4067 = vmatprep.subr.mxu0 0.0
    %4068 = vmatpush2.msra.mxu0 0.0
    %4069 = vmatprep.subr.mxu0 0.0
    %4070 = vmatpush2.msra.mxu0 0.0
    %4071 = vmatprep.subr.mxu0 0.0
    %4072 = vmatpush2.msra.mxu0 0.0
    %4073 = vmatprep.subr.mxu0 0.0
    %4074 = vmatpush2.msra.mxu0 0.0
    %4075 = vmatprep.subr.mxu0 0.0
    %4076 = vmatpush2.msra.mxu0 0.0
    %4077 = vmatprep.subr.mxu0 0.0
    %4078 = vmatpush2.msra.mxu0 0.0
    %4079 = vmatprep.subr.mxu0 0.0
    %4080 = vmatpush2.msra.mxu0 0.0
    %4081 = vmatprep.subr.mxu0 0.0
    %4082 = vmatpush2.msra.mxu0 0.0
    %4083 = vmatprep.mubr.f32.mxu0 0.0
    %v4084 = vand.u32 %v3530, 4294901760
    %4085 = vmatmul.mubr.f32.gmra.mxu0 %v4084
    %v4086 = vpop.f32.mrf.mxu0
    %v4087 = vadd.f32 %v3967, %v4086
    %v4088 = vpop.f32.mrf.mxu0
    %v4089 = vadd.f32 %v3969, %v4088
    %4090 = vdwg.mxu0
    %4091 = vmatprep.subr.mxu0 0.0
    %4092 = vmatpush1.msra.mxu0 0.0
    %4093 = vmatprep.subr.mxu0 0.0
    %4094 = vmatpush1.msra.mxu0 0.0
    %4095 = vmatprep.subr.mxu0 0.0
    %4096 = vmatpush1.msra.mxu0 0.0
    %4097 = vmatprep.subr.mxu0 0.0
    %4098 = vmatpush1.msra.mxu0 0.0
    %4099 = vmatprep.subr.mxu0 0.0
    %4100 = vmatpush1.msra.mxu0 0.0
    %4101 = vmatprep.subr.mxu0 0.0
    %4102 = vmatpush1.msra.mxu0 0.0
    %4103 = vmatprep.subr.mxu0 0.0
    %4104 = vmatpush1.msra.mxu0 0.0
    %4105 = vmatprep.subr.mxu0 0.0
    %4106 = vmatpush1.msra.mxu0 0.0
    %v4107 = vand.u32 %v631, 4294901760
    %4108 = vmatprep.subr.mxu0 %v4107
    %v4109 = vand.u32 %v630, 4294901760
    %4110 = vmatpush1.msra.mxu0 %v4109
    %v4111 = vand.u32 %v629, 4294901760
    %4112 = vmatprep.subr.mxu0 %v4111
    %v4113 = vand.u32 %v628, 4294901760
    %4114 = vmatpush1.msra.mxu0 %v4113
    %v4115 = vand.u32 %v627, 4294901760
    %4116 = vmatprep.subr.mxu0 %v4115
    %v4117 = vand.u32 %v626, 4294901760
    %4118 = vmatpush1.msra.mxu0 %v4117
    %v4119 = vand.u32 %v625, 4294901760
    %4120 = vmatprep.subr.mxu0 %v4119
    %v4121 = vand.u32 %v624, 4294901760
    %4122 = vmatpush1.msra.mxu0 %v4121
    %v4123 = vand.u32 %v623, 4294901760
    %4124 = vmatprep.subr.mxu0 %v4123
    %v4125 = vand.u32 %v622, 4294901760
    %4126 = vmatpush1.msra.mxu0 %v4125
    %v4127 = vand.u32 %v621, 4294901760
    %4128 = vmatprep.subr.mxu0 %v4127
    %v4129 = vand.u32 %v620, 4294901760
    %4130 = vmatpush1.msra.mxu0 %v4129
    %v4131 = vand.u32 %v619, 4294901760
    %4132 = vmatprep.subr.mxu0 %v4131
    %v4133 = vand.u32 %v618, 4294901760
    %4134 = vmatpush1.msra.mxu0 %v4133
    %v4135 = vand.u32 %v617, 4294901760
    %4136 = vmatprep.subr.mxu0 %v4135
    %v4137 = vand.u32 %v616, 4294901760
    %4138 = vmatpush1.msra.mxu0 %v4137
    %4139 = vmatprep.subr.mxu0 0.0
    %4140 = vmatpush2.msra.mxu0 0.0
    %4141 = vmatprep.subr.mxu0 0.0
    %4142 = vmatpush2.msra.mxu0 0.0
    %4143 = vmatprep.subr.mxu0 0.0
    %4144 = vmatpush2.msra.mxu0 0.0
    %4145 = vmatprep.subr.mxu0 0.0
    %4146 = vmatpush2.msra.mxu0 0.0
    %4147 = vmatprep.subr.mxu0 0.0
    %4148 = vmatpush2.msra.mxu0 0.0
    %4149 = vmatprep.subr.mxu0 0.0
    %4150 = vmatpush2.msra.mxu0 0.0
    %4151 = vmatprep.subr.mxu0 0.0
    %4152 = vmatpush2.msra.mxu0 0.0
    %4153 = vmatprep.subr.mxu0 0.0
    %4154 = vmatpush2.msra.mxu0 0.0
    %4155 = vmatprep.subr.mxu0 0.0
    %4156 = vmatpush2.msra.mxu0 0.0
    %4157 = vmatprep.subr.mxu0 0.0
    %4158 = vmatpush2.msra.mxu0 0.0
    %4159 = vmatprep.subr.mxu0 0.0
    %4160 = vmatpush2.msra.mxu0 0.0
    %4161 = vmatprep.subr.mxu0 0.0
    %4162 = vmatpush2.msra.mxu0 0.0
    %4163 = vmatprep.subr.mxu0 0.0
    %4164 = vmatpush2.msra.mxu0 0.0
    %4165 = vmatprep.subr.mxu0 0.0
    %4166 = vmatpush2.msra.mxu0 0.0
    %4167 = vmatprep.subr.mxu0 0.0
    %4168 = vmatpush2.msra.mxu0 0.0
    %4169 = vmatprep.subr.mxu0 0.0
    %4170 = vmatpush2.msra.mxu0 0.0
    %4171 = vmatprep.mubr.f32.mxu0 0.0
    %v4172 = vand.u32 %v3530, 4294901760
    %4173 = vmatmul.mubr.f32.gmra.mxu0 %v4172
    %v4174 = vpop.f32.mrf.mxu0
    %v4175 = vadd.f32 %v4087, %v4174
    %v4176 = vpop.f32.mrf.mxu0
    %v4177 = vadd.f32 %v4089, %v4176
    %4178 = vdwg.mxu0
    %v4179 = vrot.slane %v607, 5
    %v4180 = vrot.slane %v613, 4
    %v4181 = vsel %vm642, %v4180, %v4179
    %v4183 = vadd.f32 %v4175, %v4181
    %v4184 = vxor.u32 %v4183, 2147483648
    %v4185 = vmul.f32 %v4184, 1.442695
    %v4186 = vpow.pop %v4185
    %v4187 = vadd.f32 %v4186, 1.0
    %v4188 = vrcp.pop %v4187
    %v4189 = vmul.f32 1.0, %v4188
    %v4190 = vtanh.pop %v4183
    %v4191 = vmul.f32 %v4189, %v3489
    %4193 = vrot.lane.b32.xlu0 %v4190, 64
    %v4194 = vpop.permute.xlu0 %4193
    %v4196 = vmul.f32 %v4189, %v4194
    %4198 = vrot.lane.b32.xlu0 %v4196, 32
    %v4199 = vpop.permute.xlu0 %4198
    %v4201 = vadd.f32 %v4191, %v4199
    %v4202 = vtanh.pop %v4201
    %4204 = vrot.lane.b32.xlu0 %v4202, 64
    %v4205 = vpop.permute.xlu0 %4204
    %v4207 = vmul.f32 %v4189, %v4205
    %v4208 = vxor.u32 %v4177, 2147483648
    %v4209 = vmul.f32 %v4208, 1.442695
    %v4210 = vpow.pop %v4209
    %v4211 = vadd.f32 %v4210, 1.0
    %v4212 = vrcp.pop %v4211
    %v4213 = vmul.f32 1.0, %v4212
    %v4214 = vtanh.pop %v4177
    %v4215 = vmul.f32 %v4213, %v3513
    %4217 = vrot.lane.b32.xlu0 %v4214, 64
    %v4218 = vpop.permute.xlu0 %4217
    %v4220 = vmul.f32 %v4213, %v4218
    %4222 = vrot.lane.b32.xlu0 %v4220, 32
    %v4223 = vpop.permute.xlu0 %4222
    %v4225 = vadd.f32 %v4215, %v4223
    %v4226 = vtanh.pop %v4225
    %4228 = vrot.lane.b32.xlu0 %v4226, 64
    %v4229 = vpop.permute.xlu0 %4228
    %v4231 = vmul.f32 %v4213, %v4229
    %4233 = vrot.lane.b32.xlu0 %v4207, 32
    %v4234 = vpop.permute.xlu0 %4233
    %4237 = vrot.lane.b32.xlu0 %v4231, 64
    %v4238 = vpop.permute.xlu0 %4237
    %v4240 = vsel %vm674, %v4234, %v4238
    %v4242 = vsel %vm681, %v4240, 0
    %4244 = vmatprep.subr.mxu0 0.0
    %4245 = vmatpush1.msra.mxu0 0.0
    %4246 = vmatprep.subr.mxu0 0.0
    %4247 = vmatpush1.msra.mxu0 0.0
    %4248 = vmatprep.subr.mxu0 0.0
    %4249 = vmatpush1.msra.mxu0 0.0
    %4250 = vmatprep.subr.mxu0 0.0
    %4251 = vmatpush1.msra.mxu0 0.0
    %4252 = vmatprep.subr.mxu0 0.0
    %4253 = vmatpush1.msra.mxu0 0.0
    %4254 = vmatprep.subr.mxu0 0.0
    %4255 = vmatpush1.msra.mxu0 0.0
    %4256 = vmatprep.subr.mxu0 0.0
    %4257 = vmatpush1.msra.mxu0 0.0
    %4258 = vmatprep.subr.mxu0 0.0
    %4259 = vmatpush1.msra.mxu0 0.0
    %v4260 = vand.u32 %v631, 4294901760
    %4261 = vmatprep.subr.mxu0 %v4260
    %v4262 = vand.u32 %v630, 4294901760
    %4263 = vmatpush1.msra.mxu0 %v4262
    %v4264 = vand.u32 %v629, 4294901760
    %4265 = vmatprep.subr.mxu0 %v4264
    %v4266 = vand.u32 %v628, 4294901760
    %4267 = vmatpush1.msra.mxu0 %v4266
    %v4268 = vand.u32 %v627, 4294901760
    %4269 = vmatprep.subr.mxu0 %v4268
    %v4270 = vand.u32 %v626, 4294901760
    %4271 = vmatpush1.msra.mxu0 %v4270
    %v4272 = vand.u32 %v625, 4294901760
    %4273 = vmatprep.subr.mxu0 %v4272
    %v4274 = vand.u32 %v624, 4294901760
    %4275 = vmatpush1.msra.mxu0 %v4274
    %v4276 = vand.u32 %v623, 4294901760
    %4277 = vmatprep.subr.mxu0 %v4276
    %v4278 = vand.u32 %v622, 4294901760
    %4279 = vmatpush1.msra.mxu0 %v4278
    %v4280 = vand.u32 %v621, 4294901760
    %4281 = vmatprep.subr.mxu0 %v4280
    %v4282 = vand.u32 %v620, 4294901760
    %4283 = vmatpush1.msra.mxu0 %v4282
    %v4284 = vand.u32 %v619, 4294901760
    %4285 = vmatprep.subr.mxu0 %v4284
    %v4286 = vand.u32 %v618, 4294901760
    %4287 = vmatpush1.msra.mxu0 %v4286
    %v4288 = vand.u32 %v617, 4294901760
    %4289 = vmatprep.subr.mxu0 %v4288
    %v4290 = vand.u32 %v616, 4294901760
    %4291 = vmatpush1.msra.mxu0 %v4290
    %4292 = vmatprep.subr.mxu0 0.0
    %4293 = vmatpush2.msra.mxu0 0.0
    %4294 = vmatprep.subr.mxu0 0.0
    %4295 = vmatpush2.msra.mxu0 0.0
    %4296 = vmatprep.subr.mxu0 0.0
    %4297 = vmatpush2.msra.mxu0 0.0
    %4298 = vmatprep.subr.mxu0 0.0
    %4299 = vmatpush2.msra.mxu0 0.0
    %4300 = vmatprep.subr.mxu0 0.0
    %4301 = vmatpush2.msra.mxu0 0.0
    %4302 = vmatprep.subr.mxu0 0.0
    %4303 = vmatpush2.msra.mxu0 0.0
    %4304 = vmatprep.subr.mxu0 0.0
    %4305 = vmatpush2.msra.mxu0 0.0
    %4306 = vmatprep.subr.mxu0 0.0
    %4307 = vmatpush2.msra.mxu0 0.0
    %4308 = vmatprep.subr.mxu0 0.0
    %4309 = vmatpush2.msra.mxu0 0.0
    %4310 = vmatprep.subr.mxu0 0.0
    %4311 = vmatpush2.msra.mxu0 0.0
    %4312 = vmatprep.subr.mxu0 0.0
    %4313 = vmatpush2.msra.mxu0 0.0
    %4314 = vmatprep.subr.mxu0 0.0
    %4315 = vmatpush2.msra.mxu0 0.0
    %4316 = vmatprep.subr.mxu0 0.0
    %4317 = vmatpush2.msra.mxu0 0.0
    %4318 = vmatprep.subr.mxu0 0.0
    %4319 = vmatpush2.msra.mxu0 0.0
    %4320 = vmatprep.subr.mxu0 0.0
    %4321 = vmatpush2.msra.mxu0 0.0
    %4322 = vmatprep.subr.mxu0 0.0
    %4323 = vmatpush2.msra.mxu0 0.0
    %4324 = vmatprep.mubr.f32.mxu0 0.0
    %v4325 = vand.u32 %v4242, 4294901760
    %v4326 = vsub.f32 %v4242, %v4325
    %v4327 = vand.u32 %v4326, 4294901760
    %v4328 = vsub.f32 %v4326, %v4327
    %v4329 = vand.u32 %v4328, 4294901760
    %4330 = vmatmul.mubr.f32.gmra.mxu0 %v4329
    %v4331 = vpop.f32.mrf.mxu0
    %v4332 = vadd.f32 %v637, %v4331
    %v4333 = vpop.f32.mrf.mxu0
    %v4334 = vadd.f32 %v679, %v4333
    %4335 = vdwg.mxu0
    %4336 = vmatprep.subr.mxu0 0.0
    %4337 = vmatpush1.msra.mxu0 0.0
    %4338 = vmatprep.subr.mxu0 0.0
    %4339 = vmatpush1.msra.mxu0 0.0
    %4340 = vmatprep.subr.mxu0 0.0
    %4341 = vmatpush1.msra.mxu0 0.0
    %4342 = vmatprep.subr.mxu0 0.0
    %4343 = vmatpush1.msra.mxu0 0.0
    %4344 = vmatprep.subr.mxu0 0.0
    %4345 = vmatpush1.msra.mxu0 0.0
    %4346 = vmatprep.subr.mxu0 0.0
    %4347 = vmatpush1.msra.mxu0 0.0
    %4348 = vmatprep.subr.mxu0 0.0
    %4349 = vmatpush1.msra.mxu0 0.0
    %4350 = vmatprep.subr.mxu0 0.0
    %4351 = vmatpush1.msra.mxu0 0.0
    %v4352 = vand.u32 %v631, 4294901760
    %v4353 = vsub.f32 %v631, %v4352
    %v4354 = vand.u32 %v4353, 4294901760
    %v4355 = vsub.f32 %v4353, %v4354
    %v4356 = vand.u32 %v4355, 4294901760
    %4357 = vmatprep.subr.mxu0 %v4356
    %v4358 = vand.u32 %v630, 4294901760
    %v4359 = vsub.f32 %v630, %v4358
    %v4360 = vand.u32 %v4359, 4294901760
    %v4361 = vsub.f32 %v4359, %v4360
    %v4362 = vand.u32 %v4361, 4294901760
    %4363 = vmatpush1.msra.mxu0 %v4362
    %v4364 = vand.u32 %v629, 4294901760
    %v4365 = vsub.f32 %v629, %v4364
    %v4366 = vand.u32 %v4365, 4294901760
    %v4367 = vsub.f32 %v4365, %v4366
    %v4368 = vand.u32 %v4367, 4294901760
    %4369 = vmatprep.subr.mxu0 %v4368
    %v4370 = vand.u32 %v628, 4294901760
    %v4371 = vsub.f32 %v628, %v4370
    %v4372 = vand.u32 %v4371, 4294901760
    %v4373 = vsub.f32 %v4371, %v4372
    %v4374 = vand.u32 %v4373, 4294901760
    %4375 = vmatpush1.msra.mxu0 %v4374
    %v4376 = vand.u32 %v627, 4294901760
    %v4377 = vsub.f32 %v627, %v4376
    %v4378 = vand.u32 %v4377, 4294901760
    %v4379 = vsub.f32 %v4377, %v4378
    %v4380 = vand.u32 %v4379, 4294901760
    %4381 = vmatprep.subr.mxu0 %v4380
    %v4382 = vand.u32 %v626, 4294901760
    %v4383 = vsub.f32 %v626, %v4382
    %v4384 = vand.u32 %v4383, 4294901760
    %v4385 = vsub.f32 %v4383, %v4384
    %v4386 = vand.u32 %v4385, 4294901760
    %4387 = vmatpush1.msra.mxu0 %v4386
    %v4388 = vand.u32 %v625, 4294901760
    %v4389 = vsub.f32 %v625, %v4388
    %v4390 = vand.u32 %v4389, 4294901760
    %v4391 = vsub.f32 %v4389, %v4390
    %v4392 = vand.u32 %v4391, 4294901760
    %4393 = vmatprep.subr.mxu0 %v4392
    %v4394 = vand.u32 %v624, 4294901760
    %v4395 = vsub.f32 %v624, %v4394
    %v4396 = vand.u32 %v4395, 4294901760
    %v4397 = vsub.f32 %v4395, %v4396
    %v4398 = vand.u32 %v4397, 4294901760
    %4399 = vmatpush1.msra.mxu0 %v4398
    %v4400 = vand.u32 %v623, 4294901760
    %v4401 = vsub.f32 %v623, %v4400
    %v4402 = vand.u32 %v4401, 4294901760
    %v4403 = vsub.f32 %v4401, %v4402
    %v4404 = vand.u32 %v4403, 4294901760
    %4405 = vmatprep.subr.mxu0 %v4404
    %v4406 = vand.u32 %v622, 4294901760
    %v4407 = vsub.f32 %v622, %v4406
    %v4408 = vand.u32 %v4407, 4294901760
    %v4409 = vsub.f32 %v4407, %v4408
    %v4410 = vand.u32 %v4409, 4294901760
    %4411 = vmatpush1.msra.mxu0 %v4410
    %v4412 = vand.u32 %v621, 4294901760
    %v4413 = vsub.f32 %v621, %v4412
    %v4414 = vand.u32 %v4413, 4294901760
    %v4415 = vsub.f32 %v4413, %v4414
    %v4416 = vand.u32 %v4415, 4294901760
    %4417 = vmatprep.subr.mxu0 %v4416
    %v4418 = vand.u32 %v620, 4294901760
    %v4419 = vsub.f32 %v620, %v4418
    %v4420 = vand.u32 %v4419, 4294901760
    %v4421 = vsub.f32 %v4419, %v4420
    %v4422 = vand.u32 %v4421, 4294901760
    %4423 = vmatpush1.msra.mxu0 %v4422
    %v4424 = vand.u32 %v619, 4294901760
    %v4425 = vsub.f32 %v619, %v4424
    %v4426 = vand.u32 %v4425, 4294901760
    %v4427 = vsub.f32 %v4425, %v4426
    %v4428 = vand.u32 %v4427, 4294901760
    %4429 = vmatprep.subr.mxu0 %v4428
    %v4430 = vand.u32 %v618, 4294901760
    %v4431 = vsub.f32 %v618, %v4430
    %v4432 = vand.u32 %v4431, 4294901760
    %v4433 = vsub.f32 %v4431, %v4432
    %v4434 = vand.u32 %v4433, 4294901760
    %4435 = vmatpush1.msra.mxu0 %v4434
    %v4436 = vand.u32 %v617, 4294901760
    %v4437 = vsub.f32 %v617, %v4436
    %v4438 = vand.u32 %v4437, 4294901760
    %v4439 = vsub.f32 %v4437, %v4438
    %v4440 = vand.u32 %v4439, 4294901760
    %4441 = vmatprep.subr.mxu0 %v4440
    %v4442 = vand.u32 %v616, 4294901760
    %v4443 = vsub.f32 %v616, %v4442
    %v4444 = vand.u32 %v4443, 4294901760
    %v4445 = vsub.f32 %v4443, %v4444
    %v4446 = vand.u32 %v4445, 4294901760
    %4447 = vmatpush1.msra.mxu0 %v4446
    %4448 = vmatprep.subr.mxu0 0.0
    %4449 = vmatpush2.msra.mxu0 0.0
    %4450 = vmatprep.subr.mxu0 0.0
    %4451 = vmatpush2.msra.mxu0 0.0
    %4452 = vmatprep.subr.mxu0 0.0
    %4453 = vmatpush2.msra.mxu0 0.0
    %4454 = vmatprep.subr.mxu0 0.0
    %4455 = vmatpush2.msra.mxu0 0.0
    %4456 = vmatprep.subr.mxu0 0.0
    %4457 = vmatpush2.msra.mxu0 0.0
    %4458 = vmatprep.subr.mxu0 0.0
    %4459 = vmatpush2.msra.mxu0 0.0
    %4460 = vmatprep.subr.mxu0 0.0
    %4461 = vmatpush2.msra.mxu0 0.0
    %4462 = vmatprep.subr.mxu0 0.0
    %4463 = vmatpush2.msra.mxu0 0.0
    %4464 = vmatprep.subr.mxu0 0.0
    %4465 = vmatpush2.msra.mxu0 0.0
    %4466 = vmatprep.subr.mxu0 0.0
    %4467 = vmatpush2.msra.mxu0 0.0
    %4468 = vmatprep.subr.mxu0 0.0
    %4469 = vmatpush2.msra.mxu0 0.0
    %4470 = vmatprep.subr.mxu0 0.0
    %4471 = vmatpush2.msra.mxu0 0.0
    %4472 = vmatprep.subr.mxu0 0.0
    %4473 = vmatpush2.msra.mxu0 0.0
    %4474 = vmatprep.subr.mxu0 0.0
    %4475 = vmatpush2.msra.mxu0 0.0
    %4476 = vmatprep.subr.mxu0 0.0
    %4477 = vmatpush2.msra.mxu0 0.0
    %4478 = vmatprep.subr.mxu0 0.0
    %4479 = vmatpush2.msra.mxu0 0.0
    %4480 = vmatprep.mubr.f32.mxu0 0.0
    %v4481 = vand.u32 %v4242, 4294901760
    %4482 = vmatmul.mubr.f32.gmra.mxu0 %v4481
    %v4483 = vpop.f32.mrf.mxu0
    %v4484 = vadd.f32 %v4332, %v4483
    %v4485 = vpop.f32.mrf.mxu0
    %v4486 = vadd.f32 %v4334, %v4485
    %4487 = vdwg.mxu0
    %4488 = vmatprep.subr.mxu0 0.0
    %4489 = vmatpush1.msra.mxu0 0.0
    %4490 = vmatprep.subr.mxu0 0.0
    %4491 = vmatpush1.msra.mxu0 0.0
    %4492 = vmatprep.subr.mxu0 0.0
    %4493 = vmatpush1.msra.mxu0 0.0
    %4494 = vmatprep.subr.mxu0 0.0
    %4495 = vmatpush1.msra.mxu0 0.0
    %4496 = vmatprep.subr.mxu0 0.0
    %4497 = vmatpush1.msra.mxu0 0.0
    %4498 = vmatprep.subr.mxu0 0.0
    %4499 = vmatpush1.msra.mxu0 0.0
    %4500 = vmatprep.subr.mxu0 0.0
    %4501 = vmatpush1.msra.mxu0 0.0
    %4502 = vmatprep.subr.mxu0 0.0
    %4503 = vmatpush1.msra.mxu0 0.0
    %v4504 = vand.u32 %v631, 4294901760
    %v4505 = vsub.f32 %v631, %v4504
    %4506 = vmatprep.subr.mxu0 %v4505
    %v4507 = vand.u32 %v630, 4294901760
    %v4508 = vsub.f32 %v630, %v4507
    %4509 = vmatpush1.msra.mxu0 %v4508
    %v4510 = vand.u32 %v629, 4294901760
    %v4511 = vsub.f32 %v629, %v4510
    %4512 = vmatprep.subr.mxu0 %v4511
    %v4513 = vand.u32 %v628, 4294901760
    %v4514 = vsub.f32 %v628, %v4513
    %4515 = vmatpush1.msra.mxu0 %v4514
    %v4516 = vand.u32 %v627, 4294901760
    %v4517 = vsub.f32 %v627, %v4516
    %4518 = vmatprep.subr.mxu0 %v4517
    %v4519 = vand.u32 %v626, 4294901760
    %v4520 = vsub.f32 %v626, %v4519
    %4521 = vmatpush1.msra.mxu0 %v4520
    %v4522 = vand.u32 %v625, 4294901760
    %v4523 = vsub.f32 %v625, %v4522
    %4524 = vmatprep.subr.mxu0 %v4523
    %v4525 = vand.u32 %v624, 4294901760
    %v4526 = vsub.f32 %v624, %v4525
    %4527 = vmatpush1.msra.mxu0 %v4526
    %v4528 = vand.u32 %v623, 4294901760
    %v4529 = vsub.f32 %v623, %v4528
    %4530 = vmatprep.subr.mxu0 %v4529
    %v4531 = vand.u32 %v622, 4294901760
    %v4532 = vsub.f32 %v622, %v4531
    %4533 = vmatpush1.msra.mxu0 %v4532
    %v4534 = vand.u32 %v621, 4294901760
    %v4535 = vsub.f32 %v621, %v4534
    %4536 = vmatprep.subr.mxu0 %v4535
    %v4537 = vand.u32 %v620, 4294901760
    %v4538 = vsub.f32 %v620, %v4537
    %4539 = vmatpush1.msra.mxu0 %v4538
    %v4540 = vand.u32 %v619, 4294901760
    %v4541 = vsub.f32 %v619, %v4540
    %4542 = vmatprep.subr.mxu0 %v4541
    %v4543 = vand.u32 %v618, 4294901760
    %v4544 = vsub.f32 %v618, %v4543
    %4545 = vmatpush1.msra.mxu0 %v4544
    %v4546 = vand.u32 %v617, 4294901760
    %v4547 = vsub.f32 %v617, %v4546
    %4548 = vmatprep.subr.mxu0 %v4547
    %v4549 = vand.u32 %v616, 4294901760
    %v4550 = vsub.f32 %v616, %v4549
    %4551 = vmatpush1.msra.mxu0 %v4550
    %4552 = vmatprep.subr.mxu0 0.0
    %4553 = vmatpush2.msra.mxu0 0.0
    %4554 = vmatprep.subr.mxu0 0.0
    %4555 = vmatpush2.msra.mxu0 0.0
    %4556 = vmatprep.subr.mxu0 0.0
    %4557 = vmatpush2.msra.mxu0 0.0
    %4558 = vmatprep.subr.mxu0 0.0
    %4559 = vmatpush2.msra.mxu0 0.0
    %4560 = vmatprep.subr.mxu0 0.0
    %4561 = vmatpush2.msra.mxu0 0.0
    %4562 = vmatprep.subr.mxu0 0.0
    %4563 = vmatpush2.msra.mxu0 0.0
    %4564 = vmatprep.subr.mxu0 0.0
    %4565 = vmatpush2.msra.mxu0 0.0
    %4566 = vmatprep.subr.mxu0 0.0
    %4567 = vmatpush2.msra.mxu0 0.0
    %4568 = vmatprep.subr.mxu0 0.0
    %4569 = vmatpush2.msra.mxu0 0.0
    %4570 = vmatprep.subr.mxu0 0.0
    %4571 = vmatpush2.msra.mxu0 0.0
    %4572 = vmatprep.subr.mxu0 0.0
    %4573 = vmatpush2.msra.mxu0 0.0
    %4574 = vmatprep.subr.mxu0 0.0
    %4575 = vmatpush2.msra.mxu0 0.0
    %4576 = vmatprep.subr.mxu0 0.0
    %4577 = vmatpush2.msra.mxu0 0.0
    %4578 = vmatprep.subr.mxu0 0.0
    %4579 = vmatpush2.msra.mxu0 0.0
    %4580 = vmatprep.subr.mxu0 0.0
    %4581 = vmatpush2.msra.mxu0 0.0
    %4582 = vmatprep.subr.mxu0 0.0
    %4583 = vmatpush2.msra.mxu0 0.0
    %4584 = vmatprep.mubr.f32.mxu0 0.0
    %v4585 = vand.u32 %v4242, 4294901760
    %v4586 = vsub.f32 %v4242, %v4585
    %4587 = vmatmul.mubr.f32.gmra.mxu0 %v4586
    %v4588 = vpop.f32.mrf.mxu0
    %v4589 = vadd.f32 %v4484, %v4588
    %v4590 = vpop.f32.mrf.mxu0
    %v4591 = vadd.f32 %v4486, %v4590
    %4592 = vdwg.mxu0
    %4593 = vmatprep.subr.mxu0 0.0
    %4594 = vmatpush1.msra.mxu0 0.0
    %4595 = vmatprep.subr.mxu0 0.0
    %4596 = vmatpush1.msra.mxu0 0.0
    %4597 = vmatprep.subr.mxu0 0.0
    %4598 = vmatpush1.msra.mxu0 0.0
    %4599 = vmatprep.subr.mxu0 0.0
    %4600 = vmatpush1.msra.mxu0 0.0
    %4601 = vmatprep.subr.mxu0 0.0
    %4602 = vmatpush1.msra.mxu0 0.0
    %4603 = vmatprep.subr.mxu0 0.0
    %4604 = vmatpush1.msra.mxu0 0.0
    %4605 = vmatprep.subr.mxu0 0.0
    %4606 = vmatpush1.msra.mxu0 0.0
    %4607 = vmatprep.subr.mxu0 0.0
    %4608 = vmatpush1.msra.mxu0 0.0
    %v4609 = vand.u32 %v631, 4294901760
    %4610 = vmatprep.subr.mxu0 %v4609
    %v4611 = vand.u32 %v630, 4294901760
    %4612 = vmatpush1.msra.mxu0 %v4611
    %v4613 = vand.u32 %v629, 4294901760
    %4614 = vmatprep.subr.mxu0 %v4613
    %v4615 = vand.u32 %v628, 4294901760
    %4616 = vmatpush1.msra.mxu0 %v4615
    %v4617 = vand.u32 %v627, 4294901760
    %4618 = vmatprep.subr.mxu0 %v4617
    %v4619 = vand.u32 %v626, 4294901760
    %4620 = vmatpush1.msra.mxu0 %v4619
    %v4621 = vand.u32 %v625, 4294901760
    %4622 = vmatprep.subr.mxu0 %v4621
    %v4623 = vand.u32 %v624, 4294901760
    %4624 = vmatpush1.msra.mxu0 %v4623
    %v4625 = vand.u32 %v623, 4294901760
    %4626 = vmatprep.subr.mxu0 %v4625
    %v4627 = vand.u32 %v622, 4294901760
    %4628 = vmatpush1.msra.mxu0 %v4627
    %v4629 = vand.u32 %v621, 4294901760
    %4630 = vmatprep.subr.mxu0 %v4629
    %v4631 = vand.u32 %v620, 4294901760
    %4632 = vmatpush1.msra.mxu0 %v4631
    %v4633 = vand.u32 %v619, 4294901760
    %4634 = vmatprep.subr.mxu0 %v4633
    %v4635 = vand.u32 %v618, 4294901760
    %4636 = vmatpush1.msra.mxu0 %v4635
    %v4637 = vand.u32 %v617, 4294901760
    %4638 = vmatprep.subr.mxu0 %v4637
    %v4639 = vand.u32 %v616, 4294901760
    %4640 = vmatpush1.msra.mxu0 %v4639
    %4641 = vmatprep.subr.mxu0 0.0
    %4642 = vmatpush2.msra.mxu0 0.0
    %4643 = vmatprep.subr.mxu0 0.0
    %4644 = vmatpush2.msra.mxu0 0.0
    %4645 = vmatprep.subr.mxu0 0.0
    %4646 = vmatpush2.msra.mxu0 0.0
    %4647 = vmatprep.subr.mxu0 0.0
    %4648 = vmatpush2.msra.mxu0 0.0
    %4649 = vmatprep.subr.mxu0 0.0
    %4650 = vmatpush2.msra.mxu0 0.0
    %4651 = vmatprep.subr.mxu0 0.0
    %4652 = vmatpush2.msra.mxu0 0.0
    %4653 = vmatprep.subr.mxu0 0.0
    %4654 = vmatpush2.msra.mxu0 0.0
    %4655 = vmatprep.subr.mxu0 0.0
    %4656 = vmatpush2.msra.mxu0 0.0
    %4657 = vmatprep.subr.mxu0 0.0
    %4658 = vmatpush2.msra.mxu0 0.0
    %4659 = vmatprep.subr.mxu0 0.0
    %4660 = vmatpush2.msra.mxu0 0.0
    %4661 = vmatprep.subr.mxu0 0.0
    %4662 = vmatpush2.msra.mxu0 0.0
    %4663 = vmatprep.subr.mxu0 0.0
    %4664 = vmatpush2.msra.mxu0 0.0
    %4665 = vmatprep.subr.mxu0 0.0
    %4666 = vmatpush2.msra.mxu0 0.0
    %4667 = vmatprep.subr.mxu0 0.0
    %4668 = vmatpush2.msra.mxu0 0.0
    %4669 = vmatprep.subr.mxu0 0.0
    %4670 = vmatpush2.msra.mxu0 0.0
    %4671 = vmatprep.subr.mxu0 0.0
    %4672 = vmatpush2.msra.mxu0 0.0
    %4673 = vmatprep.mubr.f32.mxu0 0.0
    %v4674 = vand.u32 %v4242, 4294901760
    %v4675 = vsub.f32 %v4242, %v4674
    %v4676 = vand.u32 %v4675, 4294901760
    %4677 = vmatmul.mubr.f32.gmra.mxu0 %v4676
    %v4678 = vpop.f32.mrf.mxu0
    %v4679 = vadd.f32 %v4589, %v4678
    %v4680 = vpop.f32.mrf.mxu0
    %v4681 = vadd.f32 %v4591, %v4680
    %4682 = vdwg.mxu0
    %4683 = vmatprep.subr.mxu0 0.0
    %4684 = vmatpush1.msra.mxu0 0.0
    %4685 = vmatprep.subr.mxu0 0.0
    %4686 = vmatpush1.msra.mxu0 0.0
    %4687 = vmatprep.subr.mxu0 0.0
    %4688 = vmatpush1.msra.mxu0 0.0
    %4689 = vmatprep.subr.mxu0 0.0
    %4690 = vmatpush1.msra.mxu0 0.0
    %4691 = vmatprep.subr.mxu0 0.0
    %4692 = vmatpush1.msra.mxu0 0.0
    %4693 = vmatprep.subr.mxu0 0.0
    %4694 = vmatpush1.msra.mxu0 0.0
    %4695 = vmatprep.subr.mxu0 0.0
    %4696 = vmatpush1.msra.mxu0 0.0
    %4697 = vmatprep.subr.mxu0 0.0
    %4698 = vmatpush1.msra.mxu0 0.0
    %v4699 = vand.u32 %v631, 4294901760
    %v4700 = vsub.f32 %v631, %v4699
    %v4701 = vand.u32 %v4700, 4294901760
    %4702 = vmatprep.subr.mxu0 %v4701
    %v4703 = vand.u32 %v630, 4294901760
    %v4704 = vsub.f32 %v630, %v4703
    %v4705 = vand.u32 %v4704, 4294901760
    %4706 = vmatpush1.msra.mxu0 %v4705
    %v4707 = vand.u32 %v629, 4294901760
    %v4708 = vsub.f32 %v629, %v4707
    %v4709 = vand.u32 %v4708, 4294901760
    %4710 = vmatprep.subr.mxu0 %v4709
    %v4711 = vand.u32 %v628, 4294901760
    %v4712 = vsub.f32 %v628, %v4711
    %v4713 = vand.u32 %v4712, 4294901760
    %4714 = vmatpush1.msra.mxu0 %v4713
    %v4715 = vand.u32 %v627, 4294901760
    %v4716 = vsub.f32 %v627, %v4715
    %v4717 = vand.u32 %v4716, 4294901760
    %4718 = vmatprep.subr.mxu0 %v4717
    %v4719 = vand.u32 %v626, 4294901760
    %v4720 = vsub.f32 %v626, %v4719
    %v4721 = vand.u32 %v4720, 4294901760
    %4722 = vmatpush1.msra.mxu0 %v4721
    %v4723 = vand.u32 %v625, 4294901760
    %v4724 = vsub.f32 %v625, %v4723
    %v4725 = vand.u32 %v4724, 4294901760
    %4726 = vmatprep.subr.mxu0 %v4725
    %v4727 = vand.u32 %v624, 4294901760
    %v4728 = vsub.f32 %v624, %v4727
    %v4729 = vand.u32 %v4728, 4294901760
    %4730 = vmatpush1.msra.mxu0 %v4729
    %v4731 = vand.u32 %v623, 4294901760
    %v4732 = vsub.f32 %v623, %v4731
    %v4733 = vand.u32 %v4732, 4294901760
    %4734 = vmatprep.subr.mxu0 %v4733
    %v4735 = vand.u32 %v622, 4294901760
    %v4736 = vsub.f32 %v622, %v4735
    %v4737 = vand.u32 %v4736, 4294901760
    %4738 = vmatpush1.msra.mxu0 %v4737
    %v4739 = vand.u32 %v621, 4294901760
    %v4740 = vsub.f32 %v621, %v4739
    %v4741 = vand.u32 %v4740, 4294901760
    %4742 = vmatprep.subr.mxu0 %v4741
    %v4743 = vand.u32 %v620, 4294901760
    %v4744 = vsub.f32 %v620, %v4743
    %v4745 = vand.u32 %v4744, 4294901760
    %4746 = vmatpush1.msra.mxu0 %v4745
    %v4747 = vand.u32 %v619, 4294901760
    %v4748 = vsub.f32 %v619, %v4747
    %v4749 = vand.u32 %v4748, 4294901760
    %4750 = vmatprep.subr.mxu0 %v4749
    %v4751 = vand.u32 %v618, 4294901760
    %v4752 = vsub.f32 %v618, %v4751
    %v4753 = vand.u32 %v4752, 4294901760
    %4754 = vmatpush1.msra.mxu0 %v4753
    %v4755 = vand.u32 %v617, 4294901760
    %v4756 = vsub.f32 %v617, %v4755
    %v4757 = vand.u32 %v4756, 4294901760
    %4758 = vmatprep.subr.mxu0 %v4757
    %v4759 = vand.u32 %v616, 4294901760
    %v4760 = vsub.f32 %v616, %v4759
    %v4761 = vand.u32 %v4760, 4294901760
    %4762 = vmatpush1.msra.mxu0 %v4761
    %4763 = vmatprep.subr.mxu0 0.0
    %4764 = vmatpush2.msra.mxu0 0.0
    %4765 = vmatprep.subr.mxu0 0.0
    %4766 = vmatpush2.msra.mxu0 0.0
    %4767 = vmatprep.subr.mxu0 0.0
    %4768 = vmatpush2.msra.mxu0 0.0
    %4769 = vmatprep.subr.mxu0 0.0
    %4770 = vmatpush2.msra.mxu0 0.0
    %4771 = vmatprep.subr.mxu0 0.0
    %4772 = vmatpush2.msra.mxu0 0.0
    %4773 = vmatprep.subr.mxu0 0.0
    %4774 = vmatpush2.msra.mxu0 0.0
    %4775 = vmatprep.subr.mxu0 0.0
    %4776 = vmatpush2.msra.mxu0 0.0
    %4777 = vmatprep.subr.mxu0 0.0
    %4778 = vmatpush2.msra.mxu0 0.0
    %4779 = vmatprep.subr.mxu0 0.0
    %4780 = vmatpush2.msra.mxu0 0.0
    %4781 = vmatprep.subr.mxu0 0.0
    %4782 = vmatpush2.msra.mxu0 0.0
    %4783 = vmatprep.subr.mxu0 0.0
    %4784 = vmatpush2.msra.mxu0 0.0
    %4785 = vmatprep.subr.mxu0 0.0
    %4786 = vmatpush2.msra.mxu0 0.0
    %4787 = vmatprep.subr.mxu0 0.0
    %4788 = vmatpush2.msra.mxu0 0.0
    %4789 = vmatprep.subr.mxu0 0.0
    %4790 = vmatpush2.msra.mxu0 0.0
    %4791 = vmatprep.subr.mxu0 0.0
    %4792 = vmatpush2.msra.mxu0 0.0
    %4793 = vmatprep.subr.mxu0 0.0
    %4794 = vmatpush2.msra.mxu0 0.0
    %4795 = vmatprep.mubr.f32.mxu0 0.0
    %v4796 = vand.u32 %v4242, 4294901760
    %4797 = vmatmul.mubr.f32.gmra.mxu0 %v4796
    %v4798 = vpop.f32.mrf.mxu0
    %v4799 = vadd.f32 %v4679, %v4798
    %v4800 = vpop.f32.mrf.mxu0
    %v4801 = vadd.f32 %v4681, %v4800
    %4802 = vdwg.mxu0
    %4803 = vmatprep.subr.mxu0 0.0
    %4804 = vmatpush1.msra.mxu0 0.0
    %4805 = vmatprep.subr.mxu0 0.0
    %4806 = vmatpush1.msra.mxu0 0.0
    %4807 = vmatprep.subr.mxu0 0.0
    %4808 = vmatpush1.msra.mxu0 0.0
    %4809 = vmatprep.subr.mxu0 0.0
    %4810 = vmatpush1.msra.mxu0 0.0
    %4811 = vmatprep.subr.mxu0 0.0
    %4812 = vmatpush1.msra.mxu0 0.0
    %4813 = vmatprep.subr.mxu0 0.0
    %4814 = vmatpush1.msra.mxu0 0.0
    %4815 = vmatprep.subr.mxu0 0.0
    %4816 = vmatpush1.msra.mxu0 0.0
    %4817 = vmatprep.subr.mxu0 0.0
    %4818 = vmatpush1.msra.mxu0 0.0
    %v4819 = vand.u32 %v631, 4294901760
    %4820 = vmatprep.subr.mxu0 %v4819
    %v4821 = vand.u32 %v630, 4294901760
    %4822 = vmatpush1.msra.mxu0 %v4821
    %v4823 = vand.u32 %v629, 4294901760
    %4824 = vmatprep.subr.mxu0 %v4823
    %v4825 = vand.u32 %v628, 4294901760
    %4826 = vmatpush1.msra.mxu0 %v4825
    %v4827 = vand.u32 %v627, 4294901760
    %4828 = vmatprep.subr.mxu0 %v4827
    %v4829 = vand.u32 %v626, 4294901760
    %4830 = vmatpush1.msra.mxu0 %v4829
    %v4831 = vand.u32 %v625, 4294901760
    %4832 = vmatprep.subr.mxu0 %v4831
    %v4833 = vand.u32 %v624, 4294901760
    %4834 = vmatpush1.msra.mxu0 %v4833
    %v4835 = vand.u32 %v623, 4294901760
    %4836 = vmatprep.subr.mxu0 %v4835
    %v4837 = vand.u32 %v622, 4294901760
    %4838 = vmatpush1.msra.mxu0 %v4837
    %v4839 = vand.u32 %v621, 4294901760
    %4840 = vmatprep.subr.mxu0 %v4839
    %v4841 = vand.u32 %v620, 4294901760
    %4842 = vmatpush1.msra.mxu0 %v4841
    %v4843 = vand.u32 %v619, 4294901760
    %4844 = vmatprep.subr.mxu0 %v4843
    %v4845 = vand.u32 %v618, 4294901760
    %4846 = vmatpush1.msra.mxu0 %v4845
    %v4847 = vand.u32 %v617, 4294901760
    %4848 = vmatprep.subr.mxu0 %v4847
    %v4849 = vand.u32 %v616, 4294901760
    %4850 = vmatpush1.msra.mxu0 %v4849
    %4851 = vmatprep.subr.mxu0 0.0
    %4852 = vmatpush2.msra.mxu0 0.0
    %4853 = vmatprep.subr.mxu0 0.0
    %4854 = vmatpush2.msra.mxu0 0.0
    %4855 = vmatprep.subr.mxu0 0.0
    %4856 = vmatpush2.msra.mxu0 0.0
    %4857 = vmatprep.subr.mxu0 0.0
    %4858 = vmatpush2.msra.mxu0 0.0
    %4859 = vmatprep.subr.mxu0 0.0
    %4860 = vmatpush2.msra.mxu0 0.0
    %4861 = vmatprep.subr.mxu0 0.0
    %4862 = vmatpush2.msra.mxu0 0.0
    %4863 = vmatprep.subr.mxu0 0.0
    %4864 = vmatpush2.msra.mxu0 0.0
    %4865 = vmatprep.subr.mxu0 0.0
    %4866 = vmatpush2.msra.mxu0 0.0
    %4867 = vmatprep.subr.mxu0 0.0
    %4868 = vmatpush2.msra.mxu0 0.0
    %4869 = vmatprep.subr.mxu0 0.0
    %4870 = vmatpush2.msra.mxu0 0.0
    %4871 = vmatprep.subr.mxu0 0.0
    %4872 = vmatpush2.msra.mxu0 0.0
    %4873 = vmatprep.subr.mxu0 0.0
    %4874 = vmatpush2.msra.mxu0 0.0
    %4875 = vmatprep.subr.mxu0 0.0
    %4876 = vmatpush2.msra.mxu0 0.0
    %4877 = vmatprep.subr.mxu0 0.0
    %4878 = vmatpush2.msra.mxu0 0.0
    %4879 = vmatprep.subr.mxu0 0.0
    %4880 = vmatpush2.msra.mxu0 0.0
    %4881 = vmatprep.subr.mxu0 0.0
    %4882 = vmatpush2.msra.mxu0 0.0
    %4883 = vmatprep.mubr.f32.mxu0 0.0
    %v4884 = vand.u32 %v4242, 4294901760
    %4885 = vmatmul.mubr.f32.gmra.mxu0 %v4884
    %v4886 = vpop.f32.mrf.mxu0
    %v4887 = vadd.f32 %v4799, %v4886
    %v4888 = vpop.f32.mrf.mxu0
    %v4889 = vadd.f32 %v4801, %v4888
    %4890 = vdwg.mxu0
    %v4891 = vrot.slane %v607, 6
    %v4892 = vrot.slane %v613, 5
    %v4893 = vsel %vm642, %v4892, %v4891
    %v4895 = vadd.f32 %v4887, %v4893
    %v4896 = vxor.u32 %v4895, 2147483648
    %v4897 = vmul.f32 %v4896, 1.442695
    %v4898 = vpow.pop %v4897
    %v4899 = vadd.f32 %v4898, 1.0
    %v4900 = vrcp.pop %v4899
    %v4901 = vmul.f32 1.0, %v4900
    %v4902 = vtanh.pop %v4895
    %v4903 = vmul.f32 %v4901, %v4201
    %4905 = vrot.lane.b32.xlu0 %v4902, 64
    %v4906 = vpop.permute.xlu0 %4905
    %v4908 = vmul.f32 %v4901, %v4906
    %4910 = vrot.lane.b32.xlu0 %v4908, 32
    %v4911 = vpop.permute.xlu0 %4910
    %v4913 = vadd.f32 %v4903, %v4911
    %v4914 = vtanh.pop %v4913
    %4916 = vrot.lane.b32.xlu0 %v4914, 64
    %v4917 = vpop.permute.xlu0 %4916
    %v4919 = vmul.f32 %v4901, %v4917
    %v4920 = vxor.u32 %v4889, 2147483648
    %v4921 = vmul.f32 %v4920, 1.442695
    %v4922 = vpow.pop %v4921
    %v4923 = vadd.f32 %v4922, 1.0
    %v4924 = vrcp.pop %v4923
    %v4925 = vmul.f32 1.0, %v4924
    %v4926 = vtanh.pop %v4889
    %v4927 = vmul.f32 %v4925, %v4225
    %4929 = vrot.lane.b32.xlu0 %v4926, 64
    %v4930 = vpop.permute.xlu0 %4929
    %v4932 = vmul.f32 %v4925, %v4930
    %4934 = vrot.lane.b32.xlu0 %v4932, 32
    %v4935 = vpop.permute.xlu0 %4934
    %v4937 = vadd.f32 %v4927, %v4935
    %v4938 = vtanh.pop %v4937
    %4940 = vrot.lane.b32.xlu0 %v4938, 64
    %v4941 = vpop.permute.xlu0 %4940
    %v4943 = vmul.f32 %v4925, %v4941
    %4945 = vrot.lane.b32.xlu0 %v4919, 32
    %v4946 = vpop.permute.xlu0 %4945
    %4949 = vrot.lane.b32.xlu0 %v4943, 64
    %v4950 = vpop.permute.xlu0 %4949
    %v4952 = vsel %vm674, %v4946, %v4950
    %v4954 = vsel %vm681, %v4952, 0
    %4956 = vmatprep.subr.mxu0 0.0
    %4957 = vmatpush1.msra.mxu0 0.0
    %4958 = vmatprep.subr.mxu0 0.0
    %4959 = vmatpush1.msra.mxu0 0.0
    %4960 = vmatprep.subr.mxu0 0.0
    %4961 = vmatpush1.msra.mxu0 0.0
    %4962 = vmatprep.subr.mxu0 0.0
    %4963 = vmatpush1.msra.mxu0 0.0
    %4964 = vmatprep.subr.mxu0 0.0
    %4965 = vmatpush1.msra.mxu0 0.0
    %4966 = vmatprep.subr.mxu0 0.0
    %4967 = vmatpush1.msra.mxu0 0.0
    %4968 = vmatprep.subr.mxu0 0.0
    %4969 = vmatpush1.msra.mxu0 0.0
    %4970 = vmatprep.subr.mxu0 0.0
    %4971 = vmatpush1.msra.mxu0 0.0
    %v4972 = vand.u32 %v631, 4294901760
    %4973 = vmatprep.subr.mxu0 %v4972
    %v4974 = vand.u32 %v630, 4294901760
    %4975 = vmatpush1.msra.mxu0 %v4974
    %v4976 = vand.u32 %v629, 4294901760
    %4977 = vmatprep.subr.mxu0 %v4976
    %v4978 = vand.u32 %v628, 4294901760
    %4979 = vmatpush1.msra.mxu0 %v4978
    %v4980 = vand.u32 %v627, 4294901760
    %4981 = vmatprep.subr.mxu0 %v4980
    %v4982 = vand.u32 %v626, 4294901760
    %4983 = vmatpush1.msra.mxu0 %v4982
    %v4984 = vand.u32 %v625, 4294901760
    %4985 = vmatprep.subr.mxu0 %v4984
    %v4986 = vand.u32 %v624, 4294901760
    %4987 = vmatpush1.msra.mxu0 %v4986
    %v4988 = vand.u32 %v623, 4294901760
    %4989 = vmatprep.subr.mxu0 %v4988
    %v4990 = vand.u32 %v622, 4294901760
    %4991 = vmatpush1.msra.mxu0 %v4990
    %v4992 = vand.u32 %v621, 4294901760
    %4993 = vmatprep.subr.mxu0 %v4992
    %v4994 = vand.u32 %v620, 4294901760
    %4995 = vmatpush1.msra.mxu0 %v4994
    %v4996 = vand.u32 %v619, 4294901760
    %4997 = vmatprep.subr.mxu0 %v4996
    %v4998 = vand.u32 %v618, 4294901760
    %4999 = vmatpush1.msra.mxu0 %v4998
    %v5000 = vand.u32 %v617, 4294901760
    %5001 = vmatprep.subr.mxu0 %v5000
    %v5002 = vand.u32 %v616, 4294901760
    %5003 = vmatpush1.msra.mxu0 %v5002
    %5004 = vmatprep.subr.mxu0 0.0
    %5005 = vmatpush2.msra.mxu0 0.0
    %5006 = vmatprep.subr.mxu0 0.0
    %5007 = vmatpush2.msra.mxu0 0.0
    %5008 = vmatprep.subr.mxu0 0.0
    %5009 = vmatpush2.msra.mxu0 0.0
    %5010 = vmatprep.subr.mxu0 0.0
    %5011 = vmatpush2.msra.mxu0 0.0
    %5012 = vmatprep.subr.mxu0 0.0
    %5013 = vmatpush2.msra.mxu0 0.0
    %5014 = vmatprep.subr.mxu0 0.0
    %5015 = vmatpush2.msra.mxu0 0.0
    %5016 = vmatprep.subr.mxu0 0.0
    %5017 = vmatpush2.msra.mxu0 0.0
    %5018 = vmatprep.subr.mxu0 0.0
    %5019 = vmatpush2.msra.mxu0 0.0
    %5020 = vmatprep.subr.mxu0 0.0
    %5021 = vmatpush2.msra.mxu0 0.0
    %5022 = vmatprep.subr.mxu0 0.0
    %5023 = vmatpush2.msra.mxu0 0.0
    %5024 = vmatprep.subr.mxu0 0.0
    %5025 = vmatpush2.msra.mxu0 0.0
    %5026 = vmatprep.subr.mxu0 0.0
    %5027 = vmatpush2.msra.mxu0 0.0
    %5028 = vmatprep.subr.mxu0 0.0
    %5029 = vmatpush2.msra.mxu0 0.0
    %5030 = vmatprep.subr.mxu0 0.0
    %5031 = vmatpush2.msra.mxu0 0.0
    %5032 = vmatprep.subr.mxu0 0.0
    %5033 = vmatpush2.msra.mxu0 0.0
    %5034 = vmatprep.subr.mxu0 0.0
    %5035 = vmatpush2.msra.mxu0 0.0
    %5036 = vmatprep.mubr.f32.mxu0 0.0
    %v5037 = vand.u32 %v4954, 4294901760
    %v5038 = vsub.f32 %v4954, %v5037
    %v5039 = vand.u32 %v5038, 4294901760
    %v5040 = vsub.f32 %v5038, %v5039
    %v5041 = vand.u32 %v5040, 4294901760
    %5042 = vmatmul.mubr.f32.gmra.mxu0 %v5041
    %v5043 = vpop.f32.mrf.mxu0
    %v5044 = vadd.f32 %v637, %v5043
    %v5045 = vpop.f32.mrf.mxu0
    %v5046 = vadd.f32 %v679, %v5045
    %5047 = vdwg.mxu0
    %5048 = vmatprep.subr.mxu0 0.0
    %5049 = vmatpush1.msra.mxu0 0.0
    %5050 = vmatprep.subr.mxu0 0.0
    %5051 = vmatpush1.msra.mxu0 0.0
    %5052 = vmatprep.subr.mxu0 0.0
    %5053 = vmatpush1.msra.mxu0 0.0
    %5054 = vmatprep.subr.mxu0 0.0
    %5055 = vmatpush1.msra.mxu0 0.0
    %5056 = vmatprep.subr.mxu0 0.0
    %5057 = vmatpush1.msra.mxu0 0.0
    %5058 = vmatprep.subr.mxu0 0.0
    %5059 = vmatpush1.msra.mxu0 0.0
    %5060 = vmatprep.subr.mxu0 0.0
    %5061 = vmatpush1.msra.mxu0 0.0
    %5062 = vmatprep.subr.mxu0 0.0
    %5063 = vmatpush1.msra.mxu0 0.0
    %v5064 = vand.u32 %v631, 4294901760
    %v5065 = vsub.f32 %v631, %v5064
    %v5066 = vand.u32 %v5065, 4294901760
    %v5067 = vsub.f32 %v5065, %v5066
    %v5068 = vand.u32 %v5067, 4294901760
    %5069 = vmatprep.subr.mxu0 %v5068
    %v5070 = vand.u32 %v630, 4294901760
    %v5071 = vsub.f32 %v630, %v5070
    %v5072 = vand.u32 %v5071, 4294901760
    %v5073 = vsub.f32 %v5071, %v5072
    %v5074 = vand.u32 %v5073, 4294901760
    %5075 = vmatpush1.msra.mxu0 %v5074
    %v5076 = vand.u32 %v629, 4294901760
    %v5077 = vsub.f32 %v629, %v5076
    %v5078 = vand.u32 %v5077, 4294901760
    %v5079 = vsub.f32 %v5077, %v5078
    %v5080 = vand.u32 %v5079, 4294901760
    %5081 = vmatprep.subr.mxu0 %v5080
    %v5082 = vand.u32 %v628, 4294901760
    %v5083 = vsub.f32 %v628, %v5082
    %v5084 = vand.u32 %v5083, 4294901760
    %v5085 = vsub.f32 %v5083, %v5084
    %v5086 = vand.u32 %v5085, 4294901760
    %5087 = vmatpush1.msra.mxu0 %v5086
    %v5088 = vand.u32 %v627, 4294901760
    %v5089 = vsub.f32 %v627, %v5088
    %v5090 = vand.u32 %v5089, 4294901760
    %v5091 = vsub.f32 %v5089, %v5090
    %v5092 = vand.u32 %v5091, 4294901760
    %5093 = vmatprep.subr.mxu0 %v5092
    %v5094 = vand.u32 %v626, 4294901760
    %v5095 = vsub.f32 %v626, %v5094
    %v5096 = vand.u32 %v5095, 4294901760
    %v5097 = vsub.f32 %v5095, %v5096
    %v5098 = vand.u32 %v5097, 4294901760
    %5099 = vmatpush1.msra.mxu0 %v5098
    %v5100 = vand.u32 %v625, 4294901760
    %v5101 = vsub.f32 %v625, %v5100
    %v5102 = vand.u32 %v5101, 4294901760
    %v5103 = vsub.f32 %v5101, %v5102
    %v5104 = vand.u32 %v5103, 4294901760
    %5105 = vmatprep.subr.mxu0 %v5104
    %v5106 = vand.u32 %v624, 4294901760
    %v5107 = vsub.f32 %v624, %v5106
    %v5108 = vand.u32 %v5107, 4294901760
    %v5109 = vsub.f32 %v5107, %v5108
    %v5110 = vand.u32 %v5109, 4294901760
    %5111 = vmatpush1.msra.mxu0 %v5110
    %v5112 = vand.u32 %v623, 4294901760
    %v5113 = vsub.f32 %v623, %v5112
    %v5114 = vand.u32 %v5113, 4294901760
    %v5115 = vsub.f32 %v5113, %v5114
    %v5116 = vand.u32 %v5115, 4294901760
    %5117 = vmatprep.subr.mxu0 %v5116
    %v5118 = vand.u32 %v622, 4294901760
    %v5119 = vsub.f32 %v622, %v5118
    %v5120 = vand.u32 %v5119, 4294901760
    %v5121 = vsub.f32 %v5119, %v5120
    %v5122 = vand.u32 %v5121, 4294901760
    %5123 = vmatpush1.msra.mxu0 %v5122
    %v5124 = vand.u32 %v621, 4294901760
    %v5125 = vsub.f32 %v621, %v5124
    %v5126 = vand.u32 %v5125, 4294901760
    %v5127 = vsub.f32 %v5125, %v5126
    %v5128 = vand.u32 %v5127, 4294901760
    %5129 = vmatprep.subr.mxu0 %v5128
    %v5130 = vand.u32 %v620, 4294901760
    %v5131 = vsub.f32 %v620, %v5130
    %v5132 = vand.u32 %v5131, 4294901760
    %v5133 = vsub.f32 %v5131, %v5132
    %v5134 = vand.u32 %v5133, 4294901760
    %5135 = vmatpush1.msra.mxu0 %v5134
    %v5136 = vand.u32 %v619, 4294901760
    %v5137 = vsub.f32 %v619, %v5136
    %v5138 = vand.u32 %v5137, 4294901760
    %v5139 = vsub.f32 %v5137, %v5138
    %v5140 = vand.u32 %v5139, 4294901760
    %5141 = vmatprep.subr.mxu0 %v5140
    %v5142 = vand.u32 %v618, 4294901760
    %v5143 = vsub.f32 %v618, %v5142
    %v5144 = vand.u32 %v5143, 4294901760
    %v5145 = vsub.f32 %v5143, %v5144
    %v5146 = vand.u32 %v5145, 4294901760
    %5147 = vmatpush1.msra.mxu0 %v5146
    %v5148 = vand.u32 %v617, 4294901760
    %v5149 = vsub.f32 %v617, %v5148
    %v5150 = vand.u32 %v5149, 4294901760
    %v5151 = vsub.f32 %v5149, %v5150
    %v5152 = vand.u32 %v5151, 4294901760
    %5153 = vmatprep.subr.mxu0 %v5152
    %v5154 = vand.u32 %v616, 4294901760
    %v5155 = vsub.f32 %v616, %v5154
    %v5156 = vand.u32 %v5155, 4294901760
    %v5157 = vsub.f32 %v5155, %v5156
    %v5158 = vand.u32 %v5157, 4294901760
    %5159 = vmatpush1.msra.mxu0 %v5158
    %5160 = vmatprep.subr.mxu0 0.0
    %5161 = vmatpush2.msra.mxu0 0.0
    %5162 = vmatprep.subr.mxu0 0.0
    %5163 = vmatpush2.msra.mxu0 0.0
    %5164 = vmatprep.subr.mxu0 0.0
    %5165 = vmatpush2.msra.mxu0 0.0
    %5166 = vmatprep.subr.mxu0 0.0
    %5167 = vmatpush2.msra.mxu0 0.0
    %5168 = vmatprep.subr.mxu0 0.0
    %5169 = vmatpush2.msra.mxu0 0.0
    %5170 = vmatprep.subr.mxu0 0.0
    %5171 = vmatpush2.msra.mxu0 0.0
    %5172 = vmatprep.subr.mxu0 0.0
    %5173 = vmatpush2.msra.mxu0 0.0
    %5174 = vmatprep.subr.mxu0 0.0
    %5175 = vmatpush2.msra.mxu0 0.0
    %5176 = vmatprep.subr.mxu0 0.0
    %5177 = vmatpush2.msra.mxu0 0.0
    %5178 = vmatprep.subr.mxu0 0.0
    %5179 = vmatpush2.msra.mxu0 0.0
    %5180 = vmatprep.subr.mxu0 0.0
    %5181 = vmatpush2.msra.mxu0 0.0
    %5182 = vmatprep.subr.mxu0 0.0
    %5183 = vmatpush2.msra.mxu0 0.0
    %5184 = vmatprep.subr.mxu0 0.0
    %5185 = vmatpush2.msra.mxu0 0.0
    %5186 = vmatprep.subr.mxu0 0.0
    %5187 = vmatpush2.msra.mxu0 0.0
    %5188 = vmatprep.subr.mxu0 0.0
    %5189 = vmatpush2.msra.mxu0 0.0
    %5190 = vmatprep.subr.mxu0 0.0
    %5191 = vmatpush2.msra.mxu0 0.0
    %5192 = vmatprep.mubr.f32.mxu0 0.0
    %v5193 = vand.u32 %v4954, 4294901760
    %5194 = vmatmul.mubr.f32.gmra.mxu0 %v5193
    %v5195 = vpop.f32.mrf.mxu0
    %v5196 = vadd.f32 %v5044, %v5195
    %v5197 = vpop.f32.mrf.mxu0
    %v5198 = vadd.f32 %v5046, %v5197
    %5199 = vdwg.mxu0
    %5200 = vmatprep.subr.mxu0 0.0
    %5201 = vmatpush1.msra.mxu0 0.0
    %5202 = vmatprep.subr.mxu0 0.0
    %5203 = vmatpush1.msra.mxu0 0.0
    %5204 = vmatprep.subr.mxu0 0.0
    %5205 = vmatpush1.msra.mxu0 0.0
    %5206 = vmatprep.subr.mxu0 0.0
    %5207 = vmatpush1.msra.mxu0 0.0
    %5208 = vmatprep.subr.mxu0 0.0
    %5209 = vmatpush1.msra.mxu0 0.0
    %5210 = vmatprep.subr.mxu0 0.0
    %5211 = vmatpush1.msra.mxu0 0.0
    %5212 = vmatprep.subr.mxu0 0.0
    %5213 = vmatpush1.msra.mxu0 0.0
    %5214 = vmatprep.subr.mxu0 0.0
    %5215 = vmatpush1.msra.mxu0 0.0
    %v5216 = vand.u32 %v631, 4294901760
    %v5217 = vsub.f32 %v631, %v5216
    %5218 = vmatprep.subr.mxu0 %v5217
    %v5219 = vand.u32 %v630, 4294901760
    %v5220 = vsub.f32 %v630, %v5219
    %5221 = vmatpush1.msra.mxu0 %v5220
    %v5222 = vand.u32 %v629, 4294901760
    %v5223 = vsub.f32 %v629, %v5222
    %5224 = vmatprep.subr.mxu0 %v5223
    %v5225 = vand.u32 %v628, 4294901760
    %v5226 = vsub.f32 %v628, %v5225
    %5227 = vmatpush1.msra.mxu0 %v5226
    %v5228 = vand.u32 %v627, 4294901760
    %v5229 = vsub.f32 %v627, %v5228
    %5230 = vmatprep.subr.mxu0 %v5229
    %v5231 = vand.u32 %v626, 4294901760
    %v5232 = vsub.f32 %v626, %v5231
    %5233 = vmatpush1.msra.mxu0 %v5232
    %v5234 = vand.u32 %v625, 4294901760
    %v5235 = vsub.f32 %v625, %v5234
    %5236 = vmatprep.subr.mxu0 %v5235
    %v5237 = vand.u32 %v624, 4294901760
    %v5238 = vsub.f32 %v624, %v5237
    %5239 = vmatpush1.msra.mxu0 %v5238
    %v5240 = vand.u32 %v623, 4294901760
    %v5241 = vsub.f32 %v623, %v5240
    %5242 = vmatprep.subr.mxu0 %v5241
    %v5243 = vand.u32 %v622, 4294901760
    %v5244 = vsub.f32 %v622, %v5243
    %5245 = vmatpush1.msra.mxu0 %v5244
    %v5246 = vand.u32 %v621, 4294901760
    %v5247 = vsub.f32 %v621, %v5246
    %5248 = vmatprep.subr.mxu0 %v5247
    %v5249 = vand.u32 %v620, 4294901760
    %v5250 = vsub.f32 %v620, %v5249
    %5251 = vmatpush1.msra.mxu0 %v5250
    %v5252 = vand.u32 %v619, 4294901760
    %v5253 = vsub.f32 %v619, %v5252
    %5254 = vmatprep.subr.mxu0 %v5253
    %v5255 = vand.u32 %v618, 4294901760
    %v5256 = vsub.f32 %v618, %v5255
    %5257 = vmatpush1.msra.mxu0 %v5256
    %v5258 = vand.u32 %v617, 4294901760
    %v5259 = vsub.f32 %v617, %v5258
    %5260 = vmatprep.subr.mxu0 %v5259
    %v5261 = vand.u32 %v616, 4294901760
    %v5262 = vsub.f32 %v616, %v5261
    %5263 = vmatpush1.msra.mxu0 %v5262
    %5264 = vmatprep.subr.mxu0 0.0
    %5265 = vmatpush2.msra.mxu0 0.0
    %5266 = vmatprep.subr.mxu0 0.0
    %5267 = vmatpush2.msra.mxu0 0.0
    %5268 = vmatprep.subr.mxu0 0.0
    %5269 = vmatpush2.msra.mxu0 0.0
    %5270 = vmatprep.subr.mxu0 0.0
    %5271 = vmatpush2.msra.mxu0 0.0
    %5272 = vmatprep.subr.mxu0 0.0
    %5273 = vmatpush2.msra.mxu0 0.0
    %5274 = vmatprep.subr.mxu0 0.0
    %5275 = vmatpush2.msra.mxu0 0.0
    %5276 = vmatprep.subr.mxu0 0.0
    %5277 = vmatpush2.msra.mxu0 0.0
    %5278 = vmatprep.subr.mxu0 0.0
    %5279 = vmatpush2.msra.mxu0 0.0
    %5280 = vmatprep.subr.mxu0 0.0
    %5281 = vmatpush2.msra.mxu0 0.0
    %5282 = vmatprep.subr.mxu0 0.0
    %5283 = vmatpush2.msra.mxu0 0.0
    %5284 = vmatprep.subr.mxu0 0.0
    %5285 = vmatpush2.msra.mxu0 0.0
    %5286 = vmatprep.subr.mxu0 0.0
    %5287 = vmatpush2.msra.mxu0 0.0
    %5288 = vmatprep.subr.mxu0 0.0
    %5289 = vmatpush2.msra.mxu0 0.0
    %5290 = vmatprep.subr.mxu0 0.0
    %5291 = vmatpush2.msra.mxu0 0.0
    %5292 = vmatprep.subr.mxu0 0.0
    %5293 = vmatpush2.msra.mxu0 0.0
    %5294 = vmatprep.subr.mxu0 0.0
    %5295 = vmatpush2.msra.mxu0 0.0
    %5296 = vmatprep.mubr.f32.mxu0 0.0
    %v5297 = vand.u32 %v4954, 4294901760
    %v5298 = vsub.f32 %v4954, %v5297
    %5299 = vmatmul.mubr.f32.gmra.mxu0 %v5298
    %v5300 = vpop.f32.mrf.mxu0
    %v5301 = vadd.f32 %v5196, %v5300
    %v5302 = vpop.f32.mrf.mxu0
    %v5303 = vadd.f32 %v5198, %v5302
    %5304 = vdwg.mxu0
    %5305 = vmatprep.subr.mxu0 0.0
    %5306 = vmatpush1.msra.mxu0 0.0
    %5307 = vmatprep.subr.mxu0 0.0
    %5308 = vmatpush1.msra.mxu0 0.0
    %5309 = vmatprep.subr.mxu0 0.0
    %5310 = vmatpush1.msra.mxu0 0.0
    %5311 = vmatprep.subr.mxu0 0.0
    %5312 = vmatpush1.msra.mxu0 0.0
    %5313 = vmatprep.subr.mxu0 0.0
    %5314 = vmatpush1.msra.mxu0 0.0
    %5315 = vmatprep.subr.mxu0 0.0
    %5316 = vmatpush1.msra.mxu0 0.0
    %5317 = vmatprep.subr.mxu0 0.0
    %5318 = vmatpush1.msra.mxu0 0.0
    %5319 = vmatprep.subr.mxu0 0.0
    %5320 = vmatpush1.msra.mxu0 0.0
    %v5321 = vand.u32 %v631, 4294901760
    %5322 = vmatprep.subr.mxu0 %v5321
    %v5323 = vand.u32 %v630, 4294901760
    %5324 = vmatpush1.msra.mxu0 %v5323
    %v5325 = vand.u32 %v629, 4294901760
    %5326 = vmatprep.subr.mxu0 %v5325
    %v5327 = vand.u32 %v628, 4294901760
    %5328 = vmatpush1.msra.mxu0 %v5327
    %v5329 = vand.u32 %v627, 4294901760
    %5330 = vmatprep.subr.mxu0 %v5329
    %v5331 = vand.u32 %v626, 4294901760
    %5332 = vmatpush1.msra.mxu0 %v5331
    %v5333 = vand.u32 %v625, 4294901760
    %5334 = vmatprep.subr.mxu0 %v5333
    %v5335 = vand.u32 %v624, 4294901760
    %5336 = vmatpush1.msra.mxu0 %v5335
    %v5337 = vand.u32 %v623, 4294901760
    %5338 = vmatprep.subr.mxu0 %v5337
    %v5339 = vand.u32 %v622, 4294901760
    %5340 = vmatpush1.msra.mxu0 %v5339
    %v5341 = vand.u32 %v621, 4294901760
    %5342 = vmatprep.subr.mxu0 %v5341
    %v5343 = vand.u32 %v620, 4294901760
    %5344 = vmatpush1.msra.mxu0 %v5343
    %v5345 = vand.u32 %v619, 4294901760
    %5346 = vmatprep.subr.mxu0 %v5345
    %v5347 = vand.u32 %v618, 4294901760
    %5348 = vmatpush1.msra.mxu0 %v5347
    %v5349 = vand.u32 %v617, 4294901760
    %5350 = vmatprep.subr.mxu0 %v5349
    %v5351 = vand.u32 %v616, 4294901760
    %5352 = vmatpush1.msra.mxu0 %v5351
    %5353 = vmatprep.subr.mxu0 0.0
    %5354 = vmatpush2.msra.mxu0 0.0
    %5355 = vmatprep.subr.mxu0 0.0
    %5356 = vmatpush2.msra.mxu0 0.0
    %5357 = vmatprep.subr.mxu0 0.0
    %5358 = vmatpush2.msra.mxu0 0.0
    %5359 = vmatprep.subr.mxu0 0.0
    %5360 = vmatpush2.msra.mxu0 0.0
    %5361 = vmatprep.subr.mxu0 0.0
    %5362 = vmatpush2.msra.mxu0 0.0
    %5363 = vmatprep.subr.mxu0 0.0
    %5364 = vmatpush2.msra.mxu0 0.0
    %5365 = vmatprep.subr.mxu0 0.0
    %5366 = vmatpush2.msra.mxu0 0.0
    %5367 = vmatprep.subr.mxu0 0.0
    %5368 = vmatpush2.msra.mxu0 0.0
    %5369 = vmatprep.subr.mxu0 0.0
    %5370 = vmatpush2.msra.mxu0 0.0
    %5371 = vmatprep.subr.mxu0 0.0
    %5372 = vmatpush2.msra.mxu0 0.0
    %5373 = vmatprep.subr.mxu0 0.0
    %5374 = vmatpush2.msra.mxu0 0.0
    %5375 = vmatprep.subr.mxu0 0.0
    %5376 = vmatpush2.msra.mxu0 0.0
    %5377 = vmatprep.subr.mxu0 0.0
    %5378 = vmatpush2.msra.mxu0 0.0
    %5379 = vmatprep.subr.mxu0 0.0
    %5380 = vmatpush2.msra.mxu0 0.0
    %5381 = vmatprep.subr.mxu0 0.0
    %5382 = vmatpush2.msra.mxu0 0.0
    %5383 = vmatprep.subr.mxu0 0.0
    %5384 = vmatpush2.msra.mxu0 0.0
    %5385 = vmatprep.mubr.f32.mxu0 0.0
    %v5386 = vand.u32 %v4954, 4294901760
    %v5387 = vsub.f32 %v4954, %v5386
    %v5388 = vand.u32 %v5387, 4294901760
    %5389 = vmatmul.mubr.f32.gmra.mxu0 %v5388
    %v5390 = vpop.f32.mrf.mxu0
    %v5391 = vadd.f32 %v5301, %v5390
    %v5392 = vpop.f32.mrf.mxu0
    %v5393 = vadd.f32 %v5303, %v5392
    %5394 = vdwg.mxu0
    %5395 = vmatprep.subr.mxu0 0.0
    %5396 = vmatpush1.msra.mxu0 0.0
    %5397 = vmatprep.subr.mxu0 0.0
    %5398 = vmatpush1.msra.mxu0 0.0
    %5399 = vmatprep.subr.mxu0 0.0
    %5400 = vmatpush1.msra.mxu0 0.0
    %5401 = vmatprep.subr.mxu0 0.0
    %5402 = vmatpush1.msra.mxu0 0.0
    %5403 = vmatprep.subr.mxu0 0.0
    %5404 = vmatpush1.msra.mxu0 0.0
    %5405 = vmatprep.subr.mxu0 0.0
    %5406 = vmatpush1.msra.mxu0 0.0
    %5407 = vmatprep.subr.mxu0 0.0
    %5408 = vmatpush1.msra.mxu0 0.0
    %5409 = vmatprep.subr.mxu0 0.0
    %5410 = vmatpush1.msra.mxu0 0.0
    %v5411 = vand.u32 %v631, 4294901760
    %v5412 = vsub.f32 %v631, %v5411
    %v5413 = vand.u32 %v5412, 4294901760
    %5414 = vmatprep.subr.mxu0 %v5413
    %v5415 = vand.u32 %v630, 4294901760
    %v5416 = vsub.f32 %v630, %v5415
    %v5417 = vand.u32 %v5416, 4294901760
    %5418 = vmatpush1.msra.mxu0 %v5417
    %v5419 = vand.u32 %v629, 4294901760
    %v5420 = vsub.f32 %v629, %v5419
    %v5421 = vand.u32 %v5420, 4294901760
    %5422 = vmatprep.subr.mxu0 %v5421
    %v5423 = vand.u32 %v628, 4294901760
    %v5424 = vsub.f32 %v628, %v5423
    %v5425 = vand.u32 %v5424, 4294901760
    %5426 = vmatpush1.msra.mxu0 %v5425
    %v5427 = vand.u32 %v627, 4294901760
    %v5428 = vsub.f32 %v627, %v5427
    %v5429 = vand.u32 %v5428, 4294901760
    %5430 = vmatprep.subr.mxu0 %v5429
    %v5431 = vand.u32 %v626, 4294901760
    %v5432 = vsub.f32 %v626, %v5431
    %v5433 = vand.u32 %v5432, 4294901760
    %5434 = vmatpush1.msra.mxu0 %v5433
    %v5435 = vand.u32 %v625, 4294901760
    %v5436 = vsub.f32 %v625, %v5435
    %v5437 = vand.u32 %v5436, 4294901760
    %5438 = vmatprep.subr.mxu0 %v5437
    %v5439 = vand.u32 %v624, 4294901760
    %v5440 = vsub.f32 %v624, %v5439
    %v5441 = vand.u32 %v5440, 4294901760
    %5442 = vmatpush1.msra.mxu0 %v5441
    %v5443 = vand.u32 %v623, 4294901760
    %v5444 = vsub.f32 %v623, %v5443
    %v5445 = vand.u32 %v5444, 4294901760
    %5446 = vmatprep.subr.mxu0 %v5445
    %v5447 = vand.u32 %v622, 4294901760
    %v5448 = vsub.f32 %v622, %v5447
    %v5449 = vand.u32 %v5448, 4294901760
    %5450 = vmatpush1.msra.mxu0 %v5449
    %v5451 = vand.u32 %v621, 4294901760
    %v5452 = vsub.f32 %v621, %v5451
    %v5453 = vand.u32 %v5452, 4294901760
    %5454 = vmatprep.subr.mxu0 %v5453
    %v5455 = vand.u32 %v620, 4294901760
    %v5456 = vsub.f32 %v620, %v5455
    %v5457 = vand.u32 %v5456, 4294901760
    %5458 = vmatpush1.msra.mxu0 %v5457
    %v5459 = vand.u32 %v619, 4294901760
    %v5460 = vsub.f32 %v619, %v5459
    %v5461 = vand.u32 %v5460, 4294901760
    %5462 = vmatprep.subr.mxu0 %v5461
    %v5463 = vand.u32 %v618, 4294901760
    %v5464 = vsub.f32 %v618, %v5463
    %v5465 = vand.u32 %v5464, 4294901760
    %5466 = vmatpush1.msra.mxu0 %v5465
    %v5467 = vand.u32 %v617, 4294901760
    %v5468 = vsub.f32 %v617, %v5467
    %v5469 = vand.u32 %v5468, 4294901760
    %5470 = vmatprep.subr.mxu0 %v5469
    %v5471 = vand.u32 %v616, 4294901760
    %v5472 = vsub.f32 %v616, %v5471
    %v5473 = vand.u32 %v5472, 4294901760
    %5474 = vmatpush1.msra.mxu0 %v5473
    %5475 = vmatprep.subr.mxu0 0.0
    %5476 = vmatpush2.msra.mxu0 0.0
    %5477 = vmatprep.subr.mxu0 0.0
    %5478 = vmatpush2.msra.mxu0 0.0
    %5479 = vmatprep.subr.mxu0 0.0
    %5480 = vmatpush2.msra.mxu0 0.0
    %5481 = vmatprep.subr.mxu0 0.0
    %5482 = vmatpush2.msra.mxu0 0.0
    %5483 = vmatprep.subr.mxu0 0.0
    %5484 = vmatpush2.msra.mxu0 0.0
    %5485 = vmatprep.subr.mxu0 0.0
    %5486 = vmatpush2.msra.mxu0 0.0
    %5487 = vmatprep.subr.mxu0 0.0
    %5488 = vmatpush2.msra.mxu0 0.0
    %5489 = vmatprep.subr.mxu0 0.0
    %5490 = vmatpush2.msra.mxu0 0.0
    %5491 = vmatprep.subr.mxu0 0.0
    %5492 = vmatpush2.msra.mxu0 0.0
    %5493 = vmatprep.subr.mxu0 0.0
    %5494 = vmatpush2.msra.mxu0 0.0
    %5495 = vmatprep.subr.mxu0 0.0
    %5496 = vmatpush2.msra.mxu0 0.0
    %5497 = vmatprep.subr.mxu0 0.0
    %5498 = vmatpush2.msra.mxu0 0.0
    %5499 = vmatprep.subr.mxu0 0.0
    %5500 = vmatpush2.msra.mxu0 0.0
    %5501 = vmatprep.subr.mxu0 0.0
    %5502 = vmatpush2.msra.mxu0 0.0
    %5503 = vmatprep.subr.mxu0 0.0
    %5504 = vmatpush2.msra.mxu0 0.0
    %5505 = vmatprep.subr.mxu0 0.0
    %5506 = vmatpush2.msra.mxu0 0.0
    %5507 = vmatprep.mubr.f32.mxu0 0.0
    %v5508 = vand.u32 %v4954, 4294901760
    %5509 = vmatmul.mubr.f32.gmra.mxu0 %v5508
    %v5510 = vpop.f32.mrf.mxu0
    %v5511 = vadd.f32 %v5391, %v5510
    %v5512 = vpop.f32.mrf.mxu0
    %v5513 = vadd.f32 %v5393, %v5512
    %5514 = vdwg.mxu0
    %5515 = vmatprep.subr.mxu0 0.0
    %5516 = vmatpush1.msra.mxu0 0.0
    %5517 = vmatprep.subr.mxu0 0.0
    %5518 = vmatpush1.msra.mxu0 0.0
    %5519 = vmatprep.subr.mxu0 0.0
    %5520 = vmatpush1.msra.mxu0 0.0
    %5521 = vmatprep.subr.mxu0 0.0
    %5522 = vmatpush1.msra.mxu0 0.0
    %5523 = vmatprep.subr.mxu0 0.0
    %5524 = vmatpush1.msra.mxu0 0.0
    %5525 = vmatprep.subr.mxu0 0.0
    %5526 = vmatpush1.msra.mxu0 0.0
    %5527 = vmatprep.subr.mxu0 0.0
    %5528 = vmatpush1.msra.mxu0 0.0
    %5529 = vmatprep.subr.mxu0 0.0
    %5530 = vmatpush1.msra.mxu0 0.0
    %v5531 = vand.u32 %v631, 4294901760
    %5532 = vmatprep.subr.mxu0 %v5531
    %v5533 = vand.u32 %v630, 4294901760
    %5534 = vmatpush1.msra.mxu0 %v5533
    %v5535 = vand.u32 %v629, 4294901760
    %5536 = vmatprep.subr.mxu0 %v5535
    %v5537 = vand.u32 %v628, 4294901760
    %5538 = vmatpush1.msra.mxu0 %v5537
    %v5539 = vand.u32 %v627, 4294901760
    %5540 = vmatprep.subr.mxu0 %v5539
    %v5541 = vand.u32 %v626, 4294901760
    %5542 = vmatpush1.msra.mxu0 %v5541
    %v5543 = vand.u32 %v625, 4294901760
    %5544 = vmatprep.subr.mxu0 %v5543
    %v5545 = vand.u32 %v624, 4294901760
    %5546 = vmatpush1.msra.mxu0 %v5545
    %v5547 = vand.u32 %v623, 4294901760
    %5548 = vmatprep.subr.mxu0 %v5547
    %v5549 = vand.u32 %v622, 4294901760
    %5550 = vmatpush1.msra.mxu0 %v5549
    %v5551 = vand.u32 %v621, 4294901760
    %5552 = vmatprep.subr.mxu0 %v5551
    %v5553 = vand.u32 %v620, 4294901760
    %5554 = vmatpush1.msra.mxu0 %v5553
    %v5555 = vand.u32 %v619, 4294901760
    %5556 = vmatprep.subr.mxu0 %v5555
    %v5557 = vand.u32 %v618, 4294901760
    %5558 = vmatpush1.msra.mxu0 %v5557
    %v5559 = vand.u32 %v617, 4294901760
    %5560 = vmatprep.subr.mxu0 %v5559
    %v5561 = vand.u32 %v616, 4294901760
    %5562 = vmatpush1.msra.mxu0 %v5561
    %5563 = vmatprep.subr.mxu0 0.0
    %5564 = vmatpush2.msra.mxu0 0.0
    %5565 = vmatprep.subr.mxu0 0.0
    %5566 = vmatpush2.msra.mxu0 0.0
    %5567 = vmatprep.subr.mxu0 0.0
    %5568 = vmatpush2.msra.mxu0 0.0
    %5569 = vmatprep.subr.mxu0 0.0
    %5570 = vmatpush2.msra.mxu0 0.0
    %5571 = vmatprep.subr.mxu0 0.0
    %5572 = vmatpush2.msra.mxu0 0.0
    %5573 = vmatprep.subr.mxu0 0.0
    %5574 = vmatpush2.msra.mxu0 0.0
    %5575 = vmatprep.subr.mxu0 0.0
    %5576 = vmatpush2.msra.mxu0 0.0
    %5577 = vmatprep.subr.mxu0 0.0
    %5578 = vmatpush2.msra.mxu0 0.0
    %5579 = vmatprep.subr.mxu0 0.0
    %5580 = vmatpush2.msra.mxu0 0.0
    %5581 = vmatprep.subr.mxu0 0.0
    %5582 = vmatpush2.msra.mxu0 0.0
    %5583 = vmatprep.subr.mxu0 0.0
    %5584 = vmatpush2.msra.mxu0 0.0
    %5585 = vmatprep.subr.mxu0 0.0
    %5586 = vmatpush2.msra.mxu0 0.0
    %5587 = vmatprep.subr.mxu0 0.0
    %5588 = vmatpush2.msra.mxu0 0.0
    %5589 = vmatprep.subr.mxu0 0.0
    %5590 = vmatpush2.msra.mxu0 0.0
    %5591 = vmatprep.subr.mxu0 0.0
    %5592 = vmatpush2.msra.mxu0 0.0
    %5593 = vmatprep.subr.mxu0 0.0
    %5594 = vmatpush2.msra.mxu0 0.0
    %5595 = vmatprep.mubr.f32.mxu0 0.0
    %v5596 = vand.u32 %v4954, 4294901760
    %5597 = vmatmul.mubr.f32.gmra.mxu0 %v5596
    %v5598 = vpop.f32.mrf.mxu0
    %v5599 = vadd.f32 %v5511, %v5598
    %v5600 = vpop.f32.mrf.mxu0
    %v5601 = vadd.f32 %v5513, %v5600
    %5602 = vdwg.mxu0
    %v5603 = vrot.slane %v607, 7
    %v5604 = vrot.slane %v613, 6
    %v5605 = vsel %vm642, %v5604, %v5603
    %v5607 = vadd.f32 %v5599, %v5605
    %v5608 = vxor.u32 %v5607, 2147483648
    %v5609 = vmul.f32 %v5608, 1.442695
    %v5610 = vpow.pop %v5609
    %v5611 = vadd.f32 %v5610, 1.0
    %v5612 = vrcp.pop %v5611
    %v5613 = vmul.f32 1.0, %v5612
    %v5614 = vtanh.pop %v5607
    %v5615 = vmul.f32 %v5613, %v4913
    %5617 = vrot.lane.b32.xlu0 %v5614, 64
    %v5618 = vpop.permute.xlu0 %5617
    %v5620 = vmul.f32 %v5613, %v5618
    %5622 = vrot.lane.b32.xlu0 %v5620, 32
    %v5623 = vpop.permute.xlu0 %5622
    %v5625 = vadd.f32 %v5615, %v5623
    %v5626 = vtanh.pop %v5625
    %5628 = vrot.lane.b32.xlu0 %v5626, 64
    %v5629 = vpop.permute.xlu0 %5628
    %v5631 = vmul.f32 %v5613, %v5629
    %v5632 = vxor.u32 %v5601, 2147483648
    %v5633 = vmul.f32 %v5632, 1.442695
    %v5634 = vpow.pop %v5633
    %v5635 = vadd.f32 %v5634, 1.0
    %v5636 = vrcp.pop %v5635
    %v5637 = vmul.f32 1.0, %v5636
    %v5638 = vtanh.pop %v5601
    %v5639 = vmul.f32 %v5637, %v4937
    %5641 = vrot.lane.b32.xlu0 %v5638, 64
    %v5642 = vpop.permute.xlu0 %5641
    %v5644 = vmul.f32 %v5637, %v5642
    %5646 = vrot.lane.b32.xlu0 %v5644, 32
    %v5647 = vpop.permute.xlu0 %5646
    %v5649 = vadd.f32 %v5639, %v5647
    %v5650 = vtanh.pop %v5649
    %5652 = vrot.lane.b32.xlu0 %v5650, 64
    %v5653 = vpop.permute.xlu0 %5652
    %v5655 = vmul.f32 %v5637, %v5653
    %5657 = vrot.lane.b32.xlu0 %v5631, 32
    %v5658 = vpop.permute.xlu0 %5657
    %5661 = vrot.lane.b32.xlu0 %v5655, 64
    %v5662 = vpop.permute.xlu0 %5661
    %v5664 = vsel %vm674, %v5658, %v5662
    %v5666 = vsel %vm681, %v5664, 0
    %5668 = vmatprep.subr.mxu0 0.0
    %5669 = vmatpush1.msra.mxu0 0.0
    %5670 = vmatprep.subr.mxu0 0.0
    %5671 = vmatpush1.msra.mxu0 0.0
    %5672 = vmatprep.subr.mxu0 0.0
    %5673 = vmatpush1.msra.mxu0 0.0
    %5674 = vmatprep.subr.mxu0 0.0
    %5675 = vmatpush1.msra.mxu0 0.0
    %5676 = vmatprep.subr.mxu0 0.0
    %5677 = vmatpush1.msra.mxu0 0.0
    %5678 = vmatprep.subr.mxu0 0.0
    %5679 = vmatpush1.msra.mxu0 0.0
    %5680 = vmatprep.subr.mxu0 0.0
    %5681 = vmatpush1.msra.mxu0 0.0
    %5682 = vmatprep.subr.mxu0 0.0
    %5683 = vmatpush1.msra.mxu0 0.0
    %v5684 = vand.u32 %v631, 4294901760
    %5685 = vmatprep.subr.mxu0 %v5684
    %v5686 = vand.u32 %v630, 4294901760
    %5687 = vmatpush1.msra.mxu0 %v5686
    %v5688 = vand.u32 %v629, 4294901760
    %5689 = vmatprep.subr.mxu0 %v5688
    %v5690 = vand.u32 %v628, 4294901760
    %5691 = vmatpush1.msra.mxu0 %v5690
    %v5692 = vand.u32 %v627, 4294901760
    %5693 = vmatprep.subr.mxu0 %v5692
    %v5694 = vand.u32 %v626, 4294901760
    %5695 = vmatpush1.msra.mxu0 %v5694
    %v5696 = vand.u32 %v625, 4294901760
    %5697 = vmatprep.subr.mxu0 %v5696
    %v5698 = vand.u32 %v624, 4294901760
    %5699 = vmatpush1.msra.mxu0 %v5698
    %v5700 = vand.u32 %v623, 4294901760
    %5701 = vmatprep.subr.mxu0 %v5700
    %v5702 = vand.u32 %v622, 4294901760
    %5703 = vmatpush1.msra.mxu0 %v5702
    %v5704 = vand.u32 %v621, 4294901760
    %5705 = vmatprep.subr.mxu0 %v5704
    %v5706 = vand.u32 %v620, 4294901760
    %5707 = vmatpush1.msra.mxu0 %v5706
    %v5708 = vand.u32 %v619, 4294901760
    %5709 = vmatprep.subr.mxu0 %v5708
    %v5710 = vand.u32 %v618, 4294901760
    %5711 = vmatpush1.msra.mxu0 %v5710
    %v5712 = vand.u32 %v617, 4294901760
    %5713 = vmatprep.subr.mxu0 %v5712
    %v5714 = vand.u32 %v616, 4294901760
    %5715 = vmatpush1.msra.mxu0 %v5714
    %5716 = vmatprep.subr.mxu0 0.0
    %5717 = vmatpush2.msra.mxu0 0.0
    %5718 = vmatprep.subr.mxu0 0.0
    %5719 = vmatpush2.msra.mxu0 0.0
    %5720 = vmatprep.subr.mxu0 0.0
    %5721 = vmatpush2.msra.mxu0 0.0
    %5722 = vmatprep.subr.mxu0 0.0
    %5723 = vmatpush2.msra.mxu0 0.0
    %5724 = vmatprep.subr.mxu0 0.0
    %5725 = vmatpush2.msra.mxu0 0.0
    %5726 = vmatprep.subr.mxu0 0.0
    %5727 = vmatpush2.msra.mxu0 0.0
    %5728 = vmatprep.subr.mxu0 0.0
    %5729 = vmatpush2.msra.mxu0 0.0
    %5730 = vmatprep.subr.mxu0 0.0
    %5731 = vmatpush2.msra.mxu0 0.0
    %5732 = vmatprep.subr.mxu0 0.0
    %5733 = vmatpush2.msra.mxu0 0.0
    %5734 = vmatprep.subr.mxu0 0.0
    %5735 = vmatpush2.msra.mxu0 0.0
    %5736 = vmatprep.subr.mxu0 0.0
    %5737 = vmatpush2.msra.mxu0 0.0
    %5738 = vmatprep.subr.mxu0 0.0
    %5739 = vmatpush2.msra.mxu0 0.0
    %5740 = vmatprep.subr.mxu0 0.0
    %5741 = vmatpush2.msra.mxu0 0.0
    %5742 = vmatprep.subr.mxu0 0.0
    %5743 = vmatpush2.msra.mxu0 0.0
    %5744 = vmatprep.subr.mxu0 0.0
    %5745 = vmatpush2.msra.mxu0 0.0
    %5746 = vmatprep.subr.mxu0 0.0
    %5747 = vmatpush2.msra.mxu0 0.0
    %5748 = vmatprep.mubr.f32.mxu0 0.0
    %v5749 = vand.u32 %v5666, 4294901760
    %v5750 = vsub.f32 %v5666, %v5749
    %v5751 = vand.u32 %v5750, 4294901760
    %v5752 = vsub.f32 %v5750, %v5751
    %v5753 = vand.u32 %v5752, 4294901760
    %5754 = vmatmul.mubr.f32.gmra.mxu0 %v5753
    %v5755 = vpop.f32.mrf.mxu0
    %v5756 = vpop.f32.mrf.mxu0
    %v5757 = vadd.f32 %v679, %v5756
    %5758 = vdwg.mxu0
    %5759 = vmatprep.subr.mxu0 0.0
    %5760 = vmatpush1.msra.mxu0 0.0
    %5761 = vmatprep.subr.mxu0 0.0
    %5762 = vmatpush1.msra.mxu0 0.0
    %5763 = vmatprep.subr.mxu0 0.0
    %5764 = vmatpush1.msra.mxu0 0.0
    %5765 = vmatprep.subr.mxu0 0.0
    %5766 = vmatpush1.msra.mxu0 0.0
    %5767 = vmatprep.subr.mxu0 0.0
    %5768 = vmatpush1.msra.mxu0 0.0
    %5769 = vmatprep.subr.mxu0 0.0
    %5770 = vmatpush1.msra.mxu0 0.0
    %5771 = vmatprep.subr.mxu0 0.0
    %5772 = vmatpush1.msra.mxu0 0.0
    %5773 = vmatprep.subr.mxu0 0.0
    %5774 = vmatpush1.msra.mxu0 0.0
    %v5775 = vand.u32 %v631, 4294901760
    %v5776 = vsub.f32 %v631, %v5775
    %v5777 = vand.u32 %v5776, 4294901760
    %v5778 = vsub.f32 %v5776, %v5777
    %v5779 = vand.u32 %v5778, 4294901760
    %5780 = vmatprep.subr.mxu0 %v5779
    %v5781 = vand.u32 %v630, 4294901760
    %v5782 = vsub.f32 %v630, %v5781
    %v5783 = vand.u32 %v5782, 4294901760
    %v5784 = vsub.f32 %v5782, %v5783
    %v5785 = vand.u32 %v5784, 4294901760
    %5786 = vmatpush1.msra.mxu0 %v5785
    %v5787 = vand.u32 %v629, 4294901760
    %v5788 = vsub.f32 %v629, %v5787
    %v5789 = vand.u32 %v5788, 4294901760
    %v5790 = vsub.f32 %v5788, %v5789
    %v5791 = vand.u32 %v5790, 4294901760
    %5792 = vmatprep.subr.mxu0 %v5791
    %v5793 = vand.u32 %v628, 4294901760
    %v5794 = vsub.f32 %v628, %v5793
    %v5795 = vand.u32 %v5794, 4294901760
    %v5796 = vsub.f32 %v5794, %v5795
    %v5797 = vand.u32 %v5796, 4294901760
    %5798 = vmatpush1.msra.mxu0 %v5797
    %v5799 = vand.u32 %v627, 4294901760
    %v5800 = vsub.f32 %v627, %v5799
    %v5801 = vand.u32 %v5800, 4294901760
    %v5802 = vsub.f32 %v5800, %v5801
    %v5803 = vand.u32 %v5802, 4294901760
    %5804 = vmatprep.subr.mxu0 %v5803
    %v5805 = vand.u32 %v626, 4294901760
    %v5806 = vsub.f32 %v626, %v5805
    %v5807 = vand.u32 %v5806, 4294901760
    %v5808 = vsub.f32 %v5806, %v5807
    %v5809 = vand.u32 %v5808, 4294901760
    %5810 = vmatpush1.msra.mxu0 %v5809
    %v5811 = vand.u32 %v625, 4294901760
    %v5812 = vsub.f32 %v625, %v5811
    %v5813 = vand.u32 %v5812, 4294901760
    %v5814 = vsub.f32 %v5812, %v5813
    %v5815 = vand.u32 %v5814, 4294901760
    %5816 = vmatprep.subr.mxu0 %v5815
    %v5817 = vand.u32 %v624, 4294901760
    %v5818 = vsub.f32 %v624, %v5817
    %v5819 = vand.u32 %v5818, 4294901760
    %v5820 = vsub.f32 %v5818, %v5819
    %v5821 = vand.u32 %v5820, 4294901760
    %5822 = vmatpush1.msra.mxu0 %v5821
    %v5823 = vand.u32 %v623, 4294901760
    %v5824 = vsub.f32 %v623, %v5823
    %v5825 = vand.u32 %v5824, 4294901760
    %v5826 = vsub.f32 %v5824, %v5825
    %v5827 = vand.u32 %v5826, 4294901760
    %5828 = vmatprep.subr.mxu0 %v5827
    %v5829 = vand.u32 %v622, 4294901760
    %v5830 = vsub.f32 %v622, %v5829
    %v5831 = vand.u32 %v5830, 4294901760
    %v5832 = vsub.f32 %v5830, %v5831
    %v5833 = vand.u32 %v5832, 4294901760
    %5834 = vmatpush1.msra.mxu0 %v5833
    %v5835 = vand.u32 %v621, 4294901760
    %v5836 = vsub.f32 %v621, %v5835
    %v5837 = vand.u32 %v5836, 4294901760
    %v5838 = vsub.f32 %v5836, %v5837
    %v5839 = vand.u32 %v5838, 4294901760
    %5840 = vmatprep.subr.mxu0 %v5839
    %v5841 = vand.u32 %v620, 4294901760
    %v5842 = vsub.f32 %v620, %v5841
    %v5843 = vand.u32 %v5842, 4294901760
    %v5844 = vsub.f32 %v5842, %v5843
    %v5845 = vand.u32 %v5844, 4294901760
    %5846 = vmatpush1.msra.mxu0 %v5845
    %v5847 = vand.u32 %v619, 4294901760
    %v5848 = vsub.f32 %v619, %v5847
    %v5849 = vand.u32 %v5848, 4294901760
    %v5850 = vsub.f32 %v5848, %v5849
    %v5851 = vand.u32 %v5850, 4294901760
    %5852 = vmatprep.subr.mxu0 %v5851
    %v5853 = vand.u32 %v618, 4294901760
    %v5854 = vsub.f32 %v618, %v5853
    %v5855 = vand.u32 %v5854, 4294901760
    %v5856 = vsub.f32 %v5854, %v5855
    %v5857 = vand.u32 %v5856, 4294901760
    %5858 = vmatpush1.msra.mxu0 %v5857
    %v5859 = vand.u32 %v617, 4294901760
    %v5860 = vsub.f32 %v617, %v5859
    %v5861 = vand.u32 %v5860, 4294901760
    %v5862 = vsub.f32 %v5860, %v5861
    %v5863 = vand.u32 %v5862, 4294901760
    %5864 = vmatprep.subr.mxu0 %v5863
    %v5865 = vand.u32 %v616, 4294901760
    %v5866 = vsub.f32 %v616, %v5865
    %v5867 = vand.u32 %v5866, 4294901760
    %v5868 = vsub.f32 %v5866, %v5867
    %v5869 = vand.u32 %v5868, 4294901760
    %5870 = vmatpush1.msra.mxu0 %v5869
    %5871 = vmatprep.subr.mxu0 0.0
    %5872 = vmatpush2.msra.mxu0 0.0
    %5873 = vmatprep.subr.mxu0 0.0
    %5874 = vmatpush2.msra.mxu0 0.0
    %5875 = vmatprep.subr.mxu0 0.0
    %5876 = vmatpush2.msra.mxu0 0.0
    %5877 = vmatprep.subr.mxu0 0.0
    %5878 = vmatpush2.msra.mxu0 0.0
    %5879 = vmatprep.subr.mxu0 0.0
    %5880 = vmatpush2.msra.mxu0 0.0
    %5881 = vmatprep.subr.mxu0 0.0
    %5882 = vmatpush2.msra.mxu0 0.0
    %5883 = vmatprep.subr.mxu0 0.0
    %5884 = vmatpush2.msra.mxu0 0.0
    %5885 = vmatprep.subr.mxu0 0.0
    %5886 = vmatpush2.msra.mxu0 0.0
    %5887 = vmatprep.subr.mxu0 0.0
    %5888 = vmatpush2.msra.mxu0 0.0
    %5889 = vmatprep.subr.mxu0 0.0
    %5890 = vmatpush2.msra.mxu0 0.0
    %5891 = vmatprep.subr.mxu0 0.0
    %5892 = vmatpush2.msra.mxu0 0.0
    %5893 = vmatprep.subr.mxu0 0.0
    %5894 = vmatpush2.msra.mxu0 0.0
    %5895 = vmatprep.subr.mxu0 0.0
    %5896 = vmatpush2.msra.mxu0 0.0
    %5897 = vmatprep.subr.mxu0 0.0
    %5898 = vmatpush2.msra.mxu0 0.0
    %5899 = vmatprep.subr.mxu0 0.0
    %5900 = vmatpush2.msra.mxu0 0.0
    %5901 = vmatprep.subr.mxu0 0.0
    %5902 = vmatpush2.msra.mxu0 0.0
    %5903 = vmatprep.mubr.f32.mxu0 0.0
    %v5904 = vand.u32 %v5666, 4294901760
    %5905 = vmatmul.mubr.f32.gmra.mxu0 %v5904
    %v5906 = vpop.f32.mrf.mxu0
    %v5907 = vpop.f32.mrf.mxu0
    %v5908 = vadd.f32 %v5757, %v5907
    %5909 = vdwg.mxu0
    %5910 = vmatprep.subr.mxu0 0.0
    %5911 = vmatpush1.msra.mxu0 0.0
    %5912 = vmatprep.subr.mxu0 0.0
    %5913 = vmatpush1.msra.mxu0 0.0
    %5914 = vmatprep.subr.mxu0 0.0
    %5915 = vmatpush1.msra.mxu0 0.0
    %5916 = vmatprep.subr.mxu0 0.0
    %5917 = vmatpush1.msra.mxu0 0.0
    %5918 = vmatprep.subr.mxu0 0.0
    %5919 = vmatpush1.msra.mxu0 0.0
    %5920 = vmatprep.subr.mxu0 0.0
    %5921 = vmatpush1.msra.mxu0 0.0
    %5922 = vmatprep.subr.mxu0 0.0
    %5923 = vmatpush1.msra.mxu0 0.0
    %5924 = vmatprep.subr.mxu0 0.0
    %5925 = vmatpush1.msra.mxu0 0.0
    %v5926 = vand.u32 %v631, 4294901760
    %v5927 = vsub.f32 %v631, %v5926
    %5928 = vmatprep.subr.mxu0 %v5927
    %v5929 = vand.u32 %v630, 4294901760
    %v5930 = vsub.f32 %v630, %v5929
    %5931 = vmatpush1.msra.mxu0 %v5930
    %v5932 = vand.u32 %v629, 4294901760
    %v5933 = vsub.f32 %v629, %v5932
    %5934 = vmatprep.subr.mxu0 %v5933
    %v5935 = vand.u32 %v628, 4294901760
    %v5936 = vsub.f32 %v628, %v5935
    %5937 = vmatpush1.msra.mxu0 %v5936
    %v5938 = vand.u32 %v627, 4294901760
    %v5939 = vsub.f32 %v627, %v5938
    %5940 = vmatprep.subr.mxu0 %v5939
    %v5941 = vand.u32 %v626, 4294901760
    %v5942 = vsub.f32 %v626, %v5941
    %5943 = vmatpush1.msra.mxu0 %v5942
    %v5944 = vand.u32 %v625, 4294901760
    %v5945 = vsub.f32 %v625, %v5944
    %5946 = vmatprep.subr.mxu0 %v5945
    %v5947 = vand.u32 %v624, 4294901760
    %v5948 = vsub.f32 %v624, %v5947
    %5949 = vmatpush1.msra.mxu0 %v5948
    %v5950 = vand.u32 %v623, 4294901760
    %v5951 = vsub.f32 %v623, %v5950
    %5952 = vmatprep.subr.mxu0 %v5951
    %v5953 = vand.u32 %v622, 4294901760
    %v5954 = vsub.f32 %v622, %v5953
    %5955 = vmatpush1.msra.mxu0 %v5954
    %v5956 = vand.u32 %v621, 4294901760
    %v5957 = vsub.f32 %v621, %v5956
    %5958 = vmatprep.subr.mxu0 %v5957
    %v5959 = vand.u32 %v620, 4294901760
    %v5960 = vsub.f32 %v620, %v5959
    %5961 = vmatpush1.msra.mxu0 %v5960
    %v5962 = vand.u32 %v619, 4294901760
    %v5963 = vsub.f32 %v619, %v5962
    %5964 = vmatprep.subr.mxu0 %v5963
    %v5965 = vand.u32 %v618, 4294901760
    %v5966 = vsub.f32 %v618, %v5965
    %5967 = vmatpush1.msra.mxu0 %v5966
    %v5968 = vand.u32 %v617, 4294901760
    %v5969 = vsub.f32 %v617, %v5968
    %5970 = vmatprep.subr.mxu0 %v5969
    %v5971 = vand.u32 %v616, 4294901760
    %v5972 = vsub.f32 %v616, %v5971
    %5973 = vmatpush1.msra.mxu0 %v5972
    %5974 = vmatprep.subr.mxu0 0.0
    %5975 = vmatpush2.msra.mxu0 0.0
    %5976 = vmatprep.subr.mxu0 0.0
    %5977 = vmatpush2.msra.mxu0 0.0
    %5978 = vmatprep.subr.mxu0 0.0
    %5979 = vmatpush2.msra.mxu0 0.0
    %5980 = vmatprep.subr.mxu0 0.0
    %5981 = vmatpush2.msra.mxu0 0.0
    %5982 = vmatprep.subr.mxu0 0.0
    %5983 = vmatpush2.msra.mxu0 0.0
    %5984 = vmatprep.subr.mxu0 0.0
    %5985 = vmatpush2.msra.mxu0 0.0
    %5986 = vmatprep.subr.mxu0 0.0
    %5987 = vmatpush2.msra.mxu0 0.0
    %5988 = vmatprep.subr.mxu0 0.0
    %5989 = vmatpush2.msra.mxu0 0.0
    %5990 = vmatprep.subr.mxu0 0.0
    %5991 = vmatpush2.msra.mxu0 0.0
    %5992 = vmatprep.subr.mxu0 0.0
    %5993 = vmatpush2.msra.mxu0 0.0
    %5994 = vmatprep.subr.mxu0 0.0
    %5995 = vmatpush2.msra.mxu0 0.0
    %5996 = vmatprep.subr.mxu0 0.0
    %5997 = vmatpush2.msra.mxu0 0.0
    %5998 = vmatprep.subr.mxu0 0.0
    %5999 = vmatpush2.msra.mxu0 0.0
    %6000 = vmatprep.subr.mxu0 0.0
    %6001 = vmatpush2.msra.mxu0 0.0
    %6002 = vmatprep.subr.mxu0 0.0
    %6003 = vmatpush2.msra.mxu0 0.0
    %6004 = vmatprep.subr.mxu0 0.0
    %6005 = vmatpush2.msra.mxu0 0.0
    %6006 = vmatprep.mubr.f32.mxu0 0.0
    %v6007 = vand.u32 %v5666, 4294901760
    %v6008 = vsub.f32 %v5666, %v6007
    %6009 = vmatmul.mubr.f32.gmra.mxu0 %v6008
    %v6010 = vpop.f32.mrf.mxu0
    %v6011 = vpop.f32.mrf.mxu0
    %v6012 = vadd.f32 %v5908, %v6011
    %6013 = vdwg.mxu0
    %6014 = vmatprep.subr.mxu0 0.0
    %6015 = vmatpush1.msra.mxu0 0.0
    %6016 = vmatprep.subr.mxu0 0.0
    %6017 = vmatpush1.msra.mxu0 0.0
    %6018 = vmatprep.subr.mxu0 0.0
    %6019 = vmatpush1.msra.mxu0 0.0
    %6020 = vmatprep.subr.mxu0 0.0
    %6021 = vmatpush1.msra.mxu0 0.0
    %6022 = vmatprep.subr.mxu0 0.0
    %6023 = vmatpush1.msra.mxu0 0.0
    %6024 = vmatprep.subr.mxu0 0.0
    %6025 = vmatpush1.msra.mxu0 0.0
    %6026 = vmatprep.subr.mxu0 0.0
    %6027 = vmatpush1.msra.mxu0 0.0
    %6028 = vmatprep.subr.mxu0 0.0
    %6029 = vmatpush1.msra.mxu0 0.0
    %v6030 = vand.u32 %v631, 4294901760
    %6031 = vmatprep.subr.mxu0 %v6030
    %v6032 = vand.u32 %v630, 4294901760
    %6033 = vmatpush1.msra.mxu0 %v6032
    %v6034 = vand.u32 %v629, 4294901760
    %6035 = vmatprep.subr.mxu0 %v6034
    %v6036 = vand.u32 %v628, 4294901760
    %6037 = vmatpush1.msra.mxu0 %v6036
    %v6038 = vand.u32 %v627, 4294901760
    %6039 = vmatprep.subr.mxu0 %v6038
    %v6040 = vand.u32 %v626, 4294901760
    %6041 = vmatpush1.msra.mxu0 %v6040
    %v6042 = vand.u32 %v625, 4294901760
    %6043 = vmatprep.subr.mxu0 %v6042
    %v6044 = vand.u32 %v624, 4294901760
    %6045 = vmatpush1.msra.mxu0 %v6044
    %v6046 = vand.u32 %v623, 4294901760
    %6047 = vmatprep.subr.mxu0 %v6046
    %v6048 = vand.u32 %v622, 4294901760
    %6049 = vmatpush1.msra.mxu0 %v6048
    %v6050 = vand.u32 %v621, 4294901760
    %6051 = vmatprep.subr.mxu0 %v6050
    %v6052 = vand.u32 %v620, 4294901760
    %6053 = vmatpush1.msra.mxu0 %v6052
    %v6054 = vand.u32 %v619, 4294901760
    %6055 = vmatprep.subr.mxu0 %v6054
    %v6056 = vand.u32 %v618, 4294901760
    %6057 = vmatpush1.msra.mxu0 %v6056
    %v6058 = vand.u32 %v617, 4294901760
    %6059 = vmatprep.subr.mxu0 %v6058
    %v6060 = vand.u32 %v616, 4294901760
    %6061 = vmatpush1.msra.mxu0 %v6060
    %6062 = vmatprep.subr.mxu0 0.0
    %6063 = vmatpush2.msra.mxu0 0.0
    %6064 = vmatprep.subr.mxu0 0.0
    %6065 = vmatpush2.msra.mxu0 0.0
    %6066 = vmatprep.subr.mxu0 0.0
    %6067 = vmatpush2.msra.mxu0 0.0
    %6068 = vmatprep.subr.mxu0 0.0
    %6069 = vmatpush2.msra.mxu0 0.0
    %6070 = vmatprep.subr.mxu0 0.0
    %6071 = vmatpush2.msra.mxu0 0.0
    %6072 = vmatprep.subr.mxu0 0.0
    %6073 = vmatpush2.msra.mxu0 0.0
    %6074 = vmatprep.subr.mxu0 0.0
    %6075 = vmatpush2.msra.mxu0 0.0
    %6076 = vmatprep.subr.mxu0 0.0
    %6077 = vmatpush2.msra.mxu0 0.0
    %6078 = vmatprep.subr.mxu0 0.0
    %6079 = vmatpush2.msra.mxu0 0.0
    %6080 = vmatprep.subr.mxu0 0.0
    %6081 = vmatpush2.msra.mxu0 0.0
    %6082 = vmatprep.subr.mxu0 0.0
    %6083 = vmatpush2.msra.mxu0 0.0
    %6084 = vmatprep.subr.mxu0 0.0
    %6085 = vmatpush2.msra.mxu0 0.0
    %6086 = vmatprep.subr.mxu0 0.0
    %6087 = vmatpush2.msra.mxu0 0.0
    %6088 = vmatprep.subr.mxu0 0.0
    %6089 = vmatpush2.msra.mxu0 0.0
    %6090 = vmatprep.subr.mxu0 0.0
    %6091 = vmatpush2.msra.mxu0 0.0
    %6092 = vmatprep.subr.mxu0 0.0
    %6093 = vmatpush2.msra.mxu0 0.0
    %6094 = vmatprep.mubr.f32.mxu0 0.0
    %v6095 = vand.u32 %v5666, 4294901760
    %v6096 = vsub.f32 %v5666, %v6095
    %v6097 = vand.u32 %v6096, 4294901760
    %6098 = vmatmul.mubr.f32.gmra.mxu0 %v6097
    %v6099 = vpop.f32.mrf.mxu0
    %v6100 = vpop.f32.mrf.mxu0
    %v6101 = vadd.f32 %v6012, %v6100
    %6102 = vdwg.mxu0
    %6103 = vmatprep.subr.mxu0 0.0
    %6104 = vmatpush1.msra.mxu0 0.0
    %6105 = vmatprep.subr.mxu0 0.0
    %6106 = vmatpush1.msra.mxu0 0.0
    %6107 = vmatprep.subr.mxu0 0.0
    %6108 = vmatpush1.msra.mxu0 0.0
    %6109 = vmatprep.subr.mxu0 0.0
    %6110 = vmatpush1.msra.mxu0 0.0
    %6111 = vmatprep.subr.mxu0 0.0
    %6112 = vmatpush1.msra.mxu0 0.0
    %6113 = vmatprep.subr.mxu0 0.0
    %6114 = vmatpush1.msra.mxu0 0.0
    %6115 = vmatprep.subr.mxu0 0.0
    %6116 = vmatpush1.msra.mxu0 0.0
    %6117 = vmatprep.subr.mxu0 0.0
    %6118 = vmatpush1.msra.mxu0 0.0
    %v6119 = vand.u32 %v631, 4294901760
    %v6120 = vsub.f32 %v631, %v6119
    %v6121 = vand.u32 %v6120, 4294901760
    %6122 = vmatprep.subr.mxu0 %v6121
    %v6123 = vand.u32 %v630, 4294901760
    %v6124 = vsub.f32 %v630, %v6123
    %v6125 = vand.u32 %v6124, 4294901760
    %6126 = vmatpush1.msra.mxu0 %v6125
    %v6127 = vand.u32 %v629, 4294901760
    %v6128 = vsub.f32 %v629, %v6127
    %v6129 = vand.u32 %v6128, 4294901760
    %6130 = vmatprep.subr.mxu0 %v6129
    %v6131 = vand.u32 %v628, 4294901760
    %v6132 = vsub.f32 %v628, %v6131
    %v6133 = vand.u32 %v6132, 4294901760
    %6134 = vmatpush1.msra.mxu0 %v6133
    %v6135 = vand.u32 %v627, 4294901760
    %v6136 = vsub.f32 %v627, %v6135
    %v6137 = vand.u32 %v6136, 4294901760
    %6138 = vmatprep.subr.mxu0 %v6137
    %v6139 = vand.u32 %v626, 4294901760
    %v6140 = vsub.f32 %v626, %v6139
    %v6141 = vand.u32 %v6140, 4294901760
    %6142 = vmatpush1.msra.mxu0 %v6141
    %v6143 = vand.u32 %v625, 4294901760
    %v6144 = vsub.f32 %v625, %v6143
    %v6145 = vand.u32 %v6144, 4294901760
    %6146 = vmatprep.subr.mxu0 %v6145
    %v6147 = vand.u32 %v624, 4294901760
    %v6148 = vsub.f32 %v624, %v6147
    %v6149 = vand.u32 %v6148, 4294901760
    %6150 = vmatpush1.msra.mxu0 %v6149
    %v6151 = vand.u32 %v623, 4294901760
    %v6152 = vsub.f32 %v623, %v6151
    %v6153 = vand.u32 %v6152, 4294901760
    %6154 = vmatprep.subr.mxu0 %v6153
    %v6155 = vand.u32 %v622, 4294901760
    %v6156 = vsub.f32 %v622, %v6155
    %v6157 = vand.u32 %v6156, 4294901760
    %6158 = vmatpush1.msra.mxu0 %v6157
    %v6159 = vand.u32 %v621, 4294901760
    %v6160 = vsub.f32 %v621, %v6159
    %v6161 = vand.u32 %v6160, 4294901760
    %6162 = vmatprep.subr.mxu0 %v6161
    %v6163 = vand.u32 %v620, 4294901760
    %v6164 = vsub.f32 %v620, %v6163
    %v6165 = vand.u32 %v6164, 4294901760
    %6166 = vmatpush1.msra.mxu0 %v6165
    %v6167 = vand.u32 %v619, 4294901760
    %v6168 = vsub.f32 %v619, %v6167
    %v6169 = vand.u32 %v6168, 4294901760
    %6170 = vmatprep.subr.mxu0 %v6169
    %v6171 = vand.u32 %v618, 4294901760
    %v6172 = vsub.f32 %v618, %v6171
    %v6173 = vand.u32 %v6172, 4294901760
    %6174 = vmatpush1.msra.mxu0 %v6173
    %v6175 = vand.u32 %v617, 4294901760
    %v6176 = vsub.f32 %v617, %v6175
    %v6177 = vand.u32 %v6176, 4294901760
    %6178 = vmatprep.subr.mxu0 %v6177
    %v6179 = vand.u32 %v616, 4294901760
    %v6180 = vsub.f32 %v616, %v6179
    %v6181 = vand.u32 %v6180, 4294901760
    %6182 = vmatpush1.msra.mxu0 %v6181
    %6183 = vmatprep.subr.mxu0 0.0
    %6184 = vmatpush2.msra.mxu0 0.0
    %6185 = vmatprep.subr.mxu0 0.0
    %6186 = vmatpush2.msra.mxu0 0.0
    %6187 = vmatprep.subr.mxu0 0.0
    %6188 = vmatpush2.msra.mxu0 0.0
    %6189 = vmatprep.subr.mxu0 0.0
    %6190 = vmatpush2.msra.mxu0 0.0
    %6191 = vmatprep.subr.mxu0 0.0
    %6192 = vmatpush2.msra.mxu0 0.0
    %6193 = vmatprep.subr.mxu0 0.0
    %6194 = vmatpush2.msra.mxu0 0.0
    %6195 = vmatprep.subr.mxu0 0.0
    %6196 = vmatpush2.msra.mxu0 0.0
    %6197 = vmatprep.subr.mxu0 0.0
    %6198 = vmatpush2.msra.mxu0 0.0
    %6199 = vmatprep.subr.mxu0 0.0
    %6200 = vmatpush2.msra.mxu0 0.0
    %6201 = vmatprep.subr.mxu0 0.0
    %6202 = vmatpush2.msra.mxu0 0.0
    %6203 = vmatprep.subr.mxu0 0.0
    %6204 = vmatpush2.msra.mxu0 0.0
    %6205 = vmatprep.subr.mxu0 0.0
    %6206 = vmatpush2.msra.mxu0 0.0
    %6207 = vmatprep.subr.mxu0 0.0
    %6208 = vmatpush2.msra.mxu0 0.0
    %6209 = vmatprep.subr.mxu0 0.0
    %6210 = vmatpush2.msra.mxu0 0.0
    %6211 = vmatprep.subr.mxu0 0.0
    %6212 = vmatpush2.msra.mxu0 0.0
    %6213 = vmatprep.subr.mxu0 0.0
    %6214 = vmatpush2.msra.mxu0 0.0
    %6215 = vmatprep.mubr.f32.mxu0 0.0
    %v6216 = vand.u32 %v5666, 4294901760
    %6217 = vmatmul.mubr.f32.gmra.mxu0 %v6216
    %v6218 = vpop.f32.mrf.mxu0
    %v6219 = vpop.f32.mrf.mxu0
    %v6220 = vadd.f32 %v6101, %v6219
    %6221 = vdwg.mxu0
    %6222 = vmatprep.subr.mxu0 0.0
    %6223 = vmatpush1.msra.mxu0 0.0
    %6224 = vmatprep.subr.mxu0 0.0
    %6225 = vmatpush1.msra.mxu0 0.0
    %6226 = vmatprep.subr.mxu0 0.0
    %6227 = vmatpush1.msra.mxu0 0.0
    %6228 = vmatprep.subr.mxu0 0.0
    %6229 = vmatpush1.msra.mxu0 0.0
    %6230 = vmatprep.subr.mxu0 0.0
    %6231 = vmatpush1.msra.mxu0 0.0
    %6232 = vmatprep.subr.mxu0 0.0
    %6233 = vmatpush1.msra.mxu0 0.0
    %6234 = vmatprep.subr.mxu0 0.0
    %6235 = vmatpush1.msra.mxu0 0.0
    %6236 = vmatprep.subr.mxu0 0.0
    %6237 = vmatpush1.msra.mxu0 0.0
    %v6238 = vand.u32 %v631, 4294901760
    %6239 = vmatprep.subr.mxu0 %v6238
    %v6240 = vand.u32 %v630, 4294901760
    %6241 = vmatpush1.msra.mxu0 %v6240
    %v6242 = vand.u32 %v629, 4294901760
    %6243 = vmatprep.subr.mxu0 %v6242
    %v6244 = vand.u32 %v628, 4294901760
    %6245 = vmatpush1.msra.mxu0 %v6244
    %v6246 = vand.u32 %v627, 4294901760
    %6247 = vmatprep.subr.mxu0 %v6246
    %v6248 = vand.u32 %v626, 4294901760
    %6249 = vmatpush1.msra.mxu0 %v6248
    %v6250 = vand.u32 %v625, 4294901760
    %6251 = vmatprep.subr.mxu0 %v6250
    %v6252 = vand.u32 %v624, 4294901760
    %6253 = vmatpush1.msra.mxu0 %v6252
    %v6254 = vand.u32 %v623, 4294901760
    %6255 = vmatprep.subr.mxu0 %v6254
    %v6256 = vand.u32 %v622, 4294901760
    %6257 = vmatpush1.msra.mxu0 %v6256
    %v6258 = vand.u32 %v621, 4294901760
    %6259 = vmatprep.subr.mxu0 %v6258
    %v6260 = vand.u32 %v620, 4294901760
    %6261 = vmatpush1.msra.mxu0 %v6260
    %v6262 = vand.u32 %v619, 4294901760
    %6263 = vmatprep.subr.mxu0 %v6262
    %v6264 = vand.u32 %v618, 4294901760
    %6265 = vmatpush1.msra.mxu0 %v6264
    %v6266 = vand.u32 %v617, 4294901760
    %6267 = vmatprep.subr.mxu0 %v6266
    %v6268 = vand.u32 %v616, 4294901760
    %6269 = vmatpush1.msra.mxu0 %v6268
    %6270 = vmatprep.subr.mxu0 0.0
    %6271 = vmatpush2.msra.mxu0 0.0
    %6272 = vmatprep.subr.mxu0 0.0
    %6273 = vmatpush2.msra.mxu0 0.0
    %6274 = vmatprep.subr.mxu0 0.0
    %6275 = vmatpush2.msra.mxu0 0.0
    %6276 = vmatprep.subr.mxu0 0.0
    %6277 = vmatpush2.msra.mxu0 0.0
    %6278 = vmatprep.subr.mxu0 0.0
    %6279 = vmatpush2.msra.mxu0 0.0
    %6280 = vmatprep.subr.mxu0 0.0
    %6281 = vmatpush2.msra.mxu0 0.0
    %6282 = vmatprep.subr.mxu0 0.0
    %6283 = vmatpush2.msra.mxu0 0.0
    %6284 = vmatprep.subr.mxu0 0.0
    %6285 = vmatpush2.msra.mxu0 0.0
    %6286 = vmatprep.subr.mxu0 0.0
    %6287 = vmatpush2.msra.mxu0 0.0
    %6288 = vmatprep.subr.mxu0 0.0
    %6289 = vmatpush2.msra.mxu0 0.0
    %6290 = vmatprep.subr.mxu0 0.0
    %6291 = vmatpush2.msra.mxu0 0.0
    %6292 = vmatprep.subr.mxu0 0.0
    %6293 = vmatpush2.msra.mxu0 0.0
    %6294 = vmatprep.subr.mxu0 0.0
    %6295 = vmatpush2.msra.mxu0 0.0
    %6296 = vmatprep.subr.mxu0 0.0
    %6297 = vmatpush2.msra.mxu0 0.0
    %6298 = vmatprep.subr.mxu0 0.0
    %6299 = vmatpush2.msra.mxu0 0.0
    %6300 = vmatprep.subr.mxu0 0.0
    %6301 = vmatpush2.msra.mxu0 0.0
    %6302 = vmatprep.mubr.f32.mxu0 0.0
    %v6303 = vand.u32 %v5666, 4294901760
    %6304 = vmatmul.mubr.f32.gmra.mxu0 %v6303
    %v6305 = vpop.f32.mrf.mxu0
    %v6306 = vpop.f32.mrf.mxu0
    %v6307 = vadd.f32 %v6220, %v6306
    %6308 = vdwg.mxu0
    %v6309 = vxor.u32 %v6307, 2147483648
    %v6310 = vmul.f32 %v6309, 1.442695
    %v6311 = vpow.pop %v6310
    %v6312 = vadd.f32 %v6311, 1.0
    %v6313 = vrcp.pop %v6312
    %v6314 = vmul.f32 1.0, %v6313
    %v6315 = vtanh.pop %v6307
    %v6316 = vmul.f32 %v6314, %v5649
    %6318 = vrot.lane.b32.xlu0 %v6315, 64
    %v6319 = vpop.permute.xlu0 %6318
    %v6321 = vmul.f32 %v6314, %v6319
    %6323 = vrot.lane.b32.xlu0 %v6321, 32
    %v6324 = vpop.permute.xlu0 %6323
    %v6326 = vadd.f32 %v6316, %v6324
    %v6327 = vtanh.pop %v6326
    %6329 = vrot.lane.b32.xlu0 %v6327, 64
    %v6330 = vpop.permute.xlu0 %6329
    %v6332 = vmul.f32 %v6314, %v6330
    %v6334 = vunpack.c.l.s4 1966171168
    %v6335 = vunpack.c.0.s8 %v6334
    %v6336 = vlaneseq
    %v6337 = vshrl.u32 %v6336, 7
    %v6338 = vsub.s32 %v6335, %v6337
    %v6339 = vrot.slane %v1383, %v6338
    %v6340 = vcombine.high %v6339, %v6339
    %v6342 = vunpack.c.l.s4 1966171168
    %v6343 = vunpack.c.0.s8 %v6342
    %v6344 = vlaneseq
    %v6345 = vshrl.u32 %v6344, 7
    %v6346 = vsub.s32 %v6343, %v6345
    %v6347 = vrot.slane %v6339, %v6346
    %v6349 = vunpack.c.l.s4 1966171168
    %v6350 = vunpack.c.0.s8 %v6349
    %v6351 = vlaneseq
    %v6352 = vshrl.u32 %v6351, 7
    %v6353 = vsub.s32 %v6350, %v6352
    %v6354 = vrot.slane %v6340, %v6353
    %v6358 = vunpack.c.l.s4 1966171168
    %v6359 = vunpack.c.0.s8 %v6358
    %v6360 = vlaneseq
    %v6361 = vshrl.u32 %v6360, 7
    %v6362 = vsub.s32 %v6359, %v6361
    %v6363 = vrot.slane %v2095, %v6362
    %v6364 = vcombine.high %v6363, %v6363
    %v6366 = vunpack.c.l.s4 1966171168
    %v6367 = vunpack.c.0.s8 %v6366
    %v6368 = vlaneseq
    %v6369 = vshrl.u32 %v6368, 7
    %v6370 = vsub.s32 %v6367, %v6369
    %v6371 = vrot.slane %v6363, %v6370
    %v6373 = vunpack.c.l.s4 1966171168
    %v6374 = vunpack.c.0.s8 %v6373
    %v6375 = vlaneseq
    %v6376 = vshrl.u32 %v6375, 7
    %v6377 = vsub.s32 %v6374, %v6376
    %v6378 = vrot.slane %v6364, %v6377
    %v6380 = vunpack.c.l.s4 1966171168
    %v6381 = vunpack.c.0.s8 %v6380
    %v6382 = vlaneseq
    %v6383 = vshrl.u32 %v6382, 7
    %v6384 = vsub.s32 %v6381, %v6383
    %v6385 = vrot.slane %v2807, %v6384
    %v6386 = vcombine.high %v6385, %v6385
    %v6388 = vunpack.c.l.s4 1966171168
    %v6389 = vunpack.c.0.s8 %v6388
    %v6390 = vlaneseq
    %v6391 = vshrl.u32 %v6390, 7
    %v6392 = vsub.s32 %v6389, %v6391
    %v6393 = vrot.slane %v6385, %v6392
    %v6395 = vunpack.c.l.s4 1966171168
    %v6396 = vunpack.c.0.s8 %v6395
    %v6397 = vlaneseq
    %v6398 = vshrl.u32 %v6397, 7
    %v6399 = vsub.s32 %v6396, %v6398
    %v6400 = vrot.slane %v6386, %v6399
    %v6402 = vunpack.c.l.s4 1966171168
    %v6403 = vunpack.c.0.s8 %v6402
    %v6404 = vlaneseq
    %v6405 = vshrl.u32 %v6404, 7
    %v6406 = vsub.s32 %v6403, %v6405
    %v6407 = vrot.slane %v3519, %v6406
    %v6408 = vcombine.high %v6407, %v6407
    %v6410 = vunpack.c.l.s4 1966171168
    %v6411 = vunpack.c.0.s8 %v6410
    %v6412 = vlaneseq
    %v6413 = vshrl.u32 %v6412, 7
    %v6414 = vsub.s32 %v6411, %v6413
    %v6415 = vrot.slane %v6407, %v6414
    %v6417 = vunpack.c.l.s4 1966171168
    %v6418 = vunpack.c.0.s8 %v6417
    %v6419 = vlaneseq
    %v6420 = vshrl.u32 %v6419, 7
    %v6421 = vsub.s32 %v6418, %v6420
    %v6422 = vrot.slane %v6408, %v6421
    %v6424 = vunpack.c.l.s4 1966171168
    %v6425 = vunpack.c.0.s8 %v6424
    %v6426 = vlaneseq
    %v6427 = vshrl.u32 %v6426, 7
    %v6428 = vsub.s32 %v6425, %v6427
    %v6429 = vrot.slane %v4231, %v6428
    %v6430 = vcombine.high %v6429, %v6429
    %v6432 = vunpack.c.l.s4 1966171168
    %v6433 = vunpack.c.0.s8 %v6432
    %v6434 = vlaneseq
    %v6435 = vshrl.u32 %v6434, 7
    %v6436 = vsub.s32 %v6433, %v6435
    %v6437 = vrot.slane %v6429, %v6436
    %v6439 = vunpack.c.l.s4 1966171168
    %v6440 = vunpack.c.0.s8 %v6439
    %v6441 = vlaneseq
    %v6442 = vshrl.u32 %v6441, 7
    %v6443 = vsub.s32 %v6440, %v6442
    %v6444 = vrot.slane %v6430, %v6443
    %v6446 = vunpack.c.l.s4 1966171168
    %v6447 = vunpack.c.0.s8 %v6446
    %v6448 = vlaneseq
    %v6449 = vshrl.u32 %v6448, 7
    %v6450 = vsub.s32 %v6447, %v6449
    %v6451 = vrot.slane %v4943, %v6450
    %v6452 = vcombine.high %v6451, %v6451
    %v6454 = vunpack.c.l.s4 1966171168
    %v6455 = vunpack.c.0.s8 %v6454
    %v6456 = vlaneseq
    %v6457 = vshrl.u32 %v6456, 7
    %v6458 = vsub.s32 %v6455, %v6457
    %v6459 = vrot.slane %v6451, %v6458
    %v6461 = vunpack.c.l.s4 1966171168
    %v6462 = vunpack.c.0.s8 %v6461
    %v6463 = vlaneseq
    %v6464 = vshrl.u32 %v6463, 7
    %v6465 = vsub.s32 %v6462, %v6464
    %v6466 = vrot.slane %v6452, %v6465
    %v6468 = vunpack.c.l.s4 1966171168
    %v6469 = vunpack.c.0.s8 %v6468
    %v6470 = vlaneseq
    %v6471 = vshrl.u32 %v6470, 7
    %v6472 = vsub.s32 %v6469, %v6471
    %v6473 = vrot.slane %v5655, %v6472
    %v6474 = vcombine.high %v6473, %v6473
    %v6476 = vunpack.c.l.s4 1966171168
    %v6477 = vunpack.c.0.s8 %v6476
    %v6478 = vlaneseq
    %v6479 = vshrl.u32 %v6478, 7
    %v6480 = vsub.s32 %v6477, %v6479
    %v6481 = vrot.slane %v6473, %v6480
    %v6483 = vunpack.c.l.s4 1966171168
    %v6484 = vunpack.c.0.s8 %v6483
    %v6485 = vlaneseq
    %v6486 = vshrl.u32 %v6485, 7
    %v6487 = vsub.s32 %v6484, %v6486
    %v6488 = vrot.slane %v6474, %v6487
    %v6491 = vunpack.c.l.s4 1966171168
    %v6492 = vunpack.c.0.s8 %v6491
    %v6493 = vlaneseq
    %v6494 = vshrl.u32 %v6493, 7
    %v6495 = vsub.s32 %v6492, %v6494
    %v6496 = vrot.slane %v6332, %v6495
    %v6497 = vcombine.high %v6496, %v6496
    %v6499 = vunpack.c.l.s4 1966171168
    %v6500 = vunpack.c.0.s8 %v6499
    %v6501 = vlaneseq
    %v6502 = vshrl.u32 %v6501, 7
    %v6503 = vsub.s32 %v6500, %v6502
    %v6504 = vrot.slane %v6496, %v6503
    %v6506 = vunpack.c.l.s4 1966171168
    %v6507 = vunpack.c.0.s8 %v6506
    %v6508 = vlaneseq
    %v6509 = vshrl.u32 %v6508, 7
    %v6510 = vsub.s32 %v6507, %v6509
    %v6511 = vrot.slane %v6497, %v6510
    %v6512 = vlaneseq
    %v6513 = vshrl.u32 %v6512, 7
    %v6514 = vsub.s32 0, %v6513
    %v6515 = vrot.slane %v6371, %v6514
    %v6516 = vlaneseq
    %v6517 = vshrl.u32 %v6516, 7
    %v6518 = vsub.s32 0, %v6517
    %v6519 = vrot.slane %v6378, %v6518
    %v6522 = vlaneseq
    %v6523 = vshrl.u32 %v6522, 7
    %v6524 = vsub.s32 0, %v6523
    %v6525 = vrot.slane %v6393, %v6524
    %v6526 = vlaneseq
    %v6527 = vshrl.u32 %v6526, 7
    %v6528 = vsub.s32 0, %v6527
    %v6529 = vrot.slane %v6400, %v6528
    %v6532 = vlaneseq
    %v6533 = vshrl.u32 %v6532, 7
    %v6534 = vsub.s32 0, %v6533
    %v6535 = vrot.slane %v6415, %v6534
    %v6536 = vlaneseq
    %v6537 = vshrl.u32 %v6536, 7
    %v6538 = vsub.s32 0, %v6537
    %v6539 = vrot.slane %v6422, %v6538
    %v6542 = vlaneseq
    %v6543 = vshrl.u32 %v6542, 7
    %v6544 = vsub.s32 0, %v6543
    %v6545 = vrot.slane %v6437, %v6544
    %v6546 = vlaneseq
    %v6547 = vshrl.u32 %v6546, 7
    %v6548 = vsub.s32 0, %v6547
    %v6549 = vrot.slane %v6444, %v6548
    %v6552 = vlaneseq
    %v6553 = vshrl.u32 %v6552, 7
    %v6554 = vsub.s32 0, %v6553
    %v6555 = vrot.slane %v6459, %v6554
    %v6556 = vlaneseq
    %v6557 = vshrl.u32 %v6556, 7
    %v6558 = vsub.s32 0, %v6557
    %v6559 = vrot.slane %v6466, %v6558
    %v6562 = vlaneseq
    %v6563 = vshrl.u32 %v6562, 7
    %v6564 = vsub.s32 0, %v6563
    %v6565 = vrot.slane %v6481, %v6564
    %v6566 = vlaneseq
    %v6567 = vshrl.u32 %v6566, 7
    %v6568 = vsub.s32 0, %v6567
    %v6569 = vrot.slane %v6488, %v6568
    %v6572 = vlaneseq
    %v6573 = vshrl.u32 %v6572, 7
    %v6574 = vsub.s32 0, %v6573
    %v6575 = vrot.slane %v6504, %v6574
    %v6576 = vlaneseq
    %v6577 = vshrl.u32 %v6576, 7
    %v6578 = vsub.s32 0, %v6577
    %v6579 = vrot.slane %v6511, %v6578
    %vm6582 = vcmask 1040384
    %v6583 = vsel %vm6582, %v6347, %v6515
    %v6584 = vsel %vm6582, %v6354, %v6519
    %vm6585 = vcmask 1041408
    %v6586 = vsel %vm6585, %v6583, %v6525
    %v6587 = vsel %vm6585, %v6584, %v6529
    %vm6588 = vcmask 1042432
    %v6589 = vsel %vm6588, %v6586, %v6535
    %v6590 = vsel %vm6588, %v6587, %v6539
    %vm6591 = vcmask 1043456
    %v6592 = vsel %vm6591, %v6589, %v6545
    %v6593 = vsel %vm6591, %v6590, %v6549
    %vm6594 = vcmask 1044480
    %v6595 = vsel %vm6594, %v6592, %v6555
    %v6596 = vsel %vm6594, %v6593, %v6559
    %vm6597 = vcmask 1045504
    %v6598 = vsel %vm6597, %v6595, %v6565
    %v6599 = vsel %vm6597, %v6596, %v6569
    %vm6600 = vcmask 1046528
    %v6601 = vsel %vm6600, %v6598, %v6575
    %v6602 = vsel %vm6600, %v6599, %v6579
    %v6603 = vld [vmem:[%s5] sm:$0xff]
    %v6604 = vld [vmem:[%s5 + $0x8] sm:$0xff]
    %v6605 = vld [vmem:[%s5 + $0x10] sm:$0xff]
    %v6606 = vld [vmem:[%s5 + $0x18] sm:$0xff]
    %v6607 = vld [vmem:[%s6] sm:$0x1]
    %v6609 = vlaneseq
    %v6610 = vshrl.u32 %v6609, 7
    %v6611 = vsub.s32 0, %v6610
    %v6612 = vrot.slane %v6607, %v6611
    %6616 = vrot.lane.b32.xlu0 %v6601, 32
    %v6617 = vpop.permute.xlu0 %6616
    %6618 = vrot.lane.b32.xlu0 %v6602, 32
    %v6619 = vpop.permute.xlu0 %6618
    %v6620 = vsel %vm674, %v6617, 0
    %v6622 = vsel %vm674, %v6619, 0
    %6624 = vmatprep.subr.mxu0 0.0
    %6625 = vmatpush1.msra.mxu0 0.0
    %6626 = vmatprep.subr.mxu0 0.0
    %6627 = vmatpush1.msra.mxu0 0.0
    %6628 = vmatprep.subr.mxu0 0.0
    %6629 = vmatpush1.msra.mxu0 0.0
    %6630 = vmatprep.subr.mxu0 0.0
    %6631 = vmatpush1.msra.mxu0 0.0
    %6632 = vmatprep.subr.mxu0 0.0
    %6633 = vmatpush1.msra.mxu0 0.0
    %6634 = vmatprep.subr.mxu0 0.0
    %6635 = vmatpush1.msra.mxu0 0.0
    %6636 = vmatprep.subr.mxu0 0.0
    %6637 = vmatpush1.msra.mxu0 0.0
    %6638 = vmatprep.subr.mxu0 0.0
    %6639 = vmatpush1.msra.mxu0 0.0
    %6640 = vmatprep.subr.mxu0 0.0
    %6641 = vmatpush1.msra.mxu0 0.0
    %6642 = vmatprep.subr.mxu0 0.0
    %6643 = vmatpush1.msra.mxu0 0.0
    %6644 = vmatprep.subr.mxu0 0.0
    %6645 = vmatpush1.msra.mxu0 0.0
    %6646 = vmatprep.subr.mxu0 0.0
    %6647 = vmatpush1.msra.mxu0 0.0
    %6648 = vmatprep.subr.mxu0 0.0
    %v6649 = vand.u32 %v6606, 4294901760
    %6650 = vmatpush1.msra.mxu0 %v6649
    %6651 = vmatprep.subr.mxu0 0.0
    %v6652 = vand.u32 %v6605, 4294901760
    %6653 = vmatpush1.msra.mxu0 %v6652
    %6654 = vmatprep.subr.mxu0 0.0
    %v6655 = vand.u32 %v6604, 4294901760
    %6656 = vmatpush1.msra.mxu0 %v6655
    %6657 = vmatprep.subr.mxu0 0.0
    %v6658 = vand.u32 %v6603, 4294901760
    %6659 = vmatpush1.msra.mxu0 %v6658
    %6660 = vmatprep.subr.mxu0 0.0
    %6661 = vmatpush2.msra.mxu0 0.0
    %6662 = vmatprep.subr.mxu0 0.0
    %6663 = vmatpush2.msra.mxu0 0.0
    %6664 = vmatprep.subr.mxu0 0.0
    %6665 = vmatpush2.msra.mxu0 0.0
    %6666 = vmatprep.subr.mxu0 0.0
    %6667 = vmatpush2.msra.mxu0 0.0
    %6668 = vmatprep.subr.mxu0 0.0
    %6669 = vmatpush2.msra.mxu0 0.0
    %6670 = vmatprep.subr.mxu0 0.0
    %6671 = vmatpush2.msra.mxu0 0.0
    %6672 = vmatprep.subr.mxu0 0.0
    %6673 = vmatpush2.msra.mxu0 0.0
    %6674 = vmatprep.subr.mxu0 0.0
    %6675 = vmatpush2.msra.mxu0 0.0
    %6676 = vmatprep.subr.mxu0 0.0
    %6677 = vmatpush2.msra.mxu0 0.0
    %6678 = vmatprep.subr.mxu0 0.0
    %6679 = vmatpush2.msra.mxu0 0.0
    %6680 = vmatprep.subr.mxu0 0.0
    %6681 = vmatpush2.msra.mxu0 0.0
    %6682 = vmatprep.subr.mxu0 0.0
    %6683 = vmatpush2.msra.mxu0 0.0
    %6684 = vmatprep.subr.mxu0 0.0
    %6685 = vmatpush2.msra.mxu0 0.0
    %6686 = vmatprep.subr.mxu0 0.0
    %6687 = vmatpush2.msra.mxu0 0.0
    %6688 = vmatprep.subr.mxu0 0.0
    %6689 = vmatpush2.msra.mxu0 0.0
    %6690 = vmatprep.subr.mxu0 0.0
    %6691 = vmatpush2.msra.mxu0 0.0
    %6692 = vmatprep.mubr.f32.mxu0 0.0
    %v6693 = vand.u32 %v6620, 4294901760
    %v6694 = vsub.f32 %v6620, %v6693
    %v6695 = vand.u32 %v6694, 4294901760
    %v6696 = vsub.f32 %v6694, %v6695
    %v6697 = vand.u32 %v6696, 4294901760
    %6698 = vmatmul.mubr.f32.gmra.mxu0 %v6697
    %v6699 = vpop.f32.mrf.mxu0
    %v6700 = vadd.f32 %v6612, %v6699
    %v6701 = vpop.f32.mrf.mxu0
    %6702 = vmatprep.mubr.f32.mxu0 0.0
    %v6703 = vand.u32 %v6622, 4294901760
    %v6704 = vsub.f32 %v6622, %v6703
    %v6705 = vand.u32 %v6704, 4294901760
    %v6706 = vsub.f32 %v6704, %v6705
    %v6707 = vand.u32 %v6706, 4294901760
    %6708 = vmatmul.mubr.f32.gmra.mxu0 %v6707
    %v6709 = vpop.f32.mrf.mxu0
    %v6710 = vadd.f32 %v6612, %v6709
    %v6711 = vpop.f32.mrf.mxu0
    %6712 = vdwg.mxu0
    %6713 = vmatprep.subr.mxu0 0.0
    %6714 = vmatpush1.msra.mxu0 0.0
    %6715 = vmatprep.subr.mxu0 0.0
    %6716 = vmatpush1.msra.mxu0 0.0
    %6717 = vmatprep.subr.mxu0 0.0
    %6718 = vmatpush1.msra.mxu0 0.0
    %6719 = vmatprep.subr.mxu0 0.0
    %6720 = vmatpush1.msra.mxu0 0.0
    %6721 = vmatprep.subr.mxu0 0.0
    %6722 = vmatpush1.msra.mxu0 0.0
    %6723 = vmatprep.subr.mxu0 0.0
    %6724 = vmatpush1.msra.mxu0 0.0
    %6725 = vmatprep.subr.mxu0 0.0
    %6726 = vmatpush1.msra.mxu0 0.0
    %6727 = vmatprep.subr.mxu0 0.0
    %6728 = vmatpush1.msra.mxu0 0.0
    %6729 = vmatprep.subr.mxu0 0.0
    %6730 = vmatpush1.msra.mxu0 0.0
    %6731 = vmatprep.subr.mxu0 0.0
    %6732 = vmatpush1.msra.mxu0 0.0
    %6733 = vmatprep.subr.mxu0 0.0
    %6734 = vmatpush1.msra.mxu0 0.0
    %6735 = vmatprep.subr.mxu0 0.0
    %6736 = vmatpush1.msra.mxu0 0.0
    %6737 = vmatprep.subr.mxu0 0.0
    %v6738 = vand.u32 %v6606, 4294901760
    %v6739 = vsub.f32 %v6606, %v6738
    %v6740 = vand.u32 %v6739, 4294901760
    %v6741 = vsub.f32 %v6739, %v6740
    %v6742 = vand.u32 %v6741, 4294901760
    %6743 = vmatpush1.msra.mxu0 %v6742
    %6744 = vmatprep.subr.mxu0 0.0
    %v6745 = vand.u32 %v6605, 4294901760
    %v6746 = vsub.f32 %v6605, %v6745
    %v6747 = vand.u32 %v6746, 4294901760
    %v6748 = vsub.f32 %v6746, %v6747
    %v6749 = vand.u32 %v6748, 4294901760
    %6750 = vmatpush1.msra.mxu0 %v6749
    %6751 = vmatprep.subr.mxu0 0.0
    %v6752 = vand.u32 %v6604, 4294901760
    %v6753 = vsub.f32 %v6604, %v6752
    %v6754 = vand.u32 %v6753, 4294901760
    %v6755 = vsub.f32 %v6753, %v6754
    %v6756 = vand.u32 %v6755, 4294901760
    %6757 = vmatpush1.msra.mxu0 %v6756
    %6758 = vmatprep.subr.mxu0 0.0
    %v6759 = vand.u32 %v6603, 4294901760
    %v6760 = vsub.f32 %v6603, %v6759
    %v6761 = vand.u32 %v6760, 4294901760
    %v6762 = vsub.f32 %v6760, %v6761
    %v6763 = vand.u32 %v6762, 4294901760
    %6764 = vmatpush1.msra.mxu0 %v6763
    %6765 = vmatprep.subr.mxu0 0.0
    %6766 = vmatpush2.msra.mxu0 0.0
    %6767 = vmatprep.subr.mxu0 0.0
    %6768 = vmatpush2.msra.mxu0 0.0
    %6769 = vmatprep.subr.mxu0 0.0
    %6770 = vmatpush2.msra.mxu0 0.0
    %6771 = vmatprep.subr.mxu0 0.0
    %6772 = vmatpush2.msra.mxu0 0.0
    %6773 = vmatprep.subr.mxu0 0.0
    %6774 = vmatpush2.msra.mxu0 0.0
    %6775 = vmatprep.subr.mxu0 0.0
    %6776 = vmatpush2.msra.mxu0 0.0
    %6777 = vmatprep.subr.mxu0 0.0
    %6778 = vmatpush2.msra.mxu0 0.0
    %6779 = vmatprep.subr.mxu0 0.0
    %6780 = vmatpush2.msra.mxu0 0.0
    %6781 = vmatprep.subr.mxu0 0.0
    %6782 = vmatpush2.msra.mxu0 0.0
    %6783 = vmatprep.subr.mxu0 0.0
    %6784 = vmatpush2.msra.mxu0 0.0
    %6785 = vmatprep.subr.mxu0 0.0
    %6786 = vmatpush2.msra.mxu0 0.0
    %6787 = vmatprep.subr.mxu0 0.0
    %6788 = vmatpush2.msra.mxu0 0.0
    %6789 = vmatprep.subr.mxu0 0.0
    %6790 = vmatpush2.msra.mxu0 0.0
    %6791 = vmatprep.subr.mxu0 0.0
    %6792 = vmatpush2.msra.mxu0 0.0
    %6793 = vmatprep.subr.mxu0 0.0
    %6794 = vmatpush2.msra.mxu0 0.0
    %6795 = vmatprep.subr.mxu0 0.0
    %6796 = vmatpush2.msra.mxu0 0.0
    %6797 = vmatprep.mubr.f32.mxu0 0.0
    %v6798 = vand.u32 %v6620, 4294901760
    %6799 = vmatmul.mubr.f32.gmra.mxu0 %v6798
    %v6800 = vpop.f32.mrf.mxu0
    %v6801 = vadd.f32 %v6700, %v6800
    %v6802 = vpop.f32.mrf.mxu0
    %6803 = vmatprep.mubr.f32.mxu0 0.0
    %v6804 = vand.u32 %v6622, 4294901760
    %6805 = vmatmul.mubr.f32.gmra.mxu0 %v6804
    %v6806 = vpop.f32.mrf.mxu0
    %v6807 = vadd.f32 %v6710, %v6806
    %v6808 = vpop.f32.mrf.mxu0
    %6809 = vdwg.mxu0
    %6810 = vmatprep.subr.mxu0 0.0
    %6811 = vmatpush1.msra.mxu0 0.0
    %6812 = vmatprep.subr.mxu0 0.0
    %6813 = vmatpush1.msra.mxu0 0.0
    %6814 = vmatprep.subr.mxu0 0.0
    %6815 = vmatpush1.msra.mxu0 0.0
    %6816 = vmatprep.subr.mxu0 0.0
    %6817 = vmatpush1.msra.mxu0 0.0
    %6818 = vmatprep.subr.mxu0 0.0
    %6819 = vmatpush1.msra.mxu0 0.0
    %6820 = vmatprep.subr.mxu0 0.0
    %6821 = vmatpush1.msra.mxu0 0.0
    %6822 = vmatprep.subr.mxu0 0.0
    %6823 = vmatpush1.msra.mxu0 0.0
    %6824 = vmatprep.subr.mxu0 0.0
    %6825 = vmatpush1.msra.mxu0 0.0
    %6826 = vmatprep.subr.mxu0 0.0
    %6827 = vmatpush1.msra.mxu0 0.0
    %6828 = vmatprep.subr.mxu0 0.0
    %6829 = vmatpush1.msra.mxu0 0.0
    %6830 = vmatprep.subr.mxu0 0.0
    %6831 = vmatpush1.msra.mxu0 0.0
    %6832 = vmatprep.subr.mxu0 0.0
    %6833 = vmatpush1.msra.mxu0 0.0
    %6834 = vmatprep.subr.mxu0 0.0
    %v6835 = vand.u32 %v6606, 4294901760
    %v6836 = vsub.f32 %v6606, %v6835
    %6837 = vmatpush1.msra.mxu0 %v6836
    %6838 = vmatprep.subr.mxu0 0.0
    %v6839 = vand.u32 %v6605, 4294901760
    %v6840 = vsub.f32 %v6605, %v6839
    %6841 = vmatpush1.msra.mxu0 %v6840
    %6842 = vmatprep.subr.mxu0 0.0
    %v6843 = vand.u32 %v6604, 4294901760
    %v6844 = vsub.f32 %v6604, %v6843
    %6845 = vmatpush1.msra.mxu0 %v6844
    %6846 = vmatprep.subr.mxu0 0.0
    %v6847 = vand.u32 %v6603, 4294901760
    %v6848 = vsub.f32 %v6603, %v6847
    %6849 = vmatpush1.msra.mxu0 %v6848
    %6850 = vmatprep.subr.mxu0 0.0
    %6851 = vmatpush2.msra.mxu0 0.0
    %6852 = vmatprep.subr.mxu0 0.0
    %6853 = vmatpush2.msra.mxu0 0.0
    %6854 = vmatprep.subr.mxu0 0.0
    %6855 = vmatpush2.msra.mxu0 0.0
    %6856 = vmatprep.subr.mxu0 0.0
    %6857 = vmatpush2.msra.mxu0 0.0
    %6858 = vmatprep.subr.mxu0 0.0
    %6859 = vmatpush2.msra.mxu0 0.0
    %6860 = vmatprep.subr.mxu0 0.0
    %6861 = vmatpush2.msra.mxu0 0.0
    %6862 = vmatprep.subr.mxu0 0.0
    %6863 = vmatpush2.msra.mxu0 0.0
    %6864 = vmatprep.subr.mxu0 0.0
    %6865 = vmatpush2.msra.mxu0 0.0
    %6866 = vmatprep.subr.mxu0 0.0
    %6867 = vmatpush2.msra.mxu0 0.0
    %6868 = vmatprep.subr.mxu0 0.0
    %6869 = vmatpush2.msra.mxu0 0.0
    %6870 = vmatprep.subr.mxu0 0.0
    %6871 = vmatpush2.msra.mxu0 0.0
    %6872 = vmatprep.subr.mxu0 0.0
    %6873 = vmatpush2.msra.mxu0 0.0
    %6874 = vmatprep.subr.mxu0 0.0
    %6875 = vmatpush2.msra.mxu0 0.0
    %6876 = vmatprep.subr.mxu0 0.0
    %6877 = vmatpush2.msra.mxu0 0.0
    %6878 = vmatprep.subr.mxu0 0.0
    %6879 = vmatpush2.msra.mxu0 0.0
    %6880 = vmatprep.subr.mxu0 0.0
    %6881 = vmatpush2.msra.mxu0 0.0
    %6882 = vmatprep.mubr.f32.mxu0 0.0
    %v6883 = vand.u32 %v6620, 4294901760
    %v6884 = vsub.f32 %v6620, %v6883
    %6885 = vmatmul.mubr.f32.gmra.mxu0 %v6884
    %v6886 = vpop.f32.mrf.mxu0
    %v6887 = vadd.f32 %v6801, %v6886
    %v6888 = vpop.f32.mrf.mxu0
    %6889 = vmatprep.mubr.f32.mxu0 0.0
    %v6890 = vand.u32 %v6622, 4294901760
    %v6891 = vsub.f32 %v6622, %v6890
    %6892 = vmatmul.mubr.f32.gmra.mxu0 %v6891
    %v6893 = vpop.f32.mrf.mxu0
    %v6894 = vadd.f32 %v6807, %v6893
    %v6895 = vpop.f32.mrf.mxu0
    %6896 = vdwg.mxu0
    %6897 = vmatprep.subr.mxu0 0.0
    %6898 = vmatpush1.msra.mxu0 0.0
    %6899 = vmatprep.subr.mxu0 0.0
    %6900 = vmatpush1.msra.mxu0 0.0
    %6901 = vmatprep.subr.mxu0 0.0
    %6902 = vmatpush1.msra.mxu0 0.0
    %6903 = vmatprep.subr.mxu0 0.0
    %6904 = vmatpush1.msra.mxu0 0.0
    %6905 = vmatprep.subr.mxu0 0.0
    %6906 = vmatpush1.msra.mxu0 0.0
    %6907 = vmatprep.subr.mxu0 0.0
    %6908 = vmatpush1.msra.mxu0 0.0
    %6909 = vmatprep.subr.mxu0 0.0
    %6910 = vmatpush1.msra.mxu0 0.0
    %6911 = vmatprep.subr.mxu0 0.0
    %6912 = vmatpush1.msra.mxu0 0.0
    %6913 = vmatprep.subr.mxu0 0.0
    %6914 = vmatpush1.msra.mxu0 0.0
    %6915 = vmatprep.subr.mxu0 0.0
    %6916 = vmatpush1.msra.mxu0 0.0
    %6917 = vmatprep.subr.mxu0 0.0
    %6918 = vmatpush1.msra.mxu0 0.0
    %6919 = vmatprep.subr.mxu0 0.0
    %6920 = vmatpush1.msra.mxu0 0.0
    %6921 = vmatprep.subr.mxu0 0.0
    %v6922 = vand.u32 %v6606, 4294901760
    %6923 = vmatpush1.msra.mxu0 %v6922
    %6924 = vmatprep.subr.mxu0 0.0
    %v6925 = vand.u32 %v6605, 4294901760
    %6926 = vmatpush1.msra.mxu0 %v6925
    %6927 = vmatprep.subr.mxu0 0.0
    %v6928 = vand.u32 %v6604, 4294901760
    %6929 = vmatpush1.msra.mxu0 %v6928
    %6930 = vmatprep.subr.mxu0 0.0
    %v6931 = vand.u32 %v6603, 4294901760
    %6932 = vmatpush1.msra.mxu0 %v6931
    %6933 = vmatprep.subr.mxu0 0.0
    %6934 = vmatpush2.msra.mxu0 0.0
    %6935 = vmatprep.subr.mxu0 0.0
    %6936 = vmatpush2.msra.mxu0 0.0
    %6937 = vmatprep.subr.mxu0 0.0
    %6938 = vmatpush2.msra.mxu0 0.0
    %6939 = vmatprep.subr.mxu0 0.0
    %6940 = vmatpush2.msra.mxu0 0.0
    %6941 = vmatprep.subr.mxu0 0.0
    %6942 = vmatpush2.msra.mxu0 0.0
    %6943 = vmatprep.subr.mxu0 0.0
    %6944 = vmatpush2.msra.mxu0 0.0
    %6945 = vmatprep.subr.mxu0 0.0
    %6946 = vmatpush2.msra.mxu0 0.0
    %6947 = vmatprep.subr.mxu0 0.0
    %6948 = vmatpush2.msra.mxu0 0.0
    %6949 = vmatprep.subr.mxu0 0.0
    %6950 = vmatpush2.msra.mxu0 0.0
    %6951 = vmatprep.subr.mxu0 0.0
    %6952 = vmatpush2.msra.mxu0 0.0
    %6953 = vmatprep.subr.mxu0 0.0
    %6954 = vmatpush2.msra.mxu0 0.0
    %6955 = vmatprep.subr.mxu0 0.0
    %6956 = vmatpush2.msra.mxu0 0.0
    %6957 = vmatprep.subr.mxu0 0.0
    %6958 = vmatpush2.msra.mxu0 0.0
    %6959 = vmatprep.subr.mxu0 0.0
    %6960 = vmatpush2.msra.mxu0 0.0
    %6961 = vmatprep.subr.mxu0 0.0
    %6962 = vmatpush2.msra.mxu0 0.0
    %6963 = vmatprep.subr.mxu0 0.0
    %6964 = vmatpush2.msra.mxu0 0.0
    %6965 = vmatprep.mubr.f32.mxu0 0.0
    %v6966 = vand.u32 %v6620, 4294901760
    %v6967 = vsub.f32 %v6620, %v6966
    %v6968 = vand.u32 %v6967, 4294901760
    %6969 = vmatmul.mubr.f32.gmra.mxu0 %v6968
    %v6970 = vpop.f32.mrf.mxu0
    %v6971 = vadd.f32 %v6887, %v6970
    %v6972 = vpop.f32.mrf.mxu0
    %6973 = vmatprep.mubr.f32.mxu0 0.0
    %v6974 = vand.u32 %v6622, 4294901760
    %v6975 = vsub.f32 %v6622, %v6974
    %v6976 = vand.u32 %v6975, 4294901760
    %6977 = vmatmul.mubr.f32.gmra.mxu0 %v6976
    %v6978 = vpop.f32.mrf.mxu0
    %v6979 = vadd.f32 %v6894, %v6978
    %v6980 = vpop.f32.mrf.mxu0
    %6981 = vdwg.mxu0
    %6982 = vmatprep.subr.mxu0 0.0
    %6983 = vmatpush1.msra.mxu0 0.0
    %6984 = vmatprep.subr.mxu0 0.0
    %6985 = vmatpush1.msra.mxu0 0.0
    %6986 = vmatprep.subr.mxu0 0.0
    %6987 = vmatpush1.msra.mxu0 0.0
    %6988 = vmatprep.subr.mxu0 0.0
    %6989 = vmatpush1.msra.mxu0 0.0
    %6990 = vmatprep.subr.mxu0 0.0
    %6991 = vmatpush1.msra.mxu0 0.0
    %6992 = vmatprep.subr.mxu0 0.0
    %6993 = vmatpush1.msra.mxu0 0.0
    %6994 = vmatprep.subr.mxu0 0.0
    %6995 = vmatpush1.msra.mxu0 0.0
    %6996 = vmatprep.subr.mxu0 0.0
    %6997 = vmatpush1.msra.mxu0 0.0
    %6998 = vmatprep.subr.mxu0 0.0
    %6999 = vmatpush1.msra.mxu0 0.0
    %7000 = vmatprep.subr.mxu0 0.0
    %7001 = vmatpush1.msra.mxu0 0.0
    %7002 = vmatprep.subr.mxu0 0.0
    %7003 = vmatpush1.msra.mxu0 0.0
    %7004 = vmatprep.subr.mxu0 0.0
    %7005 = vmatpush1.msra.mxu0 0.0
    %7006 = vmatprep.subr.mxu0 0.0
    %v7007 = vand.u32 %v6606, 4294901760
    %v7008 = vsub.f32 %v6606, %v7007
    %v7009 = vand.u32 %v7008, 4294901760
    %7010 = vmatpush1.msra.mxu0 %v7009
    %7011 = vmatprep.subr.mxu0 0.0
    %v7012 = vand.u32 %v6605, 4294901760
    %v7013 = vsub.f32 %v6605, %v7012
    %v7014 = vand.u32 %v7013, 4294901760
    %7015 = vmatpush1.msra.mxu0 %v7014
    %7016 = vmatprep.subr.mxu0 0.0
    %v7017 = vand.u32 %v6604, 4294901760
    %v7018 = vsub.f32 %v6604, %v7017
    %v7019 = vand.u32 %v7018, 4294901760
    %7020 = vmatpush1.msra.mxu0 %v7019
    %7021 = vmatprep.subr.mxu0 0.0
    %v7022 = vand.u32 %v6603, 4294901760
    %v7023 = vsub.f32 %v6603, %v7022
    %v7024 = vand.u32 %v7023, 4294901760
    %7025 = vmatpush1.msra.mxu0 %v7024
    %7026 = vmatprep.subr.mxu0 0.0
    %7027 = vmatpush2.msra.mxu0 0.0
    %7028 = vmatprep.subr.mxu0 0.0
    %7029 = vmatpush2.msra.mxu0 0.0
    %7030 = vmatprep.subr.mxu0 0.0
    %7031 = vmatpush2.msra.mxu0 0.0
    %7032 = vmatprep.subr.mxu0 0.0
    %7033 = vmatpush2.msra.mxu0 0.0
    %7034 = vmatprep.subr.mxu0 0.0
    %7035 = vmatpush2.msra.mxu0 0.0
    %7036 = vmatprep.subr.mxu0 0.0
    %7037 = vmatpush2.msra.mxu0 0.0
    %7038 = vmatprep.subr.mxu0 0.0
    %7039 = vmatpush2.msra.mxu0 0.0
    %7040 = vmatprep.subr.mxu0 0.0
    %7041 = vmatpush2.msra.mxu0 0.0
    %7042 = vmatprep.subr.mxu0 0.0
    %7043 = vmatpush2.msra.mxu0 0.0
    %7044 = vmatprep.subr.mxu0 0.0
    %7045 = vmatpush2.msra.mxu0 0.0
    %7046 = vmatprep.subr.mxu0 0.0
    %7047 = vmatpush2.msra.mxu0 0.0
    %7048 = vmatprep.subr.mxu0 0.0
    %7049 = vmatpush2.msra.mxu0 0.0
    %7050 = vmatprep.subr.mxu0 0.0
    %7051 = vmatpush2.msra.mxu0 0.0
    %7052 = vmatprep.subr.mxu0 0.0
    %7053 = vmatpush2.msra.mxu0 0.0
    %7054 = vmatprep.subr.mxu0 0.0
    %7055 = vmatpush2.msra.mxu0 0.0
    %7056 = vmatprep.subr.mxu0 0.0
    %7057 = vmatpush2.msra.mxu0 0.0
    %7058 = vmatprep.mubr.f32.mxu0 0.0
    %v7059 = vand.u32 %v6620, 4294901760
    %7060 = vmatmul.mubr.f32.gmra.mxu0 %v7059
    %v7061 = vpop.f32.mrf.mxu0
    %v7062 = vadd.f32 %v6971, %v7061
    %v7063 = vpop.f32.mrf.mxu0
    %7064 = vmatprep.mubr.f32.mxu0 0.0
    %v7065 = vand.u32 %v6622, 4294901760
    %7066 = vmatmul.mubr.f32.gmra.mxu0 %v7065
    %v7067 = vpop.f32.mrf.mxu0
    %v7068 = vadd.f32 %v6979, %v7067
    %v7069 = vpop.f32.mrf.mxu0
    %7070 = vdwg.mxu0
    %7071 = vmatprep.subr.mxu0 0.0
    %7072 = vmatpush1.msra.mxu0 0.0
    %7073 = vmatprep.subr.mxu0 0.0
    %7074 = vmatpush1.msra.mxu0 0.0
    %7075 = vmatprep.subr.mxu0 0.0
    %7076 = vmatpush1.msra.mxu0 0.0
    %7077 = vmatprep.subr.mxu0 0.0
    %7078 = vmatpush1.msra.mxu0 0.0
    %7079 = vmatprep.subr.mxu0 0.0
    %7080 = vmatpush1.msra.mxu0 0.0
    %7081 = vmatprep.subr.mxu0 0.0
    %7082 = vmatpush1.msra.mxu0 0.0
    %7083 = vmatprep.subr.mxu0 0.0
    %7084 = vmatpush1.msra.mxu0 0.0
    %7085 = vmatprep.subr.mxu0 0.0
    %7086 = vmatpush1.msra.mxu0 0.0
    %7087 = vmatprep.subr.mxu0 0.0
    %7088 = vmatpush1.msra.mxu0 0.0
    %7089 = vmatprep.subr.mxu0 0.0
    %7090 = vmatpush1.msra.mxu0 0.0
    %7091 = vmatprep.subr.mxu0 0.0
    %7092 = vmatpush1.msra.mxu0 0.0
    %7093 = vmatprep.subr.mxu0 0.0
    %7094 = vmatpush1.msra.mxu0 0.0
    %7095 = vmatprep.subr.mxu0 0.0
    %v7096 = vand.u32 %v6606, 4294901760
    %7097 = vmatpush1.msra.mxu0 %v7096
    %7098 = vmatprep.subr.mxu0 0.0
    %v7099 = vand.u32 %v6605, 4294901760
    %7100 = vmatpush1.msra.mxu0 %v7099
    %7101 = vmatprep.subr.mxu0 0.0
    %v7102 = vand.u32 %v6604, 4294901760
    %7103 = vmatpush1.msra.mxu0 %v7102
    %7104 = vmatprep.subr.mxu0 0.0
    %v7105 = vand.u32 %v6603, 4294901760
    %7106 = vmatpush1.msra.mxu0 %v7105
    %7107 = vmatprep.subr.mxu0 0.0
    %7108 = vmatpush2.msra.mxu0 0.0
    %7109 = vmatprep.subr.mxu0 0.0
    %7110 = vmatpush2.msra.mxu0 0.0
    %7111 = vmatprep.subr.mxu0 0.0
    %7112 = vmatpush2.msra.mxu0 0.0
    %7113 = vmatprep.subr.mxu0 0.0
    %7114 = vmatpush2.msra.mxu0 0.0
    %7115 = vmatprep.subr.mxu0 0.0
    %7116 = vmatpush2.msra.mxu0 0.0
    %7117 = vmatprep.subr.mxu0 0.0
    %7118 = vmatpush2.msra.mxu0 0.0
    %7119 = vmatprep.subr.mxu0 0.0
    %7120 = vmatpush2.msra.mxu0 0.0
    %7121 = vmatprep.subr.mxu0 0.0
    %7122 = vmatpush2.msra.mxu0 0.0
    %7123 = vmatprep.subr.mxu0 0.0
    %7124 = vmatpush2.msra.mxu0 0.0
    %7125 = vmatprep.subr.mxu0 0.0
    %7126 = vmatpush2.msra.mxu0 0.0
    %7127 = vmatprep.subr.mxu0 0.0
    %7128 = vmatpush2.msra.mxu0 0.0
    %7129 = vmatprep.subr.mxu0 0.0
    %7130 = vmatpush2.msra.mxu0 0.0
    %7131 = vmatprep.subr.mxu0 0.0
    %7132 = vmatpush2.msra.mxu0 0.0
    %7133 = vmatprep.subr.mxu0 0.0
    %7134 = vmatpush2.msra.mxu0 0.0
    %7135 = vmatprep.subr.mxu0 0.0
    %7136 = vmatpush2.msra.mxu0 0.0
    %7137 = vmatprep.subr.mxu0 0.0
    %7138 = vmatpush2.msra.mxu0 0.0
    %7139 = vmatprep.mubr.f32.mxu0 0.0
    %v7140 = vand.u32 %v6620, 4294901760
    %7141 = vmatmul.mubr.f32.gmra.mxu0 %v7140
    %v7142 = vpop.f32.mrf.mxu0
    %v7143 = vadd.f32 %v7062, %v7142
    %v7144 = vpop.f32.mrf.mxu0
    %7145 = vmatprep.mubr.f32.mxu0 0.0
    %v7146 = vand.u32 %v6622, 4294901760
    %7147 = vmatmul.mubr.f32.gmra.mxu0 %v7146
    %v7148 = vpop.f32.mrf.mxu0
    %v7149 = vadd.f32 %v7068, %v7148
    %v7150 = vpop.f32.mrf.mxu0
    %7151 = vdwg.mxu0
    %vm7152 = vcmask 23552
    %7153 = vst.msk [vmem:[%s7] sm:$0xff] %vm7152, %v7143
    %7154 = vst.msk [vmem:[%s7 + $0x8] sm:$0xff] %vm7152, %v7149
    // Predicated region
    $region38: #{tpu_custom_call.1} parent=1 // pred_check
      _
    $region39: #{tpu_custom_call.1} parent=1 // pred_check_branch
      %7156 = sbr.rel (0) target = $region41
    $region40: #{tpu_custom_call.1} parent=1 // pred_region
      _
    $region41: #{tpu_custom_call.1} parent=1 // pred_fallthru
      _
    // Predicated region
    $region42: #{tpu_custom_call.1} parent=1 // pred_check
      _
    $region43: #{tpu_custom_call.1} parent=1 // pred_check_branch
      %7158 = sbr.rel (0) target = $region45
    $region44: #{tpu_custom_call.1} parent=1 // pred_region
      _
    $region45: #{tpu_custom_call.1} parent=1 // pred_fallthru
      _
    %7159 = vsyncpa [#allocation3], 1
    %7160 = vsyncpa [#allocation5], 1

</llo_original>
